<compile_context>
chip_gen: v7x
topology: tpu7x:2x2x1
jax: 0.10.0
libtpu: 0.0.40
codegen_flags: <defaults>
</compile_context>

<pallas_src>
import functools

import numpy as np
import jax
import jax.numpy as jnp
from jax.experimental import pallas as pl
from jax.experimental.pallas import tpu as pltpu

# ----------------------- model configuration (small) -----------------------
C = 16                 # reference default is 1024; scaled down
MODEL_SCALE = 4        # res2net scale
NOUT = 8
SINC_STRIDE = 10
SINC_K = 251           # hard-coded in the reference __init__
CONTEXT = True
SUMMED = True
ENCODER_TYPE = "ECA"
LOG_SINC = True
NORM_SINC = "mean"
OUT_BN = False
ATTN_IN = 1536 * 3 if CONTEXT else 1536
ATTN_OUT = 1536 if ENCODER_TYPE == "ECA" else 1

_VMEM_LIMIT = 32 * 1024 * 1024   # explicit scoped-VMEM budget (safe on v5e/v6e/v7x)


def _round_up(x, m):
    return (x + m - 1) // m * m


# ----------------------------- Pallas kernels ------------------------------
def _mm_bias_kernel(a_ref, b_ref, bias_ref, o_ref, acc_ref, *, relu):
    """Tiled matmul with f32 VMEM accumulator and fused bias (+ReLU) epilogue."""
    @pl.when(pl.program_id(2) == 0)
    def _():
        acc_ref[...] = jnp.zeros_like(acc_ref)

    acc_ref[...] += jnp.dot(a_ref[...], b_ref[...],
                            preferred_element_type=jnp.float32)

    @pl.when(pl.program_id(2) == pl.num_programs(2) - 1)
    def _():
        y = acc_ref[...] + bias_ref[...]
        if relu:
            y = jnp.maximum(y, 0.0)
        o_ref[...] = y.astype(o_ref.dtype)


def pallas_matmul_bias(a, b, bias, *, relu=False, in_dtype=jnp.bfloat16,
                       tm_max=128, tn_max=256, tk_max=512):
    """a: (M, K), b: (K, N), bias: (N,) -> f32 (M, N).

    Tiled/pipelined MXU matmul. Operands cast to `in_dtype` (default bf16),
    accumulation and epilogue in f32. M/N/K are zero-padded to tile multiples
    so all blocks are (sublane, lane)-aligned and stores are lane-dense.
    """
    M, K = a.shape
    K2, N = b.shape
    assert K2 == K
    tm = min(tm_max, _round_up(M, 16))     # 16: safe sublane tile for bf16 + f32
    tn = min(tn_max, _round_up(N, 128))
    tk = min(tk_max, _round_up(K, 128))
    Mp, Np, Kp = _round_up(M, tm), _round_up(N, tn), _round_up(K, tk)

    a_p = jnp.pad(a.astype(in_dtype), ((0, Mp - M), (0, Kp - K)))
    b_p = jnp.pad(b.astype(in_dtype), ((0, Kp - K), (0, Np - N)))
    bias_p = jnp.pad(bias.reshape(1, N).astype(jnp.float32), ((0, 0), (0, Np - N)))

    out = pl.pallas_call(
        functools.partial(_mm_bias_kernel, relu=relu),
        grid=(Mp // tm, Np // tn, Kp // tk),
        in_specs=[
            pl.BlockSpec((tm, tk), lambda i, j, k: (i, k)),
            pl.BlockSpec((tk, tn), lambda i, j, k: (k, j)),
            pl.BlockSpec((1, tn), lambda i, j, k: (0, j)),
        ],
        out_specs=pl.BlockSpec((tm, tn), lambda i, j, k: (i, j)),
        out_shape=jax.ShapeDtypeStruct((Mp, Np), jnp.float32),
        scratch_shapes=[pltpu.VMEM((tm, tn), jnp.float32)],
        compiler_params=pltpu.CompilerParams(
            dimension_semantics=("parallel", "parallel", "arbitrary"),
            vmem_limit_bytes=_VMEM_LIMIT,
        ),
    )(a_p, b_p, bias_p)
    return out[:M, :N]


def _attn_pool_kernel(x_ref, lg_ref, o_ref, m_ref, l_ref, s1_ref, s2_ref, *, c):
    """Online-softmax attentive statistics pooling, tiled over time."""
    t = pl.program_id(1)

    @pl.when(t == 0)
    def _():
        m_ref[...] = jnp.full_like(m_ref, -jnp.inf)
        l_ref[...] = jnp.zeros_like(l_ref)
        s1_ref[...] = jnp.zeros_like(s1_ref)
        s2_ref[...] = jnp.zeros_like(s2_ref)

    x = x_ref[0]       # (tT, C)
    lg = lg_ref[0]     # (tT, C)
    m_prev = m_ref[...]                                          # (1, C)
    m_new = jnp.maximum(m_prev, jnp.max(lg, axis=0, keepdims=True))
    alpha = jnp.exp(m_prev - m_new)
    p = jnp.exp(lg - m_new)                                      # (tT, C)
    l_ref[...] = alpha * l_ref[...] + jnp.sum(p, axis=0, keepdims=True)
    s1_ref[...] = alpha * s1_ref[...] + jnp.sum(p * x, axis=0, keepdims=True)
    s2_ref[...] = alpha * s2_ref[...] + jnp.sum(p * x * x, axis=0, keepdims=True)
    m_ref[...] = m_new

    @pl.when(t == pl.num_programs(1) - 1)
    def _():
        inv_l = 1.0 / l_ref[...]
        mu = s1_ref[...] * inv_l
        sg = jnp.sqrt(jnp.clip(s2_ref[...] * inv_l - mu * mu, 1e-4, 1e4))
        o_ref[0, :, 0:c] = mu                                    # lane-aligned slices
        o_ref[0, :, c:2 * c] = sg


def pallas_attn_stat_pool(x_btc, logits_btc):
    """Fused softmax(T) + weighted mean/std. x, logits: (B, T, C) -> (B, 2*C)."""
    B, T, Cc = x_btc.shape
    tT = min(128, _round_up(T, 8))
    Tp = _round_up(T, tT)
    x_p = jnp.pad(x_btc.astype(jnp.float32), ((0, 0), (0, Tp - T), (0, 0)))
    lg_p = jnp.pad(logits_btc.astype(jnp.float32), ((0, 0), (0, Tp - T), (0, 0)),
                   constant_values=-1e30)   # padded steps get ~zero softmax weight

    out = pl.pallas_call(
        functools.partial(_attn_pool_kernel, c=Cc),
        grid=(B, Tp // tT),
        in_specs=[
            pl.BlockSpec((1, tT, Cc), lambda b, t: (b, t, 0)),
            pl.BlockSpec((1, tT, Cc), lambda b, t: (b, t, 0)),
        ],
        out_specs=pl.BlockSpec((1, 1, 2 * Cc), lambda b, t: (b, 0, 0)),
        out_shape=jax.ShapeDtypeStruct((B, 1, 2 * Cc), jnp.float32),
        scratch_shapes=[
            pltpu.VMEM((1, Cc), jnp.float32),   # running max
            pltpu.VMEM((1, Cc), jnp.float32),   # running denominator
            pltpu.VMEM((1, Cc), jnp.float32),   # running sum w*x
            pltpu.VMEM((1, Cc), jnp.float32),   # running sum w*x^2
        ],
        compiler_params=pltpu.CompilerParams(
            dimension_semantics=("parallel", "arbitrary"),
            vmem_limit_bytes=_VMEM_LIMIT,
        ),
    )(x_p, lg_p)
    return out.reshape(B, 2 * Cc)   # == torch.cat((mu, sg), 1)


# ------------------------- conv / norm glue (channel-last) -------------------------
def conv1x1(x_btc, w, b, *, relu=False):
    """1x1 Conv1d on channel-last input. w: (Cout, Cin, 1) or (Cout, Cin)."""
    B, T, Cin = x_btc.shape
    Cout = w.shape[0]
    wmat = w.reshape(Cout, Cin).T                                  # (Cin, Cout)
    out = pallas_matmul_bias(x_btc.reshape(B * T, Cin), wmat, b, relu=relu)
    return out.reshape(B, T, Cout)


def conv1d_k(x_btc, w, b, *, dilation=1, padding=0, relu=False):
    """K-tap dilated Conv1d (stride 1) on channel-last input, via K shifted slices."""
    B, T, Cin = x_btc.shape
    Cout, _, K = w.shape
    xp = jnp.pad(x_btc, ((0, 0), (padding, padding), (0, 0)))
    T_out = T + 2 * padding - dilation * (K - 1)
    cols = [xp[:, k * dilation:k * dilation + T_out, :] for k in range(K)]
    patches = jnp.concatenate(cols, axis=-1)                       # (B, T_out, K*Cin)
    wmat = jnp.transpose(w, (2, 1, 0)).reshape(K * Cin, Cout)      # rows: k*Cin + ci
    out = pallas_matmul_bias(patches.reshape(B * T_out, K * Cin), wmat, b, relu=relu)
    return out.reshape(B, T_out, Cout)


def sinc_conv(x_bt, filt, *, stride):
    """Strided sinc filterbank conv, x: (B, T), filt: (Cf, 1, K) -> (B, T_out, Cf).

    Uses a stride-phase reshape so patches are built from contiguous slices
    (no gather) before the tiled Pallas matmul; operands stay f32 for the
    log-sinc front-end precision.
    """
    # TODO(synk): a fully in-kernel sliding-window conv would also avoid
    #             materializing the phase-decomposed patches in HBM.
    B, T = x_bt.shape
    Cf, _, K = filt.shape
    J = -(-K // stride)                     # ceil(K / stride)
    Kp = J * stride
    T_out = (T - K) // stride + 1
    Tc = (T // stride) * stride
    xr = x_bt[:, :Tc].reshape(B, Tc // stride, stride)
    need = T_out + J - 1
    if xr.shape[1] < need:
        xr = jnp.pad(xr, ((0, 0), (0, need - xr.shape[1]), (0, 0)))
    cols = [xr[:, j:j + T_out, :] for j in range(J)]
    patches = jnp.concatenate(cols, axis=-1).reshape(B * T_out, Kp)
    w_p = jnp.pad(filt.reshape(Cf, K), ((0, 0), (0, Kp - K))).T    # (Kp, Cf)
    out = pallas_matmul_bias(patches, w_p, jnp.zeros((Cf,), jnp.float32),
                             relu=False, in_dtype=jnp.float32)
    return out.reshape(B, T_out, Cf)


def batch_norm_cl(x_btc, gamma, beta, eps=1e-5):
    # training-mode batch statistics (biased variance), channel-last
    mean = jnp.mean(x_btc, axis=(0, 1), keepdims=True)
    var = jnp.mean((x_btc - mean) ** 2, axis=(0, 1), keepdims=True)
    return (x_btc - mean) / jnp.sqrt(var + eps) * gamma[None, None, :] + beta[None, None, :]


def batch_norm_2d(x_bc, gamma, beta, eps=1e-5):
    mean = jnp.mean(x_bc, axis=0, keepdims=True)
    var = jnp.mean((x_bc - mean) ** 2, axis=0, keepdims=True)
    return (x_bc - mean) / jnp.sqrt(var + eps) * gamma[None, :] + beta[None, :]


def max_pool_time(x_btc, k):
    B, T, Cc = x_btc.shape
    To = T // k
    return jnp.max(x_btc[:, :To * k, :].reshape(B, To, k, Cc), axis=2)


def make_sinc_filters(n_filters, kernel_size, sample_rate=16000.0):
    """Deterministic mel-spaced bandpass sinc filterbank (ParamSincFB stand-in)."""
    def to_mel(hz):
        return 2595.0 * np.log10(1.0 + hz / 700.0)

    def to_hz(mel):
        return 700.0 * (10.0 ** (mel / 2595.0) - 1.0)

    low_hz, high_hz = 30.0, sample_rate / 2.0 - 100.0
    mels = np.linspace(to_mel(low_hz), to_mel(high_hz), n_filters + 1)
    hz = to_hz(mels)
    f_lo = hz[:-1] / sample_rate
    f_hi = hz[1:] / sample_rate
    t = np.arange(kernel_size) - (kernel_size - 1) / 2.0
    window = np.hamming(kernel_size)
    filts = []
    for lo, hi in zip(f_lo, f_hi):
        band = 2.0 * hi * np.sinc(2.0 * hi * t) - 2.0 * lo * np.sinc(2.0 * lo * t)
        filts.append(band * window)
    return np.stack(filts).astype(np.float32)[:, None, :]   # (n_filters, 1, K)


# ----------------------------- parameter setup ------------------------------
def init_params(key):
    keys = iter(jax.random.split(key, 512))

    def nrm(shape, scale=0.05):
        return scale * jax.random.normal(next(keys), shape, dtype=jnp.float32)

    ones = lambda s: jnp.ones(s, jnp.float32)
    zeros = lambda s: jnp.zeros(s, jnp.float32)

    def block_params(inplanes, planes, scale):
        width = planes // scale
        return {
            "conv1_w": nrm((width * scale, inplanes, 1)), "conv1_b": zeros((width * scale,)),
            "bn1_g": ones((width * scale,)), "bn1_b": zeros((width * scale,)),
            "convs_w": [nrm((width, width, 3)) for _ in range(scale - 1)],
            "convs_b": [zeros((width,)) for _ in range(scale - 1)],
            "bns_g": [ones((width,)) for _ in range(scale - 1)],
            "bns_b": [zeros((width,)) for _ in range(scale - 1)],
            "conv3_w": nrm((planes, width * scale, 1)), "conv3_b": zeros((planes,)),
            "bn3_g": ones((planes,)), "bn3_b": zeros((planes,)),
            "afms_alpha": ones((planes, 1)),
            "afms_fc_w": nrm((planes, planes)), "afms_fc_b": zeros((planes,)),
            "residual_w": (nrm((planes, inplanes, 1)) if inplanes != planes else None),
        }

    p = {
        "inorm_g": ones((1,)), "inorm_b": zeros((1,)),
        "sinc_w": jnp.asarray(make_sinc_filters(C // 4, SINC_K)),
        "layer1": block_params(C // 4, C, MODEL_SCALE),
        "layer2": block_params(C, C, MODEL_SCALE),
        "layer3": block_params(C, C, MODEL_SCALE),
        "layer4_w": nrm((1536, 3 * C, 1)), "layer4_b": zeros((1536,)),
        "attn_w1": nrm((128, ATTN_IN, 1)), "attn_b1": zeros((128,)),
        "attn_bn_g": ones((128,)), "attn_bn_b": zeros((128,)),
        "attn_w2": nrm((ATTN_OUT, 128, 1)), "attn_b2": zeros((ATTN_OUT,)),
        "bn5_g": ones((3072,)), "bn5_b": zeros((3072,)),
        "fc6_w": nrm((3072, NOUT)), "fc6_b": zeros((NOUT,)),
        "bn6_g": ones((NOUT,)), "bn6_b": zeros((NOUT,)),
    }
    return p


# ------------------------------- forward pass -------------------------------
def bottle2neck(bp, x, kernel_size, dilation, scale, pool):
    """Res2Net Bottle2neck in channel-last (B, T, C) layout."""
    planes = bp["conv3_w"].shape[0]
    width = bp["conv1_w"].shape[0] // scale
    if bp["residual_w"] is not None:
        residual = conv1x1(x, bp["residual_w"], jnp.zeros((planes,), jnp.float32))
    else:
        residual = x

    out = conv1x1(x, bp["conv1_w"], bp["conv1_b"], relu=True)      # fused ReLU epilogue
    out = batch_norm_cl(out, bp["bn1_g"], bp["bn1_b"])

    spx = [out[..., i * width:(i + 1) * width] for i in range(scale)]
    pad = (kernel_size // 2) * dilation
    pieces = []
    sp = None
    for i in range(scale - 1):
        sp = spx[i] if i == 0 else sp + spx[i]
        sp = conv1d_k(sp, bp["convs_w"][i], bp["convs_b"][i],
                      dilation=dilation, padding=pad, relu=True)   # fused ReLU
        sp = batch_norm_cl(sp, bp["bns_g"][i], bp["bns_b"][i])
        pieces.append(sp)
    pieces.append(spx[scale - 1])
    out = jnp.concatenate(pieces, axis=-1)

    out = conv1x1(out, bp["conv3_w"], bp["conv3_b"], relu=True)    # fused ReLU
    out = batch_norm_cl(out, bp["bn3_g"], bp["bn3_b"])
    out = out + residual
    if pool:
        out = max_pool_time(out, pool)

    # AFMS (tiny FC -> plain XLA dot; per-channel alpha)
    y = jnp.mean(out, axis=1)                                      # (B, planes)
    y = jax.nn.sigmoid(jnp.dot(y, bp["afms_fc_w"]) + bp["afms_fc_b"])
    out = (out + bp["afms_alpha"].reshape(1, 1, planes)) * y[:, None, :]
    return out


def rawnet3_forward(params, x):
    B, _ = x.shape
    # ---- preprocess: PreEmphasis (reflect-pad, coef 0.97) + InstanceNorm1d(1) ----
    xp = jnp.concatenate([x[:, 1:2], x], axis=1)
    y = xp[:, 1:] - 0.97 * xp[:, :-1]                              # (B, samp)
    mean = jnp.mean(y, axis=1, keepdims=True)
    var = jnp.mean((y - mean) ** 2, axis=1, keepdims=True)
    y = (y - mean) / jnp.sqrt(var + 1e-4) * params["inorm_g"][0] + params["inorm_b"][0]

    # ---- sinc filterbank encoder (strided conv via Pallas matmul, f32) ----
    x = sinc_conv(y, params["sinc_w"], stride=SINC_STRIDE)         # (B, T, C//4)
    x = jnp.abs(x)
    if LOG_SINC:
        x = jnp.log(x + 1e-6)
    if NORM_SINC == "mean":
        x = x - jnp.mean(x, axis=1, keepdims=True)                 # mean over time

    # ---- res2net backbone (channel-last) ----
    x1 = bottle2neck(params["layer1"], x, 3, 2, MODEL_SCALE, 5)
    x2 = bottle2neck(params["layer2"], x1, 3, 3, MODEL_SCALE, 3)
    if SUMMED:
        x3 = bottle2neck(params["layer3"], max_pool_time(x1, 3) + x2, 3, 4, MODEL_SCALE, None)
    else:
        x3 = bottle2neck(params["layer3"], x2, 3, 4, MODEL_SCALE, None)

    xcat = jnp.concatenate([max_pool_time(x1, 3), x2, x3], axis=-1)   # (B, T, 3C)
    x = conv1x1(xcat, params["layer4_w"], params["layer4_b"], relu=True)  # (B, T, 1536)
    Bb, t, D = x.shape

    # ---- attention logits ----
    if CONTEXT:
        # Decompose the 1x1 conv over cat([x, mu, sd], channel) into an x-matmul
        # plus a per-batch, time-constant bias: no global_x concat / repeat.
        mu_t = jnp.mean(x, axis=1)                                       # (B, 1536)
        var_t = jnp.sum((x - mu_t[:, None, :]) ** 2, axis=1) / (t - 1)   # unbiased (torch.var)
        sd_t = jnp.sqrt(jnp.clip(var_t, 1e-4, 1e4))
        w1 = params["attn_w1"].reshape(128, ATTN_IN)
        w1_x, w1_mu, w1_sd = w1[:, :D], w1[:, D:2 * D], w1[:, 2 * D:]
        ctx_bias = (jnp.dot(mu_t, w1_mu.T) + jnp.dot(sd_t, w1_sd.T)
                    + params["attn_b1"][None, :])                        # (B, 128), tiny
        a = pallas_matmul_bias(x.reshape(Bb * t, D), w1_x.T,
                               jnp.zeros((128,), jnp.float32))
        a = a.reshape(Bb, t, 128) + ctx_bias[:, None, :]
    else:
        a = conv1x1(x, params["attn_w1"], params["attn_b1"])
    a = jax.nn.relu(a)
    a = batch_norm_cl(a, params["attn_bn_g"], params["attn_bn_b"])
    # TODO(synk): the 128->1536 logits conv could be fused into the pooling kernel
    #             to avoid one (B, T, 1536) HBM round trip.
    logits = conv1x1(a, params["attn_w2"], params["attn_b2"])            # (B, t, 1536)

    # ---- attentive statistics pooling (tiled online-softmax Pallas kernel) ----
    pooled = pallas_attn_stat_pool(x, logits)                            # (B, 3072)

    out = batch_norm_2d(pooled, params["bn5_g"], params["bn5_b"])
    out = jnp.dot(out, params["fc6_w"]) + params["fc6_b"]                # tiny -> XLA dot
    if OUT_BN:
        out = batch_norm_2d(out, params["bn6_g"], params["bn6_b"])
    return out


# ---------------------------------- main ------------------------------------
if __name__ == "__main__":
    key = jax.random.PRNGKey(0)
    pkey, xkey = jax.random.split(key)
    params = init_params(pkey)
    x = jax.random.normal(xkey, (2, 1600), dtype=jnp.float32)     # (bs, samp)

    fwd = jax.jit(rawnet3_forward)
    out = fwd(params, x)
    out = jax.block_until_ready(out)

    assert out.shape == (2, NOUT), out.shape
    assert bool(jnp.all(jnp.isfinite(out)))
    print("KERNEL_OK")
</pallas_src>

<mosaic_0001>
module attributes {stable_mosaic.version = 11 : i64} {
  func.func @_mm_bias_kernel(%arg0: i32, %arg1: i32, %arg2: i32, %arg3: memref<128x384xf32, #tpu.memory_space<vmem>>, %arg4: memref<384x128xf32, #tpu.memory_space<vmem>>, %arg5: memref<1x128xf32, #tpu.memory_space<vmem>>, %arg6: memref<128x128xf32, #tpu.memory_space<vmem>>, %arg7: memref<128x128xf32, #tpu.memory_space<vmem>>) attributes {dimension_semantics = [#tpu.dimension_semantics<parallel>, #tpu.dimension_semantics<parallel>, #tpu.dimension_semantics<arbitrary>], iteration_bounds = array<i64: 3, 1, 1>, scalar_prefetch = 0 : i64, scratch_operands = 1 : i64, tpu.core_type = #tpu.core_type<tc>, window_params = [{transform_indices = @transform_0, window_bounds = array<i64: 128, 384>}, {transform_indices = @transform_1, window_bounds = array<i64: 384, 128>}, {transform_indices = @transform_2, window_bounds = array<i64: 1, 128>}, {transform_indices = @transform_3, window_bounds = array<i64: 128, 128>}]} {
    %c0_i32 = arith.constant 0 : i32
    %0 = arith.cmpi eq, %arg2, %c0_i32 : i32
    %1 = arith.extui %0 : i1 to i32
    %c0_i32_0 = arith.constant 0 : i32
    %2 = arith.cmpi ne, %1, %c0_i32_0 : i32
    scf.if %2 {
      %cst_10 = arith.constant 0.000000e+00 : f32
      %12 = vector.broadcast %cst_10 : f32 to vector<128x128xf32>
      %c0_11 = arith.constant 0 : index
      %c0_12 = arith.constant 0 : index
      %13 = vector.load %arg7[%c0_11, %c0_12] : memref<128x128xf32, #tpu.memory_space<vmem>>, vector<128x128xf32>
      tpu.vector_store %arg7[%c0_11, %c0_12], %12 {strides = array<i32>} : memref<128x128xf32, #tpu.memory_space<vmem>>, vector<128x128xf32>,
    } else {
    }
    %c0 = arith.constant 0 : index
    %c0_1 = arith.constant 0 : index
    %3 = vector.load %arg7[%c0, %c0_1] : memref<128x128xf32, #tpu.memory_space<vmem>>, vector<128x128xf32>
    %c0_2 = arith.constant 0 : index
    %c0_3 = arith.constant 0 : index
    %4 = vector.load %arg3[%c0_2, %c0_3] : memref<128x384xf32, #tpu.memory_space<vmem>>, vector<128x384xf32>
    %c0_4 = arith.constant 0 : index
    %c0_5 = arith.constant 0 : index
    %5 = vector.load %arg4[%c0_4, %c0_5] : memref<384x128xf32, #tpu.memory_space<vmem>>, vector<384x128xf32>
    %cst = arith.constant dense<0.000000e+00> : vector<128x128xf32>
    %6 = tpu.matmul %4, %5, %cst {dimension_numbers = #tpu.dot_dimension_numbers<[1], [0], [0], [1], [0, 0, 1, 1], [], []>} : vector<128x384xf32>, vector<384x128xf32>, vector<128x128xf32> -> vector<128x128xf32>
    %7 = arith.addf %3, %6 : vector<128x128xf32>
    %c0_6 = arith.constant 0 : index
    %c0_7 = arith.constant 0 : index
    %8 = vector.load %arg7[%c0_6, %c0_7] : memref<128x128xf32, #tpu.memory_space<vmem>>, vector<128x128xf32>
    tpu.vector_store %arg7[%c0_6, %c0_7], %7 {strides = array<i32>} : memref<128x128xf32, #tpu.memory_space<vmem>>, vector<128x128xf32>,
    %c0_i32_8 = arith.constant 0 : i32
    %9 = arith.cmpi eq, %arg2, %c0_i32_8 : i32
    %10 = arith.extui %9 : i1 to i32
    %c0_i32_9 = arith.constant 0 : i32
    %11 = arith.cmpi ne, %10, %c0_i32_9 : i32
    scf.if %11 {
      %c0_10 = arith.constant 0 : index
      %c0_11 = arith.constant 0 : index
      %12 = vector.load %arg7[%c0_10, %c0_11] : memref<128x128xf32, #tpu.memory_space<vmem>>, vector<128x128xf32>
      %c0_12 = arith.constant 0 : index
      %c0_13 = arith.constant 0 : index
      %13 = vector.load %arg5[%c0_12, %c0_13] : memref<1x128xf32, #tpu.memory_space<vmem>>, vector<1x128xf32>
      %14 = vector.broadcast %13 : vector<1x128xf32> to vector<128x128xf32>
      %15 = arith.addf %12, %14 : vector<128x128xf32>
      %c0_14 = arith.constant 0 : index
      %c0_15 = arith.constant 0 : index
      %16 = vector.load %arg6[%c0_14, %c0_15] : memref<128x128xf32, #tpu.memory_space<vmem>>, vector<128x128xf32>
      tpu.vector_store %arg6[%c0_14, %c0_15], %15 {strides = array<i32>} : memref<128x128xf32, #tpu.memory_space<vmem>>, vector<128x128xf32>,
    } else {
    }
    return
  }
  func.func @transform_0(%arg0: i32, %arg1: i32, %arg2: i32) -> (i32, i32) {
    %c0_i32 = arith.constant 0 : i32
    return %arg0, %arg2 : i32, i32
  }
  func.func @transform_1(%arg0: i32, %arg1: i32, %arg2: i32) -> (i32, i32) {
    %c0_i32 = arith.constant 0 : i32
    return %arg2, %arg1 : i32, i32
  }
  func.func @transform_2(%arg0: i32, %arg1: i32, %arg2: i32) -> (i32, i32) {
    %c0_i32 = arith.constant 0 : i32
    %c0_i32_0 = arith.constant 0 : i32
    return %c0_i32, %arg1 : i32, i32
  }
  func.func @transform_3(%arg0: i32, %arg1: i32, %arg2: i32) -> (i32, i32) {
    %c0_i32 = arith.constant 0 : i32
    return %arg0, %arg1 : i32, i32
  }
}

module attributes {stable_mosaic.version = 11 : i64} {
  func.func @_mm_bias_kernel(%arg0: i32, %arg1: i32, %arg2: i32, %arg3: memref<128x128xbf16, #tpu.memory_space<vmem>>, %arg4: memref<128x128xbf16, #tpu.memory_space<vmem>>, %arg5: memref<1x128xf32, #tpu.memory_space<vmem>>, %arg6: memref<128x128xf32, #tpu.memory_space<vmem>>, %arg7: memref<128x128xf32, #tpu.memory_space<vmem>>) attributes {dimension_semantics = [#tpu.dimension_semantics<parallel>, #tpu.dimension_semantics<parallel>, #tpu.dimension_semantics<arbitrary>], iteration_bounds = array<i64: 3, 1, 1>, scalar_prefetch = 0 : i64, scratch_operands = 1 : i64, tpu.core_type = #tpu.core_type<tc>, window_params = [{transform_indices = @transform_0, window_bounds = array<i64: 128, 128>}, {transform_indices = @transform_1, window_bounds = array<i64: 128, 128>}, {transform_indices = @transform_2, window_bounds = array<i64: 1, 128>}, {transform_indices = @transform_3, window_bounds = array<i64: 128, 128>}]} {
    %c0_i32 = arith.constant 0 : i32
    %0 = arith.cmpi eq, %arg2, %c0_i32 : i32
    %1 = arith.extui %0 : i1 to i32
    %c0_i32_0 = arith.constant 0 : i32
    %2 = arith.cmpi ne, %1, %c0_i32_0 : i32
    scf.if %2 {
      %cst_10 = arith.constant 0.000000e+00 : f32
      %12 = vector.broadcast %cst_10 : f32 to vector<128x128xf32>
      %c0_11 = arith.constant 0 : index
      %c0_12 = arith.constant 0 : index
      %13 = vector.load %arg7[%c0_11, %c0_12] : memref<128x128xf32, #tpu.memory_space<vmem>>, vector<128x128xf32>
      tpu.vector_store %arg7[%c0_11, %c0_12], %12 {strides = array<i32>} : memref<128x128xf32, #tpu.memory_space<vmem>>, vector<128x128xf32>,
    } else {
    }
    %c0 = arith.constant 0 : index
    %c0_1 = arith.constant 0 : index
    %3 = vector.load %arg7[%c0, %c0_1] : memref<128x128xf32, #tpu.memory_space<vmem>>, vector<128x128xf32>
    %c0_2 = arith.constant 0 : index
    %c0_3 = arith.constant 0 : index
    %4 = vector.load %arg3[%c0_2, %c0_3] : memref<128x128xbf16, #tpu.memory_space<vmem>>, vector<128x128xbf16>
    %c0_4 = arith.constant 0 : index
    %c0_5 = arith.constant 0 : index
    %5 = vector.load %arg4[%c0_4, %c0_5] : memref<128x128xbf16, #tpu.memory_space<vmem>>, vector<128x128xbf16>
    %cst = arith.constant dense<0.000000e+00> : vector<128x128xf32>
    %6 = tpu.matmul %4, %5, %cst {dimension_numbers = #tpu.dot_dimension_numbers<[1], [0], [0], [1], [0, 0, 1, 1], [], []>} : vector<128x128xbf16>, vector<128x128xbf16>, vector<128x128xf32> -> vector<128x128xf32>
    %7 = arith.addf %3, %6 : vector<128x128xf32>
    %c0_6 = arith.constant 0 : index
    %c0_7 = arith.constant 0 : index
    %8 = vector.load %arg7[%c0_6, %c0_7] : memref<128x128xf32, #tpu.memory_space<vmem>>, vector<128x128xf32>
    tpu.vector_store %arg7[%c0_6, %c0_7], %7 {strides = array<i32>} : memref<128x128xf32, #tpu.memory_space<vmem>>, vector<128x128xf32>,
    %c0_i32_8 = arith.constant 0 : i32
    %9 = arith.cmpi eq, %arg2, %c0_i32_8 : i32
    %10 = arith.extui %9 : i1 to i32
    %c0_i32_9 = arith.constant 0 : i32
    %11 = arith.cmpi ne, %10, %c0_i32_9 : i32
    scf.if %11 {
      %c0_10 = arith.constant 0 : index
      %c0_11 = arith.constant 0 : index
      %12 = vector.load %arg7[%c0_10, %c0_11] : memref<128x128xf32, #tpu.memory_space<vmem>>, vector<128x128xf32>
      %c0_12 = arith.constant 0 : index
      %c0_13 = arith.constant 0 : index
      %13 = vector.load %arg5[%c0_12, %c0_13] : memref<1x128xf32, #tpu.memory_space<vmem>>, vector<1x128xf32>
      %14 = vector.broadcast %13 : vector<1x128xf32> to vector<128x128xf32>
      %15 = arith.addf %12, %14 : vector<128x128xf32>
      %cst_14 = arith.constant 0.000000e+00 : f32
      %16 = vector.broadcast %cst_14 : f32 to vector<128x128xf32>
      %17 = arith.maximumf %15, %16 : vector<128x128xf32>
      %c0_15 = arith.constant 0 : index
      %c0_16 = arith.constant 0 : index
      %18 = vector.load %arg6[%c0_15, %c0_16] : memref<128x128xf32, #tpu.memory_space<vmem>>, vector<128x128xf32>
      tpu.vector_store %arg6[%c0_15, %c0_16], %17 {strides = array<i32>} : memref<128x128xf32, #tpu.memory_space<vmem>>, vector<128x128xf32>,
    } else {
    }
    return
  }
  func.func @transform_0(%arg0: i32, %arg1: i32, %arg2: i32) -> (i32, i32) {
    %c0_i32 = arith.constant 0 : i32
    return %arg0, %arg2 : i32, i32
  }
  func.func @transform_1(%arg0: i32, %arg1: i32, %arg2: i32) -> (i32, i32) {
    %c0_i32 = arith.constant 0 : i32
    return %arg2, %arg1 : i32, i32
  }
  func.func @transform_2(%arg0: i32, %arg1: i32, %arg2: i32) -> (i32, i32) {
    %c0_i32 = arith.constant 0 : i32
    %c0_i32_0 = arith.constant 0 : i32
    return %c0_i32, %arg1 : i32, i32
  }
  func.func @transform_3(%arg0: i32, %arg1: i32, %arg2: i32) -> (i32, i32) {
    %c0_i32 = arith.constant 0 : i32
    return %arg0, %arg1 : i32, i32
  }
}

module attributes {stable_mosaic.version = 11 : i64} {
  func.func @_mm_bias_kernel(%arg0: i32, %arg1: i32, %arg2: i32, %arg3: memref<128x128xbf16, #tpu.memory_space<vmem>>, %arg4: memref<128x128xbf16, #tpu.memory_space<vmem>>, %arg5: memref<1x128xf32, #tpu.memory_space<vmem>>, %arg6: memref<128x128xf32, #tpu.memory_space<vmem>>, %arg7: memref<128x128xf32, #tpu.memory_space<vmem>>) attributes {dimension_semantics = [#tpu.dimension_semantics<parallel>, #tpu.dimension_semantics<parallel>, #tpu.dimension_semantics<arbitrary>], iteration_bounds = array<i64: 3, 1, 1>, scalar_prefetch = 0 : i64, scratch_operands = 1 : i64, tpu.core_type = #tpu.core_type<tc>, window_params = [{transform_indices = @transform_0, window_bounds = array<i64: 128, 128>}, {transform_indices = @transform_1, window_bounds = array<i64: 128, 128>}, {transform_indices = @transform_2, window_bounds = array<i64: 1, 128>}, {transform_indices = @transform_3, window_bounds = array<i64: 128, 128>}]} {
    %c0_i32 = arith.constant 0 : i32
    %0 = arith.cmpi eq, %arg2, %c0_i32 : i32
    %1 = arith.extui %0 : i1 to i32
    %c0_i32_0 = arith.constant 0 : i32
    %2 = arith.cmpi ne, %1, %c0_i32_0 : i32
    scf.if %2 {
      %cst_10 = arith.constant 0.000000e+00 : f32
      %12 = vector.broadcast %cst_10 : f32 to vector<128x128xf32>
      %c0_11 = arith.constant 0 : index
      %c0_12 = arith.constant 0 : index
      %13 = vector.load %arg7[%c0_11, %c0_12] : memref<128x128xf32, #tpu.memory_space<vmem>>, vector<128x128xf32>
      tpu.vector_store %arg7[%c0_11, %c0_12], %12 {strides = array<i32>} : memref<128x128xf32, #tpu.memory_space<vmem>>, vector<128x128xf32>,
    } else {
    }
    %c0 = arith.constant 0 : index
    %c0_1 = arith.constant 0 : index
    %3 = vector.load %arg7[%c0, %c0_1] : memref<128x128xf32, #tpu.memory_space<vmem>>, vector<128x128xf32>
    %c0_2 = arith.constant 0 : index
    %c0_3 = arith.constant 0 : index
    %4 = vector.load %arg3[%c0_2, %c0_3] : memref<128x128xbf16, #tpu.memory_space<vmem>>, vector<128x128xbf16>
    %c0_4 = arith.constant 0 : index
    %c0_5 = arith.constant 0 : index
    %5 = vector.load %arg4[%c0_4, %c0_5] : memref<128x128xbf16, #tpu.memory_space<vmem>>, vector<128x128xbf16>
    %cst = arith.constant dense<0.000000e+00> : vector<128x128xf32>
    %6 = tpu.matmul %4, %5, %cst {dimension_numbers = #tpu.dot_dimension_numbers<[1], [0], [0], [1], [0, 0, 1, 1], [], []>} : vector<128x128xbf16>, vector<128x128xbf16>, vector<128x128xf32> -> vector<128x128xf32>
    %7 = arith.addf %3, %6 : vector<128x128xf32>
    %c0_6 = arith.constant 0 : index
    %c0_7 = arith.constant 0 : index
    %8 = vector.load %arg7[%c0_6, %c0_7] : memref<128x128xf32, #tpu.memory_space<vmem>>, vector<128x128xf32>
    tpu.vector_store %arg7[%c0_6, %c0_7], %7 {strides = array<i32>} : memref<128x128xf32, #tpu.memory_space<vmem>>, vector<128x128xf32>,
    %c0_i32_8 = arith.constant 0 : i32
    %9 = arith.cmpi eq, %arg2, %c0_i32_8 : i32
    %10 = arith.extui %9 : i1 to i32
    %c0_i32_9 = arith.constant 0 : i32
    %11 = arith.cmpi ne, %10, %c0_i32_9 : i32
    scf.if %11 {
      %c0_10 = arith.constant 0 : index
      %c0_11 = arith.constant 0 : index
      %12 = vector.load %arg7[%c0_10, %c0_11] : memref<128x128xf32, #tpu.memory_space<vmem>>, vector<128x128xf32>
      %c0_12 = arith.constant 0 : index
      %c0_13 = arith.constant 0 : index
      %13 = vector.load %arg5[%c0_12, %c0_13] : memref<1x128xf32, #tpu.memory_space<vmem>>, vector<1x128xf32>
      %14 = vector.broadcast %13 : vector<1x128xf32> to vector<128x128xf32>
      %15 = arith.addf %12, %14 : vector<128x128xf32>
      %c0_14 = arith.constant 0 : index
      %c0_15 = arith.constant 0 : index
      %16 = vector.load %arg6[%c0_14, %c0_15] : memref<128x128xf32, #tpu.memory_space<vmem>>, vector<128x128xf32>
      tpu.vector_store %arg6[%c0_14, %c0_15], %15 {strides = array<i32>} : memref<128x128xf32, #tpu.memory_space<vmem>>, vector<128x128xf32>,
    } else {
    }
    return
  }
  func.func @transform_0(%arg0: i32, %arg1: i32, %arg2: i32) -> (i32, i32) {
    %c0_i32 = arith.constant 0 : i32
    return %arg0, %arg2 : i32, i32
  }
  func.func @transform_1(%arg0: i32, %arg1: i32, %arg2: i32) -> (i32, i32) {
    %c0_i32 = arith.constant 0 : i32
    return %arg2, %arg1 : i32, i32
  }
  func.func @transform_2(%arg0: i32, %arg1: i32, %arg2: i32) -> (i32, i32) {
    %c0_i32 = arith.constant 0 : i32
    %c0_i32_0 = arith.constant 0 : i32
    return %c0_i32, %arg1 : i32, i32
  }
  func.func @transform_3(%arg0: i32, %arg1: i32, %arg2: i32) -> (i32, i32) {
    %c0_i32 = arith.constant 0 : i32
    return %arg0, %arg1 : i32, i32
  }
}

module attributes {stable_mosaic.version = 11 : i64} {
  func.func @_mm_bias_kernel(%arg0: i32, %arg1: i32, %arg2: i32, %arg3: memref<64x128xbf16, #tpu.memory_space<vmem>>, %arg4: memref<128x128xbf16, #tpu.memory_space<vmem>>, %arg5: memref<1x128xf32, #tpu.memory_space<vmem>>, %arg6: memref<64x128xf32, #tpu.memory_space<vmem>>, %arg7: memref<64x128xf32, #tpu.memory_space<vmem>>) attributes {dimension_semantics = [#tpu.dimension_semantics<parallel>, #tpu.dimension_semantics<parallel>, #tpu.dimension_semantics<arbitrary>], iteration_bounds = array<i64: 1, 1, 1>, scalar_prefetch = 0 : i64, scratch_operands = 1 : i64, tpu.core_type = #tpu.core_type<tc>, window_params = [{transform_indices = @transform_0, window_bounds = array<i64: 64, 128>}, {transform_indices = @transform_1, window_bounds = array<i64: 128, 128>}, {transform_indices = @transform_2, window_bounds = array<i64: 1, 128>}, {transform_indices = @transform_3, window_bounds = array<i64: 64, 128>}]} {
    %c0_i32 = arith.constant 0 : i32
    %0 = arith.cmpi eq, %arg2, %c0_i32 : i32
    %1 = arith.extui %0 : i1 to i32
    %c0_i32_0 = arith.constant 0 : i32
    %2 = arith.cmpi ne, %1, %c0_i32_0 : i32
    scf.if %2 {
      %cst_10 = arith.constant 0.000000e+00 : f32
      %12 = vector.broadcast %cst_10 : f32 to vector<64x128xf32>
      %c0_11 = arith.constant 0 : index
      %c0_12 = arith.constant 0 : index
      %13 = vector.load %arg7[%c0_11, %c0_12] : memref<64x128xf32, #tpu.memory_space<vmem>>, vector<64x128xf32>
      tpu.vector_store %arg7[%c0_11, %c0_12], %12 {strides = array<i32>} : memref<64x128xf32, #tpu.memory_space<vmem>>, vector<64x128xf32>,
    } else {
    }
    %c0 = arith.constant 0 : index
    %c0_1 = arith.constant 0 : index
    %3 = vector.load %arg7[%c0, %c0_1] : memref<64x128xf32, #tpu.memory_space<vmem>>, vector<64x128xf32>
    %c0_2 = arith.constant 0 : index
    %c0_3 = arith.constant 0 : index
    %4 = vector.load %arg3[%c0_2, %c0_3] : memref<64x128xbf16, #tpu.memory_space<vmem>>, vector<64x128xbf16>
    %c0_4 = arith.constant 0 : index
    %c0_5 = arith.constant 0 : index
    %5 = vector.load %arg4[%c0_4, %c0_5] : memref<128x128xbf16, #tpu.memory_space<vmem>>, vector<128x128xbf16>
    %cst = arith.constant dense<0.000000e+00> : vector<64x128xf32>
    %6 = tpu.matmul %4, %5, %cst {dimension_numbers = #tpu.dot_dimension_numbers<[1], [0], [0], [1], [0, 0, 1, 1], [], []>} : vector<64x128xbf16>, vector<128x128xbf16>, vector<64x128xf32> -> vector<64x128xf32>
    %7 = arith.addf %3, %6 : vector<64x128xf32>
    %c0_6 = arith.constant 0 : index
    %c0_7 = arith.constant 0 : index
    %8 = vector.load %arg7[%c0_6, %c0_7] : memref<64x128xf32, #tpu.memory_space<vmem>>, vector<64x128xf32>
    tpu.vector_store %arg7[%c0_6, %c0_7], %7 {strides = array<i32>} : memref<64x128xf32, #tpu.memory_space<vmem>>, vector<64x128xf32>,
    %c0_i32_8 = arith.constant 0 : i32
    %9 = arith.cmpi eq, %arg2, %c0_i32_8 : i32
    %10 = arith.extui %9 : i1 to i32
    %c0_i32_9 = arith.constant 0 : i32
    %11 = arith.cmpi ne, %10, %c0_i32_9 : i32
    scf.if %11 {
      %c0_10 = arith.constant 0 : index
      %c0_11 = arith.constant 0 : index
      %12 = vector.load %arg7[%c0_10, %c0_11] : memref<64x128xf32, #tpu.memory_space<vmem>>, vector<64x128xf32>
      %c0_12 = arith.constant 0 : index
      %c0_13 = arith.constant 0 : index
      %13 = vector.load %arg5[%c0_12, %c0_13] : memref<1x128xf32, #tpu.memory_space<vmem>>, vector<1x128xf32>
      %14 = vector.broadcast %13 : vector<1x128xf32> to vector<64x128xf32>
      %15 = arith.addf %12, %14 : vector<64x128xf32>
      %cst_14 = arith.constant 0.000000e+00 : f32
      %16 = vector.broadcast %cst_14 : f32 to vector<64x128xf32>
      %17 = arith.maximumf %15, %16 : vector<64x128xf32>
      %c0_15 = arith.constant 0 : index
      %c0_16 = arith.constant 0 : index
      %18 = vector.load %arg6[%c0_15, %c0_16] : memref<64x128xf32, #tpu.memory_space<vmem>>, vector<64x128xf32>
      tpu.vector_store %arg6[%c0_15, %c0_16], %17 {strides = array<i32>} : memref<64x128xf32, #tpu.memory_space<vmem>>, vector<64x128xf32>,
    } else {
    }
    return
  }
  func.func @transform_0(%arg0: i32, %arg1: i32, %arg2: i32) -> (i32, i32) {
    %c0_i32 = arith.constant 0 : i32
    return %arg0, %arg2 : i32, i32
  }
  func.func @transform_1(%arg0: i32, %arg1: i32, %arg2: i32) -> (i32, i32) {
    %c0_i32 = arith.constant 0 : i32
    return %arg2, %arg1 : i32, i32
  }
  func.func @transform_2(%arg0: i32, %arg1: i32, %arg2: i32) -> (i32, i32) {
    %c0_i32 = arith.constant 0 : i32
    %c0_i32_0 = arith.constant 0 : i32
    return %c0_i32, %arg1 : i32, i32
  }
  func.func @transform_3(%arg0: i32, %arg1: i32, %arg2: i32) -> (i32, i32) {
    %c0_i32 = arith.constant 0 : i32
    return %arg0, %arg1 : i32, i32
  }
}

module attributes {stable_mosaic.version = 11 : i64} {
  func.func @_mm_bias_kernel(%arg0: i32, %arg1: i32, %arg2: i32, %arg3: memref<32x128xbf16, #tpu.memory_space<vmem>>, %arg4: memref<128x128xbf16, #tpu.memory_space<vmem>>, %arg5: memref<1x128xf32, #tpu.memory_space<vmem>>, %arg6: memref<32x128xf32, #tpu.memory_space<vmem>>, %arg7: memref<32x128xf32, #tpu.memory_space<vmem>>) attributes {dimension_semantics = [#tpu.dimension_semantics<parallel>, #tpu.dimension_semantics<parallel>, #tpu.dimension_semantics<arbitrary>], iteration_bounds = array<i64: 1, 1, 1>, scalar_prefetch = 0 : i64, scratch_operands = 1 : i64, tpu.core_type = #tpu.core_type<tc>, window_params = [{transform_indices = @transform_0, window_bounds = array<i64: 32, 128>}, {transform_indices = @transform_1, window_bounds = array<i64: 128, 128>}, {transform_indices = @transform_2, window_bounds = array<i64: 1, 128>}, {transform_indices = @transform_3, window_bounds = array<i64: 32, 128>}]} {
    %c0_i32 = arith.constant 0 : i32
    %0 = arith.cmpi eq, %arg2, %c0_i32 : i32
    %1 = arith.extui %0 : i1 to i32
    %c0_i32_0 = arith.constant 0 : i32
    %2 = arith.cmpi ne, %1, %c0_i32_0 : i32
    scf.if %2 {
      %cst_10 = arith.constant 0.000000e+00 : f32
      %12 = vector.broadcast %cst_10 : f32 to vector<32x128xf32>
      %c0_11 = arith.constant 0 : index
      %c0_12 = arith.constant 0 : index
      %13 = vector.load %arg7[%c0_11, %c0_12] : memref<32x128xf32, #tpu.memory_space<vmem>>, vector<32x128xf32>
      tpu.vector_store %arg7[%c0_11, %c0_12], %12 {strides = array<i32>} : memref<32x128xf32, #tpu.memory_space<vmem>>, vector<32x128xf32>,
    } else {
    }
    %c0 = arith.constant 0 : index
    %c0_1 = arith.constant 0 : index
    %3 = vector.load %arg7[%c0, %c0_1] : memref<32x128xf32, #tpu.memory_space<vmem>>, vector<32x128xf32>
    %c0_2 = arith.constant 0 : index
    %c0_3 = arith.constant 0 : index
    %4 = vector.load %arg3[%c0_2, %c0_3] : memref<32x128xbf16, #tpu.memory_space<vmem>>, vector<32x128xbf16>
    %c0_4 = arith.constant 0 : index
    %c0_5 = arith.constant 0 : index
    %5 = vector.load %arg4[%c0_4, %c0_5] : memref<128x128xbf16, #tpu.memory_space<vmem>>, vector<128x128xbf16>
    %cst = arith.constant dense<0.000000e+00> : vector<32x128xf32>
    %6 = tpu.matmul %4, %5, %cst {dimension_numbers = #tpu.dot_dimension_numbers<[1], [0], [0], [1], [0, 0, 1, 1], [], []>} : vector<32x128xbf16>, vector<128x128xbf16>, vector<32x128xf32> -> vector<32x128xf32>
    %7 = arith.addf %3, %6 : vector<32x128xf32>
    %c0_6 = arith.constant 0 : index
    %c0_7 = arith.constant 0 : index
    %8 = vector.load %arg7[%c0_6, %c0_7] : memref<32x128xf32, #tpu.memory_space<vmem>>, vector<32x128xf32>
    tpu.vector_store %arg7[%c0_6, %c0_7], %7 {strides = array<i32>} : memref<32x128xf32, #tpu.memory_space<vmem>>, vector<32x128xf32>,
    %c0_i32_8 = arith.constant 0 : i32
    %9 = arith.cmpi eq, %arg2, %c0_i32_8 : i32
    %10 = arith.extui %9 : i1 to i32
    %c0_i32_9 = arith.constant 0 : i32
    %11 = arith.cmpi ne, %10, %c0_i32_9 : i32
    scf.if %11 {
      %c0_10 = arith.constant 0 : index
      %c0_11 = arith.constant 0 : index
      %12 = vector.load %arg7[%c0_10, %c0_11] : memref<32x128xf32, #tpu.memory_space<vmem>>, vector<32x128xf32>
      %c0_12 = arith.constant 0 : index
      %c0_13 = arith.constant 0 : index
      %13 = vector.load %arg5[%c0_12, %c0_13] : memref<1x128xf32, #tpu.memory_space<vmem>>, vector<1x128xf32>
      %14 = vector.broadcast %13 : vector<1x128xf32> to vector<32x128xf32>
      %15 = arith.addf %12, %14 : vector<32x128xf32>
      %cst_14 = arith.constant 0.000000e+00 : f32
      %16 = vector.broadcast %cst_14 : f32 to vector<32x128xf32>
      %17 = arith.maximumf %15, %16 : vector<32x128xf32>
      %c0_15 = arith.constant 0 : index
      %c0_16 = arith.constant 0 : index
      %18 = vector.load %arg6[%c0_15, %c0_16] : memref<32x128xf32, #tpu.memory_space<vmem>>, vector<32x128xf32>
      tpu.vector_store %arg6[%c0_15, %c0_16], %17 {strides = array<i32>} : memref<32x128xf32, #tpu.memory_space<vmem>>, vector<32x128xf32>,
    } else {
    }
    return
  }
  func.func @transform_0(%arg0: i32, %arg1: i32, %arg2: i32) -> (i32, i32) {
    %c0_i32 = arith.constant 0 : i32
    return %arg0, %arg2 : i32, i32
  }
  func.func @transform_1(%arg0: i32, %arg1: i32, %arg2: i32) -> (i32, i32) {
    %c0_i32 = arith.constant 0 : i32
    return %arg2, %arg1 : i32, i32
  }
  func.func @transform_2(%arg0: i32, %arg1: i32, %arg2: i32) -> (i32, i32) {
    %c0_i32 = arith.constant 0 : i32
    %c0_i32_0 = arith.constant 0 : i32
    return %c0_i32, %arg1 : i32, i32
  }
  func.func @transform_3(%arg0: i32, %arg1: i32, %arg2: i32) -> (i32, i32) {
    %c0_i32 = arith.constant 0 : i32
    return %arg0, %arg1 : i32, i32
  }
}

module attributes {stable_mosaic.version = 11 : i64} {
  func.func @_mm_bias_kernel(%arg0: i32, %arg1: i32, %arg2: i32, %arg3: memref<32x128xbf16, #tpu.memory_space<vmem>>, %arg4: memref<128x256xbf16, #tpu.memory_space<vmem>>, %arg5: memref<1x256xf32, #tpu.memory_space<vmem>>, %arg6: memref<32x256xf32, #tpu.memory_space<vmem>>, %arg7: memref<32x256xf32, #tpu.memory_space<vmem>>) attributes {dimension_semantics = [#tpu.dimension_semantics<parallel>, #tpu.dimension_semantics<parallel>, #tpu.dimension_semantics<arbitrary>], iteration_bounds = array<i64: 1, 6, 1>, scalar_prefetch = 0 : i64, scratch_operands = 1 : i64, tpu.core_type = #tpu.core_type<tc>, window_params = [{transform_indices = @transform_0, window_bounds = array<i64: 32, 128>}, {transform_indices = @transform_1, window_bounds = array<i64: 128, 256>}, {transform_indices = @transform_2, window_bounds = array<i64: 1, 256>}, {transform_indices = @transform_3, window_bounds = array<i64: 32, 256>}]} {
    %c0_i32 = arith.constant 0 : i32
    %0 = arith.cmpi eq, %arg2, %c0_i32 : i32
    %1 = arith.extui %0 : i1 to i32
    %c0_i32_0 = arith.constant 0 : i32
    %2 = arith.cmpi ne, %1, %c0_i32_0 : i32
    scf.if %2 {
      %cst_10 = arith.constant 0.000000e+00 : f32
      %12 = vector.broadcast %cst_10 : f32 to vector<32x256xf32>
      %c0_11 = arith.constant 0 : index
      %c0_12 = arith.constant 0 : index
      %13 = vector.load %arg7[%c0_11, %c0_12] : memref<32x256xf32, #tpu.memory_space<vmem>>, vector<32x256xf32>
      tpu.vector_store %arg7[%c0_11, %c0_12], %12 {strides = array<i32>} : memref<32x256xf32, #tpu.memory_space<vmem>>, vector<32x256xf32>,
    } else {
    }
    %c0 = arith.constant 0 : index
    %c0_1 = arith.constant 0 : index
    %3 = vector.load %arg7[%c0, %c0_1] : memref<32x256xf32, #tpu.memory_space<vmem>>, vector<32x256xf32>
    %c0_2 = arith.constant 0 : index
    %c0_3 = arith.constant 0 : index
    %4 = vector.load %arg3[%c0_2, %c0_3] : memref<32x128xbf16, #tpu.memory_space<vmem>>, vector<32x128xbf16>
    %c0_4 = arith.constant 0 : index
    %c0_5 = arith.constant 0 : index
    %5 = vector.load %arg4[%c0_4, %c0_5] : memref<128x256xbf16, #tpu.memory_space<vmem>>, vector<128x256xbf16>
    %cst = arith.constant dense<0.000000e+00> : vector<32x256xf32>
    %6 = tpu.matmul %4, %5, %cst {dimension_numbers = #tpu.dot_dimension_numbers<[1], [0], [0], [1], [0, 0, 1, 1], [], []>} : vector<32x128xbf16>, vector<128x256xbf16>, vector<32x256xf32> -> vector<32x256xf32>
    %7 = arith.addf %3, %6 : vector<32x256xf32>
    %c0_6 = arith.constant 0 : index
    %c0_7 = arith.constant 0 : index
    %8 = vector.load %arg7[%c0_6, %c0_7] : memref<32x256xf32, #tpu.memory_space<vmem>>, vector<32x256xf32>
    tpu.vector_store %arg7[%c0_6, %c0_7], %7 {strides = array<i32>} : memref<32x256xf32, #tpu.memory_space<vmem>>, vector<32x256xf32>,
    %c0_i32_8 = arith.constant 0 : i32
    %9 = arith.cmpi eq, %arg2, %c0_i32_8 : i32
    %10 = arith.extui %9 : i1 to i32
    %c0_i32_9 = arith.constant 0 : i32
    %11 = arith.cmpi ne, %10, %c0_i32_9 : i32
    scf.if %11 {
      %c0_10 = arith.constant 0 : index
      %c0_11 = arith.constant 0 : index
      %12 = vector.load %arg7[%c0_10, %c0_11] : memref<32x256xf32, #tpu.memory_space<vmem>>, vector<32x256xf32>
      %c0_12 = arith.constant 0 : index
      %c0_13 = arith.constant 0 : index
      %13 = vector.load %arg5[%c0_12, %c0_13] : memref<1x256xf32, #tpu.memory_space<vmem>>, vector<1x256xf32>
      %14 = vector.broadcast %13 : vector<1x256xf32> to vector<32x256xf32>
      %15 = arith.addf %12, %14 : vector<32x256xf32>
      %cst_14 = arith.constant 0.000000e+00 : f32
      %16 = vector.broadcast %cst_14 : f32 to vector<32x256xf32>
      %17 = arith.maximumf %15, %16 : vector<32x256xf32>
      %c0_15 = arith.constant 0 : index
      %c0_16 = arith.constant 0 : index
      %18 = vector.load %arg6[%c0_15, %c0_16] : memref<32x256xf32, #tpu.memory_space<vmem>>, vector<32x256xf32>
      tpu.vector_store %arg6[%c0_15, %c0_16], %17 {strides = array<i32>} : memref<32x256xf32, #tpu.memory_space<vmem>>, vector<32x256xf32>,
    } else {
    }
    return
  }
  func.func @transform_0(%arg0: i32, %arg1: i32, %arg2: i32) -> (i32, i32) {
    %c0_i32 = arith.constant 0 : i32
    return %arg0, %arg2 : i32, i32
  }
  func.func @transform_1(%arg0: i32, %arg1: i32, %arg2: i32) -> (i32, i32) {
    %c0_i32 = arith.constant 0 : i32
    return %arg2, %arg1 : i32, i32
  }
  func.func @transform_2(%arg0: i32, %arg1: i32, %arg2: i32) -> (i32, i32) {
    %c0_i32 = arith.constant 0 : i32
    %c0_i32_0 = arith.constant 0 : i32
    return %c0_i32, %arg1 : i32, i32
  }
  func.func @transform_3(%arg0: i32, %arg1: i32, %arg2: i32) -> (i32, i32) {
    %c0_i32 = arith.constant 0 : i32
    return %arg0, %arg1 : i32, i32
  }
}

module attributes {stable_mosaic.version = 11 : i64} {
  func.func @_mm_bias_kernel(%arg0: i32, %arg1: i32, %arg2: i32, %arg3: memref<32x512xbf16, #tpu.memory_space<vmem>>, %arg4: memref<512x128xbf16, #tpu.memory_space<vmem>>, %arg5: memref<1x128xf32, #tpu.memory_space<vmem>>, %arg6: memref<32x128xf32, #tpu.memory_space<vmem>>, %arg7: memref<32x128xf32, #tpu.memory_space<vmem>>) attributes {dimension_semantics = [#tpu.dimension_semantics<parallel>, #tpu.dimension_semantics<parallel>, #tpu.dimension_semantics<arbitrary>], iteration_bounds = array<i64: 1, 1, 3>, scalar_prefetch = 0 : i64, scratch_operands = 1 : i64, tpu.core_type = #tpu.core_type<tc>, window_params = [{transform_indices = @transform_0, window_bounds = array<i64: 32, 512>}, {transform_indices = @transform_1, window_bounds = array<i64: 512, 128>}, {transform_indices = @transform_2, window_bounds = array<i64: 1, 128>}, {transform_indices = @transform_3, window_bounds = array<i64: 32, 128>}]} {
    %c0_i32 = arith.constant 0 : i32
    %0 = arith.cmpi eq, %arg2, %c0_i32 : i32
    %1 = arith.extui %0 : i1 to i32
    %c0_i32_0 = arith.constant 0 : i32
    %2 = arith.cmpi ne, %1, %c0_i32_0 : i32
    scf.if %2 {
      %cst_9 = arith.constant 0.000000e+00 : f32
      %12 = vector.broadcast %cst_9 : f32 to vector<32x128xf32>
      %c0_10 = arith.constant 0 : index
      %c0_11 = arith.constant 0 : index
      %13 = vector.load %arg7[%c0_10, %c0_11] : memref<32x128xf32, #tpu.memory_space<vmem>>, vector<32x128xf32>
      tpu.vector_store %arg7[%c0_10, %c0_11], %12 {strides = array<i32>} : memref<32x128xf32, #tpu.memory_space<vmem>>, vector<32x128xf32>,
    } else {
    }
    %c0 = arith.constant 0 : index
    %c0_1 = arith.constant 0 : index
    %3 = vector.load %arg7[%c0, %c0_1] : memref<32x128xf32, #tpu.memory_space<vmem>>, vector<32x128xf32>
    %c0_2 = arith.constant 0 : index
    %c0_3 = arith.constant 0 : index
    %4 = vector.load %arg3[%c0_2, %c0_3] : memref<32x512xbf16, #tpu.memory_space<vmem>>, vector<32x512xbf16>
    %c0_4 = arith.constant 0 : index
    %c0_5 = arith.constant 0 : index
    %5 = vector.load %arg4[%c0_4, %c0_5] : memref<512x128xbf16, #tpu.memory_space<vmem>>, vector<512x128xbf16>
    %cst = arith.constant dense<0.000000e+00> : vector<32x128xf32>
    %6 = tpu.matmul %4, %5, %cst {dimension_numbers = #tpu.dot_dimension_numbers<[1], [0], [0], [1], [0, 0, 1, 1], [], []>} : vector<32x512xbf16>, vector<512x128xbf16>, vector<32x128xf32> -> vector<32x128xf32>
    %7 = arith.addf %3, %6 : vector<32x128xf32>
    %c0_6 = arith.constant 0 : index
    %c0_7 = arith.constant 0 : index
    %8 = vector.load %arg7[%c0_6, %c0_7] : memref<32x128xf32, #tpu.memory_space<vmem>>, vector<32x128xf32>
    tpu.vector_store %arg7[%c0_6, %c0_7], %7 {strides = array<i32>} : memref<32x128xf32, #tpu.memory_space<vmem>>, vector<32x128xf32>,
    %c2_i32 = arith.constant 2 : i32
    %9 = arith.cmpi eq, %arg2, %c2_i32 : i32
    %10 = arith.extui %9 : i1 to i32
    %c0_i32_8 = arith.constant 0 : i32
    %11 = arith.cmpi ne, %10, %c0_i32_8 : i32
    scf.if %11 {
      %c0_9 = arith.constant 0 : index
      %c0_10 = arith.constant 0 : index
      %12 = vector.load %arg7[%c0_9, %c0_10] : memref<32x128xf32, #tpu.memory_space<vmem>>, vector<32x128xf32>
      %c0_11 = arith.constant 0 : index
      %c0_12 = arith.constant 0 : index
      %13 = vector.load %arg5[%c0_11, %c0_12] : memref<1x128xf32, #tpu.memory_space<vmem>>, vector<1x128xf32>
      %14 = vector.broadcast %13 : vector<1x128xf32> to vector<32x128xf32>
      %15 = arith.addf %12, %14 : vector<32x128xf32>
      %c0_13 = arith.constant 0 : index
      %c0_14 = arith.constant 0 : index
      %16 = vector.load %arg6[%c0_13, %c0_14] : memref<32x128xf32, #tpu.memory_space<vmem>>, vector<32x128xf32>
      tpu.vector_store %arg6[%c0_13, %c0_14], %15 {strides = array<i32>} : memref<32x128xf32, #tpu.memory_space<vmem>>, vector<32x128xf32>,
    } else {
    }
    return
  }
  func.func @transform_0(%arg0: i32, %arg1: i32, %arg2: i32) -> (i32, i32) {
    %c0_i32 = arith.constant 0 : i32
    return %arg0, %arg2 : i32, i32
  }
  func.func @transform_1(%arg0: i32, %arg1: i32, %arg2: i32) -> (i32, i32) {
    %c0_i32 = arith.constant 0 : i32
    return %arg2, %arg1 : i32, i32
  }
  func.func @transform_2(%arg0: i32, %arg1: i32, %arg2: i32) -> (i32, i32) {
    %c0_i32 = arith.constant 0 : i32
    %c0_i32_0 = arith.constant 0 : i32
    return %c0_i32, %arg1 : i32, i32
  }
  func.func @transform_3(%arg0: i32, %arg1: i32, %arg2: i32) -> (i32, i32) {
    %c0_i32 = arith.constant 0 : i32
    return %arg0, %arg1 : i32, i32
  }
}

module attributes {stable_mosaic.version = 11 : i64} {
  func.func @_mm_bias_kernel(%arg0: i32, %arg1: i32, %arg2: i32, %arg3: memref<32x128xbf16, #tpu.memory_space<vmem>>, %arg4: memref<128x256xbf16, #tpu.memory_space<vmem>>, %arg5: memref<1x256xf32, #tpu.memory_space<vmem>>, %arg6: memref<32x256xf32, #tpu.memory_space<vmem>>, %arg7: memref<32x256xf32, #tpu.memory_space<vmem>>) attributes {dimension_semantics = [#tpu.dimension_semantics<parallel>, #tpu.dimension_semantics<parallel>, #tpu.dimension_semantics<arbitrary>], iteration_bounds = array<i64: 1, 6, 1>, scalar_prefetch = 0 : i64, scratch_operands = 1 : i64, tpu.core_type = #tpu.core_type<tc>, window_params = [{transform_indices = @transform_0, window_bounds = array<i64: 32, 128>}, {transform_indices = @transform_1, window_bounds = array<i64: 128, 256>}, {transform_indices = @transform_2, window_bounds = array<i64: 1, 256>}, {transform_indices = @transform_3, window_bounds = array<i64: 32, 256>}]} {
    %c0_i32 = arith.constant 0 : i32
    %0 = arith.cmpi eq, %arg2, %c0_i32 : i32
    %1 = arith.extui %0 : i1 to i32
    %c0_i32_0 = arith.constant 0 : i32
    %2 = arith.cmpi ne, %1, %c0_i32_0 : i32
    scf.if %2 {
      %cst_10 = arith.constant 0.000000e+00 : f32
      %12 = vector.broadcast %cst_10 : f32 to vector<32x256xf32>
      %c0_11 = arith.constant 0 : index
      %c0_12 = arith.constant 0 : index
      %13 = vector.load %arg7[%c0_11, %c0_12] : memref<32x256xf32, #tpu.memory_space<vmem>>, vector<32x256xf32>
      tpu.vector_store %arg7[%c0_11, %c0_12], %12 {strides = array<i32>} : memref<32x256xf32, #tpu.memory_space<vmem>>, vector<32x256xf32>,
    } else {
    }
    %c0 = arith.constant 0 : index
    %c0_1 = arith.constant 0 : index
    %3 = vector.load %arg7[%c0, %c0_1] : memref<32x256xf32, #tpu.memory_space<vmem>>, vector<32x256xf32>
    %c0_2 = arith.constant 0 : index
    %c0_3 = arith.constant 0 : index
    %4 = vector.load %arg3[%c0_2, %c0_3] : memref<32x128xbf16, #tpu.memory_space<vmem>>, vector<32x128xbf16>
    %c0_4 = arith.constant 0 : index
    %c0_5 = arith.constant 0 : index
    %5 = vector.load %arg4[%c0_4, %c0_5] : memref<128x256xbf16, #tpu.memory_space<vmem>>, vector<128x256xbf16>
    %cst = arith.constant dense<0.000000e+00> : vector<32x256xf32>
    %6 = tpu.matmul %4, %5, %cst {dimension_numbers = #tpu.dot_dimension_numbers<[1], [0], [0], [1], [0, 0, 1, 1], [], []>} : vector<32x128xbf16>, vector<128x256xbf16>, vector<32x256xf32> -> vector<32x256xf32>
    %7 = arith.addf %3, %6 : vector<32x256xf32>
    %c0_6 = arith.constant 0 : index
    %c0_7 = arith.constant 0 : index
    %8 = vector.load %arg7[%c0_6, %c0_7] : memref<32x256xf32, #tpu.memory_space<vmem>>, vector<32x256xf32>
    tpu.vector_store %arg7[%c0_6, %c0_7], %7 {strides = array<i32>} : memref<32x256xf32, #tpu.memory_space<vmem>>, vector<32x256xf32>,
    %c0_i32_8 = arith.constant 0 : i32
    %9 = arith.cmpi eq, %arg2, %c0_i32_8 : i32
    %10 = arith.extui %9 : i1 to i32
    %c0_i32_9 = arith.constant 0 : i32
    %11 = arith.cmpi ne, %10, %c0_i32_9 : i32
    scf.if %11 {
      %c0_10 = arith.constant 0 : index
      %c0_11 = arith.constant 0 : index
      %12 = vector.load %arg7[%c0_10, %c0_11] : memref<32x256xf32, #tpu.memory_space<vmem>>, vector<32x256xf32>
      %c0_12 = arith.constant 0 : index
      %c0_13 = arith.constant 0 : index
      %13 = vector.load %arg5[%c0_12, %c0_13] : memref<1x256xf32, #tpu.memory_space<vmem>>, vector<1x256xf32>
      %14 = vector.broadcast %13 : vector<1x256xf32> to vector<32x256xf32>
      %15 = arith.addf %12, %14 : vector<32x256xf32>
      %c0_14 = arith.constant 0 : index
      %c0_15 = arith.constant 0 : index
      %16 = vector.load %arg6[%c0_14, %c0_15] : memref<32x256xf32, #tpu.memory_space<vmem>>, vector<32x256xf32>
      tpu.vector_store %arg6[%c0_14, %c0_15], %15 {strides = array<i32>} : memref<32x256xf32, #tpu.memory_space<vmem>>, vector<32x256xf32>,
    } else {
    }
    return
  }
  func.func @transform_0(%arg0: i32, %arg1: i32, %arg2: i32) -> (i32, i32) {
    %c0_i32 = arith.constant 0 : i32
    return %arg0, %arg2 : i32, i32
  }
  func.func @transform_1(%arg0: i32, %arg1: i32, %arg2: i32) -> (i32, i32) {
    %c0_i32 = arith.constant 0 : i32
    return %arg2, %arg1 : i32, i32
  }
  func.func @transform_2(%arg0: i32, %arg1: i32, %arg2: i32) -> (i32, i32) {
    %c0_i32 = arith.constant 0 : i32
    %c0_i32_0 = arith.constant 0 : i32
    return %c0_i32, %arg1 : i32, i32
  }
  func.func @transform_3(%arg0: i32, %arg1: i32, %arg2: i32) -> (i32, i32) {
    %c0_i32 = arith.constant 0 : i32
    return %arg0, %arg1 : i32, i32
  }
}

module attributes {stable_mosaic.version = 11 : i64} {
  func.func @_attn_pool_kernel(%arg0: i32, %arg1: i32, %arg2: memref<1x16x1536xf32, #tpu.memory_space<vmem>>, %arg3: memref<1x16x1536xf32, #tpu.memory_space<vmem>>, %arg4: memref<1x1x3072xf32, #tpu.memory_space<vmem>>, %arg5: memref<1x1536xf32, #tpu.memory_space<vmem>>, %arg6: memref<1x1536xf32, #tpu.memory_space<vmem>>, %arg7: memref<1x1536xf32, #tpu.memory_space<vmem>>, %arg8: memref<1x1536xf32, #tpu.memory_space<vmem>>) attributes {dimension_semantics = [#tpu.dimension_semantics<parallel>, #tpu.dimension_semantics<arbitrary>], iteration_bounds = array<i64: 2, 1>, scalar_prefetch = 0 : i64, scratch_operands = 4 : i64, tpu.core_type = #tpu.core_type<tc>, window_params = [{transform_indices = @transform_0, window_bounds = array<i64: 1, 16, 1536>}, {transform_indices = @transform_1, window_bounds = array<i64: 1, 16, 1536>}, {transform_indices = @transform_2, window_bounds = array<i64: 1, 1, 3072>}]} {
    %c0_i32 = arith.constant 0 : i32
    %0 = arith.cmpi eq, %arg1, %c0_i32 : i32
    %1 = arith.extui %0 : i1 to i32
    %c0_i32_0 = arith.constant 0 : i32
    %2 = arith.cmpi ne, %1, %c0_i32_0 : i32
    scf.if %2 {
      %cst_27 = arith.constant 0xFF800000 : f32
      %41 = vector.broadcast %cst_27 : f32 to vector<1x1536xf32>
      %c0_28 = arith.constant 0 : index
      %c0_29 = arith.constant 0 : index
      %42 = vector.load %arg5[%c0_28, %c0_29] : memref<1x1536xf32, #tpu.memory_space<vmem>>, vector<1x1536xf32>
      tpu.vector_store %arg5[%c0_28, %c0_29], %41 {strides = array<i32>} : memref<1x1536xf32, #tpu.memory_space<vmem>>, vector<1x1536xf32>,
      %cst_30 = arith.constant 0.000000e+00 : f32
      %43 = vector.broadcast %cst_30 : f32 to vector<1x1536xf32>
      %c0_31 = arith.constant 0 : index
      %c0_32 = arith.constant 0 : index
      %44 = vector.load %arg6[%c0_31, %c0_32] : memref<1x1536xf32, #tpu.memory_space<vmem>>, vector<1x1536xf32>
      tpu.vector_store %arg6[%c0_31, %c0_32], %43 {strides = array<i32>} : memref<1x1536xf32, #tpu.memory_space<vmem>>, vector<1x1536xf32>,
      %cst_33 = arith.constant 0.000000e+00 : f32
      %45 = vector.broadcast %cst_33 : f32 to vector<1x1536xf32>
      %c0_34 = arith.constant 0 : index
      %c0_35 = arith.constant 0 : index
      %46 = vector.load %arg7[%c0_34, %c0_35] : memref<1x1536xf32, #tpu.memory_space<vmem>>, vector<1x1536xf32>
      tpu.vector_store %arg7[%c0_34, %c0_35], %45 {strides = array<i32>} : memref<1x1536xf32, #tpu.memory_space<vmem>>, vector<1x1536xf32>,
      %cst_36 = arith.constant 0.000000e+00 : f32
      %47 = vector.broadcast %cst_36 : f32 to vector<1x1536xf32>
      %c0_37 = arith.constant 0 : index
      %c0_38 = arith.constant 0 : index
      %48 = vector.load %arg8[%c0_37, %c0_38] : memref<1x1536xf32, #tpu.memory_space<vmem>>, vector<1x1536xf32>
      tpu.vector_store %arg8[%c0_37, %c0_38], %47 {strides = array<i32>} : memref<1x1536xf32, #tpu.memory_space<vmem>>, vector<1x1536xf32>,
    } else {
    }
    %c0 = arith.constant 0 : index
    %c0_1 = arith.constant 0 : index
    %c0_2 = arith.constant 0 : index
    %3 = vector.load %arg2[%c0, %c0_1, %c0_2] : memref<1x16x1536xf32, #tpu.memory_space<vmem>>, vector<1x16x1536xf32>
    %4 = vector.shape_cast %3 : vector<1x16x1536xf32> to vector<16x1536xf32>
    %c0_3 = arith.constant 0 : index
    %c0_4 = arith.constant 0 : index
    %c0_5 = arith.constant 0 : index
    %5 = vector.load %arg3[%c0_3, %c0_4, %c0_5] : memref<1x16x1536xf32, #tpu.memory_space<vmem>>, vector<1x16x1536xf32>
    %6 = vector.shape_cast %5 : vector<1x16x1536xf32> to vector<16x1536xf32>
    %c0_6 = arith.constant 0 : index
    %c0_7 = arith.constant 0 : index
    %7 = vector.load %arg5[%c0_6, %c0_7] : memref<1x1536xf32, #tpu.memory_space<vmem>>, vector<1x1536xf32>
    %cst = arith.constant dense<0xFF800000> : vector<1536xf32>
    %8 = vector.multi_reduction <maximumf>, %6, %cst [0] : vector<16x1536xf32> to vector<1536xf32>
    %9 = vector.shape_cast %8 : vector<1536xf32> to vector<1x1536xf32>
    %10 = arith.maximumf %7, %9 : vector<1x1536xf32>
    %11 = arith.subf %7, %10 : vector<1x1536xf32>
    %12 = math.exp %11 : vector<1x1536xf32>
    %13 = vector.broadcast %10 : vector<1x1536xf32> to vector<16x1536xf32>
    %14 = arith.subf %6, %13 : vector<16x1536xf32>
    %15 = math.exp %14 : vector<16x1536xf32>
    %c0_8 = arith.constant 0 : index
    %c0_9 = arith.constant 0 : index
    %16 = vector.load %arg6[%c0_8, %c0_9] : memref<1x1536xf32, #tpu.memory_space<vmem>>, vector<1x1536xf32>
    %17 = arith.mulf %12, %16 : vector<1x1536xf32>
    %cst_10 = arith.constant dense<0.000000e+00> : vector<1536xf32>
    %18 = vector.multi_reduction <add>, %15, %cst_10 [0] : vector<16x1536xf32> to vector<1536xf32>
    %19 = vector.shape_cast %18 : vector<1536xf32> to vector<1x1536xf32>
    %20 = arith.addf %17, %19 : vector<1x1536xf32>
    %c0_11 = arith.constant 0 : index
    %c0_12 = arith.constant 0 : index
    %21 = vector.load %arg6[%c0_11, %c0_12] : memref<1x1536xf32, #tpu.memory_space<vmem>>, vector<1x1536xf32>
    tpu.vector_store %arg6[%c0_11, %c0_12], %20 {strides = array<i32>} : memref<1x1536xf32, #tpu.memory_space<vmem>>, vector<1x1536xf32>,
    %c0_13 = arith.constant 0 : index
    %c0_14 = arith.constant 0 : index
    %22 = vector.load %arg7[%c0_13, %c0_14] : memref<1x1536xf32, #tpu.memory_space<vmem>>, vector<1x1536xf32>
    %23 = arith.mulf %12, %22 : vector<1x1536xf32>
    %24 = arith.mulf %15, %4 : vector<16x1536xf32>
    %cst_15 = arith.constant dense<0.000000e+00> : vector<1536xf32>
    %25 = vector.multi_reduction <add>, %24, %cst_15 [0] : vector<16x1536xf32> to vector<1536xf32>
    %26 = vector.shape_cast %25 : vector<1536xf32> to vector<1x1536xf32>
    %27 = arith.addf %23, %26 : vector<1x1536xf32>
    %c0_16 = arith.constant 0 : index
    %c0_17 = arith.constant 0 : index
    %28 = vector.load %arg7[%c0_16, %c0_17] : memref<1x1536xf32, #tpu.memory_space<vmem>>, vector<1x1536xf32>
    tpu.vector_store %arg7[%c0_16, %c0_17], %27 {strides = array<i32>} : memref<1x1536xf32, #tpu.memory_space<vmem>>, vector<1x1536xf32>,
    %c0_18 = arith.constant 0 : index
    %c0_19 = arith.constant 0 : index
    %29 = vector.load %arg8[%c0_18, %c0_19] : memref<1x1536xf32, #tpu.memory_space<vmem>>, vector<1x1536xf32>
    %30 = arith.mulf %12, %29 : vector<1x1536xf32>
    %31 = arith.mulf %15, %4 : vector<16x1536xf32>
    %32 = arith.mulf %31, %4 : vector<16x1536xf32>
    %cst_20 = arith.constant dense<0.000000e+00> : vector<1536xf32>
    %33 = vector.multi_reduction <add>, %32, %cst_20 [0] : vector<16x1536xf32> to vector<1536xf32>
    %34 = vector.shape_cast %33 : vector<1536xf32> to vector<1x1536xf32>
    %35 = arith.addf %30, %34 : vector<1x1536xf32>
    %c0_21 = arith.constant 0 : index
    %c0_22 = arith.constant 0 : index
    %36 = vector.load %arg8[%c0_21, %c0_22] : memref<1x1536xf32, #tpu.memory_space<vmem>>, vector<1x1536xf32>
    tpu.vector_store %arg8[%c0_21, %c0_22], %35 {strides = array<i32>} : memref<1x1536xf32, #tpu.memory_space<vmem>>, vector<1x1536xf32>,
    %c0_23 = arith.constant 0 : index
    %c0_24 = arith.constant 0 : index
    %37 = vector.load %arg5[%c0_23, %c0_24] : memref<1x1536xf32, #tpu.memory_space<vmem>>, vector<1x1536xf32>
    tpu.vector_store %arg5[%c0_23, %c0_24], %10 {strides = array<i32>} : memref<1x1536xf32, #tpu.memory_space<vmem>>, vector<1x1536xf32>,
    %c0_i32_25 = arith.constant 0 : i32
    %38 = arith.cmpi eq, %arg1, %c0_i32_25 : i32
    %39 = arith.extui %38 : i1 to i32
    %c0_i32_26 = arith.constant 0 : i32
    %40 = arith.cmpi ne, %39, %c0_i32_26 : i32
    scf.if %40 {
      %c0_27 = arith.constant 0 : index
      %c0_28 = arith.constant 0 : index
      %41 = vector.load %arg6[%c0_27, %c0_28] : memref<1x1536xf32, #tpu.memory_space<vmem>>, vector<1x1536xf32>
      %cst_29 = arith.constant 1.000000e+00 : f32
      %42 = vector.broadcast %cst_29 : f32 to vector<1x1536xf32>
      %43 = arith.divf %42, %41 : vector<1x1536xf32>
      %c0_30 = arith.constant 0 : index
      %c0_31 = arith.constant 0 : index
      %44 = vector.load %arg7[%c0_30, %c0_31] : memref<1x1536xf32, #tpu.memory_space<vmem>>, vector<1x1536xf32>
      %45 = arith.mulf %44, %43 : vector<1x1536xf32>
      %c0_32 = arith.constant 0 : index
      %c0_33 = arith.constant 0 : index
      %46 = vector.load %arg8[%c0_32, %c0_33] : memref<1x1536xf32, #tpu.memory_space<vmem>>, vector<1x1536xf32>
      %47 = arith.mulf %46, %43 : vector<1x1536xf32>
      %48 = arith.mulf %45, %45 : vector<1x1536xf32>
      %49 = arith.subf %47, %48 : vector<1x1536xf32>
      %cst_34 = arith.constant 9.99999974E-5 : f32
      %cst_35 = arith.constant 1.000000e+04 : f32
      %50 = vector.broadcast %cst_34 : f32 to vector<1x1536xf32>
      %51 = arith.maximumf %50, %49 : vector<1x1536xf32>
      %52 = vector.broadcast %cst_35 : f32 to vector<1x1536xf32>
      %53 = arith.minimumf %52, %51 : vector<1x1536xf32>
      %54 = math.sqrt %53 : vector<1x1536xf32>
      %c0_36 = arith.constant 0 : index
      %c0_37 = arith.constant 0 : index
      %c0_38 = arith.constant 0 : index
      %55 = vector.load %arg4[%c0_36, %c0_37, %c0_38] : memref<1x1x3072xf32, #tpu.memory_space<vmem>>, vector<1x1x1536xf32>
      %56 = vector.shape_cast %55 : vector<1x1x1536xf32> to vector<1x1536xf32>
      %57 = vector.shape_cast %45 : vector<1x1536xf32> to vector<1x1x1536xf32>
      tpu.vector_store %arg4[%c0_36, %c0_37, %c0_38], %57 {strides = array<i32>} : memref<1x1x3072xf32, #tpu.memory_space<vmem>>, vector<1x1x1536xf32>,
      %c0_39 = arith.constant 0 : index
      %c0_40 = arith.constant 0 : index
      %c1536 = arith.constant 1536 : index
      %58 = vector.load %arg4[%c0_39, %c0_40, %c1536] : memref<1x1x3072xf32, #tpu.memory_space<vmem>>, vector<1x1x1536xf32>
      %59 = vector.shape_cast %58 : vector<1x1x1536xf32> to vector<1x1536xf32>
      %60 = vector.shape_cast %54 : vector<1x1536xf32> to vector<1x1x1536xf32>
      tpu.vector_store %arg4[%c0_39, %c0_40, %c1536], %60 {strides = array<i32>} : memref<1x1x3072xf32, #tpu.memory_space<vmem>>, vector<1x1x1536xf32>,
    } else {
    }
    return
  }
  func.func @transform_0(%arg0: i32, %arg1: i32) -> (i32, i32, i32) {
    %c0_i32 = arith.constant 0 : i32
    %c0_i32_0 = arith.constant 0 : i32
    return %arg0, %arg1, %c0_i32 : i32, i32, i32
  }
  func.func @transform_1(%arg0: i32, %arg1: i32) -> (i32, i32, i32) {
    %c0_i32 = arith.constant 0 : i32
    %c0_i32_0 = arith.constant 0 : i32
    return %arg0, %arg1, %c0_i32 : i32, i32, i32
  }
  func.func @transform_2(%arg0: i32, %arg1: i32) -> (i32, i32, i32) {
    %c0_i32 = arith.constant 0 : i32
    %c0_i32_0 = arith.constant 0 : i32
    %c0_i32_1 = arith.constant 0 : i32
    return %arg0, %c0_i32, %c0_i32_0 : i32, i32, i32
  }
}

</mosaic_0001>

<llo_original>
// kernel: rawnet3_forward.21
$region0: #{rawnet3_forward.21}
  #allocation0 [shape = 'u32[]', space=smem, size = 0x4, offset = 0x4, fixed_abs, tag = 'smem constant byte address 0x4 - core index']
  #allocation1 [shape = 'u32[144,128]{1,0:T(1,128)}', space=vmem, size = 0x12000, scoped, tag = 'internal scratch']
  #allocation2 [shape = 'f32[128,128]{1,0:T(8,128)}', space=vmem, size = 0x10000, scoped, tag = 'scratch operand']
  %s0 = inlined_call_operand.vmem [shape: f32[384,384], index: 0, kind: input, shape index: {}]
  %s1 = inlined_call_operand.vmem [shape: f32[384,128], index: 1, kind: input, shape index: {}]
  %s2 = inlined_call_operand.vmem [shape: f32[1,128], index: 2, kind: input, shape index: {}]
  %s3 = inlined_call_operand.vmem [shape: f32[384,128], index: 3, kind: output, shape index: {}]
  %s4 = sld [smem:[#allocation0]]
  $region53: #{rawnet3_forward.21} parent=0
    _
  %s6 = ssub.s32 1, %s4
  %s7 = scalar_select 0, %s6, %s4
  loop: start=0, step=1, limit=5
  $region2: #{rawnet3_forward.21} parent=0 // loop_pre_header
    _
  $region3: #{rawnet3_forward.21} parent=0 // loop_header
    %s9 = sphi 0, %s13
    %p10 = scmp.ge.s32.totalorder %s9, 5
    %s16 = sphi 0, %s35
    %s17 = sphi 0, %s31
    %s18 = sphi 0, %s27
    %s19 = sphi 0, %s16
    %s20 = sphi 0, %s17
    %s21 = sphi 0, %s18
    %s22 = sphi 0, %s19
    %s23 = sphi 0, %s20
    %s24 = sphi 0, %s21
    %s40 = sphi 0, %s42
    %s43 = sphi 0, %s40
    %s44 = sphi 0, %s43
    %s60 = sphi 0, %s44
    %s68 = sphi 0, %s70
    %s71 = sphi 0, %s68
    %s72 = sphi 0, %s71
    %s88 = sphi 0, %s72
    %s94 = sphi 0, %s96
    %s97 = sphi 0, %s94
    %s98 = sphi 0, %s97
    %s114 = sphi 0, %s98
    %s122 = sphi 0, %s124
    %s125 = sphi 0, %s122
    %s126 = sphi 0, %s125
    %s142 = sphi 0, %s126
  $region4: #{rawnet3_forward.21} parent=0 // loop_header_branch
    %12 = sbr.rel (%p10) target = $region8
  $region5: #{rawnet3_forward.21} parent=0 // loop_body
    %s14 = ssub.s32 %s9, 1
    %s15 = ssub.s32 %s9, 2
    %s25 = sadd.s32 1, %s18
    %p26 = scmp.ge.s32.totalorder %s25, 1
    %s27 = scalar_select %p26, 0, %s25
    %s28 = sadd.s32 1, %s17
    %s29 = scalar_select %p26, %s28, %s17
    %p30 = scmp.ge.s32.totalorder %s29, 1
    %s31 = scalar_select %p30, 0, %s29
    %s32 = sadd.s32 1, %s16
    %s33 = scalar_select %p30, %s32, %s16
    %p34 = scmp.ge.s32.totalorder %s33, 3
    %s35 = scalar_select %p34, 0, %s33
    %s36 = ssub.s32 %s16, %s35
    %s37 = ssub.s32 %s18, %s27
    %s38 = sor.u32 %s36, %s37
    %p39 = scmp.eq.s32.totalorder %s38, 0
    %s41 = sadd.s32 %s40, 1
    %s42 = scalar_select %p39, %s40, %s41
    %p45 = pneg %p39
    %p46 = scmp.eq.s32.totalorder %s9, 2
    %p47 = por %p45, %p46
    %p48 = scmp.ne.s32.totalorder %s40, %s43
    %p49 = scmp.eq.s32.totalorder %s9, 0
    %p50 = por %p48, %p49
    %p51 = scmp.ne.s32.totalorder %s40, %s43
    %p52 = scmp.eq.s32.totalorder %s14, 2
    %p53 = por %p51, %p52
    %p54 = scmp.ne.s32.totalorder %s43, %s44
    %p55 = scmp.eq.s32.totalorder %s14, 0
    %p56 = por %p54, %p55
    %p57 = scmp.ne.s32.totalorder %s43, %s44
    %p58 = scmp.eq.s32.totalorder %s15, 2
    %p59 = por %p57, %p58
    %p61 = scmp.ne.s32.totalorder %s44, %s60
    %p62 = scmp.eq.s32.totalorder %s15, 0
    %p63 = por %p61, %p62
    %s64 = ssub.s32 %s18, %s27
    %s65 = ssub.s32 %s17, %s31
    %s66 = sor.u32 %s64, %s65
    %p67 = scmp.eq.s32.totalorder %s66, 0
    %s69 = sadd.s32 %s68, 1
    %s70 = scalar_select %p67, %s68, %s69
    %p73 = pneg %p67
    %p74 = scmp.eq.s32.totalorder %s9, 2
    %p75 = por %p73, %p74
    %p76 = scmp.ne.s32.totalorder %s68, %s71
    %p77 = scmp.eq.s32.totalorder %s9, 0
    %p78 = por %p76, %p77
    %p79 = scmp.ne.s32.totalorder %s68, %s71
    %p80 = scmp.eq.s32.totalorder %s14, 2
    %p81 = por %p79, %p80
    %p82 = scmp.ne.s32.totalorder %s71, %s72
    %p83 = scmp.eq.s32.totalorder %s14, 0
    %p84 = por %p82, %p83
    %p85 = scmp.ne.s32.totalorder %s71, %s72
    %p86 = scmp.eq.s32.totalorder %s15, 2
    %p87 = por %p85, %p86
    %p89 = scmp.ne.s32.totalorder %s72, %s88
    %p90 = scmp.eq.s32.totalorder %s15, 0
    %p91 = por %p89, %p90
    %s92 = ssub.s32 %s17, %s31
    %p93 = scmp.eq.s32.totalorder %s92, 0
    %s95 = sadd.s32 %s94, 1
    %s96 = scalar_select %p93, %s94, %s95
    %p99 = pneg %p93
    %p100 = scmp.eq.s32.totalorder %s9, 2
    %p101 = por %p99, %p100
    %p102 = scmp.ne.s32.totalorder %s94, %s97
    %p103 = scmp.eq.s32.totalorder %s9, 0
    %p104 = por %p102, %p103
    %p105 = scmp.ne.s32.totalorder %s94, %s97
    %p106 = scmp.eq.s32.totalorder %s14, 2
    %p107 = por %p105, %p106
    %p108 = scmp.ne.s32.totalorder %s97, %s98
    %p109 = scmp.eq.s32.totalorder %s14, 0
    %p110 = por %p108, %p109
    %p111 = scmp.ne.s32.totalorder %s97, %s98
    %p112 = scmp.eq.s32.totalorder %s15, 2
    %p113 = por %p111, %p112
    %p115 = scmp.ne.s32.totalorder %s98, %s114
    %p116 = scmp.eq.s32.totalorder %s15, 0
    %p117 = por %p115, %p116
    %s118 = ssub.s32 %s16, %s35
    %s119 = ssub.s32 %s17, %s31
    %s120 = sor.u32 %s118, %s119
    %p121 = scmp.eq.s32.totalorder %s120, 0
    %s123 = sadd.s32 %s122, 1
    %s124 = scalar_select %p121, %s122, %s123
    %p127 = pneg %p121
    %p128 = scmp.eq.s32.totalorder %s9, 2
    %p129 = por %p127, %p128
    %p130 = scmp.ne.s32.totalorder %s122, %s125
    %p131 = scmp.eq.s32.totalorder %s9, 0
    %p132 = por %p130, %p131
    %p133 = scmp.ne.s32.totalorder %s122, %s125
    %p134 = scmp.eq.s32.totalorder %s14, 2
    %p135 = por %p133, %p134
    %p136 = scmp.ne.s32.totalorder %s125, %s126
    %p137 = scmp.eq.s32.totalorder %s14, 0
    %p138 = por %p136, %p137
    %p139 = scmp.ne.s32.totalorder %s125, %s126
    %p140 = scmp.eq.s32.totalorder %s15, 2
    %p141 = por %p139, %p140
    %p143 = scmp.ne.s32.totalorder %s126, %s142
    %p144 = scmp.eq.s32.totalorder %s15, 0
    %p145 = por %p143, %p144
    %p146 = scmp.le.s32.totalorder 1, %s9
    %p147 = scmp.lt.s32.totalorder %s9, 4
    %p148 = pnand %p146, %p147
    %p149 = pneg %p148
    // Predicated region
    $region9: #{rawnet3_forward.21} parent=5 // pred_check
      _
    $region10: #{rawnet3_forward.21} parent=5 // pred_check_branch
      %151 = sbr.rel (%p148) target = $region12
    $region11: #{rawnet3_forward.21} parent=5 // pred_region
      %s152 = ssub.s32 %s9, 1
      // Predicated region
      $region13: #{rawnet3_forward.21} parent=11 // pred_check
        %p153 = pneg %p84
      $region14: #{rawnet3_forward.21} parent=11 // pred_check_branch
        %155 = sbr.rel (%p153) target = $region16
      $region15: #{rawnet3_forward.21} parent=11 // pred_region
        %s156 = smul.u32 48, %s21
        %p157 = scmp.lt.s32.totalorder %s156, 47
        %s158 = scalar_select %p157, %s156, 47
        %p159 = scmp.lt.s32.totalorder %s20, 0
        %s160 = scalar_select %p159, %s20, 0
        %s161 = sadd.s32 %s160, %s158
        %s162 = smul.addr %s161, 8
        %s163 = scalar_lea.vmem %s1, %s162
        %s164 = smul.u32 48, %s21
      $region16: #{rawnet3_forward.21} parent=11 // pred_fallthru
        _
      // Predicated region
      $region17: #{rawnet3_forward.21} parent=11 // pred_check
        %p165 = pneg %p110
      $region18: #{rawnet3_forward.21} parent=11 // pred_check_branch
        %167 = sbr.rel (%p165) target = $region20
      $region19: #{rawnet3_forward.21} parent=11 // pred_region
        %p168 = scmp.lt.s32.totalorder %s20, 0
        %s169 = scalar_select %p168, %s20, 0
        %s170 = scalar_lea.vmem %s2, %s169
      $region20: #{rawnet3_forward.21} parent=11 // pred_fallthru
        _
    $region12: #{rawnet3_forward.21} parent=5 // pred_fallthru
      _
    %p171 = scmp.lt.s32.totalorder %s9, 3
    // Predicated region
    $region21: #{rawnet3_forward.21} parent=5 // pred_check
      %p172 = pneg %p171
    $region22: #{rawnet3_forward.21} parent=5 // pred_check_branch
      %174 = sbr.rel (%p172) target = $region24
    $region23: #{rawnet3_forward.21} parent=5 // pred_region
      // Predicated region
      $region25: #{rawnet3_forward.21} parent=23 // pred_check
        %p175 = pneg %p50
      $region26: #{rawnet3_forward.21} parent=23 // pred_check_branch
        %177 = sbr.rel (%p175) target = $region28
      $region27: #{rawnet3_forward.21} parent=23 // pred_region
        %s178 = smul.u32 16, %s16
        %s179 = smul.u32 3, %s18
        %p180 = scmp.lt.s32.totalorder %s178, 47
        %s181 = scalar_select %p180, %s178, 47
        %p182 = scmp.lt.s32.totalorder %s179, 2
        %s183 = scalar_select %p182, %s179, 2
        %s184 = smul.addr %s181, 3
        %s185 = sadd.s32 %s183, %s184
        %s186 = smul.addr %s185, 8
        %s187 = scalar_lea.vmem %s0, %s186
        %s188 = smul.u32 16, %s16
        %s189 = smul.u32 3, %s18
      $region28: #{rawnet3_forward.21} parent=23 // pred_fallthru
        _
    $region24: #{rawnet3_forward.21} parent=5 // pred_fallthru
      _
    %p190 = scmp.le.s32.totalorder 1, %s9
    %p191 = scmp.lt.s32.totalorder %s9, 4
    %p192 = pnand %p190, %p191
    %p193 = pneg %p192
    // Predicated region
    $region29: #{rawnet3_forward.21} parent=5 // pred_check
      _
    $region30: #{rawnet3_forward.21} parent=5 // pred_check_branch
      %195 = sbr.rel (%p192) target = $region32
    $region31: #{rawnet3_forward.21} parent=5 // pred_region
      %s196 = ssub.s32 %s9, 1
      %s197 = smul.u32 16, %s19
      %s198 = smul.u32 3, %s21
      %p199 = scmp.lt.s32.totalorder %s197, 47
      %s200 = scalar_select %p199, %s197, 47
      %p201 = scmp.lt.s32.totalorder %s198, 2
      %s202 = scalar_select %p201, %s198, 2
      %s203 = smul.addr %s200, 3
      %s204 = sadd.s32 %s202, %s203
      %s205 = smul.addr %s204, 8
      %s206 = scalar_lea.vmem %s0, %s205
      %p207 = pneg %p56
      %p208 = pneg %p53
      %s209 = smul.u32 48, %s21
      %p210 = scmp.lt.s32.totalorder %s209, 47
      %s211 = scalar_select %p210, %s209, 47
      %p212 = scmp.lt.s32.totalorder %s20, 0
      %s213 = scalar_select %p212, %s20, 0
      %s214 = sadd.s32 %s213, %s211
      %s215 = smul.addr %s214, 8
      %s216 = scalar_lea.vmem %s1, %s215
      %p217 = pneg %p84
      %p218 = pneg %p81
      %p219 = scmp.lt.s32.totalorder %s20, 0
      %s220 = scalar_select %p219, %s20, 0
      %s221 = scalar_lea.vmem %s2, %s220
      %p222 = pneg %p110
      %p223 = pneg %p107
      %p224 = pneg %p138
      %p225 = pneg %p135
      %s226 = smul.u32 16, %s19
      %p227 = scmp.lt.s32.totalorder %s226, 47
      %s228 = scalar_select %p227, %s226, 47
      %p229 = scmp.lt.s32.totalorder %s20, 0
      %s230 = scalar_select %p229, %s20, 0
      %s231 = sadd.s32 %s230, %s228
      %s232 = smul.addr %s231, 8
      %s233 = scalar_lea.vmem %s3, %s232
      %s234 = smul.u32 16, %s19
      %s235 = smul.u32 3, %s21
      %p236 = scmp.lt.s32.totalorder %s234, 47
      %s237 = scalar_select %p236, %s234, 47
      %p238 = scmp.lt.s32.totalorder %s235, 2
      %s239 = scalar_select %p238, %s235, 2
      %s240 = smul.addr %s237, 3
      %s241 = sadd.s32 %s239, %s240
      %s242 = smul.addr %s241, 8
      %s243 = scalar_lea.vmem %s0, %s242
      %s244 = smul.u32 16, %s19
      %s245 = smul.u32 3, %s21
      %s246 = smul.u32 48, %s21
      %p247 = scmp.lt.s32.totalorder %s246, 47
      %s248 = scalar_select %p247, %s246, 47
      %p249 = scmp.lt.s32.totalorder %s20, 0
      %s250 = scalar_select %p249, %s20, 0
      %s251 = sadd.s32 %s250, %s248
      %s252 = smul.addr %s251, 8
      %s253 = scalar_lea.vmem %s1, %s252
      %s254 = smul.u32 48, %s21
      %p255 = scmp.lt.s32.totalorder %s20, 0
      %s256 = scalar_select %p255, %s20, 0
      %s257 = scalar_lea.vmem %s2, %s256
      %s258 = smul.u32 16, %s19
      %p259 = scmp.lt.s32.totalorder %s258, 47
      %s260 = scalar_select %p259, %s258, 47
      %p261 = scmp.lt.s32.totalorder %s20, 0
      %s262 = scalar_select %p261, %s20, 0
      %s263 = sadd.s32 %s262, %s260
      %s264 = smul.addr %s263, 8
      %s265 = scalar_lea.vmem %s3, %s264
      %s266 = smul.u32 16, %s19
      %p267 = scmp.eq.s32.totalorder %s21, 0
      // Predicated region
      $region33: #{rawnet3_forward.21} parent=31 // pred_check
        %p268 = pneg %p267
      $region34: #{rawnet3_forward.21} parent=31 // pred_check_branch
        %270 = sbr.rel (%p268) target = $region36
      $region35: #{rawnet3_forward.21} parent=31 // pred_region
        %271 = vst [vmem:[#allocation2] sm:$0xff] 0.0
        %272 = vst [vmem:[#allocation2 + $0x8] sm:$0xff] 0.0
        %273 = vst [vmem:[#allocation2 + $0x10] sm:$0xff] 0.0
        %274 = vst [vmem:[#allocation2 + $0x18] sm:$0xff] 0.0
        %275 = vst [vmem:[#allocation2 + $0x20] sm:$0xff] 0.0
        %276 = vst [vmem:[#allocation2 + $0x28] sm:$0xff] 0.0
        %277 = vst [vmem:[#allocation2 + $0x30] sm:$0xff] 0.0
        %278 = vst [vmem:[#allocation2 + $0x38] sm:$0xff] 0.0
        %279 = vst [vmem:[#allocation2 + $0x40] sm:$0xff] 0.0
        %280 = vst [vmem:[#allocation2 + $0x48] sm:$0xff] 0.0
        %281 = vst [vmem:[#allocation2 + $0x50] sm:$0xff] 0.0
        %282 = vst [vmem:[#allocation2 + $0x58] sm:$0xff] 0.0
        %283 = vst [vmem:[#allocation2 + $0x60] sm:$0xff] 0.0
        %284 = vst [vmem:[#allocation2 + $0x68] sm:$0xff] 0.0
        %285 = vst [vmem:[#allocation2 + $0x70] sm:$0xff] 0.0
        %286 = vst [vmem:[#allocation2 + $0x78] sm:$0xff] 0.0
      $region36: #{rawnet3_forward.21} parent=31 // pred_fallthru
        _
      %v287 = vld [vmem:[#allocation2] sm:$0xff]
      %v288 = vld [vmem:[#allocation2 + $0x8] sm:$0xff]
      %v289 = vld [vmem:[#allocation2 + $0x10] sm:$0xff]
      %v290 = vld [vmem:[#allocation2 + $0x18] sm:$0xff]
      %v291 = vld [vmem:[#allocation2 + $0x20] sm:$0xff]
      %v292 = vld [vmem:[#allocation2 + $0x28] sm:$0xff]
      %v293 = vld [vmem:[#allocation2 + $0x30] sm:$0xff]
      %v294 = vld [vmem:[#allocation2 + $0x38] sm:$0xff]
      %v295 = vld [vmem:[#allocation2 + $0x40] sm:$0xff]
      %v296 = vld [vmem:[#allocation2 + $0x48] sm:$0xff]
      %v297 = vld [vmem:[#allocation2 + $0x50] sm:$0xff]
      %v298 = vld [vmem:[#allocation2 + $0x58] sm:$0xff]
      %v299 = vld [vmem:[#allocation2 + $0x60] sm:$0xff]
      %v300 = vld [vmem:[#allocation2 + $0x68] sm:$0xff]
      %v301 = vld [vmem:[#allocation2 + $0x70] sm:$0xff]
      %v302 = vld [vmem:[#allocation2 + $0x78] sm:$0xff]
      %v303 = vld [vmem:[%s243] sm:$0xff]
      %v304 = vld [vmem:[%s243 + $0x8] sm:$0xff]
      %v305 = vld [vmem:[%s243 + $0x10] sm:$0xff]
      %v306 = vld [vmem:[%s243 + $0x18] sm:$0xff]
      %v307 = vld [vmem:[%s243 + $0x20] sm:$0xff]
      %v308 = vld [vmem:[%s243 + $0x28] sm:$0xff]
      %v309 = vld [vmem:[%s243 + $0x30] sm:$0xff]
      %v310 = vld [vmem:[%s243 + $0x38] sm:$0xff]
      %v311 = vld [vmem:[%s243 + $0x40] sm:$0xff]
      %v312 = vld [vmem:[%s243 + $0x48] sm:$0xff]
      %v313 = vld [vmem:[%s243 + $0x50] sm:$0xff]
      %v314 = vld [vmem:[%s243 + $0x58] sm:$0xff]
      %v315 = vld [vmem:[%s243 + $0x60] sm:$0xff]
      %v316 = vld [vmem:[%s243 + $0x68] sm:$0xff]
      %v317 = vld [vmem:[%s243 + $0x70] sm:$0xff]
      %v318 = vld [vmem:[%s243 + $0x78] sm:$0xff]
      %v319 = vld [vmem:[%s243 + $0x80] sm:$0xff]
      %v320 = vld [vmem:[%s243 + $0x88] sm:$0xff]
      %v321 = vld [vmem:[%s243 + $0x90] sm:$0xff]
      %v322 = vld [vmem:[%s243 + $0x98] sm:$0xff]
      %v323 = vld [vmem:[%s243 + $0xa0] sm:$0xff]
      %v324 = vld [vmem:[%s243 + $0xa8] sm:$0xff]
      %v325 = vld [vmem:[%s243 + $0xb0] sm:$0xff]
      %v326 = vld [vmem:[%s243 + $0xb8] sm:$0xff]
      %v327 = vld [vmem:[%s243 + $0xc0] sm:$0xff]
      %v328 = vld [vmem:[%s243 + $0xc8] sm:$0xff]
      %v329 = vld [vmem:[%s243 + $0xd0] sm:$0xff]
      %v330 = vld [vmem:[%s243 + $0xd8] sm:$0xff]
      %v331 = vld [vmem:[%s243 + $0xe0] sm:$0xff]
      %v332 = vld [vmem:[%s243 + $0xe8] sm:$0xff]
      %v333 = vld [vmem:[%s243 + $0xf0] sm:$0xff]
      %v334 = vld [vmem:[%s243 + $0xf8] sm:$0xff]
      %v335 = vld [vmem:[%s243 + $0x100] sm:$0xff]
      %v336 = vld [vmem:[%s243 + $0x108] sm:$0xff]
      %v337 = vld [vmem:[%s243 + $0x110] sm:$0xff]
      %v338 = vld [vmem:[%s243 + $0x118] sm:$0xff]
      %v339 = vld [vmem:[%s243 + $0x120] sm:$0xff]
      %v340 = vld [vmem:[%s243 + $0x128] sm:$0xff]
      %v341 = vld [vmem:[%s243 + $0x130] sm:$0xff]
      %v342 = vld [vmem:[%s243 + $0x138] sm:$0xff]
      %v343 = vld [vmem:[%s243 + $0x140] sm:$0xff]
      %v344 = vld [vmem:[%s243 + $0x148] sm:$0xff]
      %v345 = vld [vmem:[%s243 + $0x150] sm:$0xff]
      %v346 = vld [vmem:[%s243 + $0x158] sm:$0xff]
      %v347 = vld [vmem:[%s243 + $0x160] sm:$0xff]
      %v348 = vld [vmem:[%s243 + $0x168] sm:$0xff]
      %v349 = vld [vmem:[%s243 + $0x170] sm:$0xff]
      %v350 = vld [vmem:[%s243 + $0x178] sm:$0xff]
      %v351 = vld [vmem:[%s253] sm:$0xff]
      %v352 = vld [vmem:[%s253 + $0x8] sm:$0xff]
      %v353 = vld [vmem:[%s253 + $0x10] sm:$0xff]
      %v354 = vld [vmem:[%s253 + $0x18] sm:$0xff]
      %v355 = vld [vmem:[%s253 + $0x20] sm:$0xff]
      %v356 = vld [vmem:[%s253 + $0x28] sm:$0xff]
      %v357 = vld [vmem:[%s253 + $0x30] sm:$0xff]
      %v358 = vld [vmem:[%s253 + $0x38] sm:$0xff]
      %v359 = vld [vmem:[%s253 + $0x40] sm:$0xff]
      %v360 = vld [vmem:[%s253 + $0x48] sm:$0xff]
      %v361 = vld [vmem:[%s253 + $0x50] sm:$0xff]
      %v362 = vld [vmem:[%s253 + $0x58] sm:$0xff]
      %v363 = vld [vmem:[%s253 + $0x60] sm:$0xff]
      %v364 = vld [vmem:[%s253 + $0x68] sm:$0xff]
      %v365 = vld [vmem:[%s253 + $0x70] sm:$0xff]
      %v366 = vld [vmem:[%s253 + $0x78] sm:$0xff]
      %v367 = vld [vmem:[%s253 + $0x80] sm:$0xff]
      %v368 = vld [vmem:[%s253 + $0x88] sm:$0xff]
      %v369 = vld [vmem:[%s253 + $0x90] sm:$0xff]
      %v370 = vld [vmem:[%s253 + $0x98] sm:$0xff]
      %v371 = vld [vmem:[%s253 + $0xa0] sm:$0xff]
      %v372 = vld [vmem:[%s253 + $0xa8] sm:$0xff]
      %v373 = vld [vmem:[%s253 + $0xb0] sm:$0xff]
      %v374 = vld [vmem:[%s253 + $0xb8] sm:$0xff]
      %v375 = vld [vmem:[%s253 + $0xc0] sm:$0xff]
      %v376 = vld [vmem:[%s253 + $0xc8] sm:$0xff]
      %v377 = vld [vmem:[%s253 + $0xd0] sm:$0xff]
      %v378 = vld [vmem:[%s253 + $0xd8] sm:$0xff]
      %v379 = vld [vmem:[%s253 + $0xe0] sm:$0xff]
      %v380 = vld [vmem:[%s253 + $0xe8] sm:$0xff]
      %v381 = vld [vmem:[%s253 + $0xf0] sm:$0xff]
      %v382 = vld [vmem:[%s253 + $0xf8] sm:$0xff]
      %v383 = vld [vmem:[%s253 + $0x100] sm:$0xff]
      %v384 = vld [vmem:[%s253 + $0x108] sm:$0xff]
      %v385 = vld [vmem:[%s253 + $0x110] sm:$0xff]
      %v386 = vld [vmem:[%s253 + $0x118] sm:$0xff]
      %v387 = vld [vmem:[%s253 + $0x120] sm:$0xff]
      %v388 = vld [vmem:[%s253 + $0x128] sm:$0xff]
      %v389 = vld [vmem:[%s253 + $0x130] sm:$0xff]
      %v390 = vld [vmem:[%s253 + $0x138] sm:$0xff]
      %v391 = vld [vmem:[%s253 + $0x140] sm:$0xff]
      %v392 = vld [vmem:[%s253 + $0x148] sm:$0xff]
      %v393 = vld [vmem:[%s253 + $0x150] sm:$0xff]
      %v394 = vld [vmem:[%s253 + $0x158] sm:$0xff]
      %v395 = vld [vmem:[%s253 + $0x160] sm:$0xff]
      %v396 = vld [vmem:[%s253 + $0x168] sm:$0xff]
      %v397 = vld [vmem:[%s253 + $0x170] sm:$0xff]
      %v398 = vld [vmem:[%s253 + $0x178] sm:$0xff]
      %399 = vmatprep.subr.mxu0 0.0
      %400 = vmatpush1.msra.mxu0 %v351
      %401 = vmatprep.subr.mxu0 0.0
      %402 = vmatpush1.msra.mxu0 %v352
      %403 = vmatprep.subr.mxu0 0.0
      %404 = vmatpush1.msra.mxu0 %v353
      %405 = vmatprep.subr.mxu0 0.0
      %406 = vmatpush1.msra.mxu0 %v354
      %407 = vmatprep.subr.mxu0 0.0
      %408 = vmatpush1.msra.mxu0 %v355
      %409 = vmatprep.subr.mxu0 0.0
      %410 = vmatpush1.msra.mxu0 %v356
      %411 = vmatprep.subr.mxu0 0.0
      %412 = vmatpush1.msra.mxu0 %v357
      %413 = vmatprep.subr.mxu0 0.0
      %414 = vmatpush1.msra.mxu0 %v358
      %415 = vmatprep.subr.mxu0 0.0
      %416 = vmatpush1.msra.mxu0 %v359
      %417 = vmatprep.subr.mxu0 0.0
      %418 = vmatpush1.msra.mxu0 %v360
      %419 = vmatprep.subr.mxu0 0.0
      %420 = vmatpush1.msra.mxu0 %v361
      %421 = vmatprep.subr.mxu0 0.0
      %422 = vmatpush1.msra.mxu0 %v362
      %423 = vmatprep.subr.mxu0 0.0
      %424 = vmatpush1.msra.mxu0 %v363
      %425 = vmatprep.subr.mxu0 0.0
      %426 = vmatpush1.msra.mxu0 %v364
      %427 = vmatprep.subr.mxu0 0.0
      %428 = vmatpush1.msra.mxu0 %v365
      %429 = vmatprep.subr.mxu0 0.0
      %430 = vmatpush1.msra.mxu0 %v366
      %431 = vmatprep.subr.mxu0 0.0
      %432 = vmatpush1.msra.mxu0 %v367
      %433 = vmatprep.subr.mxu0 0.0
      %434 = vmatpush1.msra.mxu0 %v368
      %435 = vmatprep.subr.mxu0 0.0
      %436 = vmatpush1.msra.mxu0 %v369
      %437 = vmatprep.subr.mxu0 0.0
      %438 = vmatpush1.msra.mxu0 %v370
      %439 = vmatprep.subr.mxu0 0.0
      %440 = vmatpush1.msra.mxu0 %v371
      %441 = vmatprep.subr.mxu0 0.0
      %442 = vmatpush1.msra.mxu0 %v372
      %443 = vmatprep.subr.mxu0 0.0
      %444 = vmatpush1.msra.mxu0 %v373
      %445 = vmatprep.subr.mxu0 0.0
      %446 = vmatpush1.msra.mxu0 %v374
      %447 = vmatprep.subr.mxu0 0.0
      %448 = vmatpush1.msra.mxu0 %v375
      %449 = vmatprep.subr.mxu0 0.0
      %450 = vmatpush1.msra.mxu0 %v376
      %451 = vmatprep.subr.mxu0 0.0
      %452 = vmatpush1.msra.mxu0 %v377
      %453 = vmatprep.subr.mxu0 0.0
      %454 = vmatpush1.msra.mxu0 %v378
      %455 = vmatprep.subr.mxu0 0.0
      %456 = vmatpush1.msra.mxu0 %v379
      %457 = vmatprep.subr.mxu0 0.0
      %458 = vmatpush1.msra.mxu0 %v380
      %459 = vmatprep.subr.mxu0 0.0
      %460 = vmatpush1.msra.mxu0 %v381
      %461 = vmatprep.subr.mxu0 0.0
      %462 = vmatpush1.msra.mxu0 %v382
      %463 = vmatprep.mubr.f32.mxu0 %v304
      %464 = vmatmul.mubr.f32.gmra.mrb[0].mxu0 %v303
      %v465 = vpop.f32.mrb[0].mxu0
      %v466 = vadd.f32 0.0, %v465
      %v467 = vpop.f32.mrb[0].mxu0
      %468 = vmatprep.mubr.f32.mxu0 %v307
      %469 = vmatmul.mubr.f32.gmra.mrb[0].mxu0 %v306
      %v470 = vpop.f32.mrb[0].mxu0
      %v471 = vadd.f32 0.0, %v470
      %v472 = vpop.f32.mrb[0].mxu0
      %473 = vmatprep.mubr.f32.mxu0 %v310
      %474 = vmatmul.mubr.f32.gmra.mrb[0].mxu0 %v309
      %v475 = vpop.f32.mrb[0].mxu0
      %v476 = vadd.f32 0.0, %v475
      %v477 = vpop.f32.mrb[0].mxu0
      %478 = vmatprep.mubr.f32.mxu0 %v313
      %479 = vmatmul.mubr.f32.gmra.mrb[0].mxu0 %v312
      %v480 = vpop.f32.mrb[0].mxu0
      %v481 = vadd.f32 0.0, %v480
      %v482 = vpop.f32.mrb[0].mxu0
      %483 = vmatprep.mubr.f32.mxu0 %v316
      %484 = vmatmul.mubr.f32.gmra.mrb[0].mxu0 %v315
      %v485 = vpop.f32.mrb[0].mxu0
      %v486 = vadd.f32 0.0, %v485
      %v487 = vpop.f32.mrb[0].mxu0
      %488 = vmatprep.mubr.f32.mxu0 %v319
      %489 = vmatmul.mubr.f32.gmra.mrb[0].mxu0 %v318
      %v490 = vpop.f32.mrb[0].mxu0
      %v491 = vadd.f32 0.0, %v490
      %v492 = vpop.f32.mrb[0].mxu0
      %493 = vmatprep.mubr.f32.mxu0 %v322
      %494 = vmatmul.mubr.f32.gmra.mrb[0].mxu0 %v321
      %v495 = vpop.f32.mrb[0].mxu0
      %v496 = vadd.f32 0.0, %v495
      %v497 = vpop.f32.mrb[0].mxu0
      %498 = vmatprep.mubr.f32.mxu0 %v325
      %499 = vmatmul.mubr.f32.gmra.mrb[0].mxu0 %v324
      %v500 = vpop.f32.mrb[0].mxu0
      %v501 = vadd.f32 0.0, %v500
      %v502 = vpop.f32.mrb[0].mxu0
      %503 = vmatprep.mubr.f32.mxu0 %v328
      %504 = vmatmul.mubr.f32.gmra.mrb[0].mxu0 %v327
      %v505 = vpop.f32.mrb[0].mxu0
      %v506 = vadd.f32 0.0, %v505
      %v507 = vpop.f32.mrb[0].mxu0
      %508 = vmatprep.mubr.f32.mxu0 %v331
      %509 = vmatmul.mubr.f32.gmra.mrb[0].mxu0 %v330
      %v510 = vpop.f32.mrb[0].mxu0
      %v511 = vadd.f32 0.0, %v510
      %v512 = vpop.f32.mrb[0].mxu0
      %513 = vmatprep.mubr.f32.mxu0 %v334
      %514 = vmatmul.mubr.f32.gmra.mrb[0].mxu0 %v333
      %v515 = vpop.f32.mrb[0].mxu0
      %v516 = vadd.f32 0.0, %v515
      %v517 = vpop.f32.mrb[0].mxu0
      %518 = vmatprep.mubr.f32.mxu0 %v337
      %519 = vmatmul.mubr.f32.gmra.mrb[0].mxu0 %v336
      %v520 = vpop.f32.mrb[0].mxu0
      %v521 = vadd.f32 0.0, %v520
      %v522 = vpop.f32.mrb[0].mxu0
      %523 = vmatprep.mubr.f32.mxu0 %v340
      %524 = vmatmul.mubr.f32.gmra.mrb[0].mxu0 %v339
      %v525 = vpop.f32.mrb[0].mxu0
      %v526 = vadd.f32 0.0, %v525
      %v527 = vpop.f32.mrb[0].mxu0
      %528 = vmatprep.mubr.f32.mxu0 %v343
      %529 = vmatmul.mubr.f32.gmra.mrb[0].mxu0 %v342
      %v530 = vpop.f32.mrb[0].mxu0
      %v531 = vadd.f32 0.0, %v530
      %v532 = vpop.f32.mrb[0].mxu0
      %533 = vmatprep.mubr.f32.mxu0 %v346
      %534 = vmatmul.mubr.f32.gmra.mrb[0].mxu0 %v345
      %v535 = vpop.f32.mrb[0].mxu0
      %v536 = vadd.f32 0.0, %v535
      %v537 = vpop.f32.mrb[0].mxu0
      %538 = vmatprep.mubr.f32.mxu0 %v349
      %539 = vmatmul.mubr.f32.gmra.mrb[0].mxu0 %v348
      %v540 = vpop.f32.mrb[0].mxu0
      %v541 = vadd.f32 0.0, %v540
      %v542 = vpop.f32.mrb[0].mxu0
      %543 = vdwg.mxu0
      %544 = vmatprep.subr.mxu0 0.0
      %545 = vmatpush1.msra.mxu0 %v383
      %546 = vmatprep.subr.mxu0 0.0
      %547 = vmatpush1.msra.mxu0 %v384
      %548 = vmatprep.subr.mxu0 0.0
      %549 = vmatpush1.msra.mxu0 %v385
      %550 = vmatprep.subr.mxu0 0.0
      %551 = vmatpush1.msra.mxu0 %v386
      %552 = vmatprep.subr.mxu0 0.0
      %553 = vmatpush1.msra.mxu0 %v387
      %554 = vmatprep.subr.mxu0 0.0
      %555 = vmatpush1.msra.mxu0 %v388
      %556 = vmatprep.subr.mxu0 0.0
      %557 = vmatpush1.msra.mxu0 %v389
      %558 = vmatprep.subr.mxu0 0.0
      %559 = vmatpush1.msra.mxu0 %v390
      %560 = vmatprep.subr.mxu0 0.0
      %561 = vmatpush1.msra.mxu0 %v391
      %562 = vmatprep.subr.mxu0 0.0
      %563 = vmatpush1.msra.mxu0 %v392
      %564 = vmatprep.subr.mxu0 0.0
      %565 = vmatpush1.msra.mxu0 %v393
      %566 = vmatprep.subr.mxu0 0.0
      %567 = vmatpush1.msra.mxu0 %v394
      %568 = vmatprep.subr.mxu0 0.0
      %569 = vmatpush1.msra.mxu0 %v395
      %570 = vmatprep.subr.mxu0 0.0
      %571 = vmatpush1.msra.mxu0 %v396
      %572 = vmatprep.subr.mxu0 0.0
      %573 = vmatpush1.msra.mxu0 %v397
      %574 = vmatprep.subr.mxu0 0.0
      %575 = vmatpush1.msra.mxu0 %v398
      %576 = vmatprep.subr.mxu0 0.0
      %577 = vmatpush1.msra.mxu0 0.0
      %578 = vmatprep.subr.mxu0 0.0
      %579 = vmatpush1.msra.mxu0 0.0
      %580 = vmatprep.subr.mxu0 0.0
      %581 = vmatpush1.msra.mxu0 0.0
      %582 = vmatprep.subr.mxu0 0.0
      %583 = vmatpush1.msra.mxu0 0.0
      %584 = vmatprep.subr.mxu0 0.0
      %585 = vmatpush1.msra.mxu0 0.0
      %586 = vmatprep.subr.mxu0 0.0
      %587 = vmatpush1.msra.mxu0 0.0
      %588 = vmatprep.subr.mxu0 0.0
      %589 = vmatpush1.msra.mxu0 0.0
      %590 = vmatprep.subr.mxu0 0.0
      %591 = vmatpush1.msra.mxu0 0.0
      %592 = vmatprep.subr.mxu0 0.0
      %593 = vmatpush1.msra.mxu0 0.0
      %594 = vmatprep.subr.mxu0 0.0
      %595 = vmatpush1.msra.mxu0 0.0
      %596 = vmatprep.subr.mxu0 0.0
      %597 = vmatpush1.msra.mxu0 0.0
      %598 = vmatprep.subr.mxu0 0.0
      %599 = vmatpush1.msra.mxu0 0.0
      %600 = vmatprep.subr.mxu0 0.0
      %601 = vmatpush1.msra.mxu0 0.0
      %602 = vmatprep.subr.mxu0 0.0
      %603 = vmatpush1.msra.mxu0 0.0
      %604 = vmatprep.subr.mxu0 0.0
      %605 = vmatpush1.msra.mxu0 0.0
      %606 = vmatprep.subr.mxu0 0.0
      %607 = vmatpush1.msra.mxu0 0.0
      %608 = vmatprep.mubr.f32.mxu0 0.0
      %609 = vmatmul.mubr.f32.gmra.mrb[0].mxu0 %v305
      %v610 = vpop.f32.mrb[0].mxu0
      %v611 = vadd.f32 %v466, %v610
      %v612 = vpop.f32.mrb[0].mxu0
      %613 = vmatprep.mubr.f32.mxu0 0.0
      %614 = vmatmul.mubr.f32.gmra.mrb[0].mxu0 %v308
      %v615 = vpop.f32.mrb[0].mxu0
      %v616 = vadd.f32 %v471, %v615
      %v617 = vpop.f32.mrb[0].mxu0
      %618 = vmatprep.mubr.f32.mxu0 0.0
      %619 = vmatmul.mubr.f32.gmra.mrb[0].mxu0 %v311
      %v620 = vpop.f32.mrb[0].mxu0
      %v621 = vadd.f32 %v476, %v620
      %v622 = vpop.f32.mrb[0].mxu0
      %623 = vmatprep.mubr.f32.mxu0 0.0
      %624 = vmatmul.mubr.f32.gmra.mrb[0].mxu0 %v314
      %v625 = vpop.f32.mrb[0].mxu0
      %v626 = vadd.f32 %v481, %v625
      %v627 = vpop.f32.mrb[0].mxu0
      %628 = vmatprep.mubr.f32.mxu0 0.0
      %629 = vmatmul.mubr.f32.gmra.mrb[0].mxu0 %v317
      %v630 = vpop.f32.mrb[0].mxu0
      %v631 = vadd.f32 %v486, %v630
      %v632 = vpop.f32.mrb[0].mxu0
      %633 = vmatprep.mubr.f32.mxu0 0.0
      %634 = vmatmul.mubr.f32.gmra.mrb[0].mxu0 %v320
      %v635 = vpop.f32.mrb[0].mxu0
      %v636 = vadd.f32 %v491, %v635
      %v637 = vpop.f32.mrb[0].mxu0
      %638 = vmatprep.mubr.f32.mxu0 0.0
      %639 = vmatmul.mubr.f32.gmra.mrb[0].mxu0 %v323
      %v640 = vpop.f32.mrb[0].mxu0
      %v641 = vadd.f32 %v496, %v640
      %v642 = vpop.f32.mrb[0].mxu0
      %643 = vmatprep.mubr.f32.mxu0 0.0
      %644 = vmatmul.mubr.f32.gmra.mrb[0].mxu0 %v326
      %v645 = vpop.f32.mrb[0].mxu0
      %v646 = vadd.f32 %v501, %v645
      %v647 = vpop.f32.mrb[0].mxu0
      %648 = vmatprep.mubr.f32.mxu0 0.0
      %649 = vmatmul.mubr.f32.gmra.mrb[0].mxu0 %v329
      %v650 = vpop.f32.mrb[0].mxu0
      %v651 = vadd.f32 %v506, %v650
      %v652 = vpop.f32.mrb[0].mxu0
      %653 = vmatprep.mubr.f32.mxu0 0.0
      %654 = vmatmul.mubr.f32.gmra.mrb[0].mxu0 %v332
      %v655 = vpop.f32.mrb[0].mxu0
      %v656 = vadd.f32 %v511, %v655
      %v657 = vpop.f32.mrb[0].mxu0
      %658 = vmatprep.mubr.f32.mxu0 0.0
      %659 = vmatmul.mubr.f32.gmra.mrb[0].mxu0 %v335
      %v660 = vpop.f32.mrb[0].mxu0
      %v661 = vadd.f32 %v516, %v660
      %v662 = vpop.f32.mrb[0].mxu0
      %663 = vmatprep.mubr.f32.mxu0 0.0
      %664 = vmatmul.mubr.f32.gmra.mrb[0].mxu0 %v338
      %v665 = vpop.f32.mrb[0].mxu0
      %v666 = vadd.f32 %v521, %v665
      %v667 = vpop.f32.mrb[0].mxu0
      %668 = vmatprep.mubr.f32.mxu0 0.0
      %669 = vmatmul.mubr.f32.gmra.mrb[0].mxu0 %v341
      %v670 = vpop.f32.mrb[0].mxu0
      %v671 = vadd.f32 %v526, %v670
      %v672 = vpop.f32.mrb[0].mxu0
      %673 = vmatprep.mubr.f32.mxu0 0.0
      %674 = vmatmul.mubr.f32.gmra.mrb[0].mxu0 %v344
      %v675 = vpop.f32.mrb[0].mxu0
      %v676 = vadd.f32 %v531, %v675
      %v677 = vpop.f32.mrb[0].mxu0
      %678 = vmatprep.mubr.f32.mxu0 0.0
      %679 = vmatmul.mubr.f32.gmra.mrb[0].mxu0 %v347
      %v680 = vpop.f32.mrb[0].mxu0
      %v681 = vadd.f32 %v536, %v680
      %v682 = vpop.f32.mrb[0].mxu0
      %683 = vmatprep.mubr.f32.mxu0 0.0
      %684 = vmatmul.mubr.f32.gmra.mrb[0].mxu0 %v350
      %v685 = vpop.f32.mrb[0].mxu0
      %v686 = vadd.f32 %v541, %v685
      %v687 = vpop.f32.mrb[0].mxu0
      %688 = vdwg.mxu0
      %v689 = vadd.f32 %v287, %v611
      %v690 = vadd.f32 %v288, %v616
      %v691 = vadd.f32 %v289, %v621
      %v692 = vadd.f32 %v290, %v626
      %v693 = vadd.f32 %v291, %v631
      %v694 = vadd.f32 %v292, %v636
      %v695 = vadd.f32 %v293, %v641
      %v696 = vadd.f32 %v294, %v646
      %v697 = vadd.f32 %v295, %v651
      %v698 = vadd.f32 %v296, %v656
      %v699 = vadd.f32 %v297, %v661
      %v700 = vadd.f32 %v298, %v666
      %v701 = vadd.f32 %v299, %v671
      %v702 = vadd.f32 %v300, %v676
      %v703 = vadd.f32 %v301, %v681
      %v704 = vadd.f32 %v302, %v686
      %705 = vst [vmem:[#allocation2] sm:$0xff] %v689
      %706 = vst [vmem:[#allocation2 + $0x8] sm:$0xff] %v690
      %707 = vst [vmem:[#allocation2 + $0x10] sm:$0xff] %v691
      %708 = vst [vmem:[#allocation2 + $0x18] sm:$0xff] %v692
      %709 = vst [vmem:[#allocation2 + $0x20] sm:$0xff] %v693
      %710 = vst [vmem:[#allocation2 + $0x28] sm:$0xff] %v694
      %711 = vst [vmem:[#allocation2 + $0x30] sm:$0xff] %v695
      %712 = vst [vmem:[#allocation2 + $0x38] sm:$0xff] %v696
      %713 = vst [vmem:[#allocation2 + $0x40] sm:$0xff] %v697
      %714 = vst [vmem:[#allocation2 + $0x48] sm:$0xff] %v698
      %715 = vst [vmem:[#allocation2 + $0x50] sm:$0xff] %v699
      %716 = vst [vmem:[#allocation2 + $0x58] sm:$0xff] %v700
      %717 = vst [vmem:[#allocation2 + $0x60] sm:$0xff] %v701
      %718 = vst [vmem:[#allocation2 + $0x68] sm:$0xff] %v702
      %719 = vst [vmem:[#allocation2 + $0x70] sm:$0xff] %v703
      %720 = vst [vmem:[#allocation2 + $0x78] sm:$0xff] %v704
      // Predicated region
      $region37: #{rawnet3_forward.21} parent=31 // pred_check
        %p721 = pneg %p267
      $region38: #{rawnet3_forward.21} parent=31 // pred_check_branch
        %723 = sbr.rel (%p721) target = $region40
      $region39: #{rawnet3_forward.21} parent=31 // pred_region
        %v724 = vld [vmem:[#allocation2] sm:$0xff]
        %v725 = vld [vmem:[#allocation2 + $0x8] sm:$0xff]
        %v726 = vld [vmem:[#allocation2 + $0x10] sm:$0xff]
        %v727 = vld [vmem:[#allocation2 + $0x18] sm:$0xff]
        %v728 = vld [vmem:[#allocation2 + $0x20] sm:$0xff]
        %v729 = vld [vmem:[#allocation2 + $0x28] sm:$0xff]
        %v730 = vld [vmem:[#allocation2 + $0x30] sm:$0xff]
        %v731 = vld [vmem:[#allocation2 + $0x38] sm:$0xff]
        %v732 = vld [vmem:[#allocation2 + $0x40] sm:$0xff]
        %v733 = vld [vmem:[#allocation2 + $0x48] sm:$0xff]
        %v734 = vld [vmem:[#allocation2 + $0x50] sm:$0xff]
        %v735 = vld [vmem:[#allocation2 + $0x58] sm:$0xff]
        %v736 = vld [vmem:[#allocation2 + $0x60] sm:$0xff]
        %v737 = vld [vmem:[#allocation2 + $0x68] sm:$0xff]
        %v738 = vld [vmem:[#allocation2 + $0x70] sm:$0xff]
        %v739 = vld [vmem:[#allocation2 + $0x78] sm:$0xff]
        %v740 = vld [vmem:[%s257] sm:$0x1]
        %v742 = vlaneseq
        %v743 = vshrl.u32 %v742, 7
        %v744 = vsub.s32 0, %v743
        %v745 = vrot.slane %v740, %v744
        %v747 = vadd.f32 %v724, %v745
        %v748 = vadd.f32 %v725, %v745
        %v749 = vadd.f32 %v726, %v745
        %v750 = vadd.f32 %v727, %v745
        %v751 = vadd.f32 %v728, %v745
        %v752 = vadd.f32 %v729, %v745
        %v753 = vadd.f32 %v730, %v745
        %v754 = vadd.f32 %v731, %v745
        %v755 = vadd.f32 %v732, %v745
        %v756 = vadd.f32 %v733, %v745
        %v757 = vadd.f32 %v734, %v745
        %v758 = vadd.f32 %v735, %v745
        %v759 = vadd.f32 %v736, %v745
        %v760 = vadd.f32 %v737, %v745
        %v761 = vadd.f32 %v738, %v745
        %v762 = vadd.f32 %v739, %v745
        %763 = vst [vmem:[%s265] sm:$0xff] %v747
        %764 = vst [vmem:[%s265 + $0x8] sm:$0xff] %v748
        %765 = vst [vmem:[%s265 + $0x10] sm:$0xff] %v749
        %766 = vst [vmem:[%s265 + $0x18] sm:$0xff] %v750
        %767 = vst [vmem:[%s265 + $0x20] sm:$0xff] %v751
        %768 = vst [vmem:[%s265 + $0x28] sm:$0xff] %v752
        %769 = vst [vmem:[%s265 + $0x30] sm:$0xff] %v753
        %770 = vst [vmem:[%s265 + $0x38] sm:$0xff] %v754
        %771 = vst [vmem:[%s265 + $0x40] sm:$0xff] %v755
        %772 = vst [vmem:[%s265 + $0x48] sm:$0xff] %v756
        %773 = vst [vmem:[%s265 + $0x50] sm:$0xff] %v757
        %774 = vst [vmem:[%s265 + $0x58] sm:$0xff] %v758
        %775 = vst [vmem:[%s265 + $0x60] sm:$0xff] %v759
        %776 = vst [vmem:[%s265 + $0x68] sm:$0xff] %v760
        %777 = vst [vmem:[%s265 + $0x70] sm:$0xff] %v761
        %778 = vst [vmem:[%s265 + $0x78] sm:$0xff] %v762
      $region40: #{rawnet3_forward.21} parent=31 // pred_fallthru
        _
      %s779 = smul.u32 16, %s19
      %p780 = scmp.lt.s32.totalorder %s779, 47
      %s781 = scalar_select %p780, %s779, 47
      %p782 = scmp.lt.s32.totalorder %s20, 0
      %s783 = scalar_select %p782, %s20, 0
      %s784 = sadd.s32 %s783, %s781
      %s785 = smul.addr %s784, 8
      %s786 = scalar_lea.vmem %s3, %s785
      // Predicated region
      $region41: #{rawnet3_forward.21} parent=31 // pred_check
        %p787 = pneg %p135
      $region42: #{rawnet3_forward.21} parent=31 // pred_check_branch
        %789 = sbr.rel (%p787) target = $region44
      $region43: #{rawnet3_forward.21} parent=31 // pred_region
        %s790 = smul.u32 16, %s19
      $region44: #{rawnet3_forward.21} parent=31 // pred_fallthru
        _
    $region32: #{rawnet3_forward.21} parent=5 // pred_fallthru
      _
    %p791 = scmp.le.s32.totalorder 2, %s9
    // Predicated region
    $region45: #{rawnet3_forward.21} parent=5 // pred_check
      %p792 = pneg %p791
    $region46: #{rawnet3_forward.21} parent=5 // pred_check_branch
      %794 = sbr.rel (%p792) target = $region48
    $region47: #{rawnet3_forward.21} parent=5 // pred_region
      %s795 = ssub.s32 %s9, 2
      // Predicated region
      $region49: #{rawnet3_forward.21} parent=47 // pred_check
        %p796 = pneg %p141
      $region50: #{rawnet3_forward.21} parent=47 // pred_check_branch
        %798 = sbr.rel (%p796) target = $region52
      $region51: #{rawnet3_forward.21} parent=47 // pred_region
        %s799 = smul.u32 16, %s22
        %p800 = scmp.lt.s32.totalorder %s799, 47
        %s801 = scalar_select %p800, %s799, 47
        %p802 = scmp.lt.s32.totalorder %s23, 0
        %s803 = scalar_select %p802, %s23, 0
        %s804 = sadd.s32 %s803, %s801
        %s805 = smul.addr %s804, 8
        %s806 = scalar_lea.vmem %s3, %s805
      $region52: #{rawnet3_forward.21} parent=47 // pred_fallthru
        _
    $region48: #{rawnet3_forward.21} parent=5 // pred_fallthru
      _
  $region6: #{rawnet3_forward.21} parent=0 // loop_footer
    %s13 = sadd.s32 1, %s9
  $region7: #{rawnet3_forward.21} parent=0 // loop_footer_branch
    %8 = sbr.rel target = $region3
  $region8: #{rawnet3_forward.21} parent=0 // loop_exit
    _

// kernel: rawnet3_forward.23
$region0: #{rawnet3_forward.23}
  #allocation0 [shape = 'u32[]', space=smem, size = 0x4, offset = 0x4, fixed_abs, tag = 'smem constant byte address 0x4 - core index']
  #allocation1 [shape = 'u32[144,128]{1,0:T(1,128)}', space=vmem, size = 0x12000, scoped, tag = 'internal scratch']
  #allocation2 [shape = 'f32[128,128]{1,0:T(8,128)}', space=vmem, size = 0x10000, scoped, tag = 'scratch operand']
  %s0 = inlined_call_operand.vmem [shape: bf16[384,128], index: 0, kind: input, shape index: {}]
  %s1 = inlined_call_operand.vmem [shape: bf16[128,128], index: 1, kind: input, shape index: {}]
  %s2 = inlined_call_operand.vmem [shape: f32[1,128], index: 2, kind: input, shape index: {}]
  %s3 = inlined_call_operand.vmem [shape: f32[384,128], index: 3, kind: output, shape index: {}]
  %s4 = sld [smem:[#allocation0]]
  $region53: #{rawnet3_forward.23} parent=0
    _
  %s6 = ssub.s32 1, %s4
  %s7 = scalar_select 0, %s6, %s4
  loop: start=0, step=1, limit=5
  $region2: #{rawnet3_forward.23} parent=0 // loop_pre_header
    _
  $region3: #{rawnet3_forward.23} parent=0 // loop_header
    %s9 = sphi 0, %s13
    %p10 = scmp.ge.s32.totalorder %s9, 5
    %s16 = sphi 0, %s35
    %s17 = sphi 0, %s31
    %s18 = sphi 0, %s27
    %s19 = sphi 0, %s16
    %s20 = sphi 0, %s17
    %s21 = sphi 0, %s18
    %s22 = sphi 0, %s19
    %s23 = sphi 0, %s20
    %s24 = sphi 0, %s21
    %s40 = sphi 0, %s42
    %s43 = sphi 0, %s40
    %s44 = sphi 0, %s43
    %s60 = sphi 0, %s44
    %s68 = sphi 0, %s70
    %s71 = sphi 0, %s68
    %s72 = sphi 0, %s71
    %s88 = sphi 0, %s72
    %s94 = sphi 0, %s96
    %s97 = sphi 0, %s94
    %s98 = sphi 0, %s97
    %s114 = sphi 0, %s98
    %s122 = sphi 0, %s124
    %s125 = sphi 0, %s122
    %s126 = sphi 0, %s125
    %s142 = sphi 0, %s126
  $region4: #{rawnet3_forward.23} parent=0 // loop_header_branch
    %12 = sbr.rel (%p10) target = $region8
  $region5: #{rawnet3_forward.23} parent=0 // loop_body
    %s14 = ssub.s32 %s9, 1
    %s15 = ssub.s32 %s9, 2
    %s25 = sadd.s32 1, %s18
    %p26 = scmp.ge.s32.totalorder %s25, 1
    %s27 = scalar_select %p26, 0, %s25
    %s28 = sadd.s32 1, %s17
    %s29 = scalar_select %p26, %s28, %s17
    %p30 = scmp.ge.s32.totalorder %s29, 1
    %s31 = scalar_select %p30, 0, %s29
    %s32 = sadd.s32 1, %s16
    %s33 = scalar_select %p30, %s32, %s16
    %p34 = scmp.ge.s32.totalorder %s33, 3
    %s35 = scalar_select %p34, 0, %s33
    %s36 = ssub.s32 %s16, %s35
    %s37 = ssub.s32 %s18, %s27
    %s38 = sor.u32 %s36, %s37
    %p39 = scmp.eq.s32.totalorder %s38, 0
    %s41 = sadd.s32 %s40, 1
    %s42 = scalar_select %p39, %s40, %s41
    %p45 = pneg %p39
    %p46 = scmp.eq.s32.totalorder %s9, 2
    %p47 = por %p45, %p46
    %p48 = scmp.ne.s32.totalorder %s40, %s43
    %p49 = scmp.eq.s32.totalorder %s9, 0
    %p50 = por %p48, %p49
    %p51 = scmp.ne.s32.totalorder %s40, %s43
    %p52 = scmp.eq.s32.totalorder %s14, 2
    %p53 = por %p51, %p52
    %p54 = scmp.ne.s32.totalorder %s43, %s44
    %p55 = scmp.eq.s32.totalorder %s14, 0
    %p56 = por %p54, %p55
    %p57 = scmp.ne.s32.totalorder %s43, %s44
    %p58 = scmp.eq.s32.totalorder %s15, 2
    %p59 = por %p57, %p58
    %p61 = scmp.ne.s32.totalorder %s44, %s60
    %p62 = scmp.eq.s32.totalorder %s15, 0
    %p63 = por %p61, %p62
    %s64 = ssub.s32 %s18, %s27
    %s65 = ssub.s32 %s17, %s31
    %s66 = sor.u32 %s64, %s65
    %p67 = scmp.eq.s32.totalorder %s66, 0
    %s69 = sadd.s32 %s68, 1
    %s70 = scalar_select %p67, %s68, %s69
    %p73 = pneg %p67
    %p74 = scmp.eq.s32.totalorder %s9, 2
    %p75 = por %p73, %p74
    %p76 = scmp.ne.s32.totalorder %s68, %s71
    %p77 = scmp.eq.s32.totalorder %s9, 0
    %p78 = por %p76, %p77
    %p79 = scmp.ne.s32.totalorder %s68, %s71
    %p80 = scmp.eq.s32.totalorder %s14, 2
    %p81 = por %p79, %p80
    %p82 = scmp.ne.s32.totalorder %s71, %s72
    %p83 = scmp.eq.s32.totalorder %s14, 0
    %p84 = por %p82, %p83
    %p85 = scmp.ne.s32.totalorder %s71, %s72
    %p86 = scmp.eq.s32.totalorder %s15, 2
    %p87 = por %p85, %p86
    %p89 = scmp.ne.s32.totalorder %s72, %s88
    %p90 = scmp.eq.s32.totalorder %s15, 0
    %p91 = por %p89, %p90
    %s92 = ssub.s32 %s17, %s31
    %p93 = scmp.eq.s32.totalorder %s92, 0
    %s95 = sadd.s32 %s94, 1
    %s96 = scalar_select %p93, %s94, %s95
    %p99 = pneg %p93
    %p100 = scmp.eq.s32.totalorder %s9, 2
    %p101 = por %p99, %p100
    %p102 = scmp.ne.s32.totalorder %s94, %s97
    %p103 = scmp.eq.s32.totalorder %s9, 0
    %p104 = por %p102, %p103
    %p105 = scmp.ne.s32.totalorder %s94, %s97
    %p106 = scmp.eq.s32.totalorder %s14, 2
    %p107 = por %p105, %p106
    %p108 = scmp.ne.s32.totalorder %s97, %s98
    %p109 = scmp.eq.s32.totalorder %s14, 0
    %p110 = por %p108, %p109
    %p111 = scmp.ne.s32.totalorder %s97, %s98
    %p112 = scmp.eq.s32.totalorder %s15, 2
    %p113 = por %p111, %p112
    %p115 = scmp.ne.s32.totalorder %s98, %s114
    %p116 = scmp.eq.s32.totalorder %s15, 0
    %p117 = por %p115, %p116
    %s118 = ssub.s32 %s16, %s35
    %s119 = ssub.s32 %s17, %s31
    %s120 = sor.u32 %s118, %s119
    %p121 = scmp.eq.s32.totalorder %s120, 0
    %s123 = sadd.s32 %s122, 1
    %s124 = scalar_select %p121, %s122, %s123
    %p127 = pneg %p121
    %p128 = scmp.eq.s32.totalorder %s9, 2
    %p129 = por %p127, %p128
    %p130 = scmp.ne.s32.totalorder %s122, %s125
    %p131 = scmp.eq.s32.totalorder %s9, 0
    %p132 = por %p130, %p131
    %p133 = scmp.ne.s32.totalorder %s122, %s125
    %p134 = scmp.eq.s32.totalorder %s14, 2
    %p135 = por %p133, %p134
    %p136 = scmp.ne.s32.totalorder %s125, %s126
    %p137 = scmp.eq.s32.totalorder %s14, 0
    %p138 = por %p136, %p137
    %p139 = scmp.ne.s32.totalorder %s125, %s126
    %p140 = scmp.eq.s32.totalorder %s15, 2
    %p141 = por %p139, %p140
    %p143 = scmp.ne.s32.totalorder %s126, %s142
    %p144 = scmp.eq.s32.totalorder %s15, 0
    %p145 = por %p143, %p144
    %p146 = scmp.le.s32.totalorder 1, %s9
    %p147 = scmp.lt.s32.totalorder %s9, 4
    %p148 = pnand %p146, %p147
    %p149 = pneg %p148
    // Predicated region
    $region9: #{rawnet3_forward.23} parent=5 // pred_check
      _
    $region10: #{rawnet3_forward.23} parent=5 // pred_check_branch
      %151 = sbr.rel (%p148) target = $region12
    $region11: #{rawnet3_forward.23} parent=5 // pred_region
      %s152 = ssub.s32 %s9, 1
      // Predicated region
      $region13: #{rawnet3_forward.23} parent=11 // pred_check
        %p153 = pneg %p84
      $region14: #{rawnet3_forward.23} parent=11 // pred_check_branch
        %155 = sbr.rel (%p153) target = $region16
      $region15: #{rawnet3_forward.23} parent=11 // pred_region
        %s156 = smul.u32 16, %s21
        %p157 = scmp.lt.s32.totalorder %s156, 15
        %s158 = scalar_select %p157, %s156, 15
        %p159 = scmp.lt.s32.totalorder %s20, 0
        %s160 = scalar_select %p159, %s20, 0
        %s161 = sadd.s32 %s160, %s158
        %s162 = smul.addr %s161, 4
        %s163 = scalar_lea.vmem %s1, %s162
        %s164 = smul.u32 16, %s21
      $region16: #{rawnet3_forward.23} parent=11 // pred_fallthru
        _
      // Predicated region
      $region17: #{rawnet3_forward.23} parent=11 // pred_check
        %p165 = pneg %p110
      $region18: #{rawnet3_forward.23} parent=11 // pred_check_branch
        %167 = sbr.rel (%p165) target = $region20
      $region19: #{rawnet3_forward.23} parent=11 // pred_region
        %p168 = scmp.lt.s32.totalorder %s20, 0
        %s169 = scalar_select %p168, %s20, 0
        %s170 = scalar_lea.vmem %s2, %s169
      $region20: #{rawnet3_forward.23} parent=11 // pred_fallthru
        _
    $region12: #{rawnet3_forward.23} parent=5 // pred_fallthru
      _
    %p171 = scmp.lt.s32.totalorder %s9, 3
    // Predicated region
    $region21: #{rawnet3_forward.23} parent=5 // pred_check
      %p172 = pneg %p171
    $region22: #{rawnet3_forward.23} parent=5 // pred_check_branch
      %174 = sbr.rel (%p172) target = $region24
    $region23: #{rawnet3_forward.23} parent=5 // pred_region
      // Predicated region
      $region25: #{rawnet3_forward.23} parent=23 // pred_check
        %p175 = pneg %p50
      $region26: #{rawnet3_forward.23} parent=23 // pred_check_branch
        %177 = sbr.rel (%p175) target = $region28
      $region27: #{rawnet3_forward.23} parent=23 // pred_region
        %s178 = smul.u32 16, %s16
        %p179 = scmp.lt.s32.totalorder %s178, 47
        %s180 = scalar_select %p179, %s178, 47
        %p181 = scmp.lt.s32.totalorder %s18, 0
        %s182 = scalar_select %p181, %s18, 0
        %s183 = sadd.s32 %s182, %s180
        %s184 = smul.addr %s183, 4
        %s185 = scalar_lea.vmem %s0, %s184
        %s186 = smul.u32 16, %s16
      $region28: #{rawnet3_forward.23} parent=23 // pred_fallthru
        _
    $region24: #{rawnet3_forward.23} parent=5 // pred_fallthru
      _
    %p187 = scmp.le.s32.totalorder 1, %s9
    %p188 = scmp.lt.s32.totalorder %s9, 4
    %p189 = pnand %p187, %p188
    %p190 = pneg %p189
    // Predicated region
    $region29: #{rawnet3_forward.23} parent=5 // pred_check
      _
    $region30: #{rawnet3_forward.23} parent=5 // pred_check_branch
      %192 = sbr.rel (%p189) target = $region32
    $region31: #{rawnet3_forward.23} parent=5 // pred_region
      %s193 = ssub.s32 %s9, 1
      %s194 = smul.u32 16, %s19
      %p195 = scmp.lt.s32.totalorder %s194, 47
      %s196 = scalar_select %p195, %s194, 47
      %p197 = scmp.lt.s32.totalorder %s21, 0
      %s198 = scalar_select %p197, %s21, 0
      %s199 = sadd.s32 %s198, %s196
      %s200 = smul.addr %s199, 4
      %s201 = scalar_lea.vmem %s0, %s200
      %p202 = pneg %p56
      %p203 = pneg %p53
      %s204 = smul.u32 16, %s21
      %p205 = scmp.lt.s32.totalorder %s204, 15
      %s206 = scalar_select %p205, %s204, 15
      %p207 = scmp.lt.s32.totalorder %s20, 0
      %s208 = scalar_select %p207, %s20, 0
      %s209 = sadd.s32 %s208, %s206
      %s210 = smul.addr %s209, 4
      %s211 = scalar_lea.vmem %s1, %s210
      %p212 = pneg %p84
      %p213 = pneg %p81
      %p214 = scmp.lt.s32.totalorder %s20, 0
      %s215 = scalar_select %p214, %s20, 0
      %s216 = scalar_lea.vmem %s2, %s215
      %p217 = pneg %p110
      %p218 = pneg %p107
      %p219 = pneg %p138
      %p220 = pneg %p135
      %s221 = smul.u32 16, %s19
      %p222 = scmp.lt.s32.totalorder %s221, 47
      %s223 = scalar_select %p222, %s221, 47
      %p224 = scmp.lt.s32.totalorder %s20, 0
      %s225 = scalar_select %p224, %s20, 0
      %s226 = sadd.s32 %s225, %s223
      %s227 = smul.addr %s226, 8
      %s228 = scalar_lea.vmem %s3, %s227
      %s229 = smul.u32 16, %s19
      %p230 = scmp.lt.s32.totalorder %s229, 47
      %s231 = scalar_select %p230, %s229, 47
      %p232 = scmp.lt.s32.totalorder %s21, 0
      %s233 = scalar_select %p232, %s21, 0
      %s234 = sadd.s32 %s233, %s231
      %s235 = smul.addr %s234, 4
      %s236 = scalar_lea.vmem %s0, %s235
      %s237 = smul.u32 16, %s19
      %s238 = smul.u32 16, %s21
      %p239 = scmp.lt.s32.totalorder %s238, 15
      %s240 = scalar_select %p239, %s238, 15
      %p241 = scmp.lt.s32.totalorder %s20, 0
      %s242 = scalar_select %p241, %s20, 0
      %s243 = sadd.s32 %s242, %s240
      %s244 = smul.addr %s243, 4
      %s245 = scalar_lea.vmem %s1, %s244
      %s246 = smul.u32 16, %s21
      %p247 = scmp.lt.s32.totalorder %s20, 0
      %s248 = scalar_select %p247, %s20, 0
      %s249 = scalar_lea.vmem %s2, %s248
      %s250 = smul.u32 16, %s19
      %p251 = scmp.lt.s32.totalorder %s250, 47
      %s252 = scalar_select %p251, %s250, 47
      %p253 = scmp.lt.s32.totalorder %s20, 0
      %s254 = scalar_select %p253, %s20, 0
      %s255 = sadd.s32 %s254, %s252
      %s256 = smul.addr %s255, 8
      %s257 = scalar_lea.vmem %s3, %s256
      %s258 = smul.u32 16, %s19
      %p260 = scmp.eq.s32.totalorder %s21, 0
      // Predicated region
      $region33: #{rawnet3_forward.23} parent=31 // pred_check
        %p261 = pneg %p260
      $region34: #{rawnet3_forward.23} parent=31 // pred_check_branch
        %263 = sbr.rel (%p261) target = $region36
      $region35: #{rawnet3_forward.23} parent=31 // pred_region
        %264 = vst [vmem:[#allocation2] sm:$0xff] 0.0
        %265 = vst [vmem:[#allocation2 + $0x8] sm:$0xff] 0.0
        %266 = vst [vmem:[#allocation2 + $0x10] sm:$0xff] 0.0
        %267 = vst [vmem:[#allocation2 + $0x18] sm:$0xff] 0.0
        %268 = vst [vmem:[#allocation2 + $0x20] sm:$0xff] 0.0
        %269 = vst [vmem:[#allocation2 + $0x28] sm:$0xff] 0.0
        %270 = vst [vmem:[#allocation2 + $0x30] sm:$0xff] 0.0
        %271 = vst [vmem:[#allocation2 + $0x38] sm:$0xff] 0.0
        %272 = vst [vmem:[#allocation2 + $0x40] sm:$0xff] 0.0
        %273 = vst [vmem:[#allocation2 + $0x48] sm:$0xff] 0.0
        %274 = vst [vmem:[#allocation2 + $0x50] sm:$0xff] 0.0
        %275 = vst [vmem:[#allocation2 + $0x58] sm:$0xff] 0.0
        %276 = vst [vmem:[#allocation2 + $0x60] sm:$0xff] 0.0
        %277 = vst [vmem:[#allocation2 + $0x68] sm:$0xff] 0.0
        %278 = vst [vmem:[#allocation2 + $0x70] sm:$0xff] 0.0
        %279 = vst [vmem:[#allocation2 + $0x78] sm:$0xff] 0.0
      $region36: #{rawnet3_forward.23} parent=31 // pred_fallthru
        _
      %v280 = vld [vmem:[#allocation2] sm:$0xff]
      %v281 = vld [vmem:[#allocation2 + $0x8] sm:$0xff]
      %v282 = vld [vmem:[#allocation2 + $0x10] sm:$0xff]
      %v283 = vld [vmem:[#allocation2 + $0x18] sm:$0xff]
      %v284 = vld [vmem:[#allocation2 + $0x20] sm:$0xff]
      %v285 = vld [vmem:[#allocation2 + $0x28] sm:$0xff]
      %v286 = vld [vmem:[#allocation2 + $0x30] sm:$0xff]
      %v287 = vld [vmem:[#allocation2 + $0x38] sm:$0xff]
      %v288 = vld [vmem:[#allocation2 + $0x40] sm:$0xff]
      %v289 = vld [vmem:[#allocation2 + $0x48] sm:$0xff]
      %v290 = vld [vmem:[#allocation2 + $0x50] sm:$0xff]
      %v291 = vld [vmem:[#allocation2 + $0x58] sm:$0xff]
      %v292 = vld [vmem:[#allocation2 + $0x60] sm:$0xff]
      %v293 = vld [vmem:[#allocation2 + $0x68] sm:$0xff]
      %v294 = vld [vmem:[#allocation2 + $0x70] sm:$0xff]
      %v295 = vld [vmem:[#allocation2 + $0x78] sm:$0xff]
      %v296 = vld [vmem:[%s236] sm:$0xf]
      %v297 = vld [vmem:[%s236 + $0x4] sm:$0xf]
      %v298 = vld [vmem:[%s236 + $0x8] sm:$0xf]
      %v299 = vld [vmem:[%s236 + $0xc] sm:$0xf]
      %v300 = vld [vmem:[%s236 + $0x10] sm:$0xf]
      %v301 = vld [vmem:[%s236 + $0x14] sm:$0xf]
      %v302 = vld [vmem:[%s236 + $0x18] sm:$0xf]
      %v303 = vld [vmem:[%s236 + $0x1c] sm:$0xf]
      %v304 = vld [vmem:[%s236 + $0x20] sm:$0xf]
      %v305 = vld [vmem:[%s236 + $0x24] sm:$0xf]
      %v306 = vld [vmem:[%s236 + $0x28] sm:$0xf]
      %v307 = vld [vmem:[%s236 + $0x2c] sm:$0xf]
      %v308 = vld [vmem:[%s236 + $0x30] sm:$0xf]
      %v309 = vld [vmem:[%s236 + $0x34] sm:$0xf]
      %v310 = vld [vmem:[%s236 + $0x38] sm:$0xf]
      %v311 = vld [vmem:[%s236 + $0x3c] sm:$0xf]
      %v312 = vld [vmem:[%s245] sm:$0xf]
      %v313 = vld [vmem:[%s245 + $0x4] sm:$0xf]
      %v314 = vld [vmem:[%s245 + $0x8] sm:$0xf]
      %v315 = vld [vmem:[%s245 + $0xc] sm:$0xf]
      %v316 = vld [vmem:[%s245 + $0x10] sm:$0xf]
      %v317 = vld [vmem:[%s245 + $0x14] sm:$0xf]
      %v318 = vld [vmem:[%s245 + $0x18] sm:$0xf]
      %v319 = vld [vmem:[%s245 + $0x1c] sm:$0xf]
      %v320 = vld [vmem:[%s245 + $0x20] sm:$0xf]
      %v321 = vld [vmem:[%s245 + $0x24] sm:$0xf]
      %v322 = vld [vmem:[%s245 + $0x28] sm:$0xf]
      %v323 = vld [vmem:[%s245 + $0x2c] sm:$0xf]
      %v324 = vld [vmem:[%s245 + $0x30] sm:$0xf]
      %v325 = vld [vmem:[%s245 + $0x34] sm:$0xf]
      %v326 = vld [vmem:[%s245 + $0x38] sm:$0xf]
      %v327 = vld [vmem:[%s245 + $0x3c] sm:$0xf]
      %v344 = vunpack.c.l.b16 %v296
      %v345 = vunpack.c.l.b16 %v297
      %v346 = vunpack.c.l.b16 %v298
      %v347 = vunpack.c.l.b16 %v299
      %v348 = vunpack.c.l.b16 %v300
      %v349 = vunpack.c.l.b16 %v301
      %v350 = vunpack.c.l.b16 %v302
      %v351 = vunpack.c.l.b16 %v303
      %v352 = vunpack.c.l.b16 %v304
      %v353 = vunpack.c.l.b16 %v305
      %v354 = vunpack.c.l.b16 %v306
      %v355 = vunpack.c.l.b16 %v307
      %v356 = vunpack.c.l.b16 %v308
      %v357 = vunpack.c.l.b16 %v309
      %v358 = vunpack.c.l.b16 %v310
      %v359 = vunpack.c.l.b16 %v311
      %v360 = vpack.c.b16 %v345, %v344
      %v361 = vpack.c.b16 %v347, %v346
      %v362 = vpack.c.b16 %v349, %v348
      %v363 = vpack.c.b16 %v351, %v350
      %v364 = vpack.c.b16 %v353, %v352
      %v365 = vpack.c.b16 %v355, %v354
      %v366 = vpack.c.b16 %v357, %v356
      %v367 = vpack.c.b16 %v359, %v358
      %v392 = vunpack.c.l.b16 %v312
      %v393 = vunpack.c.l.b16 %v313
      %v394 = vunpack.c.l.b16 %v314
      %v395 = vunpack.c.l.b16 %v315
      %v396 = vunpack.c.l.b16 %v316
      %v397 = vunpack.c.l.b16 %v317
      %v398 = vunpack.c.l.b16 %v318
      %v399 = vunpack.c.l.b16 %v319
      %v400 = vunpack.c.l.b16 %v320
      %v401 = vunpack.c.l.b16 %v321
      %v402 = vunpack.c.l.b16 %v322
      %v403 = vunpack.c.l.b16 %v323
      %v404 = vunpack.c.l.b16 %v324
      %v405 = vunpack.c.l.b16 %v325
      %v406 = vunpack.c.l.b16 %v326
      %v407 = vunpack.c.l.b16 %v327
      %v408 = vpack.c.b16 %v393, %v392
      %v409 = vpack.c.b16 %v395, %v394
      %v410 = vpack.c.b16 %v397, %v396
      %v411 = vpack.c.b16 %v399, %v398
      %v412 = vpack.c.b16 %v401, %v400
      %v413 = vpack.c.b16 %v403, %v402
      %v414 = vpack.c.b16 %v405, %v404
      %v415 = vpack.c.b16 %v407, %v406
      %424 = vmatprep.subr.bf16.mxu0 0
      %425 = vmatpush1.bf16.msra.mxu0 %v408
      %426 = vmatprep.subr.bf16.mxu0 0
      %427 = vmatpush1.bf16.msra.mxu0 %v409
      %428 = vmatprep.subr.bf16.mxu0 0
      %429 = vmatpush1.bf16.msra.mxu0 %v410
      %430 = vmatprep.subr.bf16.mxu0 0
      %431 = vmatpush1.bf16.msra.mxu0 %v411
      %432 = vmatprep.subr.bf16.mxu0 0
      %433 = vmatpush1.bf16.msra.mxu0 %v412
      %434 = vmatprep.subr.bf16.mxu0 0
      %435 = vmatpush1.bf16.msra.mxu0 %v413
      %436 = vmatprep.subr.bf16.mxu0 0
      %437 = vmatpush1.bf16.msra.mxu0 %v414
      %438 = vmatprep.subr.bf16.mxu0 0
      %439 = vmatpush1.bf16.msra.mxu0 %v415
      %440 = vmatprep.subr.bf16.mxu0 0
      %441 = vmatpush1.bf16.msra.mxu0 0
      %442 = vmatprep.subr.bf16.mxu0 0
      %443 = vmatpush1.bf16.msra.mxu0 0
      %444 = vmatprep.subr.bf16.mxu0 0
      %445 = vmatpush1.bf16.msra.mxu0 0
      %446 = vmatprep.subr.bf16.mxu0 0
      %447 = vmatpush1.bf16.msra.mxu0 0
      %448 = vmatprep.subr.bf16.mxu0 0
      %449 = vmatpush1.bf16.msra.mxu0 0
      %450 = vmatprep.subr.bf16.mxu0 0
      %451 = vmatpush1.bf16.msra.mxu0 0
      %452 = vmatprep.subr.bf16.mxu0 0
      %453 = vmatpush1.bf16.msra.mxu0 0
      %454 = vmatprep.subr.bf16.mxu0 0
      %455 = vmatpush1.bf16.msra.mxu0 0
      %456 = vmatprep.mubr.bf16.mxu0 0
      %457 = vmatmul.mubr.bf16.gmra.mrb[0].mxu0 %v360
      %v458 = vpop.f32.mrb[0].mxu0
      %v459 = vadd.f32 0.0, %v458
      %v460 = vpop.f32.mrb[0].mxu0
      %v461 = vpop.f32.mrb[0].mxu0
      %v462 = vadd.f32 0.0, %v461
      %v463 = vpop.f32.mrb[0].mxu0
      %464 = vmatprep.mubr.bf16.mxu0 0
      %465 = vmatmul.mubr.bf16.gmra.mrb[0].mxu0 %v361
      %v466 = vpop.f32.mrb[0].mxu0
      %v467 = vadd.f32 0.0, %v466
      %v468 = vpop.f32.mrb[0].mxu0
      %v469 = vpop.f32.mrb[0].mxu0
      %v470 = vadd.f32 0.0, %v469
      %v471 = vpop.f32.mrb[0].mxu0
      %472 = vmatprep.mubr.bf16.mxu0 0
      %473 = vmatmul.mubr.bf16.gmra.mrb[0].mxu0 %v362
      %v474 = vpop.f32.mrb[0].mxu0
      %v475 = vadd.f32 0.0, %v474
      %v476 = vpop.f32.mrb[0].mxu0
      %v477 = vpop.f32.mrb[0].mxu0
      %v478 = vadd.f32 0.0, %v477
      %v479 = vpop.f32.mrb[0].mxu0
      %480 = vmatprep.mubr.bf16.mxu0 0
      %481 = vmatmul.mubr.bf16.gmra.mrb[0].mxu0 %v363
      %v482 = vpop.f32.mrb[0].mxu0
      %v483 = vadd.f32 0.0, %v482
      %v484 = vpop.f32.mrb[0].mxu0
      %v485 = vpop.f32.mrb[0].mxu0
      %v486 = vadd.f32 0.0, %v485
      %v487 = vpop.f32.mrb[0].mxu0
      %488 = vmatprep.mubr.bf16.mxu0 0
      %489 = vmatmul.mubr.bf16.gmra.mrb[0].mxu0 %v364
      %v490 = vpop.f32.mrb[0].mxu0
      %v491 = vadd.f32 0.0, %v490
      %v492 = vpop.f32.mrb[0].mxu0
      %v493 = vpop.f32.mrb[0].mxu0
      %v494 = vadd.f32 0.0, %v493
      %v495 = vpop.f32.mrb[0].mxu0
      %496 = vmatprep.mubr.bf16.mxu0 0
      %497 = vmatmul.mubr.bf16.gmra.mrb[0].mxu0 %v365
      %v498 = vpop.f32.mrb[0].mxu0
      %v499 = vadd.f32 0.0, %v498
      %v500 = vpop.f32.mrb[0].mxu0
      %v501 = vpop.f32.mrb[0].mxu0
      %v502 = vadd.f32 0.0, %v501
      %v503 = vpop.f32.mrb[0].mxu0
      %504 = vmatprep.mubr.bf16.mxu0 0
      %505 = vmatmul.mubr.bf16.gmra.mrb[0].mxu0 %v366
      %v506 = vpop.f32.mrb[0].mxu0
      %v507 = vadd.f32 0.0, %v506
      %v508 = vpop.f32.mrb[0].mxu0
      %v509 = vpop.f32.mrb[0].mxu0
      %v510 = vadd.f32 0.0, %v509
      %v511 = vpop.f32.mrb[0].mxu0
      %512 = vmatprep.mubr.bf16.mxu0 0
      %513 = vmatmul.mubr.bf16.gmra.mrb[0].mxu0 %v367
      %v514 = vpop.f32.mrb[0].mxu0
      %v515 = vadd.f32 0.0, %v514
      %v516 = vpop.f32.mrb[0].mxu0
      %v517 = vpop.f32.mrb[0].mxu0
      %v518 = vadd.f32 0.0, %v517
      %v519 = vpop.f32.mrb[0].mxu0
      %520 = vdwg.mxu0
      %v521 = vadd.f32 %v280, %v459
      %v522 = vadd.f32 %v281, %v462
      %v523 = vadd.f32 %v282, %v467
      %v524 = vadd.f32 %v283, %v470
      %v525 = vadd.f32 %v284, %v475
      %v526 = vadd.f32 %v285, %v478
      %v527 = vadd.f32 %v286, %v483
      %v528 = vadd.f32 %v287, %v486
      %v529 = vadd.f32 %v288, %v491
      %v530 = vadd.f32 %v289, %v494
      %v531 = vadd.f32 %v290, %v499
      %v532 = vadd.f32 %v291, %v502
      %v533 = vadd.f32 %v292, %v507
      %v534 = vadd.f32 %v293, %v510
      %v535 = vadd.f32 %v294, %v515
      %v536 = vadd.f32 %v295, %v518
      %537 = vst [vmem:[#allocation2] sm:$0xff] %v521
      %538 = vst [vmem:[#allocation2 + $0x8] sm:$0xff] %v522
      %539 = vst [vmem:[#allocation2 + $0x10] sm:$0xff] %v523
      %540 = vst [vmem:[#allocation2 + $0x18] sm:$0xff] %v524
      %541 = vst [vmem:[#allocation2 + $0x20] sm:$0xff] %v525
      %542 = vst [vmem:[#allocation2 + $0x28] sm:$0xff] %v526
      %543 = vst [vmem:[#allocation2 + $0x30] sm:$0xff] %v527
      %544 = vst [vmem:[#allocation2 + $0x38] sm:$0xff] %v528
      %545 = vst [vmem:[#allocation2 + $0x40] sm:$0xff] %v529
      %546 = vst [vmem:[#allocation2 + $0x48] sm:$0xff] %v530
      %547 = vst [vmem:[#allocation2 + $0x50] sm:$0xff] %v531
      %548 = vst [vmem:[#allocation2 + $0x58] sm:$0xff] %v532
      %549 = vst [vmem:[#allocation2 + $0x60] sm:$0xff] %v533
      %550 = vst [vmem:[#allocation2 + $0x68] sm:$0xff] %v534
      %551 = vst [vmem:[#allocation2 + $0x70] sm:$0xff] %v535
      %552 = vst [vmem:[#allocation2 + $0x78] sm:$0xff] %v536
      // Predicated region
      $region37: #{rawnet3_forward.23} parent=31 // pred_check
        %p553 = pneg %p260
      $region38: #{rawnet3_forward.23} parent=31 // pred_check_branch
        %555 = sbr.rel (%p553) target = $region40
      $region39: #{rawnet3_forward.23} parent=31 // pred_region
        %v556 = vld [vmem:[#allocation2] sm:$0xff]
        %v557 = vld [vmem:[#allocation2 + $0x8] sm:$0xff]
        %v558 = vld [vmem:[#allocation2 + $0x10] sm:$0xff]
        %v559 = vld [vmem:[#allocation2 + $0x18] sm:$0xff]
        %v560 = vld [vmem:[#allocation2 + $0x20] sm:$0xff]
        %v561 = vld [vmem:[#allocation2 + $0x28] sm:$0xff]
        %v562 = vld [vmem:[#allocation2 + $0x30] sm:$0xff]
        %v563 = vld [vmem:[#allocation2 + $0x38] sm:$0xff]
        %v564 = vld [vmem:[#allocation2 + $0x40] sm:$0xff]
        %v565 = vld [vmem:[#allocation2 + $0x48] sm:$0xff]
        %v566 = vld [vmem:[#allocation2 + $0x50] sm:$0xff]
        %v567 = vld [vmem:[#allocation2 + $0x58] sm:$0xff]
        %v568 = vld [vmem:[#allocation2 + $0x60] sm:$0xff]
        %v569 = vld [vmem:[#allocation2 + $0x68] sm:$0xff]
        %v570 = vld [vmem:[#allocation2 + $0x70] sm:$0xff]
        %v571 = vld [vmem:[#allocation2 + $0x78] sm:$0xff]
        %v572 = vld [vmem:[%s249] sm:$0x1]
        %v574 = vlaneseq
        %v575 = vshrl.u32 %v574, 7
        %v576 = vsub.s32 0, %v575
        %v577 = vrot.slane %v572, %v576
        %v579 = vadd.f32 %v556, %v577
        %v580 = vadd.f32 %v557, %v577
        %v581 = vadd.f32 %v558, %v577
        %v582 = vadd.f32 %v559, %v577
        %v583 = vadd.f32 %v560, %v577
        %v584 = vadd.f32 %v561, %v577
        %v585 = vadd.f32 %v562, %v577
        %v586 = vadd.f32 %v563, %v577
        %v587 = vadd.f32 %v564, %v577
        %v588 = vadd.f32 %v565, %v577
        %v589 = vadd.f32 %v566, %v577
        %v590 = vadd.f32 %v567, %v577
        %v591 = vadd.f32 %v568, %v577
        %v592 = vadd.f32 %v569, %v577
        %v593 = vadd.f32 %v570, %v577
        %v594 = vadd.f32 %v571, %v577
        %v595 = vmax.f32 %v579, 0.0
        %v596 = vmax.f32 %v580, 0.0
        %v597 = vmax.f32 %v581, 0.0
        %v598 = vmax.f32 %v582, 0.0
        %v599 = vmax.f32 %v583, 0.0
        %v600 = vmax.f32 %v584, 0.0
        %v601 = vmax.f32 %v585, 0.0
        %v602 = vmax.f32 %v586, 0.0
        %v603 = vmax.f32 %v587, 0.0
        %v604 = vmax.f32 %v588, 0.0
        %v605 = vmax.f32 %v589, 0.0
        %v606 = vmax.f32 %v590, 0.0
        %v607 = vmax.f32 %v591, 0.0
        %v608 = vmax.f32 %v592, 0.0
        %v609 = vmax.f32 %v593, 0.0
        %v610 = vmax.f32 %v594, 0.0
        %611 = vst [vmem:[%s257] sm:$0xff] %v595
        %612 = vst [vmem:[%s257 + $0x8] sm:$0xff] %v596
        %613 = vst [vmem:[%s257 + $0x10] sm:$0xff] %v597
        %614 = vst [vmem:[%s257 + $0x18] sm:$0xff] %v598
        %615 = vst [vmem:[%s257 + $0x20] sm:$0xff] %v599
        %616 = vst [vmem:[%s257 + $0x28] sm:$0xff] %v600
        %617 = vst [vmem:[%s257 + $0x30] sm:$0xff] %v601
        %618 = vst [vmem:[%s257 + $0x38] sm:$0xff] %v602
        %619 = vst [vmem:[%s257 + $0x40] sm:$0xff] %v603
        %620 = vst [vmem:[%s257 + $0x48] sm:$0xff] %v604
        %621 = vst [vmem:[%s257 + $0x50] sm:$0xff] %v605
        %622 = vst [vmem:[%s257 + $0x58] sm:$0xff] %v606
        %623 = vst [vmem:[%s257 + $0x60] sm:$0xff] %v607
        %624 = vst [vmem:[%s257 + $0x68] sm:$0xff] %v608
        %625 = vst [vmem:[%s257 + $0x70] sm:$0xff] %v609
        %626 = vst [vmem:[%s257 + $0x78] sm:$0xff] %v610
      $region40: #{rawnet3_forward.23} parent=31 // pred_fallthru
        _
      %s627 = smul.u32 16, %s19
      %p628 = scmp.lt.s32.totalorder %s627, 47
      %s629 = scalar_select %p628, %s627, 47
      %p630 = scmp.lt.s32.totalorder %s20, 0
      %s631 = scalar_select %p630, %s20, 0
      %s632 = sadd.s32 %s631, %s629
      %s633 = smul.addr %s632, 8
      %s634 = scalar_lea.vmem %s3, %s633
      // Predicated region
      $region41: #{rawnet3_forward.23} parent=31 // pred_check
        %p635 = pneg %p135
      $region42: #{rawnet3_forward.23} parent=31 // pred_check_branch
        %637 = sbr.rel (%p635) target = $region44
      $region43: #{rawnet3_forward.23} parent=31 // pred_region
        %s638 = smul.u32 16, %s19
      $region44: #{rawnet3_forward.23} parent=31 // pred_fallthru
        _
    $region32: #{rawnet3_forward.23} parent=5 // pred_fallthru
      _
    %p639 = scmp.le.s32.totalorder 2, %s9
    // Predicated region
    $region45: #{rawnet3_forward.23} parent=5 // pred_check
      %p640 = pneg %p639
    $region46: #{rawnet3_forward.23} parent=5 // pred_check_branch
      %642 = sbr.rel (%p640) target = $region48
    $region47: #{rawnet3_forward.23} parent=5 // pred_region
      %s643 = ssub.s32 %s9, 2
      // Predicated region
      $region49: #{rawnet3_forward.23} parent=47 // pred_check
        %p644 = pneg %p141
      $region50: #{rawnet3_forward.23} parent=47 // pred_check_branch
        %646 = sbr.rel (%p644) target = $region52
      $region51: #{rawnet3_forward.23} parent=47 // pred_region
        %s647 = smul.u32 16, %s22
        %p648 = scmp.lt.s32.totalorder %s647, 47
        %s649 = scalar_select %p648, %s647, 47
        %p650 = scmp.lt.s32.totalorder %s23, 0
        %s651 = scalar_select %p650, %s23, 0
        %s652 = sadd.s32 %s651, %s649
        %s653 = smul.addr %s652, 8
        %s654 = scalar_lea.vmem %s3, %s653
      $region52: #{rawnet3_forward.23} parent=47 // pred_fallthru
        _
    $region48: #{rawnet3_forward.23} parent=5 // pred_fallthru
      _
  $region6: #{rawnet3_forward.23} parent=0 // loop_footer
    %s13 = sadd.s32 1, %s9
  $region7: #{rawnet3_forward.23} parent=0 // loop_footer_branch
    %8 = sbr.rel target = $region3
  $region8: #{rawnet3_forward.23} parent=0 // loop_exit
    _

// kernel: rawnet3_forward.22
$region0: #{rawnet3_forward.22}
  #allocation0 [shape = 'u32[]', space=smem, size = 0x4, offset = 0x4, fixed_abs, tag = 'smem constant byte address 0x4 - core index']
  #allocation1 [shape = 'u32[144,128]{1,0:T(1,128)}', space=vmem, size = 0x12000, scoped, tag = 'internal scratch']
  #allocation2 [shape = 'f32[128,128]{1,0:T(8,128)}', space=vmem, size = 0x10000, scoped, tag = 'scratch operand']
  %s0 = inlined_call_operand.vmem [shape: bf16[384,128], index: 0, kind: input, shape index: {}]
  %s1 = inlined_call_operand.vmem [shape: bf16[128,128], index: 1, kind: input, shape index: {}]
  %s2 = inlined_call_operand.vmem [shape: f32[1,128], index: 2, kind: input, shape index: {}]
  %s3 = inlined_call_operand.vmem [shape: f32[384,128], index: 3, kind: output, shape index: {}]
  %s4 = sld [smem:[#allocation0]]
  $region53: #{rawnet3_forward.22} parent=0
    _
  %s6 = ssub.s32 1, %s4
  %s7 = scalar_select 0, %s6, %s4
  loop: start=0, step=1, limit=5
  $region2: #{rawnet3_forward.22} parent=0 // loop_pre_header
    _
  $region3: #{rawnet3_forward.22} parent=0 // loop_header
    %s9 = sphi 0, %s13
    %p10 = scmp.ge.s32.totalorder %s9, 5
    %s16 = sphi 0, %s35
    %s17 = sphi 0, %s31
    %s18 = sphi 0, %s27
    %s19 = sphi 0, %s16
    %s20 = sphi 0, %s17
    %s21 = sphi 0, %s18
    %s22 = sphi 0, %s19
    %s23 = sphi 0, %s20
    %s24 = sphi 0, %s21
    %s40 = sphi 0, %s42
    %s43 = sphi 0, %s40
    %s44 = sphi 0, %s43
    %s60 = sphi 0, %s44
    %s68 = sphi 0, %s70
    %s71 = sphi 0, %s68
    %s72 = sphi 0, %s71
    %s88 = sphi 0, %s72
    %s94 = sphi 0, %s96
    %s97 = sphi 0, %s94
    %s98 = sphi 0, %s97
    %s114 = sphi 0, %s98
    %s122 = sphi 0, %s124
    %s125 = sphi 0, %s122
    %s126 = sphi 0, %s125
    %s142 = sphi 0, %s126
  $region4: #{rawnet3_forward.22} parent=0 // loop_header_branch
    %12 = sbr.rel (%p10) target = $region8
  $region5: #{rawnet3_forward.22} parent=0 // loop_body
    %s14 = ssub.s32 %s9, 1
    %s15 = ssub.s32 %s9, 2
    %s25 = sadd.s32 1, %s18
    %p26 = scmp.ge.s32.totalorder %s25, 1
    %s27 = scalar_select %p26, 0, %s25
    %s28 = sadd.s32 1, %s17
    %s29 = scalar_select %p26, %s28, %s17
    %p30 = scmp.ge.s32.totalorder %s29, 1
    %s31 = scalar_select %p30, 0, %s29
    %s32 = sadd.s32 1, %s16
    %s33 = scalar_select %p30, %s32, %s16
    %p34 = scmp.ge.s32.totalorder %s33, 3
    %s35 = scalar_select %p34, 0, %s33
    %s36 = ssub.s32 %s16, %s35
    %s37 = ssub.s32 %s18, %s27
    %s38 = sor.u32 %s36, %s37
    %p39 = scmp.eq.s32.totalorder %s38, 0
    %s41 = sadd.s32 %s40, 1
    %s42 = scalar_select %p39, %s40, %s41
    %p45 = pneg %p39
    %p46 = scmp.eq.s32.totalorder %s9, 2
    %p47 = por %p45, %p46
    %p48 = scmp.ne.s32.totalorder %s40, %s43
    %p49 = scmp.eq.s32.totalorder %s9, 0
    %p50 = por %p48, %p49
    %p51 = scmp.ne.s32.totalorder %s40, %s43
    %p52 = scmp.eq.s32.totalorder %s14, 2
    %p53 = por %p51, %p52
    %p54 = scmp.ne.s32.totalorder %s43, %s44
    %p55 = scmp.eq.s32.totalorder %s14, 0
    %p56 = por %p54, %p55
    %p57 = scmp.ne.s32.totalorder %s43, %s44
    %p58 = scmp.eq.s32.totalorder %s15, 2
    %p59 = por %p57, %p58
    %p61 = scmp.ne.s32.totalorder %s44, %s60
    %p62 = scmp.eq.s32.totalorder %s15, 0
    %p63 = por %p61, %p62
    %s64 = ssub.s32 %s18, %s27
    %s65 = ssub.s32 %s17, %s31
    %s66 = sor.u32 %s64, %s65
    %p67 = scmp.eq.s32.totalorder %s66, 0
    %s69 = sadd.s32 %s68, 1
    %s70 = scalar_select %p67, %s68, %s69
    %p73 = pneg %p67
    %p74 = scmp.eq.s32.totalorder %s9, 2
    %p75 = por %p73, %p74
    %p76 = scmp.ne.s32.totalorder %s68, %s71
    %p77 = scmp.eq.s32.totalorder %s9, 0
    %p78 = por %p76, %p77
    %p79 = scmp.ne.s32.totalorder %s68, %s71
    %p80 = scmp.eq.s32.totalorder %s14, 2
    %p81 = por %p79, %p80
    %p82 = scmp.ne.s32.totalorder %s71, %s72
    %p83 = scmp.eq.s32.totalorder %s14, 0
    %p84 = por %p82, %p83
    %p85 = scmp.ne.s32.totalorder %s71, %s72
    %p86 = scmp.eq.s32.totalorder %s15, 2
    %p87 = por %p85, %p86
    %p89 = scmp.ne.s32.totalorder %s72, %s88
    %p90 = scmp.eq.s32.totalorder %s15, 0
    %p91 = por %p89, %p90
    %s92 = ssub.s32 %s17, %s31
    %p93 = scmp.eq.s32.totalorder %s92, 0
    %s95 = sadd.s32 %s94, 1
    %s96 = scalar_select %p93, %s94, %s95
    %p99 = pneg %p93
    %p100 = scmp.eq.s32.totalorder %s9, 2
    %p101 = por %p99, %p100
    %p102 = scmp.ne.s32.totalorder %s94, %s97
    %p103 = scmp.eq.s32.totalorder %s9, 0
    %p104 = por %p102, %p103
    %p105 = scmp.ne.s32.totalorder %s94, %s97
    %p106 = scmp.eq.s32.totalorder %s14, 2
    %p107 = por %p105, %p106
    %p108 = scmp.ne.s32.totalorder %s97, %s98
    %p109 = scmp.eq.s32.totalorder %s14, 0
    %p110 = por %p108, %p109
    %p111 = scmp.ne.s32.totalorder %s97, %s98
    %p112 = scmp.eq.s32.totalorder %s15, 2
    %p113 = por %p111, %p112
    %p115 = scmp.ne.s32.totalorder %s98, %s114
    %p116 = scmp.eq.s32.totalorder %s15, 0
    %p117 = por %p115, %p116
    %s118 = ssub.s32 %s16, %s35
    %s119 = ssub.s32 %s17, %s31
    %s120 = sor.u32 %s118, %s119
    %p121 = scmp.eq.s32.totalorder %s120, 0
    %s123 = sadd.s32 %s122, 1
    %s124 = scalar_select %p121, %s122, %s123
    %p127 = pneg %p121
    %p128 = scmp.eq.s32.totalorder %s9, 2
    %p129 = por %p127, %p128
    %p130 = scmp.ne.s32.totalorder %s122, %s125
    %p131 = scmp.eq.s32.totalorder %s9, 0
    %p132 = por %p130, %p131
    %p133 = scmp.ne.s32.totalorder %s122, %s125
    %p134 = scmp.eq.s32.totalorder %s14, 2
    %p135 = por %p133, %p134
    %p136 = scmp.ne.s32.totalorder %s125, %s126
    %p137 = scmp.eq.s32.totalorder %s14, 0
    %p138 = por %p136, %p137
    %p139 = scmp.ne.s32.totalorder %s125, %s126
    %p140 = scmp.eq.s32.totalorder %s15, 2
    %p141 = por %p139, %p140
    %p143 = scmp.ne.s32.totalorder %s126, %s142
    %p144 = scmp.eq.s32.totalorder %s15, 0
    %p145 = por %p143, %p144
    %p146 = scmp.le.s32.totalorder 1, %s9
    %p147 = scmp.lt.s32.totalorder %s9, 4
    %p148 = pnand %p146, %p147
    %p149 = pneg %p148
    // Predicated region
    $region9: #{rawnet3_forward.22} parent=5 // pred_check
      _
    $region10: #{rawnet3_forward.22} parent=5 // pred_check_branch
      %151 = sbr.rel (%p148) target = $region12
    $region11: #{rawnet3_forward.22} parent=5 // pred_region
      %s152 = ssub.s32 %s9, 1
      // Predicated region
      $region13: #{rawnet3_forward.22} parent=11 // pred_check
        %p153 = pneg %p84
      $region14: #{rawnet3_forward.22} parent=11 // pred_check_branch
        %155 = sbr.rel (%p153) target = $region16
      $region15: #{rawnet3_forward.22} parent=11 // pred_region
        %s156 = smul.u32 16, %s21
        %p157 = scmp.lt.s32.totalorder %s156, 15
        %s158 = scalar_select %p157, %s156, 15
        %p159 = scmp.lt.s32.totalorder %s20, 0
        %s160 = scalar_select %p159, %s20, 0
        %s161 = sadd.s32 %s160, %s158
        %s162 = smul.addr %s161, 4
        %s163 = scalar_lea.vmem %s1, %s162
        %s164 = smul.u32 16, %s21
      $region16: #{rawnet3_forward.22} parent=11 // pred_fallthru
        _
      // Predicated region
      $region17: #{rawnet3_forward.22} parent=11 // pred_check
        %p165 = pneg %p110
      $region18: #{rawnet3_forward.22} parent=11 // pred_check_branch
        %167 = sbr.rel (%p165) target = $region20
      $region19: #{rawnet3_forward.22} parent=11 // pred_region
        %p168 = scmp.lt.s32.totalorder %s20, 0
        %s169 = scalar_select %p168, %s20, 0
        %s170 = scalar_lea.vmem %s2, %s169
      $region20: #{rawnet3_forward.22} parent=11 // pred_fallthru
        _
    $region12: #{rawnet3_forward.22} parent=5 // pred_fallthru
      _
    %p171 = scmp.lt.s32.totalorder %s9, 3
    // Predicated region
    $region21: #{rawnet3_forward.22} parent=5 // pred_check
      %p172 = pneg %p171
    $region22: #{rawnet3_forward.22} parent=5 // pred_check_branch
      %174 = sbr.rel (%p172) target = $region24
    $region23: #{rawnet3_forward.22} parent=5 // pred_region
      // Predicated region
      $region25: #{rawnet3_forward.22} parent=23 // pred_check
        %p175 = pneg %p50
      $region26: #{rawnet3_forward.22} parent=23 // pred_check_branch
        %177 = sbr.rel (%p175) target = $region28
      $region27: #{rawnet3_forward.22} parent=23 // pred_region
        %s178 = smul.u32 16, %s16
        %p179 = scmp.lt.s32.totalorder %s178, 47
        %s180 = scalar_select %p179, %s178, 47
        %p181 = scmp.lt.s32.totalorder %s18, 0
        %s182 = scalar_select %p181, %s18, 0
        %s183 = sadd.s32 %s182, %s180
        %s184 = smul.addr %s183, 4
        %s185 = scalar_lea.vmem %s0, %s184
        %s186 = smul.u32 16, %s16
      $region28: #{rawnet3_forward.22} parent=23 // pred_fallthru
        _
    $region24: #{rawnet3_forward.22} parent=5 // pred_fallthru
      _
    %p187 = scmp.le.s32.totalorder 1, %s9
    %p188 = scmp.lt.s32.totalorder %s9, 4
    %p189 = pnand %p187, %p188
    %p190 = pneg %p189
    // Predicated region
    $region29: #{rawnet3_forward.22} parent=5 // pred_check
      _
    $region30: #{rawnet3_forward.22} parent=5 // pred_check_branch
      %192 = sbr.rel (%p189) target = $region32
    $region31: #{rawnet3_forward.22} parent=5 // pred_region
      %s193 = ssub.s32 %s9, 1
      %s194 = smul.u32 16, %s19
      %p195 = scmp.lt.s32.totalorder %s194, 47
      %s196 = scalar_select %p195, %s194, 47
      %p197 = scmp.lt.s32.totalorder %s21, 0
      %s198 = scalar_select %p197, %s21, 0
      %s199 = sadd.s32 %s198, %s196
      %s200 = smul.addr %s199, 4
      %s201 = scalar_lea.vmem %s0, %s200
      %p202 = pneg %p56
      %p203 = pneg %p53
      %s204 = smul.u32 16, %s21
      %p205 = scmp.lt.s32.totalorder %s204, 15
      %s206 = scalar_select %p205, %s204, 15
      %p207 = scmp.lt.s32.totalorder %s20, 0
      %s208 = scalar_select %p207, %s20, 0
      %s209 = sadd.s32 %s208, %s206
      %s210 = smul.addr %s209, 4
      %s211 = scalar_lea.vmem %s1, %s210
      %p212 = pneg %p84
      %p213 = pneg %p81
      %p214 = scmp.lt.s32.totalorder %s20, 0
      %s215 = scalar_select %p214, %s20, 0
      %s216 = scalar_lea.vmem %s2, %s215
      %p217 = pneg %p110
      %p218 = pneg %p107
      %p219 = pneg %p138
      %p220 = pneg %p135
      %s221 = smul.u32 16, %s19
      %p222 = scmp.lt.s32.totalorder %s221, 47
      %s223 = scalar_select %p222, %s221, 47
      %p224 = scmp.lt.s32.totalorder %s20, 0
      %s225 = scalar_select %p224, %s20, 0
      %s226 = sadd.s32 %s225, %s223
      %s227 = smul.addr %s226, 8
      %s228 = scalar_lea.vmem %s3, %s227
      %s229 = smul.u32 16, %s19
      %p230 = scmp.lt.s32.totalorder %s229, 47
      %s231 = scalar_select %p230, %s229, 47
      %p232 = scmp.lt.s32.totalorder %s21, 0
      %s233 = scalar_select %p232, %s21, 0
      %s234 = sadd.s32 %s233, %s231
      %s235 = smul.addr %s234, 4
      %s236 = scalar_lea.vmem %s0, %s235
      %s237 = smul.u32 16, %s19
      %s238 = smul.u32 16, %s21
      %p239 = scmp.lt.s32.totalorder %s238, 15
      %s240 = scalar_select %p239, %s238, 15
      %p241 = scmp.lt.s32.totalorder %s20, 0
      %s242 = scalar_select %p241, %s20, 0
      %s243 = sadd.s32 %s242, %s240
      %s244 = smul.addr %s243, 4
      %s245 = scalar_lea.vmem %s1, %s244
      %s246 = smul.u32 16, %s21
      %p247 = scmp.lt.s32.totalorder %s20, 0
      %s248 = scalar_select %p247, %s20, 0
      %s249 = scalar_lea.vmem %s2, %s248
      %s250 = smul.u32 16, %s19
      %p251 = scmp.lt.s32.totalorder %s250, 47
      %s252 = scalar_select %p251, %s250, 47
      %p253 = scmp.lt.s32.totalorder %s20, 0
      %s254 = scalar_select %p253, %s20, 0
      %s255 = sadd.s32 %s254, %s252
      %s256 = smul.addr %s255, 8
      %s257 = scalar_lea.vmem %s3, %s256
      %s258 = smul.u32 16, %s19
      %p260 = scmp.eq.s32.totalorder %s21, 0
      // Predicated region
      $region33: #{rawnet3_forward.22} parent=31 // pred_check
        %p261 = pneg %p260
      $region34: #{rawnet3_forward.22} parent=31 // pred_check_branch
        %263 = sbr.rel (%p261) target = $region36
      $region35: #{rawnet3_forward.22} parent=31 // pred_region
        %264 = vst [vmem:[#allocation2] sm:$0xff] 0.0
        %265 = vst [vmem:[#allocation2 + $0x8] sm:$0xff] 0.0
        %266 = vst [vmem:[#allocation2 + $0x10] sm:$0xff] 0.0
        %267 = vst [vmem:[#allocation2 + $0x18] sm:$0xff] 0.0
        %268 = vst [vmem:[#allocation2 + $0x20] sm:$0xff] 0.0
        %269 = vst [vmem:[#allocation2 + $0x28] sm:$0xff] 0.0
        %270 = vst [vmem:[#allocation2 + $0x30] sm:$0xff] 0.0
        %271 = vst [vmem:[#allocation2 + $0x38] sm:$0xff] 0.0
        %272 = vst [vmem:[#allocation2 + $0x40] sm:$0xff] 0.0
        %273 = vst [vmem:[#allocation2 + $0x48] sm:$0xff] 0.0
        %274 = vst [vmem:[#allocation2 + $0x50] sm:$0xff] 0.0
        %275 = vst [vmem:[#allocation2 + $0x58] sm:$0xff] 0.0
        %276 = vst [vmem:[#allocation2 + $0x60] sm:$0xff] 0.0
        %277 = vst [vmem:[#allocation2 + $0x68] sm:$0xff] 0.0
        %278 = vst [vmem:[#allocation2 + $0x70] sm:$0xff] 0.0
        %279 = vst [vmem:[#allocation2 + $0x78] sm:$0xff] 0.0
      $region36: #{rawnet3_forward.22} parent=31 // pred_fallthru
        _
      %v280 = vld [vmem:[#allocation2] sm:$0xff]
      %v281 = vld [vmem:[#allocation2 + $0x8] sm:$0xff]
      %v282 = vld [vmem:[#allocation2 + $0x10] sm:$0xff]
      %v283 = vld [vmem:[#allocation2 + $0x18] sm:$0xff]
      %v284 = vld [vmem:[#allocation2 + $0x20] sm:$0xff]
      %v285 = vld [vmem:[#allocation2 + $0x28] sm:$0xff]
      %v286 = vld [vmem:[#allocation2 + $0x30] sm:$0xff]
      %v287 = vld [vmem:[#allocation2 + $0x38] sm:$0xff]
      %v288 = vld [vmem:[#allocation2 + $0x40] sm:$0xff]
      %v289 = vld [vmem:[#allocation2 + $0x48] sm:$0xff]
      %v290 = vld [vmem:[#allocation2 + $0x50] sm:$0xff]
      %v291 = vld [vmem:[#allocation2 + $0x58] sm:$0xff]
      %v292 = vld [vmem:[#allocation2 + $0x60] sm:$0xff]
      %v293 = vld [vmem:[#allocation2 + $0x68] sm:$0xff]
      %v294 = vld [vmem:[#allocation2 + $0x70] sm:$0xff]
      %v295 = vld [vmem:[#allocation2 + $0x78] sm:$0xff]
      %v296 = vld [vmem:[%s236] sm:$0xf]
      %v297 = vld [vmem:[%s236 + $0x4] sm:$0xf]
      %v298 = vld [vmem:[%s236 + $0x8] sm:$0xf]
      %v299 = vld [vmem:[%s236 + $0xc] sm:$0xf]
      %v300 = vld [vmem:[%s236 + $0x10] sm:$0xf]
      %v301 = vld [vmem:[%s236 + $0x14] sm:$0xf]
      %v302 = vld [vmem:[%s236 + $0x18] sm:$0xf]
      %v303 = vld [vmem:[%s236 + $0x1c] sm:$0xf]
      %v304 = vld [vmem:[%s236 + $0x20] sm:$0xf]
      %v305 = vld [vmem:[%s236 + $0x24] sm:$0xf]
      %v306 = vld [vmem:[%s236 + $0x28] sm:$0xf]
      %v307 = vld [vmem:[%s236 + $0x2c] sm:$0xf]
      %v308 = vld [vmem:[%s236 + $0x30] sm:$0xf]
      %v309 = vld [vmem:[%s236 + $0x34] sm:$0xf]
      %v310 = vld [vmem:[%s236 + $0x38] sm:$0xf]
      %v311 = vld [vmem:[%s236 + $0x3c] sm:$0xf]
      %v312 = vld [vmem:[%s245] sm:$0xf]
      %v313 = vld [vmem:[%s245 + $0x4] sm:$0xf]
      %v314 = vld [vmem:[%s245 + $0x8] sm:$0xf]
      %v315 = vld [vmem:[%s245 + $0xc] sm:$0xf]
      %v316 = vld [vmem:[%s245 + $0x10] sm:$0xf]
      %v317 = vld [vmem:[%s245 + $0x14] sm:$0xf]
      %v318 = vld [vmem:[%s245 + $0x18] sm:$0xf]
      %v319 = vld [vmem:[%s245 + $0x1c] sm:$0xf]
      %v320 = vld [vmem:[%s245 + $0x20] sm:$0xf]
      %v321 = vld [vmem:[%s245 + $0x24] sm:$0xf]
      %v322 = vld [vmem:[%s245 + $0x28] sm:$0xf]
      %v323 = vld [vmem:[%s245 + $0x2c] sm:$0xf]
      %v324 = vld [vmem:[%s245 + $0x30] sm:$0xf]
      %v325 = vld [vmem:[%s245 + $0x34] sm:$0xf]
      %v326 = vld [vmem:[%s245 + $0x38] sm:$0xf]
      %v327 = vld [vmem:[%s245 + $0x3c] sm:$0xf]
      %v344 = vunpack.c.l.b16 %v296
      %v345 = vunpack.c.l.b16 %v297
      %v346 = vunpack.c.l.b16 %v298
      %v347 = vunpack.c.l.b16 %v299
      %v348 = vunpack.c.l.b16 %v300
      %v349 = vunpack.c.l.b16 %v301
      %v350 = vunpack.c.l.b16 %v302
      %v351 = vunpack.c.l.b16 %v303
      %v352 = vunpack.c.l.b16 %v304
      %v353 = vunpack.c.l.b16 %v305
      %v354 = vunpack.c.l.b16 %v306
      %v355 = vunpack.c.l.b16 %v307
      %v356 = vunpack.c.l.b16 %v308
      %v357 = vunpack.c.l.b16 %v309
      %v358 = vunpack.c.l.b16 %v310
      %v359 = vunpack.c.l.b16 %v311
      %v360 = vpack.c.b16 %v345, %v344
      %v361 = vpack.c.b16 %v347, %v346
      %v362 = vpack.c.b16 %v349, %v348
      %v363 = vpack.c.b16 %v351, %v350
      %v364 = vpack.c.b16 %v353, %v352
      %v365 = vpack.c.b16 %v355, %v354
      %v366 = vpack.c.b16 %v357, %v356
      %v367 = vpack.c.b16 %v359, %v358
      %v392 = vunpack.c.l.b16 %v312
      %v393 = vunpack.c.l.b16 %v313
      %v394 = vunpack.c.l.b16 %v314
      %v395 = vunpack.c.l.b16 %v315
      %v396 = vunpack.c.l.b16 %v316
      %v397 = vunpack.c.l.b16 %v317
      %v398 = vunpack.c.l.b16 %v318
      %v399 = vunpack.c.l.b16 %v319
      %v400 = vunpack.c.l.b16 %v320
      %v401 = vunpack.c.l.b16 %v321
      %v402 = vunpack.c.l.b16 %v322
      %v403 = vunpack.c.l.b16 %v323
      %v404 = vunpack.c.l.b16 %v324
      %v405 = vunpack.c.l.b16 %v325
      %v406 = vunpack.c.l.b16 %v326
      %v407 = vunpack.c.l.b16 %v327
      %v408 = vpack.c.b16 %v393, %v392
      %v409 = vpack.c.b16 %v395, %v394
      %v410 = vpack.c.b16 %v397, %v396
      %v411 = vpack.c.b16 %v399, %v398
      %v412 = vpack.c.b16 %v401, %v400
      %v413 = vpack.c.b16 %v403, %v402
      %v414 = vpack.c.b16 %v405, %v404
      %v415 = vpack.c.b16 %v407, %v406
      %424 = vmatprep.subr.bf16.mxu0 0
      %425 = vmatpush1.bf16.msra.mxu0 %v408
      %426 = vmatprep.subr.bf16.mxu0 0
      %427 = vmatpush1.bf16.msra.mxu0 %v409
      %428 = vmatprep.subr.bf16.mxu0 0
      %429 = vmatpush1.bf16.msra.mxu0 %v410
      %430 = vmatprep.subr.bf16.mxu0 0
      %431 = vmatpush1.bf16.msra.mxu0 %v411
      %432 = vmatprep.subr.bf16.mxu0 0
      %433 = vmatpush1.bf16.msra.mxu0 %v412
      %434 = vmatprep.subr.bf16.mxu0 0
      %435 = vmatpush1.bf16.msra.mxu0 %v413
      %436 = vmatprep.subr.bf16.mxu0 0
      %437 = vmatpush1.bf16.msra.mxu0 %v414
      %438 = vmatprep.subr.bf16.mxu0 0
      %439 = vmatpush1.bf16.msra.mxu0 %v415
      %440 = vmatprep.subr.bf16.mxu0 0
      %441 = vmatpush1.bf16.msra.mxu0 0
      %442 = vmatprep.subr.bf16.mxu0 0
      %443 = vmatpush1.bf16.msra.mxu0 0
      %444 = vmatprep.subr.bf16.mxu0 0
      %445 = vmatpush1.bf16.msra.mxu0 0
      %446 = vmatprep.subr.bf16.mxu0 0
      %447 = vmatpush1.bf16.msra.mxu0 0
      %448 = vmatprep.subr.bf16.mxu0 0
      %449 = vmatpush1.bf16.msra.mxu0 0
      %450 = vmatprep.subr.bf16.mxu0 0
      %451 = vmatpush1.bf16.msra.mxu0 0
      %452 = vmatprep.subr.bf16.mxu0 0
      %453 = vmatpush1.bf16.msra.mxu0 0
      %454 = vmatprep.subr.bf16.mxu0 0
      %455 = vmatpush1.bf16.msra.mxu0 0
      %456 = vmatprep.mubr.bf16.mxu0 0
      %457 = vmatmul.mubr.bf16.gmra.mrb[0].mxu0 %v360
      %v458 = vpop.f32.mrb[0].mxu0
      %v459 = vadd.f32 0.0, %v458
      %v460 = vpop.f32.mrb[0].mxu0
      %v461 = vpop.f32.mrb[0].mxu0
      %v462 = vadd.f32 0.0, %v461
      %v463 = vpop.f32.mrb[0].mxu0
      %464 = vmatprep.mubr.bf16.mxu0 0
      %465 = vmatmul.mubr.bf16.gmra.mrb[0].mxu0 %v361
      %v466 = vpop.f32.mrb[0].mxu0
      %v467 = vadd.f32 0.0, %v466
      %v468 = vpop.f32.mrb[0].mxu0
      %v469 = vpop.f32.mrb[0].mxu0
      %v470 = vadd.f32 0.0, %v469
      %v471 = vpop.f32.mrb[0].mxu0
      %472 = vmatprep.mubr.bf16.mxu0 0
      %473 = vmatmul.mubr.bf16.gmra.mrb[0].mxu0 %v362
      %v474 = vpop.f32.mrb[0].mxu0
      %v475 = vadd.f32 0.0, %v474
      %v476 = vpop.f32.mrb[0].mxu0
      %v477 = vpop.f32.mrb[0].mxu0
      %v478 = vadd.f32 0.0, %v477
      %v479 = vpop.f32.mrb[0].mxu0
      %480 = vmatprep.mubr.bf16.mxu0 0
      %481 = vmatmul.mubr.bf16.gmra.mrb[0].mxu0 %v363
      %v482 = vpop.f32.mrb[0].mxu0
      %v483 = vadd.f32 0.0, %v482
      %v484 = vpop.f32.mrb[0].mxu0
      %v485 = vpop.f32.mrb[0].mxu0
      %v486 = vadd.f32 0.0, %v485
      %v487 = vpop.f32.mrb[0].mxu0
      %488 = vmatprep.mubr.bf16.mxu0 0
      %489 = vmatmul.mubr.bf16.gmra.mrb[0].mxu0 %v364
      %v490 = vpop.f32.mrb[0].mxu0
      %v491 = vadd.f32 0.0, %v490
      %v492 = vpop.f32.mrb[0].mxu0
      %v493 = vpop.f32.mrb[0].mxu0
      %v494 = vadd.f32 0.0, %v493
      %v495 = vpop.f32.mrb[0].mxu0
      %496 = vmatprep.mubr.bf16.mxu0 0
      %497 = vmatmul.mubr.bf16.gmra.mrb[0].mxu0 %v365
      %v498 = vpop.f32.mrb[0].mxu0
      %v499 = vadd.f32 0.0, %v498
      %v500 = vpop.f32.mrb[0].mxu0
      %v501 = vpop.f32.mrb[0].mxu0
      %v502 = vadd.f32 0.0, %v501
      %v503 = vpop.f32.mrb[0].mxu0
      %504 = vmatprep.mubr.bf16.mxu0 0
      %505 = vmatmul.mubr.bf16.gmra.mrb[0].mxu0 %v366
      %v506 = vpop.f32.mrb[0].mxu0
      %v507 = vadd.f32 0.0, %v506
      %v508 = vpop.f32.mrb[0].mxu0
      %v509 = vpop.f32.mrb[0].mxu0
      %v510 = vadd.f32 0.0, %v509
      %v511 = vpop.f32.mrb[0].mxu0
      %512 = vmatprep.mubr.bf16.mxu0 0
      %513 = vmatmul.mubr.bf16.gmra.mrb[0].mxu0 %v367
      %v514 = vpop.f32.mrb[0].mxu0
      %v515 = vadd.f32 0.0, %v514
      %v516 = vpop.f32.mrb[0].mxu0
      %v517 = vpop.f32.mrb[0].mxu0
      %v518 = vadd.f32 0.0, %v517
      %v519 = vpop.f32.mrb[0].mxu0
      %520 = vdwg.mxu0
      %v521 = vadd.f32 %v280, %v459
      %v522 = vadd.f32 %v281, %v462
      %v523 = vadd.f32 %v282, %v467
      %v524 = vadd.f32 %v283, %v470
      %v525 = vadd.f32 %v284, %v475
      %v526 = vadd.f32 %v285, %v478
      %v527 = vadd.f32 %v286, %v483
      %v528 = vadd.f32 %v287, %v486
      %v529 = vadd.f32 %v288, %v491
      %v530 = vadd.f32 %v289, %v494
      %v531 = vadd.f32 %v290, %v499
      %v532 = vadd.f32 %v291, %v502
      %v533 = vadd.f32 %v292, %v507
      %v534 = vadd.f32 %v293, %v510
      %v535 = vadd.f32 %v294, %v515
      %v536 = vadd.f32 %v295, %v518
      %537 = vst [vmem:[#allocation2] sm:$0xff] %v521
      %538 = vst [vmem:[#allocation2 + $0x8] sm:$0xff] %v522
      %539 = vst [vmem:[#allocation2 + $0x10] sm:$0xff] %v523
      %540 = vst [vmem:[#allocation2 + $0x18] sm:$0xff] %v524
      %541 = vst [vmem:[#allocation2 + $0x20] sm:$0xff] %v525
      %542 = vst [vmem:[#allocation2 + $0x28] sm:$0xff] %v526
      %543 = vst [vmem:[#allocation2 + $0x30] sm:$0xff] %v527
      %544 = vst [vmem:[#allocation2 + $0x38] sm:$0xff] %v528
      %545 = vst [vmem:[#allocation2 + $0x40] sm:$0xff] %v529
      %546 = vst [vmem:[#allocation2 + $0x48] sm:$0xff] %v530
      %547 = vst [vmem:[#allocation2 + $0x50] sm:$0xff] %v531
      %548 = vst [vmem:[#allocation2 + $0x58] sm:$0xff] %v532
      %549 = vst [vmem:[#allocation2 + $0x60] sm:$0xff] %v533
      %550 = vst [vmem:[#allocation2 + $0x68] sm:$0xff] %v534
      %551 = vst [vmem:[#allocation2 + $0x70] sm:$0xff] %v535
      %552 = vst [vmem:[#allocation2 + $0x78] sm:$0xff] %v536
      // Predicated region
      $region37: #{rawnet3_forward.22} parent=31 // pred_check
        %p553 = pneg %p260
      $region38: #{rawnet3_forward.22} parent=31 // pred_check_branch
        %555 = sbr.rel (%p553) target = $region40
      $region39: #{rawnet3_forward.22} parent=31 // pred_region
        %v556 = vld [vmem:[#allocation2] sm:$0xff]
        %v557 = vld [vmem:[#allocation2 + $0x8] sm:$0xff]
        %v558 = vld [vmem:[#allocation2 + $0x10] sm:$0xff]
        %v559 = vld [vmem:[#allocation2 + $0x18] sm:$0xff]
        %v560 = vld [vmem:[#allocation2 + $0x20] sm:$0xff]
        %v561 = vld [vmem:[#allocation2 + $0x28] sm:$0xff]
        %v562 = vld [vmem:[#allocation2 + $0x30] sm:$0xff]
        %v563 = vld [vmem:[#allocation2 + $0x38] sm:$0xff]
        %v564 = vld [vmem:[#allocation2 + $0x40] sm:$0xff]
        %v565 = vld [vmem:[#allocation2 + $0x48] sm:$0xff]
        %v566 = vld [vmem:[#allocation2 + $0x50] sm:$0xff]
        %v567 = vld [vmem:[#allocation2 + $0x58] sm:$0xff]
        %v568 = vld [vmem:[#allocation2 + $0x60] sm:$0xff]
        %v569 = vld [vmem:[#allocation2 + $0x68] sm:$0xff]
        %v570 = vld [vmem:[#allocation2 + $0x70] sm:$0xff]
        %v571 = vld [vmem:[#allocation2 + $0x78] sm:$0xff]
        %v572 = vld [vmem:[%s249] sm:$0x1]
        %v574 = vlaneseq
        %v575 = vshrl.u32 %v574, 7
        %v576 = vsub.s32 0, %v575
        %v577 = vrot.slane %v572, %v576
        %v579 = vadd.f32 %v556, %v577
        %v580 = vadd.f32 %v557, %v577
        %v581 = vadd.f32 %v558, %v577
        %v582 = vadd.f32 %v559, %v577
        %v583 = vadd.f32 %v560, %v577
        %v584 = vadd.f32 %v561, %v577
        %v585 = vadd.f32 %v562, %v577
        %v586 = vadd.f32 %v563, %v577
        %v587 = vadd.f32 %v564, %v577
        %v588 = vadd.f32 %v565, %v577
        %v589 = vadd.f32 %v566, %v577
        %v590 = vadd.f32 %v567, %v577
        %v591 = vadd.f32 %v568, %v577
        %v592 = vadd.f32 %v569, %v577
        %v593 = vadd.f32 %v570, %v577
        %v594 = vadd.f32 %v571, %v577
        %595 = vst [vmem:[%s257] sm:$0xff] %v579
        %596 = vst [vmem:[%s257 + $0x8] sm:$0xff] %v580
        %597 = vst [vmem:[%s257 + $0x10] sm:$0xff] %v581
        %598 = vst [vmem:[%s257 + $0x18] sm:$0xff] %v582
        %599 = vst [vmem:[%s257 + $0x20] sm:$0xff] %v583
        %600 = vst [vmem:[%s257 + $0x28] sm:$0xff] %v584
        %601 = vst [vmem:[%s257 + $0x30] sm:$0xff] %v585
        %602 = vst [vmem:[%s257 + $0x38] sm:$0xff] %v586
        %603 = vst [vmem:[%s257 + $0x40] sm:$0xff] %v587
        %604 = vst [vmem:[%s257 + $0x48] sm:$0xff] %v588
        %605 = vst [vmem:[%s257 + $0x50] sm:$0xff] %v589
        %606 = vst [vmem:[%s257 + $0x58] sm:$0xff] %v590
        %607 = vst [vmem:[%s257 + $0x60] sm:$0xff] %v591
        %608 = vst [vmem:[%s257 + $0x68] sm:$0xff] %v592
        %609 = vst [vmem:[%s257 + $0x70] sm:$0xff] %v593
        %610 = vst [vmem:[%s257 + $0x78] sm:$0xff] %v594
      $region40: #{rawnet3_forward.22} parent=31 // pred_fallthru
        _
      %s611 = smul.u32 16, %s19
      %p612 = scmp.lt.s32.totalorder %s611, 47
      %s613 = scalar_select %p612, %s611, 47
      %p614 = scmp.lt.s32.totalorder %s20, 0
      %s615 = scalar_select %p614, %s20, 0
      %s616 = sadd.s32 %s615, %s613
      %s617 = smul.addr %s616, 8
      %s618 = scalar_lea.vmem %s3, %s617
      // Predicated region
      $region41: #{rawnet3_forward.22} parent=31 // pred_check
        %p619 = pneg %p135
      $region42: #{rawnet3_forward.22} parent=31 // pred_check_branch
        %621 = sbr.rel (%p619) target = $region44
      $region43: #{rawnet3_forward.22} parent=31 // pred_region
        %s622 = smul.u32 16, %s19
      $region44: #{rawnet3_forward.22} parent=31 // pred_fallthru
        _
    $region32: #{rawnet3_forward.22} parent=5 // pred_fallthru
      _
    %p623 = scmp.le.s32.totalorder 2, %s9
    // Predicated region
    $region45: #{rawnet3_forward.22} parent=5 // pred_check
      %p624 = pneg %p623
    $region46: #{rawnet3_forward.22} parent=5 // pred_check_branch
      %626 = sbr.rel (%p624) target = $region48
    $region47: #{rawnet3_forward.22} parent=5 // pred_region
      %s627 = ssub.s32 %s9, 2
      // Predicated region
      $region49: #{rawnet3_forward.22} parent=47 // pred_check
        %p628 = pneg %p141
      $region50: #{rawnet3_forward.22} parent=47 // pred_check_branch
        %630 = sbr.rel (%p628) target = $region52
      $region51: #{rawnet3_forward.22} parent=47 // pred_region
        %s631 = smul.u32 16, %s22
        %p632 = scmp.lt.s32.totalorder %s631, 47
        %s633 = scalar_select %p632, %s631, 47
        %p634 = scmp.lt.s32.totalorder %s23, 0
        %s635 = scalar_select %p634, %s23, 0
        %s636 = sadd.s32 %s635, %s633
        %s637 = smul.addr %s636, 8
        %s638 = scalar_lea.vmem %s3, %s637
      $region52: #{rawnet3_forward.22} parent=47 // pred_fallthru
        _
    $region48: #{rawnet3_forward.22} parent=5 // pred_fallthru
      _
  $region6: #{rawnet3_forward.22} parent=0 // loop_footer
    %s13 = sadd.s32 1, %s9
  $region7: #{rawnet3_forward.22} parent=0 // loop_footer_branch
    %8 = sbr.rel target = $region3
  $region8: #{rawnet3_forward.22} parent=0 // loop_exit
    _

// kernel: rawnet3_forward.28
$region0: #{rawnet3_forward.28}
  #allocation0 [shape = 'u32[]', space=smem, size = 0x4, offset = 0x4, fixed_abs, tag = 'smem constant byte address 0x4 - core index']
  #allocation1 [shape = 'u32[144,128]{1,0:T(1,128)}', space=vmem, size = 0x12000, scoped, tag = 'internal scratch']
  #allocation2 [shape = 'f32[64,128]{1,0:T(8,128)}', space=vmem, size = 0x8000, scoped, tag = 'scratch operand']
  %s0 = inlined_call_operand.vmem [shape: bf16[64,128], index: 0, kind: input, shape index: {}]
  %s1 = inlined_call_operand.vmem [shape: bf16[128,128], index: 1, kind: input, shape index: {}]
  %s2 = inlined_call_operand.vmem [shape: f32[1,128], index: 2, kind: input, shape index: {}]
  %s3 = inlined_call_operand.vmem [shape: f32[64,128], index: 3, kind: output, shape index: {}]
  %s4 = sld [smem:[#allocation0]]
  $region30: #{rawnet3_forward.28} parent=0
    _
  %s6 = ssub.s32 1, %s4
  %s7 = scalar_select 0, %s6, %s4
  // Predicated region
  $region2: #{rawnet3_forward.28} parent=0 // pred_check
    _
  $region3: #{rawnet3_forward.28} parent=0 // pred_check_branch
    %9 = sbr.rel (0) target = $region5
  $region4: #{rawnet3_forward.28} parent=0 // pred_region
    _
  $region5: #{rawnet3_forward.28} parent=0 // pred_fallthru
    _
  // Predicated region
  $region6: #{rawnet3_forward.28} parent=0 // pred_check
    _
  $region7: #{rawnet3_forward.28} parent=0 // pred_check_branch
    %11 = sbr.rel (0) target = $region9
  $region8: #{rawnet3_forward.28} parent=0 // pred_region
    _
  $region9: #{rawnet3_forward.28} parent=0 // pred_fallthru
    _
  // Predicated region
  $region10: #{rawnet3_forward.28} parent=0 // pred_check
    _
  $region11: #{rawnet3_forward.28} parent=0 // pred_check_branch
    %13 = sbr.rel (0) target = $region13
  $region12: #{rawnet3_forward.28} parent=0 // pred_region
    _
  $region13: #{rawnet3_forward.28} parent=0 // pred_fallthru
    _
  %p15 = scmp.eq.s32.totalorder 0, 0
  // Predicated region
  $region14: #{rawnet3_forward.28} parent=0 // pred_check
    %p16 = pneg %p15
  $region15: #{rawnet3_forward.28} parent=0 // pred_check_branch
    %18 = sbr.rel (%p16) target = $region17
  $region16: #{rawnet3_forward.28} parent=0 // pred_region
    %19 = vst [vmem:[#allocation2] sm:$0xff] 0.0
    %20 = vst [vmem:[#allocation2 + $0x8] sm:$0xff] 0.0
    %21 = vst [vmem:[#allocation2 + $0x10] sm:$0xff] 0.0
    %22 = vst [vmem:[#allocation2 + $0x18] sm:$0xff] 0.0
    %23 = vst [vmem:[#allocation2 + $0x20] sm:$0xff] 0.0
    %24 = vst [vmem:[#allocation2 + $0x28] sm:$0xff] 0.0
    %25 = vst [vmem:[#allocation2 + $0x30] sm:$0xff] 0.0
    %26 = vst [vmem:[#allocation2 + $0x38] sm:$0xff] 0.0
  $region17: #{rawnet3_forward.28} parent=0 // pred_fallthru
    _
  %v27 = vld [vmem:[#allocation2] sm:$0xff]
  %v28 = vld [vmem:[#allocation2 + $0x8] sm:$0xff]
  %v29 = vld [vmem:[#allocation2 + $0x10] sm:$0xff]
  %v30 = vld [vmem:[#allocation2 + $0x18] sm:$0xff]
  %v31 = vld [vmem:[#allocation2 + $0x20] sm:$0xff]
  %v32 = vld [vmem:[#allocation2 + $0x28] sm:$0xff]
  %v33 = vld [vmem:[#allocation2 + $0x30] sm:$0xff]
  %v34 = vld [vmem:[#allocation2 + $0x38] sm:$0xff]
  %v35 = vld [vmem:[%s0] sm:$0xf]
  %v36 = vld [vmem:[%s0 + $0x4] sm:$0xf]
  %v37 = vld [vmem:[%s0 + $0x8] sm:$0xf]
  %v38 = vld [vmem:[%s0 + $0xc] sm:$0xf]
  %v39 = vld [vmem:[%s0 + $0x10] sm:$0xf]
  %v40 = vld [vmem:[%s0 + $0x14] sm:$0xf]
  %v41 = vld [vmem:[%s0 + $0x18] sm:$0xf]
  %v42 = vld [vmem:[%s0 + $0x1c] sm:$0xf]
  %v43 = vld [vmem:[%s1] sm:$0xf]
  %v44 = vld [vmem:[%s1 + $0x4] sm:$0xf]
  %v45 = vld [vmem:[%s1 + $0x8] sm:$0xf]
  %v46 = vld [vmem:[%s1 + $0xc] sm:$0xf]
  %v47 = vld [vmem:[%s1 + $0x10] sm:$0xf]
  %v48 = vld [vmem:[%s1 + $0x14] sm:$0xf]
  %v49 = vld [vmem:[%s1 + $0x18] sm:$0xf]
  %v50 = vld [vmem:[%s1 + $0x1c] sm:$0xf]
  %v51 = vld [vmem:[%s1 + $0x20] sm:$0xf]
  %v52 = vld [vmem:[%s1 + $0x24] sm:$0xf]
  %v53 = vld [vmem:[%s1 + $0x28] sm:$0xf]
  %v54 = vld [vmem:[%s1 + $0x2c] sm:$0xf]
  %v55 = vld [vmem:[%s1 + $0x30] sm:$0xf]
  %v56 = vld [vmem:[%s1 + $0x34] sm:$0xf]
  %v57 = vld [vmem:[%s1 + $0x38] sm:$0xf]
  %v58 = vld [vmem:[%s1 + $0x3c] sm:$0xf]
  %v67 = vunpack.c.l.b16 %v35
  %v68 = vunpack.c.l.b16 %v36
  %v69 = vunpack.c.l.b16 %v37
  %v70 = vunpack.c.l.b16 %v38
  %v71 = vunpack.c.l.b16 %v39
  %v72 = vunpack.c.l.b16 %v40
  %v73 = vunpack.c.l.b16 %v41
  %v74 = vunpack.c.l.b16 %v42
  %v75 = vpack.c.b16 %v68, %v67
  %v76 = vpack.c.b16 %v70, %v69
  %v77 = vpack.c.b16 %v72, %v71
  %v78 = vpack.c.b16 %v74, %v73
  %v99 = vunpack.c.l.b16 %v43
  %v100 = vunpack.c.l.b16 %v44
  %v101 = vunpack.c.l.b16 %v45
  %v102 = vunpack.c.l.b16 %v46
  %v103 = vunpack.c.l.b16 %v47
  %v104 = vunpack.c.l.b16 %v48
  %v105 = vunpack.c.l.b16 %v49
  %v106 = vunpack.c.l.b16 %v50
  %v107 = vunpack.c.l.b16 %v51
  %v108 = vunpack.c.l.b16 %v52
  %v109 = vunpack.c.l.b16 %v53
  %v110 = vunpack.c.l.b16 %v54
  %v111 = vunpack.c.l.b16 %v55
  %v112 = vunpack.c.l.b16 %v56
  %v113 = vunpack.c.l.b16 %v57
  %v114 = vunpack.c.l.b16 %v58
  %v115 = vpack.c.b16 %v100, %v99
  %v116 = vpack.c.b16 %v102, %v101
  %v117 = vpack.c.b16 %v104, %v103
  %v118 = vpack.c.b16 %v106, %v105
  %v119 = vpack.c.b16 %v108, %v107
  %v120 = vpack.c.b16 %v110, %v109
  %v121 = vpack.c.b16 %v112, %v111
  %v122 = vpack.c.b16 %v114, %v113
  %131 = vmatprep.subr.bf16.mxu0 0
  %132 = vmatpush1.bf16.msra.mxu0 %v115
  %133 = vmatprep.subr.bf16.mxu0 0
  %134 = vmatpush1.bf16.msra.mxu0 %v116
  %135 = vmatprep.subr.bf16.mxu0 0
  %136 = vmatpush1.bf16.msra.mxu0 %v117
  %137 = vmatprep.subr.bf16.mxu0 0
  %138 = vmatpush1.bf16.msra.mxu0 %v118
  %139 = vmatprep.subr.bf16.mxu0 0
  %140 = vmatpush1.bf16.msra.mxu0 %v119
  %141 = vmatprep.subr.bf16.mxu0 0
  %142 = vmatpush1.bf16.msra.mxu0 %v120
  %143 = vmatprep.subr.bf16.mxu0 0
  %144 = vmatpush1.bf16.msra.mxu0 %v121
  %145 = vmatprep.subr.bf16.mxu0 0
  %146 = vmatpush1.bf16.msra.mxu0 %v122
  %147 = vmatprep.subr.bf16.mxu0 0
  %148 = vmatpush1.bf16.msra.mxu0 0
  %149 = vmatprep.subr.bf16.mxu0 0
  %150 = vmatpush1.bf16.msra.mxu0 0
  %151 = vmatprep.subr.bf16.mxu0 0
  %152 = vmatpush1.bf16.msra.mxu0 0
  %153 = vmatprep.subr.bf16.mxu0 0
  %154 = vmatpush1.bf16.msra.mxu0 0
  %155 = vmatprep.subr.bf16.mxu0 0
  %156 = vmatpush1.bf16.msra.mxu0 0
  %157 = vmatprep.subr.bf16.mxu0 0
  %158 = vmatpush1.bf16.msra.mxu0 0
  %159 = vmatprep.subr.bf16.mxu0 0
  %160 = vmatpush1.bf16.msra.mxu0 0
  %161 = vmatprep.subr.bf16.mxu0 0
  %162 = vmatpush1.bf16.msra.mxu0 0
  %163 = vmatprep.mubr.bf16.mxu0 0
  %164 = vmatmul.mubr.bf16.gmra.mrb[0].mxu0 %v75
  %v165 = vpop.f32.mrb[0].mxu0
  %v166 = vadd.f32 0.0, %v165
  %v167 = vpop.f32.mrb[0].mxu0
  %v168 = vpop.f32.mrb[0].mxu0
  %v169 = vadd.f32 0.0, %v168
  %v170 = vpop.f32.mrb[0].mxu0
  %171 = vmatprep.mubr.bf16.mxu0 0
  %172 = vmatmul.mubr.bf16.gmra.mrb[0].mxu0 %v76
  %v173 = vpop.f32.mrb[0].mxu0
  %v174 = vadd.f32 0.0, %v173
  %v175 = vpop.f32.mrb[0].mxu0
  %v176 = vpop.f32.mrb[0].mxu0
  %v177 = vadd.f32 0.0, %v176
  %v178 = vpop.f32.mrb[0].mxu0
  %179 = vmatprep.mubr.bf16.mxu0 0
  %180 = vmatmul.mubr.bf16.gmra.mrb[0].mxu0 %v77
  %v181 = vpop.f32.mrb[0].mxu0
  %v182 = vadd.f32 0.0, %v181
  %v183 = vpop.f32.mrb[0].mxu0
  %v184 = vpop.f32.mrb[0].mxu0
  %v185 = vadd.f32 0.0, %v184
  %v186 = vpop.f32.mrb[0].mxu0
  %187 = vmatprep.mubr.bf16.mxu0 0
  %188 = vmatmul.mubr.bf16.gmra.mrb[0].mxu0 %v78
  %v189 = vpop.f32.mrb[0].mxu0
  %v190 = vadd.f32 0.0, %v189
  %v191 = vpop.f32.mrb[0].mxu0
  %v192 = vpop.f32.mrb[0].mxu0
  %v193 = vadd.f32 0.0, %v192
  %v194 = vpop.f32.mrb[0].mxu0
  %195 = vdwg.mxu0
  %v196 = vadd.f32 %v27, %v166
  %v197 = vadd.f32 %v28, %v169
  %v198 = vadd.f32 %v29, %v174
  %v199 = vadd.f32 %v30, %v177
  %v200 = vadd.f32 %v31, %v182
  %v201 = vadd.f32 %v32, %v185
  %v202 = vadd.f32 %v33, %v190
  %v203 = vadd.f32 %v34, %v193
  %204 = vst [vmem:[#allocation2] sm:$0xff] %v196
  %205 = vst [vmem:[#allocation2 + $0x8] sm:$0xff] %v197
  %206 = vst [vmem:[#allocation2 + $0x10] sm:$0xff] %v198
  %207 = vst [vmem:[#allocation2 + $0x18] sm:$0xff] %v199
  %208 = vst [vmem:[#allocation2 + $0x20] sm:$0xff] %v200
  %209 = vst [vmem:[#allocation2 + $0x28] sm:$0xff] %v201
  %210 = vst [vmem:[#allocation2 + $0x30] sm:$0xff] %v202
  %211 = vst [vmem:[#allocation2 + $0x38] sm:$0xff] %v203
  // Predicated region
  $region18: #{rawnet3_forward.28} parent=0 // pred_check
    %p212 = pneg %p15
  $region19: #{rawnet3_forward.28} parent=0 // pred_check_branch
    %214 = sbr.rel (%p212) target = $region21
  $region20: #{rawnet3_forward.28} parent=0 // pred_region
    %v215 = vld [vmem:[#allocation2] sm:$0xff]
    %v216 = vld [vmem:[#allocation2 + $0x8] sm:$0xff]
    %v217 = vld [vmem:[#allocation2 + $0x10] sm:$0xff]
    %v218 = vld [vmem:[#allocation2 + $0x18] sm:$0xff]
    %v219 = vld [vmem:[#allocation2 + $0x20] sm:$0xff]
    %v220 = vld [vmem:[#allocation2 + $0x28] sm:$0xff]
    %v221 = vld [vmem:[#allocation2 + $0x30] sm:$0xff]
    %v222 = vld [vmem:[#allocation2 + $0x38] sm:$0xff]
    %v223 = vld [vmem:[%s2] sm:$0x1]
    %v225 = vlaneseq
    %v226 = vshrl.u32 %v225, 7
    %v227 = vsub.s32 0, %v226
    %v228 = vrot.slane %v223, %v227
    %v230 = vadd.f32 %v215, %v228
    %v231 = vadd.f32 %v216, %v228
    %v232 = vadd.f32 %v217, %v228
    %v233 = vadd.f32 %v218, %v228
    %v234 = vadd.f32 %v219, %v228
    %v235 = vadd.f32 %v220, %v228
    %v236 = vadd.f32 %v221, %v228
    %v237 = vadd.f32 %v222, %v228
    %v238 = vmax.f32 %v230, 0.0
    %v239 = vmax.f32 %v231, 0.0
    %v240 = vmax.f32 %v232, 0.0
    %v241 = vmax.f32 %v233, 0.0
    %v242 = vmax.f32 %v234, 0.0
    %v243 = vmax.f32 %v235, 0.0
    %v244 = vmax.f32 %v236, 0.0
    %v245 = vmax.f32 %v237, 0.0
    %246 = vst [vmem:[%s3] sm:$0xff] %v238
    %247 = vst [vmem:[%s3 + $0x8] sm:$0xff] %v239
    %248 = vst [vmem:[%s3 + $0x10] sm:$0xff] %v240
    %249 = vst [vmem:[%s3 + $0x18] sm:$0xff] %v241
    %250 = vst [vmem:[%s3 + $0x20] sm:$0xff] %v242
    %251 = vst [vmem:[%s3 + $0x28] sm:$0xff] %v243
    %252 = vst [vmem:[%s3 + $0x30] sm:$0xff] %v244
    %253 = vst [vmem:[%s3 + $0x38] sm:$0xff] %v245
  $region21: #{rawnet3_forward.28} parent=0 // pred_fallthru
    _
  // Predicated region
  $region22: #{rawnet3_forward.28} parent=0 // pred_check
    _
  $region23: #{rawnet3_forward.28} parent=0 // pred_check_branch
    %255 = sbr.rel (0) target = $region25
  $region24: #{rawnet3_forward.28} parent=0 // pred_region
    _
  $region25: #{rawnet3_forward.28} parent=0 // pred_fallthru
    _
  // Predicated region
  $region26: #{rawnet3_forward.28} parent=0 // pred_check
    _
  $region27: #{rawnet3_forward.28} parent=0 // pred_check_branch
    %257 = sbr.rel (0) target = $region29
  $region28: #{rawnet3_forward.28} parent=0 // pred_region
    _
  $region29: #{rawnet3_forward.28} parent=0 // pred_fallthru
    _

// kernel: rawnet3_forward.33
$region0: #{rawnet3_forward.33}
  #allocation0 [shape = 'u32[]', space=smem, size = 0x4, offset = 0x4, fixed_abs, tag = 'smem constant byte address 0x4 - core index']
  #allocation1 [shape = 'u32[144,128]{1,0:T(1,128)}', space=vmem, size = 0x12000, scoped, tag = 'internal scratch']
  #allocation2 [shape = 'f32[32,128]{1,0:T(8,128)}', space=vmem, size = 0x4000, scoped, tag = 'scratch operand']
  %s0 = inlined_call_operand.vmem [shape: bf16[32,128], index: 0, kind: input, shape index: {}]
  %s1 = inlined_call_operand.vmem [shape: bf16[128,128], index: 1, kind: input, shape index: {}]
  %s2 = inlined_call_operand.vmem [shape: f32[1,128], index: 2, kind: input, shape index: {}]
  %s3 = inlined_call_operand.vmem [shape: f32[32,128], index: 3, kind: output, shape index: {}]
  %s4 = sld [smem:[#allocation0]]
  $region30: #{rawnet3_forward.33} parent=0
    _
  %s6 = ssub.s32 1, %s4
  %s7 = scalar_select 0, %s6, %s4
  // Predicated region
  $region2: #{rawnet3_forward.33} parent=0 // pred_check
    _
  $region3: #{rawnet3_forward.33} parent=0 // pred_check_branch
    %9 = sbr.rel (0) target = $region5
  $region4: #{rawnet3_forward.33} parent=0 // pred_region
    _
  $region5: #{rawnet3_forward.33} parent=0 // pred_fallthru
    _
  // Predicated region
  $region6: #{rawnet3_forward.33} parent=0 // pred_check
    _
  $region7: #{rawnet3_forward.33} parent=0 // pred_check_branch
    %11 = sbr.rel (0) target = $region9
  $region8: #{rawnet3_forward.33} parent=0 // pred_region
    _
  $region9: #{rawnet3_forward.33} parent=0 // pred_fallthru
    _
  // Predicated region
  $region10: #{rawnet3_forward.33} parent=0 // pred_check
    _
  $region11: #{rawnet3_forward.33} parent=0 // pred_check_branch
    %13 = sbr.rel (0) target = $region13
  $region12: #{rawnet3_forward.33} parent=0 // pred_region
    _
  $region13: #{rawnet3_forward.33} parent=0 // pred_fallthru
    _
  %p15 = scmp.eq.s32.totalorder 0, 0
  // Predicated region
  $region14: #{rawnet3_forward.33} parent=0 // pred_check
    %p16 = pneg %p15
  $region15: #{rawnet3_forward.33} parent=0 // pred_check_branch
    %18 = sbr.rel (%p16) target = $region17
  $region16: #{rawnet3_forward.33} parent=0 // pred_region
    %19 = vst [vmem:[#allocation2] sm:$0xff] 0.0
    %20 = vst [vmem:[#allocation2 + $0x8] sm:$0xff] 0.0
    %21 = vst [vmem:[#allocation2 + $0x10] sm:$0xff] 0.0
    %22 = vst [vmem:[#allocation2 + $0x18] sm:$0xff] 0.0
  $region17: #{rawnet3_forward.33} parent=0 // pred_fallthru
    _
  %v23 = vld [vmem:[#allocation2] sm:$0xff]
  %v24 = vld [vmem:[#allocation2 + $0x8] sm:$0xff]
  %v25 = vld [vmem:[#allocation2 + $0x10] sm:$0xff]
  %v26 = vld [vmem:[#allocation2 + $0x18] sm:$0xff]
  %v27 = vld [vmem:[%s0] sm:$0xf]
  %v28 = vld [vmem:[%s0 + $0x4] sm:$0xf]
  %v29 = vld [vmem:[%s0 + $0x8] sm:$0xf]
  %v30 = vld [vmem:[%s0 + $0xc] sm:$0xf]
  %v31 = vld [vmem:[%s1] sm:$0xf]
  %v32 = vld [vmem:[%s1 + $0x4] sm:$0xf]
  %v33 = vld [vmem:[%s1 + $0x8] sm:$0xf]
  %v34 = vld [vmem:[%s1 + $0xc] sm:$0xf]
  %v35 = vld [vmem:[%s1 + $0x10] sm:$0xf]
  %v36 = vld [vmem:[%s1 + $0x14] sm:$0xf]
  %v37 = vld [vmem:[%s1 + $0x18] sm:$0xf]
  %v38 = vld [vmem:[%s1 + $0x1c] sm:$0xf]
  %v39 = vld [vmem:[%s1 + $0x20] sm:$0xf]
  %v40 = vld [vmem:[%s1 + $0x24] sm:$0xf]
  %v41 = vld [vmem:[%s1 + $0x28] sm:$0xf]
  %v42 = vld [vmem:[%s1 + $0x2c] sm:$0xf]
  %v43 = vld [vmem:[%s1 + $0x30] sm:$0xf]
  %v44 = vld [vmem:[%s1 + $0x34] sm:$0xf]
  %v45 = vld [vmem:[%s1 + $0x38] sm:$0xf]
  %v46 = vld [vmem:[%s1 + $0x3c] sm:$0xf]
  %v51 = vunpack.c.l.b16 %v27
  %v52 = vunpack.c.l.b16 %v28
  %v53 = vunpack.c.l.b16 %v29
  %v54 = vunpack.c.l.b16 %v30
  %v55 = vpack.c.b16 %v52, %v51
  %v56 = vpack.c.b16 %v54, %v53
  %v75 = vunpack.c.l.b16 %v31
  %v76 = vunpack.c.l.b16 %v32
  %v77 = vunpack.c.l.b16 %v33
  %v78 = vunpack.c.l.b16 %v34
  %v79 = vunpack.c.l.b16 %v35
  %v80 = vunpack.c.l.b16 %v36
  %v81 = vunpack.c.l.b16 %v37
  %v82 = vunpack.c.l.b16 %v38
  %v83 = vunpack.c.l.b16 %v39
  %v84 = vunpack.c.l.b16 %v40
  %v85 = vunpack.c.l.b16 %v41
  %v86 = vunpack.c.l.b16 %v42
  %v87 = vunpack.c.l.b16 %v43
  %v88 = vunpack.c.l.b16 %v44
  %v89 = vunpack.c.l.b16 %v45
  %v90 = vunpack.c.l.b16 %v46
  %v91 = vpack.c.b16 %v76, %v75
  %v92 = vpack.c.b16 %v78, %v77
  %v93 = vpack.c.b16 %v80, %v79
  %v94 = vpack.c.b16 %v82, %v81
  %v95 = vpack.c.b16 %v84, %v83
  %v96 = vpack.c.b16 %v86, %v85
  %v97 = vpack.c.b16 %v88, %v87
  %v98 = vpack.c.b16 %v90, %v89
  %107 = vmatprep.subr.bf16.mxu0 0
  %108 = vmatpush1.bf16.msra.mxu0 %v91
  %109 = vmatprep.subr.bf16.mxu0 0
  %110 = vmatpush1.bf16.msra.mxu0 %v92
  %111 = vmatprep.subr.bf16.mxu0 0
  %112 = vmatpush1.bf16.msra.mxu0 %v93
  %113 = vmatprep.subr.bf16.mxu0 0
  %114 = vmatpush1.bf16.msra.mxu0 %v94
  %115 = vmatprep.subr.bf16.mxu0 0
  %116 = vmatpush1.bf16.msra.mxu0 %v95
  %117 = vmatprep.subr.bf16.mxu0 0
  %118 = vmatpush1.bf16.msra.mxu0 %v96
  %119 = vmatprep.subr.bf16.mxu0 0
  %120 = vmatpush1.bf16.msra.mxu0 %v97
  %121 = vmatprep.subr.bf16.mxu0 0
  %122 = vmatpush1.bf16.msra.mxu0 %v98
  %123 = vmatprep.subr.bf16.mxu0 0
  %124 = vmatpush1.bf16.msra.mxu0 0
  %125 = vmatprep.subr.bf16.mxu0 0
  %126 = vmatpush1.bf16.msra.mxu0 0
  %127 = vmatprep.subr.bf16.mxu0 0
  %128 = vmatpush1.bf16.msra.mxu0 0
  %129 = vmatprep.subr.bf16.mxu0 0
  %130 = vmatpush1.bf16.msra.mxu0 0
  %131 = vmatprep.subr.bf16.mxu0 0
  %132 = vmatpush1.bf16.msra.mxu0 0
  %133 = vmatprep.subr.bf16.mxu0 0
  %134 = vmatpush1.bf16.msra.mxu0 0
  %135 = vmatprep.subr.bf16.mxu0 0
  %136 = vmatpush1.bf16.msra.mxu0 0
  %137 = vmatprep.subr.bf16.mxu0 0
  %138 = vmatpush1.bf16.msra.mxu0 0
  %139 = vmatprep.mubr.bf16.mxu0 0
  %140 = vmatmul.mubr.bf16.gmra.mrb[0].mxu0 %v55
  %v141 = vpop.f32.mrb[0].mxu0
  %v142 = vadd.f32 0.0, %v141
  %v143 = vpop.f32.mrb[0].mxu0
  %v144 = vpop.f32.mrb[0].mxu0
  %v145 = vadd.f32 0.0, %v144
  %v146 = vpop.f32.mrb[0].mxu0
  %147 = vmatprep.mubr.bf16.mxu0 0
  %148 = vmatmul.mubr.bf16.gmra.mrb[0].mxu0 %v56
  %v149 = vpop.f32.mrb[0].mxu0
  %v150 = vadd.f32 0.0, %v149
  %v151 = vpop.f32.mrb[0].mxu0
  %v152 = vpop.f32.mrb[0].mxu0
  %v153 = vadd.f32 0.0, %v152
  %v154 = vpop.f32.mrb[0].mxu0
  %155 = vdwg.mxu0
  %v156 = vadd.f32 %v23, %v142
  %v157 = vadd.f32 %v24, %v145
  %v158 = vadd.f32 %v25, %v150
  %v159 = vadd.f32 %v26, %v153
  %160 = vst [vmem:[#allocation2] sm:$0xff] %v156
  %161 = vst [vmem:[#allocation2 + $0x8] sm:$0xff] %v157
  %162 = vst [vmem:[#allocation2 + $0x10] sm:$0xff] %v158
  %163 = vst [vmem:[#allocation2 + $0x18] sm:$0xff] %v159
  // Predicated region
  $region18: #{rawnet3_forward.33} parent=0 // pred_check
    %p164 = pneg %p15
  $region19: #{rawnet3_forward.33} parent=0 // pred_check_branch
    %166 = sbr.rel (%p164) target = $region21
  $region20: #{rawnet3_forward.33} parent=0 // pred_region
    %v167 = vld [vmem:[#allocation2] sm:$0xff]
    %v168 = vld [vmem:[#allocation2 + $0x8] sm:$0xff]
    %v169 = vld [vmem:[#allocation2 + $0x10] sm:$0xff]
    %v170 = vld [vmem:[#allocation2 + $0x18] sm:$0xff]
    %v171 = vld [vmem:[%s2] sm:$0x1]
    %v173 = vlaneseq
    %v174 = vshrl.u32 %v173, 7
    %v175 = vsub.s32 0, %v174
    %v176 = vrot.slane %v171, %v175
    %v178 = vadd.f32 %v167, %v176
    %v179 = vadd.f32 %v168, %v176
    %v180 = vadd.f32 %v169, %v176
    %v181 = vadd.f32 %v170, %v176
    %v182 = vmax.f32 %v178, 0.0
    %v183 = vmax.f32 %v179, 0.0
    %v184 = vmax.f32 %v180, 0.0
    %v185 = vmax.f32 %v181, 0.0
    %186 = vst [vmem:[%s3] sm:$0xff] %v182
    %187 = vst [vmem:[%s3 + $0x8] sm:$0xff] %v183
    %188 = vst [vmem:[%s3 + $0x10] sm:$0xff] %v184
    %189 = vst [vmem:[%s3 + $0x18] sm:$0xff] %v185
  $region21: #{rawnet3_forward.33} parent=0 // pred_fallthru
    _
  // Predicated region
  $region22: #{rawnet3_forward.33} parent=0 // pred_check
    _
  $region23: #{rawnet3_forward.33} parent=0 // pred_check_branch
    %191 = sbr.rel (0) target = $region25
  $region24: #{rawnet3_forward.33} parent=0 // pred_region
    _
  $region25: #{rawnet3_forward.33} parent=0 // pred_fallthru
    _
  // Predicated region
  $region26: #{rawnet3_forward.33} parent=0 // pred_check
    _
  $region27: #{rawnet3_forward.33} parent=0 // pred_check_branch
    %193 = sbr.rel (0) target = $region29
  $region28: #{rawnet3_forward.33} parent=0 // pred_region
    _
  $region29: #{rawnet3_forward.33} parent=0 // pred_fallthru
    _

// kernel: rawnet3_forward.38
$region0: #{rawnet3_forward.38}
  #allocation0 [shape = 'u32[]', space=smem, size = 0x4, offset = 0x4, fixed_abs, tag = 'smem constant byte address 0x4 - core index']
  #allocation1 [shape = 'u32[144,128]{1,0:T(1,128)}', space=vmem, size = 0x12000, scoped, tag = 'internal scratch']
  #allocation2 [shape = 'f32[32,256]{1,0:T(8,128)}', space=vmem, size = 0x8000, scoped, tag = 'scratch operand']
  %s0 = inlined_call_operand.vmem [shape: bf16[32,128], index: 0, kind: input, shape index: {}]
  %s1 = inlined_call_operand.vmem [shape: bf16[128,1536], index: 1, kind: input, shape index: {}]
  %s2 = inlined_call_operand.vmem [shape: f32[1,1536], index: 2, kind: input, shape index: {}]
  %s3 = inlined_call_operand.vmem [shape: f32[32,1536], index: 3, kind: output, shape index: {}]
  %s4 = sld [smem:[#allocation0]]
  $region110: #{rawnet3_forward.38} parent=0
    _
  %s6 = ssub.s32 1, %s4
  %s7 = scalar_select 0, %s6, %s4
  $region1: #{rawnet3_forward.38} parent=0
    #allocation3 [shape = 'u8[131072]{0}', space=vmem, size = 0x20000, scoped, tag = 'input window, operand 1']
    #allocation4 [shape = 'u8[65536]{0}', space=vmem, size = 0x10000, scoped, tag = 'output window, operand 0']
    loop: start=0, step=1, limit=8
    $region2: #{rawnet3_forward.38} parent=1 // loop_pre_header
      _
    $region3: #{rawnet3_forward.38} parent=1 // loop_header
      %s9 = sphi 0, %s13
      %p10 = scmp.ge.s32.totalorder %s9, 8
      %s16 = sphi 0, %s35
      %s17 = sphi 0, %s31
      %s18 = sphi 0, %s27
      %s19 = sphi 0, %s16
      %s20 = sphi 0, %s17
      %s21 = sphi 0, %s18
      %s22 = sphi 0, %s19
      %s23 = sphi 0, %s20
      %s24 = sphi 0, %s21
      %s40 = sphi 0, %s42
      %s43 = sphi 0, %s40
      %s44 = sphi 0, %s43
      %s60 = sphi 0, %s44
      %s68 = sphi 0, %s70
      %s71 = sphi 0, %s68
      %s72 = sphi 0, %s71
      %s88 = sphi 0, %s72
      %s94 = sphi 0, %s96
      %s97 = sphi 0, %s94
      %s98 = sphi 0, %s97
      %s114 = sphi 0, %s98
      %s122 = sphi 0, %s124
      %s125 = sphi 0, %s122
      %s126 = sphi 0, %s125
      %s142 = sphi 0, %s126
    $region4: #{rawnet3_forward.38} parent=1 // loop_header_branch
      %12 = sbr.rel (%p10) target = $region8
    $region5: #{rawnet3_forward.38} parent=1 // loop_body
      %s14 = ssub.s32 %s9, 1
      %s15 = ssub.s32 %s9, 2
      %s25 = sadd.s32 1, %s18
      %p26 = scmp.ge.s32.totalorder %s25, 1
      %s27 = scalar_select %p26, 0, %s25
      %s28 = sadd.s32 1, %s17
      %s29 = scalar_select %p26, %s28, %s17
      %p30 = scmp.ge.s32.totalorder %s29, 6
      %s31 = scalar_select %p30, 0, %s29
      %s32 = sadd.s32 1, %s16
      %s33 = scalar_select %p30, %s32, %s16
      %p34 = scmp.ge.s32.totalorder %s33, 1
      %s35 = scalar_select %p34, 0, %s33
      %s36 = ssub.s32 %s16, %s35
      %s37 = ssub.s32 %s18, %s27
      %s38 = sor.u32 %s36, %s37
      %p39 = scmp.eq.s32.totalorder %s38, 0
      %s41 = sadd.s32 %s40, 1
      %s42 = scalar_select %p39, %s40, %s41
      %p45 = pneg %p39
      %p46 = scmp.eq.s32.totalorder %s9, 5
      %p47 = por %p45, %p46
      %p48 = scmp.ne.s32.totalorder %s40, %s43
      %p49 = scmp.eq.s32.totalorder %s9, 0
      %p50 = por %p48, %p49
      %p51 = scmp.ne.s32.totalorder %s40, %s43
      %p52 = scmp.eq.s32.totalorder %s14, 5
      %p53 = por %p51, %p52
      %p54 = scmp.ne.s32.totalorder %s43, %s44
      %p55 = scmp.eq.s32.totalorder %s14, 0
      %p56 = por %p54, %p55
      %p57 = scmp.ne.s32.totalorder %s43, %s44
      %p58 = scmp.eq.s32.totalorder %s15, 5
      %p59 = por %p57, %p58
      %p61 = scmp.ne.s32.totalorder %s44, %s60
      %p62 = scmp.eq.s32.totalorder %s15, 0
      %p63 = por %p61, %p62
      %s64 = ssub.s32 %s18, %s27
      %s65 = ssub.s32 %s17, %s31
      %s66 = sor.u32 %s64, %s65
      %p67 = scmp.eq.s32.totalorder %s66, 0
      %s69 = sadd.s32 %s68, 1
      %s70 = scalar_select %p67, %s68, %s69
      %p73 = pneg %p67
      %p74 = scmp.eq.s32.totalorder %s9, 5
      %p75 = por %p73, %p74
      %p76 = scmp.ne.s32.totalorder %s68, %s71
      %p77 = scmp.eq.s32.totalorder %s9, 0
      %p78 = por %p76, %p77
      %p79 = scmp.ne.s32.totalorder %s68, %s71
      %p80 = scmp.eq.s32.totalorder %s14, 5
      %p81 = por %p79, %p80
      %p82 = scmp.ne.s32.totalorder %s71, %s72
      %p83 = scmp.eq.s32.totalorder %s14, 0
      %p84 = por %p82, %p83
      %p85 = scmp.ne.s32.totalorder %s71, %s72
      %p86 = scmp.eq.s32.totalorder %s15, 5
      %p87 = por %p85, %p86
      %p89 = scmp.ne.s32.totalorder %s72, %s88
      %p90 = scmp.eq.s32.totalorder %s15, 0
      %p91 = por %p89, %p90
      %s92 = ssub.s32 %s17, %s31
      %p93 = scmp.eq.s32.totalorder %s92, 0
      %s95 = sadd.s32 %s94, 1
      %s96 = scalar_select %p93, %s94, %s95
      %p99 = pneg %p93
      %p100 = scmp.eq.s32.totalorder %s9, 5
      %p101 = por %p99, %p100
      %p102 = scmp.ne.s32.totalorder %s94, %s97
      %p103 = scmp.eq.s32.totalorder %s9, 0
      %p104 = por %p102, %p103
      %p105 = scmp.ne.s32.totalorder %s94, %s97
      %p106 = scmp.eq.s32.totalorder %s14, 5
      %p107 = por %p105, %p106
      %p108 = scmp.ne.s32.totalorder %s97, %s98
      %p109 = scmp.eq.s32.totalorder %s14, 0
      %p110 = por %p108, %p109
      %p111 = scmp.ne.s32.totalorder %s97, %s98
      %p112 = scmp.eq.s32.totalorder %s15, 5
      %p113 = por %p111, %p112
      %p115 = scmp.ne.s32.totalorder %s98, %s114
      %p116 = scmp.eq.s32.totalorder %s15, 0
      %p117 = por %p115, %p116
      %s118 = ssub.s32 %s16, %s35
      %s119 = ssub.s32 %s17, %s31
      %s120 = sor.u32 %s118, %s119
      %p121 = scmp.eq.s32.totalorder %s120, 0
      %s123 = sadd.s32 %s122, 1
      %s124 = scalar_select %p121, %s122, %s123
      %p127 = pneg %p121
      %p128 = scmp.eq.s32.totalorder %s9, 5
      %p129 = por %p127, %p128
      %p130 = scmp.ne.s32.totalorder %s122, %s125
      %p131 = scmp.eq.s32.totalorder %s9, 0
      %p132 = por %p130, %p131
      %p133 = scmp.ne.s32.totalorder %s122, %s125
      %p134 = scmp.eq.s32.totalorder %s14, 5
      %p135 = por %p133, %p134
      %p136 = scmp.ne.s32.totalorder %s125, %s126
      %p137 = scmp.eq.s32.totalorder %s14, 0
      %p138 = por %p136, %p137
      %p139 = scmp.ne.s32.totalorder %s125, %s126
      %p140 = scmp.eq.s32.totalorder %s15, 5
      %p141 = por %p139, %p140
      %p143 = scmp.ne.s32.totalorder %s126, %s142
      %p144 = scmp.eq.s32.totalorder %s15, 0
      %p145 = por %p143, %p144
      %p146 = scmp.le.s32.totalorder 1, %s9
      %p147 = scmp.lt.s32.totalorder %s9, 7
      %p148 = pnand %p146, %p147
      %p149 = pneg %p148
      // Predicated region
      $region9: #{rawnet3_forward.38} parent=5 // pred_check
        _
      $region10: #{rawnet3_forward.38} parent=5 // pred_check_branch
        %151 = sbr.rel (%p148) target = $region12
      $region11: #{rawnet3_forward.38} parent=5 // pred_region
        %s152 = ssub.s32 %s9, 1
        // Predicated region
        $region13: #{rawnet3_forward.38} parent=11 // pred_check
          %p153 = pneg %p56
        $region14: #{rawnet3_forward.38} parent=11 // pred_check_branch
          %155 = sbr.rel (%p153) target = $region16
        $region15: #{rawnet3_forward.38} parent=11 // pred_region
          %s156 = smul.u32 4, %s19
          %p157 = scmp.lt.s32.totalorder %s156, 3
          %s158 = scalar_select %p157, %s156, 3
          %p159 = scmp.lt.s32.totalorder %s21, 0
          %s160 = scalar_select %p159, %s21, 0
          %s161 = sadd.s32 %s160, %s158
          %s162 = smul.addr %s161, 4
          %s163 = scalar_lea.vmem %s0, %s162
          %s164 = smul.u32 4, %s19
        $region16: #{rawnet3_forward.38} parent=11 // pred_fallthru
          _
      $region12: #{rawnet3_forward.38} parent=5 // pred_fallthru
        _
      %p165 = scmp.lt.s32.totalorder %s9, 6
      // Predicated region
      $region17: #{rawnet3_forward.38} parent=5 // pred_check
        %p166 = pneg %p165
      $region18: #{rawnet3_forward.38} parent=5 // pred_check_branch
        %168 = sbr.rel (%p166) target = $region20
      $region19: #{rawnet3_forward.38} parent=5 // pred_region
        // Predicated region
        $region21: #{rawnet3_forward.38} parent=19 // pred_check
          %p169 = pneg %p78
        $region22: #{rawnet3_forward.38} parent=19 // pred_check_branch
          %171 = sbr.rel (%p169) target = $region24
        $region23: #{rawnet3_forward.38} parent=19 // pred_region
          %s172 = sand.u32 %s68, 1
          %s173 = sand.u32 %s68, 1
          %s174 = smul.addr %s173, 128
          %s175 = scalar_lea.vmem [#allocation3], %s174
          %s176 = smul.u32 16, %s18
          %s177 = smul.u32 2, %s17
          %s178 = smul.addr %s176, 12
          %s179 = sadd.s32 %s177, %s178
          %s180 = smul.addr %s179, 4
          %s181 = scalar_lea.vmem %s1, %s180
          // Predicated region
          $region25: #{rawnet3_forward.38} parent=23 // pred_check
            _
          $region26: #{rawnet3_forward.38} parent=23 // pred_check_branch
            %183 = sbr.rel (0) target = $region28
          $region27: #{rawnet3_forward.38} parent=23 // pred_region
            // Predicated region
            $region29: #{rawnet3_forward.38} parent=27 // pred_check
              _
            $region30: #{rawnet3_forward.38} parent=27 // pred_check_branch
              %185 = sbr.rel (0) target = $region32
            $region31: #{rawnet3_forward.38} parent=27 // pred_region
              // Predicated region
              $region44: #{rawnet3_forward.38} parent=31 // pred_check
                _
              $region45: #{rawnet3_forward.38} parent=31 // pred_check_branch
                %230 = sbr.rel (0) target = $region47
              $region46: #{rawnet3_forward.38} parent=31 // pred_region
                loop: start=0, step=1, limit=1
                $region48: #{rawnet3_forward.38} parent=46 // loop_pre_header
                  _
                $region49: #{rawnet3_forward.38} parent=46 // loop_header
                  %s232 = sphi 0, %s236
                  %p233 = scmp.ge.s32.totalorder %s232, 1
                  %s237 = sphi %s181, %s181
                  %s238 = sphi %s175, %s175
                $region50: #{rawnet3_forward.38} parent=46 // loop_header_branch
                  %235 = sbr.rel (%p233) target = $region54
                $region51: #{rawnet3_forward.38} parent=46 // loop_body
                  %v239 = vld [vmem:[%s237] sm:$0xff]
                  %240 = vst [vmem:[%s238] sm:$0xff] %v239
                  %v241 = vld [vmem:[%s237 + $0x30] sm:$0xff]
                  %242 = vst [vmem:[%s238 + $0x8] sm:$0xff] %v241
                  %v243 = vld [vmem:[%s237 + $0x60] sm:$0xff]
                  %244 = vst [vmem:[%s238 + $0x10] sm:$0xff] %v243
                  %v245 = vld [vmem:[%s237 + $0x90] sm:$0xff]
                  %246 = vst [vmem:[%s238 + $0x18] sm:$0xff] %v245
                  %v247 = vld [vmem:[%s237 + $0xc0] sm:$0xff]
                  %248 = vst [vmem:[%s238 + $0x20] sm:$0xff] %v247
                  %v249 = vld [vmem:[%s237 + $0xf0] sm:$0xff]
                  %250 = vst [vmem:[%s238 + $0x28] sm:$0xff] %v249
                  %v251 = vld [vmem:[%s237 + $0x120] sm:$0xff]
                  %252 = vst [vmem:[%s238 + $0x30] sm:$0xff] %v251
                  %v253 = vld [vmem:[%s237 + $0x150] sm:$0xff]
                  %254 = vst [vmem:[%s238 + $0x38] sm:$0xff] %v253
                  %v255 = vld [vmem:[%s237 + $0x180] sm:$0xff]
                  %256 = vst [vmem:[%s238 + $0x40] sm:$0xff] %v255
                  %v257 = vld [vmem:[%s237 + $0x1b0] sm:$0xff]
                  %258 = vst [vmem:[%s238 + $0x48] sm:$0xff] %v257
                  %v259 = vld [vmem:[%s237 + $0x1e0] sm:$0xff]
                  %260 = vst [vmem:[%s238 + $0x50] sm:$0xff] %v259
                  %v261 = vld [vmem:[%s237 + $0x210] sm:$0xff]
                  %262 = vst [vmem:[%s238 + $0x58] sm:$0xff] %v261
                  %v263 = vld [vmem:[%s237 + $0x240] sm:$0xff]
                  %264 = vst [vmem:[%s238 + $0x60] sm:$0xff] %v263
                  %v265 = vld [vmem:[%s237 + $0x270] sm:$0xff]
                  %266 = vst [vmem:[%s238 + $0x68] sm:$0xff] %v265
                  %v267 = vld [vmem:[%s237 + $0x2a0] sm:$0xff]
                  %268 = vst [vmem:[%s238 + $0x70] sm:$0xff] %v267
                  %v269 = vld [vmem:[%s237 + $0x2d0] sm:$0xff]
                  %270 = vst [vmem:[%s238 + $0x78] sm:$0xff] %v269
                $region52: #{rawnet3_forward.38} parent=46 // loop_footer
                  %s236 = sadd.s32 1, %s232
                $region53: #{rawnet3_forward.38} parent=46 // loop_footer_branch
                  %231 = sbr.rel target = $region49
                $region54: #{rawnet3_forward.38} parent=46 // loop_exit
                  _
              $region47: #{rawnet3_forward.38} parent=31 // pred_fallthru
                _
              // Predicated region
              $region55: #{rawnet3_forward.38} parent=31 // pred_check
                _
              $region56: #{rawnet3_forward.38} parent=31 // pred_check_branch
                %272 = sbr.rel target = $region58
              $region57: #{rawnet3_forward.38} parent=31 // pred_region
                _
              $region58: #{rawnet3_forward.38} parent=31 // pred_fallthru
                _
            $region32: #{rawnet3_forward.38} parent=27 // pred_fallthru
              _
            // Predicated region
            $region33: #{rawnet3_forward.38} parent=27 // pred_check
              _
            $region34: #{rawnet3_forward.38} parent=27 // pred_check_branch
              %187 = sbr.rel target = $region36
            $region35: #{rawnet3_forward.38} parent=27 // pred_region
              loop: start=0, step=1, limit=1
              $region37: #{rawnet3_forward.38} parent=35 // loop_pre_header
                _
              $region38: #{rawnet3_forward.38} parent=35 // loop_header
                %s190 = sphi 0, %s194
                %p191 = scmp.ge.s32.totalorder %s190, 1
                %s195 = sphi %s181, %s181
                %s196 = sphi %s175, %s175
              $region39: #{rawnet3_forward.38} parent=35 // loop_header_branch
                %193 = sbr.rel (%p191) target = $region43
              $region40: #{rawnet3_forward.38} parent=35 // loop_body
                %v197 = vld [vmem:[%s195] sm:$0xff]
                %198 = vst [vmem:[%s196] sm:$0xff] %v197
                %v199 = vld [vmem:[%s195 + $0x30] sm:$0xff]
                %200 = vst [vmem:[%s196 + $0x8] sm:$0xff] %v199
                %v201 = vld [vmem:[%s195 + $0x60] sm:$0xff]
                %202 = vst [vmem:[%s196 + $0x10] sm:$0xff] %v201
                %v203 = vld [vmem:[%s195 + $0x90] sm:$0xff]
                %204 = vst [vmem:[%s196 + $0x18] sm:$0xff] %v203
                %v205 = vld [vmem:[%s195 + $0xc0] sm:$0xff]
                %206 = vst [vmem:[%s196 + $0x20] sm:$0xff] %v205
                %v207 = vld [vmem:[%s195 + $0xf0] sm:$0xff]
                %208 = vst [vmem:[%s196 + $0x28] sm:$0xff] %v207
                %v209 = vld [vmem:[%s195 + $0x120] sm:$0xff]
                %210 = vst [vmem:[%s196 + $0x30] sm:$0xff] %v209
                %v211 = vld [vmem:[%s195 + $0x150] sm:$0xff]
                %212 = vst [vmem:[%s196 + $0x38] sm:$0xff] %v211
                %v213 = vld [vmem:[%s195 + $0x180] sm:$0xff]
                %214 = vst [vmem:[%s196 + $0x40] sm:$0xff] %v213
                %v215 = vld [vmem:[%s195 + $0x1b0] sm:$0xff]
                %216 = vst [vmem:[%s196 + $0x48] sm:$0xff] %v215
                %v217 = vld [vmem:[%s195 + $0x1e0] sm:$0xff]
                %218 = vst [vmem:[%s196 + $0x50] sm:$0xff] %v217
                %v219 = vld [vmem:[%s195 + $0x210] sm:$0xff]
                %220 = vst [vmem:[%s196 + $0x58] sm:$0xff] %v219
                %v221 = vld [vmem:[%s195 + $0x240] sm:$0xff]
                %222 = vst [vmem:[%s196 + $0x60] sm:$0xff] %v221
                %v223 = vld [vmem:[%s195 + $0x270] sm:$0xff]
                %224 = vst [vmem:[%s196 + $0x68] sm:$0xff] %v223
                %v225 = vld [vmem:[%s195 + $0x2a0] sm:$0xff]
                %226 = vst [vmem:[%s196 + $0x70] sm:$0xff] %v225
                %v227 = vld [vmem:[%s195 + $0x2d0] sm:$0xff]
                %228 = vst [vmem:[%s196 + $0x78] sm:$0xff] %v227
              $region41: #{rawnet3_forward.38} parent=35 // loop_footer
                %s194 = sadd.s32 1, %s190
              $region42: #{rawnet3_forward.38} parent=35 // loop_footer_branch
                %189 = sbr.rel target = $region38
              $region43: #{rawnet3_forward.38} parent=35 // loop_exit
                _
            $region36: #{rawnet3_forward.38} parent=27 // pred_fallthru
              _
          $region28: #{rawnet3_forward.38} parent=23 // pred_fallthru
            _
          %273 = vnop
        $region24: #{rawnet3_forward.38} parent=19 // pred_fallthru
          _
        // Predicated region
        $region59: #{rawnet3_forward.38} parent=19 // pred_check
          %p274 = pneg %p104
        $region60: #{rawnet3_forward.38} parent=19 // pred_check_branch
          %276 = sbr.rel (%p274) target = $region62
        $region61: #{rawnet3_forward.38} parent=19 // pred_region
          %s277 = smul.u32 2, %s17
          %p278 = scmp.lt.s32.totalorder %s277, 11
          %s279 = scalar_select %p278, %s277, 11
          %s280 = scalar_lea.vmem %s2, %s279
          %s281 = smul.u32 2, %s17
        $region62: #{rawnet3_forward.38} parent=19 // pred_fallthru
          _
      $region20: #{rawnet3_forward.38} parent=5 // pred_fallthru
        _
      %p282 = scmp.le.s32.totalorder 1, %s9
      %p283 = scmp.lt.s32.totalorder %s9, 7
      %p284 = pnand %p282, %p283
      %p285 = pneg %p284
      // Predicated region
      $region63: #{rawnet3_forward.38} parent=5 // pred_check
        _
      $region64: #{rawnet3_forward.38} parent=5 // pred_check_branch
        %287 = sbr.rel (%p284) target = $region66
      $region65: #{rawnet3_forward.38} parent=5 // pred_region
        %s288 = ssub.s32 %s9, 1
        %s289 = sand.u32 %s71, 1
        %s290 = sand.u32 %s71, 1
        %s291 = smul.addr %s290, 128
        %s292 = scalar_lea.vmem [#allocation3], %s291
        // Predicated region
        $region67: #{rawnet3_forward.38} parent=65 // pred_check
          %p293 = pneg %p84
        $region68: #{rawnet3_forward.38} parent=65 // pred_check_branch
          %295 = sbr.rel (%p293) target = $region70
        $region69: #{rawnet3_forward.38} parent=65 // pred_region
          _
        $region70: #{rawnet3_forward.38} parent=65 // pred_fallthru
          _
        %s296 = smul.u32 4, %s19
        %p297 = scmp.lt.s32.totalorder %s296, 3
        %s298 = scalar_select %p297, %s296, 3
        %p299 = scmp.lt.s32.totalorder %s21, 0
        %s300 = scalar_select %p299, %s21, 0
        %s301 = sadd.s32 %s300, %s298
        %s302 = smul.addr %s301, 4
        %s303 = scalar_lea.vmem %s0, %s302
        %p304 = pneg %p56
        %p305 = pneg %p53
        %s306 = sand.u32 %s71, 1
        %s307 = sand.u32 %s71, 1
        %s308 = smul.addr %s307, 128
        %s309 = scalar_lea.vmem [#allocation3], %s308
        %p310 = pneg %p84
        %p311 = pneg %p81
        %s312 = smul.u32 2, %s20
        %p313 = scmp.lt.s32.totalorder %s312, 11
        %s314 = scalar_select %p313, %s312, 11
        %s315 = scalar_lea.vmem %s2, %s314
        %p316 = pneg %p110
        %p317 = pneg %p107
        %p318 = pneg %p138
        %p319 = pneg %p135
        %s320 = sand.u32 %s125, 1
        %s321 = sand.u32 %s125, 1
        %s322 = smul.addr %s321, 64
        %s323 = scalar_lea.vmem [#allocation4], %s322
        %s324 = smul.u32 4, %s19
        %p325 = scmp.lt.s32.totalorder %s324, 3
        %s326 = scalar_select %p325, %s324, 3
        %p327 = scmp.lt.s32.totalorder %s21, 0
        %s328 = scalar_select %p327, %s21, 0
        %s329 = sadd.s32 %s328, %s326
        %s330 = smul.addr %s329, 4
        %s331 = scalar_lea.vmem %s0, %s330
        %s332 = smul.u32 4, %s19
        %s333 = smul.u32 16, %s21
        %s334 = smul.u32 2, %s20
        %s335 = smul.u32 2, %s20
        %p336 = scmp.lt.s32.totalorder %s335, 11
        %s337 = scalar_select %p336, %s335, 11
        %s338 = scalar_lea.vmem %s2, %s337
        %s339 = smul.u32 2, %s20
        %s340 = smul.u32 4, %s19
        %s341 = smul.u32 2, %s20
        %p343 = scmp.eq.s32.totalorder %s21, 0
        // Predicated region
        $region71: #{rawnet3_forward.38} parent=65 // pred_check
          %p344 = pneg %p343
        $region72: #{rawnet3_forward.38} parent=65 // pred_check_branch
          %346 = sbr.rel (%p344) target = $region74
        $region73: #{rawnet3_forward.38} parent=65 // pred_region
          %347 = vst [vmem:[#allocation2] sm:$0xff] 0.0
          %348 = vst [vmem:[#allocation2 + $0x8] sm:$0xff] 0.0
          %349 = vst [vmem:[#allocation2 + $0x10] sm:$0xff] 0.0
          %350 = vst [vmem:[#allocation2 + $0x18] sm:$0xff] 0.0
          %351 = vst [vmem:[#allocation2 + $0x20] sm:$0xff] 0.0
          %352 = vst [vmem:[#allocation2 + $0x28] sm:$0xff] 0.0
          %353 = vst [vmem:[#allocation2 + $0x30] sm:$0xff] 0.0
          %354 = vst [vmem:[#allocation2 + $0x38] sm:$0xff] 0.0
        $region74: #{rawnet3_forward.38} parent=65 // pred_fallthru
          _
        %v355 = vld [vmem:[#allocation2] sm:$0xff]
        %v356 = vld [vmem:[#allocation2 + $0x8] sm:$0xff]
        %v357 = vld [vmem:[#allocation2 + $0x10] sm:$0xff]
        %v358 = vld [vmem:[#allocation2 + $0x18] sm:$0xff]
        %v359 = vld [vmem:[#allocation2 + $0x20] sm:$0xff]
        %v360 = vld [vmem:[#allocation2 + $0x28] sm:$0xff]
        %v361 = vld [vmem:[#allocation2 + $0x30] sm:$0xff]
        %v362 = vld [vmem:[#allocation2 + $0x38] sm:$0xff]
        %v363 = vld [vmem:[%s331] sm:$0xf]
        %v364 = vld [vmem:[%s331 + $0x4] sm:$0xf]
        %v365 = vld [vmem:[%s331 + $0x8] sm:$0xf]
        %v366 = vld [vmem:[%s331 + $0xc] sm:$0xf]
        %v367 = vld [vmem:[%s292] sm:$0xff]
        %v368 = vld [vmem:[%s292 + $0x8] sm:$0xff]
        %v369 = vld [vmem:[%s292 + $0x10] sm:$0xff]
        %v370 = vld [vmem:[%s292 + $0x18] sm:$0xff]
        %v371 = vld [vmem:[%s292 + $0x20] sm:$0xff]
        %v372 = vld [vmem:[%s292 + $0x28] sm:$0xff]
        %v373 = vld [vmem:[%s292 + $0x30] sm:$0xff]
        %v374 = vld [vmem:[%s292 + $0x38] sm:$0xff]
        %v375 = vld [vmem:[%s292 + $0x40] sm:$0xff]
        %v376 = vld [vmem:[%s292 + $0x48] sm:$0xff]
        %v377 = vld [vmem:[%s292 + $0x50] sm:$0xff]
        %v378 = vld [vmem:[%s292 + $0x58] sm:$0xff]
        %v379 = vld [vmem:[%s292 + $0x60] sm:$0xff]
        %v380 = vld [vmem:[%s292 + $0x68] sm:$0xff]
        %v381 = vld [vmem:[%s292 + $0x70] sm:$0xff]
        %v382 = vld [vmem:[%s292 + $0x78] sm:$0xff]
        %v387 = vunpack.c.l.b16 %v363
        %v388 = vunpack.c.l.b16 %v364
        %v389 = vunpack.c.l.b16 %v365
        %v390 = vunpack.c.l.b16 %v366
        %v391 = vpack.c.b16 %v388, %v387
        %v392 = vpack.c.b16 %v390, %v389
        %v411 = vunpack.c.l.b16 %v367
        %v412 = vunpack.c.h.b16 %v367
        %v413 = vunpack.c.l.b16 %v368
        %v414 = vunpack.c.h.b16 %v368
        %v415 = vunpack.c.l.b16 %v369
        %v416 = vunpack.c.h.b16 %v369
        %v417 = vunpack.c.l.b16 %v370
        %v418 = vunpack.c.h.b16 %v370
        %v419 = vunpack.c.l.b16 %v371
        %v420 = vunpack.c.h.b16 %v371
        %v421 = vunpack.c.l.b16 %v372
        %v422 = vunpack.c.h.b16 %v372
        %v423 = vunpack.c.l.b16 %v373
        %v424 = vunpack.c.h.b16 %v373
        %v425 = vunpack.c.l.b16 %v374
        %v426 = vunpack.c.h.b16 %v374
        %v427 = vunpack.c.l.b16 %v375
        %v428 = vunpack.c.h.b16 %v375
        %v429 = vunpack.c.l.b16 %v376
        %v430 = vunpack.c.h.b16 %v376
        %v431 = vunpack.c.l.b16 %v377
        %v432 = vunpack.c.h.b16 %v377
        %v433 = vunpack.c.l.b16 %v378
        %v434 = vunpack.c.h.b16 %v378
        %v435 = vunpack.c.l.b16 %v379
        %v436 = vunpack.c.h.b16 %v379
        %v437 = vunpack.c.l.b16 %v380
        %v438 = vunpack.c.h.b16 %v380
        %v439 = vunpack.c.l.b16 %v381
        %v440 = vunpack.c.h.b16 %v381
        %v441 = vunpack.c.l.b16 %v382
        %v442 = vunpack.c.h.b16 %v382
        %v443 = vpack.c.b16 %v413, %v411
        %v444 = vpack.c.b16 %v414, %v412
        %v445 = vpack.c.b16 %v417, %v415
        %v446 = vpack.c.b16 %v418, %v416
        %v447 = vpack.c.b16 %v421, %v419
        %v448 = vpack.c.b16 %v422, %v420
        %v449 = vpack.c.b16 %v425, %v423
        %v450 = vpack.c.b16 %v426, %v424
        %v451 = vpack.c.b16 %v429, %v427
        %v452 = vpack.c.b16 %v430, %v428
        %v453 = vpack.c.b16 %v433, %v431
        %v454 = vpack.c.b16 %v434, %v432
        %v455 = vpack.c.b16 %v437, %v435
        %v456 = vpack.c.b16 %v438, %v436
        %v457 = vpack.c.b16 %v441, %v439
        %v458 = vpack.c.b16 %v442, %v440
        %475 = vmatprep.subr.bf16.mxu0 %v444
        %476 = vmatpush1.bf16.msra.mxu0 %v443
        %477 = vmatprep.subr.bf16.mxu0 %v446
        %478 = vmatpush1.bf16.msra.mxu0 %v445
        %479 = vmatprep.subr.bf16.mxu0 %v448
        %480 = vmatpush1.bf16.msra.mxu0 %v447
        %481 = vmatprep.subr.bf16.mxu0 %v450
        %482 = vmatpush1.bf16.msra.mxu0 %v449
        %483 = vmatprep.subr.bf16.mxu0 %v452
        %484 = vmatpush1.bf16.msra.mxu0 %v451
        %485 = vmatprep.subr.bf16.mxu0 %v454
        %486 = vmatpush1.bf16.msra.mxu0 %v453
        %487 = vmatprep.subr.bf16.mxu0 %v456
        %488 = vmatpush1.bf16.msra.mxu0 %v455
        %489 = vmatprep.subr.bf16.mxu0 %v458
        %490 = vmatpush1.bf16.msra.mxu0 %v457
        %491 = vmatprep.subr.bf16.mxu0 0
        %492 = vmatpush1.bf16.msra.mxu0 0
        %493 = vmatprep.subr.bf16.mxu0 0
        %494 = vmatpush1.bf16.msra.mxu0 0
        %495 = vmatprep.subr.bf16.mxu0 0
        %496 = vmatpush1.bf16.msra.mxu0 0
        %497 = vmatprep.subr.bf16.mxu0 0
        %498 = vmatpush1.bf16.msra.mxu0 0
        %499 = vmatprep.subr.bf16.mxu0 0
        %500 = vmatpush1.bf16.msra.mxu0 0
        %501 = vmatprep.subr.bf16.mxu0 0
        %502 = vmatpush1.bf16.msra.mxu0 0
        %503 = vmatprep.subr.bf16.mxu0 0
        %504 = vmatpush1.bf16.msra.mxu0 0
        %505 = vmatprep.subr.bf16.mxu0 0
        %506 = vmatpush1.bf16.msra.mxu0 0
        %507 = vmatprep.mubr.bf16.mxu0 0
        %508 = vmatmul.mubr.bf16.gmra.mrb[0].mxu0 %v391
        %v509 = vpop.f32.mrb[0].mxu0
        %v510 = vadd.f32 0.0, %v509
        %v511 = vpop.f32.mrb[0].mxu0
        %v512 = vadd.f32 0.0, %v511
        %v513 = vpop.f32.mrb[0].mxu0
        %v514 = vadd.f32 0.0, %v513
        %v515 = vpop.f32.mrb[0].mxu0
        %v516 = vadd.f32 0.0, %v515
        %517 = vmatprep.mubr.bf16.mxu0 0
        %518 = vmatmul.mubr.bf16.gmra.mrb[0].mxu0 %v392
        %v519 = vpop.f32.mrb[0].mxu0
        %v520 = vadd.f32 0.0, %v519
        %v521 = vpop.f32.mrb[0].mxu0
        %v522 = vadd.f32 0.0, %v521
        %v523 = vpop.f32.mrb[0].mxu0
        %v524 = vadd.f32 0.0, %v523
        %v525 = vpop.f32.mrb[0].mxu0
        %v526 = vadd.f32 0.0, %v525
        %527 = vdwg.mxu0
        %v528 = vadd.f32 %v355, %v510
        %v529 = vadd.f32 %v356, %v512
        %v530 = vadd.f32 %v357, %v514
        %v531 = vadd.f32 %v358, %v516
        %v532 = vadd.f32 %v359, %v520
        %v533 = vadd.f32 %v360, %v522
        %v534 = vadd.f32 %v361, %v524
        %v535 = vadd.f32 %v362, %v526
        %536 = vst [vmem:[#allocation2] sm:$0xff] %v528
        %537 = vst [vmem:[#allocation2 + $0x8] sm:$0xff] %v529
        %538 = vst [vmem:[#allocation2 + $0x10] sm:$0xff] %v530
        %539 = vst [vmem:[#allocation2 + $0x18] sm:$0xff] %v531
        %540 = vst [vmem:[#allocation2 + $0x20] sm:$0xff] %v532
        %541 = vst [vmem:[#allocation2 + $0x28] sm:$0xff] %v533
        %542 = vst [vmem:[#allocation2 + $0x30] sm:$0xff] %v534
        %543 = vst [vmem:[#allocation2 + $0x38] sm:$0xff] %v535
        // Predicated region
        $region75: #{rawnet3_forward.38} parent=65 // pred_check
          %p544 = pneg %p343
        $region76: #{rawnet3_forward.38} parent=65 // pred_check_branch
          %546 = sbr.rel (%p544) target = $region78
        $region77: #{rawnet3_forward.38} parent=65 // pred_region
          %v547 = vld [vmem:[#allocation2] sm:$0xff]
          %v548 = vld [vmem:[#allocation2 + $0x8] sm:$0xff]
          %v549 = vld [vmem:[#allocation2 + $0x10] sm:$0xff]
          %v550 = vld [vmem:[#allocation2 + $0x18] sm:$0xff]
          %v551 = vld [vmem:[#allocation2 + $0x20] sm:$0xff]
          %v552 = vld [vmem:[#allocation2 + $0x28] sm:$0xff]
          %v553 = vld [vmem:[#allocation2 + $0x30] sm:$0xff]
          %v554 = vld [vmem:[#allocation2 + $0x38] sm:$0xff]
          %v555 = vld [vmem:[%s338] sm:$0x3]
          %v557 = vlaneseq
          %v558 = vshrl.u32 %v557, 7
          %v559 = vsub.s32 0, %v558
          %v560 = vrot.slane %v555, %v559
          %v561 = vlaneseq
          %v562 = vshrl.u32 %v561, 7
          %v563 = vsub.s32 1, %v562
          %v564 = vrot.slane %v555, %v563
          %v567 = vadd.f32 %v547, %v560
          %v568 = vadd.f32 %v548, %v564
          %v569 = vadd.f32 %v549, %v560
          %v570 = vadd.f32 %v550, %v564
          %v571 = vadd.f32 %v551, %v560
          %v572 = vadd.f32 %v552, %v564
          %v573 = vadd.f32 %v553, %v560
          %v574 = vadd.f32 %v554, %v564
          %v575 = vmax.f32 %v567, 0.0
          %v576 = vmax.f32 %v568, 0.0
          %v577 = vmax.f32 %v569, 0.0
          %v578 = vmax.f32 %v570, 0.0
          %v579 = vmax.f32 %v571, 0.0
          %v580 = vmax.f32 %v572, 0.0
          %v581 = vmax.f32 %v573, 0.0
          %v582 = vmax.f32 %v574, 0.0
          %583 = vst [vmem:[%s323] sm:$0xff] %v575
          %584 = vst [vmem:[%s323 + $0x8] sm:$0xff] %v576
          %585 = vst [vmem:[%s323 + $0x10] sm:$0xff] %v577
          %586 = vst [vmem:[%s323 + $0x18] sm:$0xff] %v578
          %587 = vst [vmem:[%s323 + $0x20] sm:$0xff] %v579
          %588 = vst [vmem:[%s323 + $0x28] sm:$0xff] %v580
          %589 = vst [vmem:[%s323 + $0x30] sm:$0xff] %v581
          %590 = vst [vmem:[%s323 + $0x38] sm:$0xff] %v582
        $region78: #{rawnet3_forward.38} parent=65 // pred_fallthru
          _
        %s591 = sand.u32 %s125, 1
        %s592 = sand.u32 %s125, 1
        %s593 = smul.addr %s592, 64
        %s594 = scalar_lea.vmem [#allocation4], %s593
        // Predicated region
        $region79: #{rawnet3_forward.38} parent=65 // pred_check
          %p595 = pneg %p135
        $region80: #{rawnet3_forward.38} parent=65 // pred_check_branch
          %597 = sbr.rel (%p595) target = $region82
        $region81: #{rawnet3_forward.38} parent=65 // pred_region
          %s598 = smul.u32 4, %s19
          %s599 = smul.u32 2, %s20
          %s600 = smul.addr %s598, 12
          %s601 = sadd.s32 %s599, %s600
          %s602 = smul.addr %s601, 8
          %s603 = scalar_lea.vmem %s3, %s602
          // Predicated region
          $region83: #{rawnet3_forward.38} parent=81 // pred_check
            _
          $region84: #{rawnet3_forward.38} parent=81 // pred_check_branch
            %605 = sbr.rel (0) target = $region86
          $region85: #{rawnet3_forward.38} parent=81 // pred_region
            // Predicated region
            $region87: #{rawnet3_forward.38} parent=85 // pred_check
              _
            $region88: #{rawnet3_forward.38} parent=85 // pred_check_branch
              %607 = sbr.rel (0) target = $region90
            $region89: #{rawnet3_forward.38} parent=85 // pred_region
              loop: start=0, step=1, limit=1
              $region91: #{rawnet3_forward.38} parent=89 // loop_pre_header
                _
              $region92: #{rawnet3_forward.38} parent=89 // loop_header
                %s609 = sphi 0, %s613
                %p610 = scmp.ge.s32.totalorder %s609, 1
                %s614 = sphi %s594, %s594
                %s615 = sphi %s603, %s603
              $region93: #{rawnet3_forward.38} parent=89 // loop_header_branch
                %612 = sbr.rel (%p610) target = $region97
              $region94: #{rawnet3_forward.38} parent=89 // loop_body
                %v616 = vld [vmem:[%s614] sm:$0xff]
                %617 = vst [vmem:[%s615] sm:$0xff] %v616
                %v618 = vld [vmem:[%s614 + $0x8] sm:$0xff]
                %619 = vst [vmem:[%s615 + $0x8] sm:$0xff] %v618
                %v620 = vld [vmem:[%s614 + $0x10] sm:$0xff]
                %621 = vst [vmem:[%s615 + $0x60] sm:$0xff] %v620
                %v622 = vld [vmem:[%s614 + $0x18] sm:$0xff]
                %623 = vst [vmem:[%s615 + $0x68] sm:$0xff] %v622
                %v624 = vld [vmem:[%s614 + $0x20] sm:$0xff]
                %625 = vst [vmem:[%s615 + $0xc0] sm:$0xff] %v624
                %v626 = vld [vmem:[%s614 + $0x28] sm:$0xff]
                %627 = vst [vmem:[%s615 + $0xc8] sm:$0xff] %v626
                %v628 = vld [vmem:[%s614 + $0x30] sm:$0xff]
                %629 = vst [vmem:[%s615 + $0x120] sm:$0xff] %v628
                %v630 = vld [vmem:[%s614 + $0x38] sm:$0xff]
                %631 = vst [vmem:[%s615 + $0x128] sm:$0xff] %v630
              $region95: #{rawnet3_forward.38} parent=89 // loop_footer
                %s613 = sadd.s32 1, %s609
              $region96: #{rawnet3_forward.38} parent=89 // loop_footer_branch
                %608 = sbr.rel target = $region92
              $region97: #{rawnet3_forward.38} parent=89 // loop_exit
                _
            $region90: #{rawnet3_forward.38} parent=85 // pred_fallthru
              _
            // Predicated region
            $region98: #{rawnet3_forward.38} parent=85 // pred_check
              _
            $region99: #{rawnet3_forward.38} parent=85 // pred_check_branch
              %633 = sbr.rel target = $region101
            $region100: #{rawnet3_forward.38} parent=85 // pred_region
              _
            $region101: #{rawnet3_forward.38} parent=85 // pred_fallthru
              _
          $region86: #{rawnet3_forward.38} parent=81 // pred_fallthru
            _
          %634 = vnop
        $region82: #{rawnet3_forward.38} parent=65 // pred_fallthru
          _
      $region66: #{rawnet3_forward.38} parent=5 // pred_fallthru
        _
      %p635 = scmp.le.s32.totalorder 2, %s9
      // Predicated region
      $region102: #{rawnet3_forward.38} parent=5 // pred_check
        %p636 = pneg %p635
      $region103: #{rawnet3_forward.38} parent=5 // pred_check_branch
        %638 = sbr.rel (%p636) target = $region105
      $region104: #{rawnet3_forward.38} parent=5 // pred_region
        %s639 = ssub.s32 %s9, 2
        // Predicated region
        $region106: #{rawnet3_forward.38} parent=104 // pred_check
          %p640 = pneg %p141
        $region107: #{rawnet3_forward.38} parent=104 // pred_check_branch
          %642 = sbr.rel (%p640) target = $region109
        $region108: #{rawnet3_forward.38} parent=104 // pred_region
          %s643 = sand.u32 %s126, 1
          %s644 = sand.u32 %s126, 1
          %s645 = smul.addr %s644, 64
          %s646 = scalar_lea.vmem [#allocation4], %s645
        $region109: #{rawnet3_forward.38} parent=104 // pred_fallthru
          _
      $region105: #{rawnet3_forward.38} parent=5 // pred_fallthru
        _
    $region6: #{rawnet3_forward.38} parent=1 // loop_footer
      %s13 = sadd.s32 1, %s9
    $region7: #{rawnet3_forward.38} parent=1 // loop_footer_branch
      %8 = sbr.rel target = $region3
    $region8: #{rawnet3_forward.38} parent=1 // loop_exit
      _

// kernel: rawnet3_forward.39
$region0: #{rawnet3_forward.39}
  #allocation0 [shape = 'u32[]', space=smem, size = 0x4, offset = 0x4, fixed_abs, tag = 'smem constant byte address 0x4 - core index']
  #allocation1 [shape = 'u32[144,128]{1,0:T(1,128)}', space=vmem, size = 0x12000, scoped, tag = 'internal scratch']
  #allocation2 [shape = 'f32[32,128]{1,0:T(8,128)}', space=vmem, size = 0x4000, scoped, tag = 'scratch operand']
  %s0 = inlined_call_operand.vmem [shape: bf16[32,1536], index: 0, kind: input, shape index: {}]
  %s1 = inlined_call_operand.vmem [shape: bf16[1536,128], index: 1, kind: input, shape index: {}]
  %s2 = inlined_call_operand.vmem [shape: f32[1,128], index: 2, kind: input, shape index: {}]
  %s3 = inlined_call_operand.vmem [shape: f32[32,128], index: 3, kind: output, shape index: {}]
  %s4 = sld [smem:[#allocation0]]
  $region76: #{rawnet3_forward.39} parent=0
    _
  %s6 = ssub.s32 1, %s4
  %s7 = scalar_select 0, %s6, %s4
  $region1: #{rawnet3_forward.39} parent=0
    #allocation3 [shape = 'u8[65536]{0}', space=vmem, size = 0x10000, scoped, tag = 'input window, operand 0']
    loop: start=0, step=1, limit=5
    $region2: #{rawnet3_forward.39} parent=1 // loop_pre_header
      _
    $region3: #{rawnet3_forward.39} parent=1 // loop_header
      %s9 = sphi 0, %s13
      %p10 = scmp.ge.s32.totalorder %s9, 5
      %s16 = sphi 0, %s35
      %s17 = sphi 0, %s31
      %s18 = sphi 0, %s27
      %s19 = sphi 0, %s16
      %s20 = sphi 0, %s17
      %s21 = sphi 0, %s18
      %s22 = sphi 0, %s19
      %s23 = sphi 0, %s20
      %s24 = sphi 0, %s21
      %s40 = sphi 0, %s42
      %s43 = sphi 0, %s40
      %s44 = sphi 0, %s43
      %s60 = sphi 0, %s44
      %s68 = sphi 0, %s70
      %s71 = sphi 0, %s68
      %s72 = sphi 0, %s71
      %s88 = sphi 0, %s72
      %s94 = sphi 0, %s96
      %s97 = sphi 0, %s94
      %s98 = sphi 0, %s97
      %s114 = sphi 0, %s98
      %s122 = sphi 0, %s124
      %s125 = sphi 0, %s122
      %s126 = sphi 0, %s125
      %s142 = sphi 0, %s126
    $region4: #{rawnet3_forward.39} parent=1 // loop_header_branch
      %12 = sbr.rel (%p10) target = $region8
    $region5: #{rawnet3_forward.39} parent=1 // loop_body
      %s14 = ssub.s32 %s9, 1
      %s15 = ssub.s32 %s9, 2
      %s25 = sadd.s32 1, %s18
      %p26 = scmp.ge.s32.totalorder %s25, 3
      %s27 = scalar_select %p26, 0, %s25
      %s28 = sadd.s32 1, %s17
      %s29 = scalar_select %p26, %s28, %s17
      %p30 = scmp.ge.s32.totalorder %s29, 1
      %s31 = scalar_select %p30, 0, %s29
      %s32 = sadd.s32 1, %s16
      %s33 = scalar_select %p30, %s32, %s16
      %p34 = scmp.ge.s32.totalorder %s33, 1
      %s35 = scalar_select %p34, 0, %s33
      %s36 = ssub.s32 %s16, %s35
      %s37 = ssub.s32 %s18, %s27
      %s38 = sor.u32 %s36, %s37
      %p39 = scmp.eq.s32.totalorder %s38, 0
      %s41 = sadd.s32 %s40, 1
      %s42 = scalar_select %p39, %s40, %s41
      %p45 = pneg %p39
      %p46 = scmp.eq.s32.totalorder %s9, 2
      %p47 = por %p45, %p46
      %p48 = scmp.ne.s32.totalorder %s40, %s43
      %p49 = scmp.eq.s32.totalorder %s9, 0
      %p50 = por %p48, %p49
      %p51 = scmp.ne.s32.totalorder %s40, %s43
      %p52 = scmp.eq.s32.totalorder %s14, 2
      %p53 = por %p51, %p52
      %p54 = scmp.ne.s32.totalorder %s43, %s44
      %p55 = scmp.eq.s32.totalorder %s14, 0
      %p56 = por %p54, %p55
      %p57 = scmp.ne.s32.totalorder %s43, %s44
      %p58 = scmp.eq.s32.totalorder %s15, 2
      %p59 = por %p57, %p58
      %p61 = scmp.ne.s32.totalorder %s44, %s60
      %p62 = scmp.eq.s32.totalorder %s15, 0
      %p63 = por %p61, %p62
      %s64 = ssub.s32 %s18, %s27
      %s65 = ssub.s32 %s17, %s31
      %s66 = sor.u32 %s64, %s65
      %p67 = scmp.eq.s32.totalorder %s66, 0
      %s69 = sadd.s32 %s68, 1
      %s70 = scalar_select %p67, %s68, %s69
      %p73 = pneg %p67
      %p74 = scmp.eq.s32.totalorder %s9, 2
      %p75 = por %p73, %p74
      %p76 = scmp.ne.s32.totalorder %s68, %s71
      %p77 = scmp.eq.s32.totalorder %s9, 0
      %p78 = por %p76, %p77
      %p79 = scmp.ne.s32.totalorder %s68, %s71
      %p80 = scmp.eq.s32.totalorder %s14, 2
      %p81 = por %p79, %p80
      %p82 = scmp.ne.s32.totalorder %s71, %s72
      %p83 = scmp.eq.s32.totalorder %s14, 0
      %p84 = por %p82, %p83
      %p85 = scmp.ne.s32.totalorder %s71, %s72
      %p86 = scmp.eq.s32.totalorder %s15, 2
      %p87 = por %p85, %p86
      %p89 = scmp.ne.s32.totalorder %s72, %s88
      %p90 = scmp.eq.s32.totalorder %s15, 0
      %p91 = por %p89, %p90
      %s92 = ssub.s32 %s17, %s31
      %p93 = scmp.eq.s32.totalorder %s92, 0
      %s95 = sadd.s32 %s94, 1
      %s96 = scalar_select %p93, %s94, %s95
      %p99 = pneg %p93
      %p100 = scmp.eq.s32.totalorder %s9, 2
      %p101 = por %p99, %p100
      %p102 = scmp.ne.s32.totalorder %s94, %s97
      %p103 = scmp.eq.s32.totalorder %s9, 0
      %p104 = por %p102, %p103
      %p105 = scmp.ne.s32.totalorder %s94, %s97
      %p106 = scmp.eq.s32.totalorder %s14, 2
      %p107 = por %p105, %p106
      %p108 = scmp.ne.s32.totalorder %s97, %s98
      %p109 = scmp.eq.s32.totalorder %s14, 0
      %p110 = por %p108, %p109
      %p111 = scmp.ne.s32.totalorder %s97, %s98
      %p112 = scmp.eq.s32.totalorder %s15, 2
      %p113 = por %p111, %p112
      %p115 = scmp.ne.s32.totalorder %s98, %s114
      %p116 = scmp.eq.s32.totalorder %s15, 0
      %p117 = por %p115, %p116
      %s118 = ssub.s32 %s16, %s35
      %s119 = ssub.s32 %s17, %s31
      %s120 = sor.u32 %s118, %s119
      %p121 = scmp.eq.s32.totalorder %s120, 0
      %s123 = sadd.s32 %s122, 1
      %s124 = scalar_select %p121, %s122, %s123
      %p127 = pneg %p121
      %p128 = scmp.eq.s32.totalorder %s9, 2
      %p129 = por %p127, %p128
      %p130 = scmp.ne.s32.totalorder %s122, %s125
      %p131 = scmp.eq.s32.totalorder %s9, 0
      %p132 = por %p130, %p131
      %p133 = scmp.ne.s32.totalorder %s122, %s125
      %p134 = scmp.eq.s32.totalorder %s14, 2
      %p135 = por %p133, %p134
      %p136 = scmp.ne.s32.totalorder %s125, %s126
      %p137 = scmp.eq.s32.totalorder %s14, 0
      %p138 = por %p136, %p137
      %p139 = scmp.ne.s32.totalorder %s125, %s126
      %p140 = scmp.eq.s32.totalorder %s15, 2
      %p141 = por %p139, %p140
      %p143 = scmp.ne.s32.totalorder %s126, %s142
      %p144 = scmp.eq.s32.totalorder %s15, 0
      %p145 = por %p143, %p144
      %p146 = scmp.le.s32.totalorder 1, %s9
      %p147 = scmp.lt.s32.totalorder %s9, 4
      %p148 = pnand %p146, %p147
      %p149 = pneg %p148
      // Predicated region
      $region9: #{rawnet3_forward.39} parent=5 // pred_check
        _
      $region10: #{rawnet3_forward.39} parent=5 // pred_check_branch
        %151 = sbr.rel (%p148) target = $region12
      $region11: #{rawnet3_forward.39} parent=5 // pred_region
        %s152 = ssub.s32 %s9, 1
        // Predicated region
        $region13: #{rawnet3_forward.39} parent=11 // pred_check
          %p153 = pneg %p110
        $region14: #{rawnet3_forward.39} parent=11 // pred_check_branch
          %155 = sbr.rel (%p153) target = $region16
        $region15: #{rawnet3_forward.39} parent=11 // pred_region
          %p156 = scmp.lt.s32.totalorder %s20, 0
          %s157 = scalar_select %p156, %s20, 0
          %s158 = scalar_lea.vmem %s2, %s157
        $region16: #{rawnet3_forward.39} parent=11 // pred_fallthru
          _
      $region12: #{rawnet3_forward.39} parent=5 // pred_fallthru
        _
      %p159 = scmp.lt.s32.totalorder %s9, 3
      // Predicated region
      $region17: #{rawnet3_forward.39} parent=5 // pred_check
        %p160 = pneg %p159
      $region18: #{rawnet3_forward.39} parent=5 // pred_check_branch
        %162 = sbr.rel (%p160) target = $region20
      $region19: #{rawnet3_forward.39} parent=5 // pred_region
        // Predicated region
        $region21: #{rawnet3_forward.39} parent=19 // pred_check
          %p163 = pneg %p50
        $region22: #{rawnet3_forward.39} parent=19 // pred_check_branch
          %165 = sbr.rel (%p163) target = $region24
        $region23: #{rawnet3_forward.39} parent=19 // pred_region
          %s166 = sand.u32 %s40, 1
          %s167 = sand.u32 %s40, 1
          %s168 = smul.addr %s167, 64
          %s169 = scalar_lea.vmem [#allocation3], %s168
          %s170 = smul.u32 4, %s16
          %s171 = smul.u32 4, %s18
          %s172 = smul.addr %s170, 12
          %s173 = sadd.s32 %s171, %s172
          %s174 = smul.addr %s173, 4
          %s175 = scalar_lea.vmem %s0, %s174
          // Predicated region
          $region25: #{rawnet3_forward.39} parent=23 // pred_check
            _
          $region26: #{rawnet3_forward.39} parent=23 // pred_check_branch
            %177 = sbr.rel (0) target = $region28
          $region27: #{rawnet3_forward.39} parent=23 // pred_region
            // Predicated region
            $region29: #{rawnet3_forward.39} parent=27 // pred_check
              _
            $region30: #{rawnet3_forward.39} parent=27 // pred_check_branch
              %179 = sbr.rel (0) target = $region32
            $region31: #{rawnet3_forward.39} parent=27 // pred_region
              loop: start=0, step=1, limit=1
              $region33: #{rawnet3_forward.39} parent=31 // loop_pre_header
                _
              $region34: #{rawnet3_forward.39} parent=31 // loop_header
                %s181 = sphi 0, %s185
                %p182 = scmp.ge.s32.totalorder %s181, 1
                %s186 = sphi %s175, %s175
                %s187 = sphi %s169, %s169
              $region35: #{rawnet3_forward.39} parent=31 // loop_header_branch
                %184 = sbr.rel (%p182) target = $region39
              $region36: #{rawnet3_forward.39} parent=31 // loop_body
                %v188 = vld [vmem:[%s186] sm:$0xff]
                %189 = vst [vmem:[%s187] sm:$0xff] %v188
                %v190 = vld [vmem:[%s186 + $0x8] sm:$0xff]
                %191 = vst [vmem:[%s187 + $0x8] sm:$0xff] %v190
                %v192 = vld [vmem:[%s186 + $0x30] sm:$0xff]
                %193 = vst [vmem:[%s187 + $0x10] sm:$0xff] %v192
                %v194 = vld [vmem:[%s186 + $0x38] sm:$0xff]
                %195 = vst [vmem:[%s187 + $0x18] sm:$0xff] %v194
                %v196 = vld [vmem:[%s186 + $0x60] sm:$0xff]
                %197 = vst [vmem:[%s187 + $0x20] sm:$0xff] %v196
                %v198 = vld [vmem:[%s186 + $0x68] sm:$0xff]
                %199 = vst [vmem:[%s187 + $0x28] sm:$0xff] %v198
                %v200 = vld [vmem:[%s186 + $0x90] sm:$0xff]
                %201 = vst [vmem:[%s187 + $0x30] sm:$0xff] %v200
                %v202 = vld [vmem:[%s186 + $0x98] sm:$0xff]
                %203 = vst [vmem:[%s187 + $0x38] sm:$0xff] %v202
              $region37: #{rawnet3_forward.39} parent=31 // loop_footer
                %s185 = sadd.s32 1, %s181
              $region38: #{rawnet3_forward.39} parent=31 // loop_footer_branch
                %180 = sbr.rel target = $region34
              $region39: #{rawnet3_forward.39} parent=31 // loop_exit
                _
            $region32: #{rawnet3_forward.39} parent=27 // pred_fallthru
              _
            // Predicated region
            $region40: #{rawnet3_forward.39} parent=27 // pred_check
              _
            $region41: #{rawnet3_forward.39} parent=27 // pred_check_branch
              %205 = sbr.rel target = $region43
            $region42: #{rawnet3_forward.39} parent=27 // pred_region
              _
            $region43: #{rawnet3_forward.39} parent=27 // pred_fallthru
              _
          $region28: #{rawnet3_forward.39} parent=23 // pred_fallthru
            _
          %206 = vnop
        $region24: #{rawnet3_forward.39} parent=19 // pred_fallthru
          _
        // Predicated region
        $region44: #{rawnet3_forward.39} parent=19 // pred_check
          %p207 = pneg %p78
        $region45: #{rawnet3_forward.39} parent=19 // pred_check_branch
          %209 = sbr.rel (%p207) target = $region47
        $region46: #{rawnet3_forward.39} parent=19 // pred_region
          %s210 = smul.u32 64, %s18
          %p211 = scmp.lt.s32.totalorder %s210, 191
          %s212 = scalar_select %p211, %s210, 191
          %p213 = scmp.lt.s32.totalorder %s17, 0
          %s214 = scalar_select %p213, %s17, 0
          %s215 = sadd.s32 %s214, %s212
          %s216 = smul.addr %s215, 4
          %s217 = scalar_lea.vmem %s1, %s216
          %s218 = smul.u32 64, %s18
        $region47: #{rawnet3_forward.39} parent=19 // pred_fallthru
          _
      $region20: #{rawnet3_forward.39} parent=5 // pred_fallthru
        _
      %p219 = scmp.le.s32.totalorder 1, %s9
      %p220 = scmp.lt.s32.totalorder %s9, 4
      %p221 = pnand %p219, %p220
      %p222 = pneg %p221
      // Predicated region
      $region48: #{rawnet3_forward.39} parent=5 // pred_check
        _
      $region49: #{rawnet3_forward.39} parent=5 // pred_check_branch
        %224 = sbr.rel (%p221) target = $region51
      $region50: #{rawnet3_forward.39} parent=5 // pred_region
        %s225 = ssub.s32 %s9, 1
        %s226 = sand.u32 %s43, 1
        %s227 = sand.u32 %s43, 1
        %s228 = smul.addr %s227, 64
        %s229 = scalar_lea.vmem [#allocation3], %s228
        // Predicated region
        $region52: #{rawnet3_forward.39} parent=50 // pred_check
          %p230 = pneg %p56
        $region53: #{rawnet3_forward.39} parent=50 // pred_check_branch
          %232 = sbr.rel (%p230) target = $region55
        $region54: #{rawnet3_forward.39} parent=50 // pred_region
          _
        $region55: #{rawnet3_forward.39} parent=50 // pred_fallthru
          _
        %s233 = sand.u32 %s43, 1
        %s234 = sand.u32 %s43, 1
        %s235 = smul.addr %s234, 64
        %s236 = scalar_lea.vmem [#allocation3], %s235
        %p237 = pneg %p56
        %p238 = pneg %p53
        %s239 = smul.u32 64, %s21
        %p240 = scmp.lt.s32.totalorder %s239, 191
        %s241 = scalar_select %p240, %s239, 191
        %p242 = scmp.lt.s32.totalorder %s20, 0
        %s243 = scalar_select %p242, %s20, 0
        %s244 = sadd.s32 %s243, %s241
        %s245 = smul.addr %s244, 4
        %s246 = scalar_lea.vmem %s1, %s245
        %p247 = pneg %p84
        %p248 = pneg %p81
        %p249 = scmp.lt.s32.totalorder %s20, 0
        %s250 = scalar_select %p249, %s20, 0
        %s251 = scalar_lea.vmem %s2, %s250
        %p252 = pneg %p110
        %p253 = pneg %p107
        %p254 = pneg %p138
        %p255 = pneg %p135
        %s256 = smul.u32 4, %s19
        %p257 = scmp.lt.s32.totalorder %s256, 3
        %s258 = scalar_select %p257, %s256, 3
        %p259 = scmp.lt.s32.totalorder %s20, 0
        %s260 = scalar_select %p259, %s20, 0
        %s261 = sadd.s32 %s260, %s258
        %s262 = smul.addr %s261, 8
        %s263 = scalar_lea.vmem %s3, %s262
        %s264 = smul.u32 4, %s19
        %s265 = smul.u32 4, %s21
        %s266 = smul.u32 64, %s21
        %p267 = scmp.lt.s32.totalorder %s266, 191
        %s268 = scalar_select %p267, %s266, 191
        %p269 = scmp.lt.s32.totalorder %s20, 0
        %s270 = scalar_select %p269, %s20, 0
        %s271 = sadd.s32 %s270, %s268
        %s272 = smul.addr %s271, 4
        %s273 = scalar_lea.vmem %s1, %s272
        %s274 = smul.u32 64, %s21
        %p275 = scmp.lt.s32.totalorder %s20, 0
        %s276 = scalar_select %p275, %s20, 0
        %s277 = scalar_lea.vmem %s2, %s276
        %s278 = smul.u32 4, %s19
        %p279 = scmp.lt.s32.totalorder %s278, 3
        %s280 = scalar_select %p279, %s278, 3
        %p281 = scmp.lt.s32.totalorder %s20, 0
        %s282 = scalar_select %p281, %s20, 0
        %s283 = sadd.s32 %s282, %s280
        %s284 = smul.addr %s283, 8
        %s285 = scalar_lea.vmem %s3, %s284
        %s286 = smul.u32 4, %s19
        %p288 = scmp.eq.s32.totalorder %s21, 0
        // Predicated region
        $region56: #{rawnet3_forward.39} parent=50 // pred_check
          %p289 = pneg %p288
        $region57: #{rawnet3_forward.39} parent=50 // pred_check_branch
          %291 = sbr.rel (%p289) target = $region59
        $region58: #{rawnet3_forward.39} parent=50 // pred_region
          %292 = vst [vmem:[#allocation2] sm:$0xff] 0.0
          %293 = vst [vmem:[#allocation2 + $0x8] sm:$0xff] 0.0
          %294 = vst [vmem:[#allocation2 + $0x10] sm:$0xff] 0.0
          %295 = vst [vmem:[#allocation2 + $0x18] sm:$0xff] 0.0
        $region59: #{rawnet3_forward.39} parent=50 // pred_fallthru
          _
        %v296 = vld [vmem:[#allocation2] sm:$0xff]
        %v297 = vld [vmem:[#allocation2 + $0x8] sm:$0xff]
        %v298 = vld [vmem:[#allocation2 + $0x10] sm:$0xff]
        %v299 = vld [vmem:[#allocation2 + $0x18] sm:$0xff]
        %v300 = vld [vmem:[%s229] sm:$0xff]
        %v301 = vld [vmem:[%s229 + $0x8] sm:$0xff]
        %v302 = vld [vmem:[%s229 + $0x10] sm:$0xff]
        %v303 = vld [vmem:[%s229 + $0x18] sm:$0xff]
        %v304 = vld [vmem:[%s229 + $0x20] sm:$0xff]
        %v305 = vld [vmem:[%s229 + $0x28] sm:$0xff]
        %v306 = vld [vmem:[%s229 + $0x30] sm:$0xff]
        %v307 = vld [vmem:[%s229 + $0x38] sm:$0xff]
        %v308 = vld [vmem:[%s273] sm:$0xf]
        %v309 = vld [vmem:[%s273 + $0x4] sm:$0xf]
        %v310 = vld [vmem:[%s273 + $0x8] sm:$0xf]
        %v311 = vld [vmem:[%s273 + $0xc] sm:$0xf]
        %v312 = vld [vmem:[%s273 + $0x10] sm:$0xf]
        %v313 = vld [vmem:[%s273 + $0x14] sm:$0xf]
        %v314 = vld [vmem:[%s273 + $0x18] sm:$0xf]
        %v315 = vld [vmem:[%s273 + $0x1c] sm:$0xf]
        %v316 = vld [vmem:[%s273 + $0x20] sm:$0xf]
        %v317 = vld [vmem:[%s273 + $0x24] sm:$0xf]
        %v318 = vld [vmem:[%s273 + $0x28] sm:$0xf]
        %v319 = vld [vmem:[%s273 + $0x2c] sm:$0xf]
        %v320 = vld [vmem:[%s273 + $0x30] sm:$0xf]
        %v321 = vld [vmem:[%s273 + $0x34] sm:$0xf]
        %v322 = vld [vmem:[%s273 + $0x38] sm:$0xf]
        %v323 = vld [vmem:[%s273 + $0x3c] sm:$0xf]
        %v324 = vld [vmem:[%s273 + $0x40] sm:$0xf]
        %v325 = vld [vmem:[%s273 + $0x44] sm:$0xf]
        %v326 = vld [vmem:[%s273 + $0x48] sm:$0xf]
        %v327 = vld [vmem:[%s273 + $0x4c] sm:$0xf]
        %v328 = vld [vmem:[%s273 + $0x50] sm:$0xf]
        %v329 = vld [vmem:[%s273 + $0x54] sm:$0xf]
        %v330 = vld [vmem:[%s273 + $0x58] sm:$0xf]
        %v331 = vld [vmem:[%s273 + $0x5c] sm:$0xf]
        %v332 = vld [vmem:[%s273 + $0x60] sm:$0xf]
        %v333 = vld [vmem:[%s273 + $0x64] sm:$0xf]
        %v334 = vld [vmem:[%s273 + $0x68] sm:$0xf]
        %v335 = vld [vmem:[%s273 + $0x6c] sm:$0xf]
        %v336 = vld [vmem:[%s273 + $0x70] sm:$0xf]
        %v337 = vld [vmem:[%s273 + $0x74] sm:$0xf]
        %v338 = vld [vmem:[%s273 + $0x78] sm:$0xf]
        %v339 = vld [vmem:[%s273 + $0x7c] sm:$0xf]
        %v340 = vld [vmem:[%s273 + $0x80] sm:$0xf]
        %v341 = vld [vmem:[%s273 + $0x84] sm:$0xf]
        %v342 = vld [vmem:[%s273 + $0x88] sm:$0xf]
        %v343 = vld [vmem:[%s273 + $0x8c] sm:$0xf]
        %v344 = vld [vmem:[%s273 + $0x90] sm:$0xf]
        %v345 = vld [vmem:[%s273 + $0x94] sm:$0xf]
        %v346 = vld [vmem:[%s273 + $0x98] sm:$0xf]
        %v347 = vld [vmem:[%s273 + $0x9c] sm:$0xf]
        %v348 = vld [vmem:[%s273 + $0xa0] sm:$0xf]
        %v349 = vld [vmem:[%s273 + $0xa4] sm:$0xf]
        %v350 = vld [vmem:[%s273 + $0xa8] sm:$0xf]
        %v351 = vld [vmem:[%s273 + $0xac] sm:$0xf]
        %v352 = vld [vmem:[%s273 + $0xb0] sm:$0xf]
        %v353 = vld [vmem:[%s273 + $0xb4] sm:$0xf]
        %v354 = vld [vmem:[%s273 + $0xb8] sm:$0xf]
        %v355 = vld [vmem:[%s273 + $0xbc] sm:$0xf]
        %v356 = vld [vmem:[%s273 + $0xc0] sm:$0xf]
        %v357 = vld [vmem:[%s273 + $0xc4] sm:$0xf]
        %v358 = vld [vmem:[%s273 + $0xc8] sm:$0xf]
        %v359 = vld [vmem:[%s273 + $0xcc] sm:$0xf]
        %v360 = vld [vmem:[%s273 + $0xd0] sm:$0xf]
        %v361 = vld [vmem:[%s273 + $0xd4] sm:$0xf]
        %v362 = vld [vmem:[%s273 + $0xd8] sm:$0xf]
        %v363 = vld [vmem:[%s273 + $0xdc] sm:$0xf]
        %v364 = vld [vmem:[%s273 + $0xe0] sm:$0xf]
        %v365 = vld [vmem:[%s273 + $0xe4] sm:$0xf]
        %v366 = vld [vmem:[%s273 + $0xe8] sm:$0xf]
        %v367 = vld [vmem:[%s273 + $0xec] sm:$0xf]
        %v368 = vld [vmem:[%s273 + $0xf0] sm:$0xf]
        %v369 = vld [vmem:[%s273 + $0xf4] sm:$0xf]
        %v370 = vld [vmem:[%s273 + $0xf8] sm:$0xf]
        %v371 = vld [vmem:[%s273 + $0xfc] sm:$0xf]
        %v380 = vunpack.c.l.b16 %v300
        %v381 = vunpack.c.h.b16 %v300
        %v382 = vunpack.c.l.b16 %v301
        %v383 = vunpack.c.h.b16 %v301
        %v384 = vunpack.c.l.b16 %v302
        %v385 = vunpack.c.h.b16 %v302
        %v386 = vunpack.c.l.b16 %v303
        %v387 = vunpack.c.h.b16 %v303
        %v388 = vunpack.c.l.b16 %v304
        %v389 = vunpack.c.h.b16 %v304
        %v390 = vunpack.c.l.b16 %v305
        %v391 = vunpack.c.h.b16 %v305
        %v392 = vunpack.c.l.b16 %v306
        %v393 = vunpack.c.h.b16 %v306
        %v394 = vunpack.c.l.b16 %v307
        %v395 = vunpack.c.h.b16 %v307
        %v396 = vpack.c.b16 %v384, %v380
        %v397 = vpack.c.b16 %v385, %v381
        %v398 = vpack.c.b16 %v386, %v382
        %v399 = vpack.c.b16 %v387, %v383
        %v400 = vpack.c.b16 %v392, %v388
        %v401 = vpack.c.b16 %v393, %v389
        %v402 = vpack.c.b16 %v394, %v390
        %v403 = vpack.c.b16 %v395, %v391
        %v476 = vunpack.c.l.b16 %v308
        %v477 = vunpack.c.l.b16 %v309
        %v478 = vunpack.c.l.b16 %v310
        %v479 = vunpack.c.l.b16 %v311
        %v480 = vunpack.c.l.b16 %v312
        %v481 = vunpack.c.l.b16 %v313
        %v482 = vunpack.c.l.b16 %v314
        %v483 = vunpack.c.l.b16 %v315
        %v484 = vunpack.c.l.b16 %v316
        %v485 = vunpack.c.l.b16 %v317
        %v486 = vunpack.c.l.b16 %v318
        %v487 = vunpack.c.l.b16 %v319
        %v488 = vunpack.c.l.b16 %v320
        %v489 = vunpack.c.l.b16 %v321
        %v490 = vunpack.c.l.b16 %v322
        %v491 = vunpack.c.l.b16 %v323
        %v492 = vunpack.c.l.b16 %v324
        %v493 = vunpack.c.l.b16 %v325
        %v494 = vunpack.c.l.b16 %v326
        %v495 = vunpack.c.l.b16 %v327
        %v496 = vunpack.c.l.b16 %v328
        %v497 = vunpack.c.l.b16 %v329
        %v498 = vunpack.c.l.b16 %v330
        %v499 = vunpack.c.l.b16 %v331
        %v500 = vunpack.c.l.b16 %v332
        %v501 = vunpack.c.l.b16 %v333
        %v502 = vunpack.c.l.b16 %v334
        %v503 = vunpack.c.l.b16 %v335
        %v504 = vunpack.c.l.b16 %v336
        %v505 = vunpack.c.l.b16 %v337
        %v506 = vunpack.c.l.b16 %v338
        %v507 = vunpack.c.l.b16 %v339
        %v508 = vunpack.c.l.b16 %v340
        %v509 = vunpack.c.l.b16 %v341
        %v510 = vunpack.c.l.b16 %v342
        %v511 = vunpack.c.l.b16 %v343
        %v512 = vunpack.c.l.b16 %v344
        %v513 = vunpack.c.l.b16 %v345
        %v514 = vunpack.c.l.b16 %v346
        %v515 = vunpack.c.l.b16 %v347
        %v516 = vunpack.c.l.b16 %v348
        %v517 = vunpack.c.l.b16 %v349
        %v518 = vunpack.c.l.b16 %v350
        %v519 = vunpack.c.l.b16 %v351
        %v520 = vunpack.c.l.b16 %v352
        %v521 = vunpack.c.l.b16 %v353
        %v522 = vunpack.c.l.b16 %v354
        %v523 = vunpack.c.l.b16 %v355
        %v524 = vunpack.c.l.b16 %v356
        %v525 = vunpack.c.l.b16 %v357
        %v526 = vunpack.c.l.b16 %v358
        %v527 = vunpack.c.l.b16 %v359
        %v528 = vunpack.c.l.b16 %v360
        %v529 = vunpack.c.l.b16 %v361
        %v530 = vunpack.c.l.b16 %v362
        %v531 = vunpack.c.l.b16 %v363
        %v532 = vunpack.c.l.b16 %v364
        %v533 = vunpack.c.l.b16 %v365
        %v534 = vunpack.c.l.b16 %v366
        %v535 = vunpack.c.l.b16 %v367
        %v536 = vunpack.c.l.b16 %v368
        %v537 = vunpack.c.l.b16 %v369
        %v538 = vunpack.c.l.b16 %v370
        %v539 = vunpack.c.l.b16 %v371
        %v540 = vpack.c.b16 %v477, %v476
        %v541 = vpack.c.b16 %v479, %v478
        %v542 = vpack.c.b16 %v481, %v480
        %v543 = vpack.c.b16 %v483, %v482
        %v544 = vpack.c.b16 %v485, %v484
        %v545 = vpack.c.b16 %v487, %v486
        %v546 = vpack.c.b16 %v489, %v488
        %v547 = vpack.c.b16 %v491, %v490
        %v548 = vpack.c.b16 %v493, %v492
        %v549 = vpack.c.b16 %v495, %v494
        %v550 = vpack.c.b16 %v497, %v496
        %v551 = vpack.c.b16 %v499, %v498
        %v552 = vpack.c.b16 %v501, %v500
        %v553 = vpack.c.b16 %v503, %v502
        %v554 = vpack.c.b16 %v505, %v504
        %v555 = vpack.c.b16 %v507, %v506
        %v556 = vpack.c.b16 %v509, %v508
        %v557 = vpack.c.b16 %v511, %v510
        %v558 = vpack.c.b16 %v513, %v512
        %v559 = vpack.c.b16 %v515, %v514
        %v560 = vpack.c.b16 %v517, %v516
        %v561 = vpack.c.b16 %v519, %v518
        %v562 = vpack.c.b16 %v521, %v520
        %v563 = vpack.c.b16 %v523, %v522
        %v564 = vpack.c.b16 %v525, %v524
        %v565 = vpack.c.b16 %v527, %v526
        %v566 = vpack.c.b16 %v529, %v528
        %v567 = vpack.c.b16 %v531, %v530
        %v568 = vpack.c.b16 %v533, %v532
        %v569 = vpack.c.b16 %v535, %v534
        %v570 = vpack.c.b16 %v537, %v536
        %v571 = vpack.c.b16 %v539, %v538
        %604 = vmatprep.subr.bf16.mxu0 0
        %605 = vmatpush1.bf16.msra.mxu0 %v540
        %606 = vmatprep.subr.bf16.mxu0 0
        %607 = vmatpush1.bf16.msra.mxu0 %v541
        %608 = vmatprep.subr.bf16.mxu0 0
        %609 = vmatpush1.bf16.msra.mxu0 %v542
        %610 = vmatprep.subr.bf16.mxu0 0
        %611 = vmatpush1.bf16.msra.mxu0 %v543
        %612 = vmatprep.subr.bf16.mxu0 0
        %613 = vmatpush1.bf16.msra.mxu0 %v544
        %614 = vmatprep.subr.bf16.mxu0 0
        %615 = vmatpush1.bf16.msra.mxu0 %v545
        %616 = vmatprep.subr.bf16.mxu0 0
        %617 = vmatpush1.bf16.msra.mxu0 %v546
        %618 = vmatprep.subr.bf16.mxu0 0
        %619 = vmatpush1.bf16.msra.mxu0 %v547
        %620 = vmatprep.subr.bf16.mxu0 0
        %621 = vmatpush1.bf16.msra.mxu0 %v548
        %622 = vmatprep.subr.bf16.mxu0 0
        %623 = vmatpush1.bf16.msra.mxu0 %v549
        %624 = vmatprep.subr.bf16.mxu0 0
        %625 = vmatpush1.bf16.msra.mxu0 %v550
        %626 = vmatprep.subr.bf16.mxu0 0
        %627 = vmatpush1.bf16.msra.mxu0 %v551
        %628 = vmatprep.subr.bf16.mxu0 0
        %629 = vmatpush1.bf16.msra.mxu0 %v552
        %630 = vmatprep.subr.bf16.mxu0 0
        %631 = vmatpush1.bf16.msra.mxu0 %v553
        %632 = vmatprep.subr.bf16.mxu0 0
        %633 = vmatpush1.bf16.msra.mxu0 %v554
        %634 = vmatprep.subr.bf16.mxu0 0
        %635 = vmatpush1.bf16.msra.mxu0 %v555
        %636 = vmatprep.mubr.bf16.mxu0 %v397
        %637 = vmatmul.mubr.bf16.gmra.mrb[0].mxu0 %v396
        %v638 = vpop.f32.mrb[0].mxu0
        %v639 = vadd.f32 0.0, %v638
        %v640 = vpop.f32.mrb[0].mxu0
        %v641 = vpop.f32.mrb[0].mxu0
        %v642 = vadd.f32 0.0, %v641
        %v643 = vpop.f32.mrb[0].mxu0
        %644 = vmatprep.mubr.bf16.mxu0 %v401
        %645 = vmatmul.mubr.bf16.gmra.mrb[0].mxu0 %v400
        %v646 = vpop.f32.mrb[0].mxu0
        %v647 = vadd.f32 0.0, %v646
        %v648 = vpop.f32.mrb[0].mxu0
        %v649 = vpop.f32.mrb[0].mxu0
        %v650 = vadd.f32 0.0, %v649
        %v651 = vpop.f32.mrb[0].mxu0
        %652 = vdwg.mxu0
        %653 = vmatprep.subr.bf16.mxu0 0
        %654 = vmatpush1.bf16.msra.mxu0 %v556
        %655 = vmatprep.subr.bf16.mxu0 0
        %656 = vmatpush1.bf16.msra.mxu0 %v557
        %657 = vmatprep.subr.bf16.mxu0 0
        %658 = vmatpush1.bf16.msra.mxu0 %v558
        %659 = vmatprep.subr.bf16.mxu0 0
        %660 = vmatpush1.bf16.msra.mxu0 %v559
        %661 = vmatprep.subr.bf16.mxu0 0
        %662 = vmatpush1.bf16.msra.mxu0 %v560
        %663 = vmatprep.subr.bf16.mxu0 0
        %664 = vmatpush1.bf16.msra.mxu0 %v561
        %665 = vmatprep.subr.bf16.mxu0 0
        %666 = vmatpush1.bf16.msra.mxu0 %v562
        %667 = vmatprep.subr.bf16.mxu0 0
        %668 = vmatpush1.bf16.msra.mxu0 %v563
        %669 = vmatprep.subr.bf16.mxu0 0
        %670 = vmatpush1.bf16.msra.mxu0 %v564
        %671 = vmatprep.subr.bf16.mxu0 0
        %672 = vmatpush1.bf16.msra.mxu0 %v565
        %673 = vmatprep.subr.bf16.mxu0 0
        %674 = vmatpush1.bf16.msra.mxu0 %v566
        %675 = vmatprep.subr.bf16.mxu0 0
        %676 = vmatpush1.bf16.msra.mxu0 %v567
        %677 = vmatprep.subr.bf16.mxu0 0
        %678 = vmatpush1.bf16.msra.mxu0 %v568
        %679 = vmatprep.subr.bf16.mxu0 0
        %680 = vmatpush1.bf16.msra.mxu0 %v569
        %681 = vmatprep.subr.bf16.mxu0 0
        %682 = vmatpush1.bf16.msra.mxu0 %v570
        %683 = vmatprep.subr.bf16.mxu0 0
        %684 = vmatpush1.bf16.msra.mxu0 %v571
        %685 = vmatprep.mubr.bf16.mxu0 %v399
        %686 = vmatmul.mubr.bf16.gmra.mrb[0].mxu0 %v398
        %v687 = vpop.f32.mrb[0].mxu0
        %v688 = vadd.f32 %v639, %v687
        %v689 = vpop.f32.mrb[0].mxu0
        %v690 = vpop.f32.mrb[0].mxu0
        %v691 = vadd.f32 %v642, %v690
        %v692 = vpop.f32.mrb[0].mxu0
        %693 = vmatprep.mubr.bf16.mxu0 %v403
        %694 = vmatmul.mubr.bf16.gmra.mrb[0].mxu0 %v402
        %v695 = vpop.f32.mrb[0].mxu0
        %v696 = vadd.f32 %v647, %v695
        %v697 = vpop.f32.mrb[0].mxu0
        %v698 = vpop.f32.mrb[0].mxu0
        %v699 = vadd.f32 %v650, %v698
        %v700 = vpop.f32.mrb[0].mxu0
        %701 = vdwg.mxu0
        %v702 = vadd.f32 %v296, %v688
        %v703 = vadd.f32 %v297, %v691
        %v704 = vadd.f32 %v298, %v696
        %v705 = vadd.f32 %v299, %v699
        %706 = vst [vmem:[#allocation2] sm:$0xff] %v702
        %707 = vst [vmem:[#allocation2 + $0x8] sm:$0xff] %v703
        %708 = vst [vmem:[#allocation2 + $0x10] sm:$0xff] %v704
        %709 = vst [vmem:[#allocation2 + $0x18] sm:$0xff] %v705
        %p710 = scmp.eq.s32.totalorder %s21, 2
        // Predicated region
        $region60: #{rawnet3_forward.39} parent=50 // pred_check
          %p711 = pneg %p710
        $region61: #{rawnet3_forward.39} parent=50 // pred_check_branch
          %713 = sbr.rel (%p711) target = $region63
        $region62: #{rawnet3_forward.39} parent=50 // pred_region
          %v714 = vld [vmem:[#allocation2] sm:$0xff]
          %v715 = vld [vmem:[#allocation2 + $0x8] sm:$0xff]
          %v716 = vld [vmem:[#allocation2 + $0x10] sm:$0xff]
          %v717 = vld [vmem:[#allocation2 + $0x18] sm:$0xff]
          %v718 = vld [vmem:[%s277] sm:$0x1]
          %v720 = vlaneseq
          %v721 = vshrl.u32 %v720, 7
          %v722 = vsub.s32 0, %v721
          %v723 = vrot.slane %v718, %v722
          %v725 = vadd.f32 %v714, %v723
          %v726 = vadd.f32 %v715, %v723
          %v727 = vadd.f32 %v716, %v723
          %v728 = vadd.f32 %v717, %v723
          %729 = vst [vmem:[%s285] sm:$0xff] %v725
          %730 = vst [vmem:[%s285 + $0x8] sm:$0xff] %v726
          %731 = vst [vmem:[%s285 + $0x10] sm:$0xff] %v727
          %732 = vst [vmem:[%s285 + $0x18] sm:$0xff] %v728
        $region63: #{rawnet3_forward.39} parent=50 // pred_fallthru
          _
        %s733 = smul.u32 4, %s19
        %p734 = scmp.lt.s32.totalorder %s733, 3
        %s735 = scalar_select %p734, %s733, 3
        %p736 = scmp.lt.s32.totalorder %s20, 0
        %s737 = scalar_select %p736, %s20, 0
        %s738 = sadd.s32 %s737, %s735
        %s739 = smul.addr %s738, 8
        %s740 = scalar_lea.vmem %s3, %s739
        // Predicated region
        $region64: #{rawnet3_forward.39} parent=50 // pred_check
          %p741 = pneg %p135
        $region65: #{rawnet3_forward.39} parent=50 // pred_check_branch
          %743 = sbr.rel (%p741) target = $region67
        $region66: #{rawnet3_forward.39} parent=50 // pred_region
          %s744 = smul.u32 4, %s19
        $region67: #{rawnet3_forward.39} parent=50 // pred_fallthru
          _
        // Predicated region
        $region68: #{rawnet3_forward.39} parent=50 // pred_check
          %p745 = pneg %p135
        $region69: #{rawnet3_forward.39} parent=50 // pred_check_branch
          %747 = sbr.rel (%p745) target = $region71
        $region70: #{rawnet3_forward.39} parent=50 // pred_region
          %s748 = smul.u32 4, %s19
          %p749 = scmp.lt.s32.totalorder %s748, 3
          %s750 = scalar_select %p749, %s748, 3
          %p751 = scmp.lt.s32.totalorder %s20, 0
          %s752 = scalar_select %p751, %s20, 0
          %s753 = sadd.s32 %s752, %s750
          %s754 = smul.addr %s753, 8
          %s755 = scalar_lea.vmem %s3, %s754
        $region71: #{rawnet3_forward.39} parent=50 // pred_fallthru
          _
      $region51: #{rawnet3_forward.39} parent=5 // pred_fallthru
        _
      %p756 = scmp.le.s32.totalorder 2, %s9
      // Predicated region
      $region72: #{rawnet3_forward.39} parent=5 // pred_check
        %p757 = pneg %p756
      $region73: #{rawnet3_forward.39} parent=5 // pred_check_branch
        %759 = sbr.rel (%p757) target = $region75
      $region74: #{rawnet3_forward.39} parent=5 // pred_region
        %s760 = ssub.s32 %s9, 2
      $region75: #{rawnet3_forward.39} parent=5 // pred_fallthru
        _
    $region6: #{rawnet3_forward.39} parent=1 // loop_footer
      %s13 = sadd.s32 1, %s9
    $region7: #{rawnet3_forward.39} parent=1 // loop_footer_branch
      %8 = sbr.rel target = $region3
    $region8: #{rawnet3_forward.39} parent=1 // loop_exit
      _

// kernel: rawnet3_forward.40
$region0: #{rawnet3_forward.40}
  #allocation0 [shape = 'u32[]', space=smem, size = 0x4, offset = 0x4, fixed_abs, tag = 'smem constant byte address 0x4 - core index']
  #allocation1 [shape = 'u32[144,128]{1,0:T(1,128)}', space=vmem, size = 0x12000, scoped, tag = 'internal scratch']
  #allocation2 [shape = 'f32[32,256]{1,0:T(8,128)}', space=vmem, size = 0x8000, scoped, tag = 'scratch operand']
  %s0 = inlined_call_operand.vmem [shape: bf16[32,128], index: 0, kind: input, shape index: {}]
  %s1 = inlined_call_operand.vmem [shape: bf16[128,1536], index: 1, kind: input, shape index: {}]
  %s2 = inlined_call_operand.vmem [shape: f32[1,1536], index: 2, kind: input, shape index: {}]
  %s3 = inlined_call_operand.vmem [shape: f32[32,1536], index: 3, kind: output, shape index: {}]
  %s4 = sld [smem:[#allocation0]]
  $region110: #{rawnet3_forward.40} parent=0
    _
  %s6 = ssub.s32 1, %s4
  %s7 = scalar_select 0, %s6, %s4
  $region1: #{rawnet3_forward.40} parent=0
    #allocation3 [shape = 'u8[131072]{0}', space=vmem, size = 0x20000, scoped, tag = 'input window, operand 1']
    #allocation4 [shape = 'u8[65536]{0}', space=vmem, size = 0x10000, scoped, tag = 'output window, operand 0']
    loop: start=0, step=1, limit=8
    $region2: #{rawnet3_forward.40} parent=1 // loop_pre_header
      _
    $region3: #{rawnet3_forward.40} parent=1 // loop_header
      %s9 = sphi 0, %s13
      %p10 = scmp.ge.s32.totalorder %s9, 8
      %s16 = sphi 0, %s35
      %s17 = sphi 0, %s31
      %s18 = sphi 0, %s27
      %s19 = sphi 0, %s16
      %s20 = sphi 0, %s17
      %s21 = sphi 0, %s18
      %s22 = sphi 0, %s19
      %s23 = sphi 0, %s20
      %s24 = sphi 0, %s21
      %s40 = sphi 0, %s42
      %s43 = sphi 0, %s40
      %s44 = sphi 0, %s43
      %s60 = sphi 0, %s44
      %s68 = sphi 0, %s70
      %s71 = sphi 0, %s68
      %s72 = sphi 0, %s71
      %s88 = sphi 0, %s72
      %s94 = sphi 0, %s96
      %s97 = sphi 0, %s94
      %s98 = sphi 0, %s97
      %s114 = sphi 0, %s98
      %s122 = sphi 0, %s124
      %s125 = sphi 0, %s122
      %s126 = sphi 0, %s125
      %s142 = sphi 0, %s126
    $region4: #{rawnet3_forward.40} parent=1 // loop_header_branch
      %12 = sbr.rel (%p10) target = $region8
    $region5: #{rawnet3_forward.40} parent=1 // loop_body
      %s14 = ssub.s32 %s9, 1
      %s15 = ssub.s32 %s9, 2
      %s25 = sadd.s32 1, %s18
      %p26 = scmp.ge.s32.totalorder %s25, 1
      %s27 = scalar_select %p26, 0, %s25
      %s28 = sadd.s32 1, %s17
      %s29 = scalar_select %p26, %s28, %s17
      %p30 = scmp.ge.s32.totalorder %s29, 6
      %s31 = scalar_select %p30, 0, %s29
      %s32 = sadd.s32 1, %s16
      %s33 = scalar_select %p30, %s32, %s16
      %p34 = scmp.ge.s32.totalorder %s33, 1
      %s35 = scalar_select %p34, 0, %s33
      %s36 = ssub.s32 %s16, %s35
      %s37 = ssub.s32 %s18, %s27
      %s38 = sor.u32 %s36, %s37
      %p39 = scmp.eq.s32.totalorder %s38, 0
      %s41 = sadd.s32 %s40, 1
      %s42 = scalar_select %p39, %s40, %s41
      %p45 = pneg %p39
      %p46 = scmp.eq.s32.totalorder %s9, 5
      %p47 = por %p45, %p46
      %p48 = scmp.ne.s32.totalorder %s40, %s43
      %p49 = scmp.eq.s32.totalorder %s9, 0
      %p50 = por %p48, %p49
      %p51 = scmp.ne.s32.totalorder %s40, %s43
      %p52 = scmp.eq.s32.totalorder %s14, 5
      %p53 = por %p51, %p52
      %p54 = scmp.ne.s32.totalorder %s43, %s44
      %p55 = scmp.eq.s32.totalorder %s14, 0
      %p56 = por %p54, %p55
      %p57 = scmp.ne.s32.totalorder %s43, %s44
      %p58 = scmp.eq.s32.totalorder %s15, 5
      %p59 = por %p57, %p58
      %p61 = scmp.ne.s32.totalorder %s44, %s60
      %p62 = scmp.eq.s32.totalorder %s15, 0
      %p63 = por %p61, %p62
      %s64 = ssub.s32 %s18, %s27
      %s65 = ssub.s32 %s17, %s31
      %s66 = sor.u32 %s64, %s65
      %p67 = scmp.eq.s32.totalorder %s66, 0
      %s69 = sadd.s32 %s68, 1
      %s70 = scalar_select %p67, %s68, %s69
      %p73 = pneg %p67
      %p74 = scmp.eq.s32.totalorder %s9, 5
      %p75 = por %p73, %p74
      %p76 = scmp.ne.s32.totalorder %s68, %s71
      %p77 = scmp.eq.s32.totalorder %s9, 0
      %p78 = por %p76, %p77
      %p79 = scmp.ne.s32.totalorder %s68, %s71
      %p80 = scmp.eq.s32.totalorder %s14, 5
      %p81 = por %p79, %p80
      %p82 = scmp.ne.s32.totalorder %s71, %s72
      %p83 = scmp.eq.s32.totalorder %s14, 0
      %p84 = por %p82, %p83
      %p85 = scmp.ne.s32.totalorder %s71, %s72
      %p86 = scmp.eq.s32.totalorder %s15, 5
      %p87 = por %p85, %p86
      %p89 = scmp.ne.s32.totalorder %s72, %s88
      %p90 = scmp.eq.s32.totalorder %s15, 0
      %p91 = por %p89, %p90
      %s92 = ssub.s32 %s17, %s31
      %p93 = scmp.eq.s32.totalorder %s92, 0
      %s95 = sadd.s32 %s94, 1
      %s96 = scalar_select %p93, %s94, %s95
      %p99 = pneg %p93
      %p100 = scmp.eq.s32.totalorder %s9, 5
      %p101 = por %p99, %p100
      %p102 = scmp.ne.s32.totalorder %s94, %s97
      %p103 = scmp.eq.s32.totalorder %s9, 0
      %p104 = por %p102, %p103
      %p105 = scmp.ne.s32.totalorder %s94, %s97
      %p106 = scmp.eq.s32.totalorder %s14, 5
      %p107 = por %p105, %p106
      %p108 = scmp.ne.s32.totalorder %s97, %s98
      %p109 = scmp.eq.s32.totalorder %s14, 0
      %p110 = por %p108, %p109
      %p111 = scmp.ne.s32.totalorder %s97, %s98
      %p112 = scmp.eq.s32.totalorder %s15, 5
      %p113 = por %p111, %p112
      %p115 = scmp.ne.s32.totalorder %s98, %s114
      %p116 = scmp.eq.s32.totalorder %s15, 0
      %p117 = por %p115, %p116
      %s118 = ssub.s32 %s16, %s35
      %s119 = ssub.s32 %s17, %s31
      %s120 = sor.u32 %s118, %s119
      %p121 = scmp.eq.s32.totalorder %s120, 0
      %s123 = sadd.s32 %s122, 1
      %s124 = scalar_select %p121, %s122, %s123
      %p127 = pneg %p121
      %p128 = scmp.eq.s32.totalorder %s9, 5
      %p129 = por %p127, %p128
      %p130 = scmp.ne.s32.totalorder %s122, %s125
      %p131 = scmp.eq.s32.totalorder %s9, 0
      %p132 = por %p130, %p131
      %p133 = scmp.ne.s32.totalorder %s122, %s125
      %p134 = scmp.eq.s32.totalorder %s14, 5
      %p135 = por %p133, %p134
      %p136 = scmp.ne.s32.totalorder %s125, %s126
      %p137 = scmp.eq.s32.totalorder %s14, 0
      %p138 = por %p136, %p137
      %p139 = scmp.ne.s32.totalorder %s125, %s126
      %p140 = scmp.eq.s32.totalorder %s15, 5
      %p141 = por %p139, %p140
      %p143 = scmp.ne.s32.totalorder %s126, %s142
      %p144 = scmp.eq.s32.totalorder %s15, 0
      %p145 = por %p143, %p144
      %p146 = scmp.le.s32.totalorder 1, %s9
      %p147 = scmp.lt.s32.totalorder %s9, 7
      %p148 = pnand %p146, %p147
      %p149 = pneg %p148
      // Predicated region
      $region9: #{rawnet3_forward.40} parent=5 // pred_check
        _
      $region10: #{rawnet3_forward.40} parent=5 // pred_check_branch
        %151 = sbr.rel (%p148) target = $region12
      $region11: #{rawnet3_forward.40} parent=5 // pred_region
        %s152 = ssub.s32 %s9, 1
        // Predicated region
        $region13: #{rawnet3_forward.40} parent=11 // pred_check
          %p153 = pneg %p56
        $region14: #{rawnet3_forward.40} parent=11 // pred_check_branch
          %155 = sbr.rel (%p153) target = $region16
        $region15: #{rawnet3_forward.40} parent=11 // pred_region
          %s156 = smul.u32 4, %s19
          %p157 = scmp.lt.s32.totalorder %s156, 3
          %s158 = scalar_select %p157, %s156, 3
          %p159 = scmp.lt.s32.totalorder %s21, 0
          %s160 = scalar_select %p159, %s21, 0
          %s161 = sadd.s32 %s160, %s158
          %s162 = smul.addr %s161, 4
          %s163 = scalar_lea.vmem %s0, %s162
          %s164 = smul.u32 4, %s19
        $region16: #{rawnet3_forward.40} parent=11 // pred_fallthru
          _
      $region12: #{rawnet3_forward.40} parent=5 // pred_fallthru
        _
      %p165 = scmp.lt.s32.totalorder %s9, 6
      // Predicated region
      $region17: #{rawnet3_forward.40} parent=5 // pred_check
        %p166 = pneg %p165
      $region18: #{rawnet3_forward.40} parent=5 // pred_check_branch
        %168 = sbr.rel (%p166) target = $region20
      $region19: #{rawnet3_forward.40} parent=5 // pred_region
        // Predicated region
        $region21: #{rawnet3_forward.40} parent=19 // pred_check
          %p169 = pneg %p78
        $region22: #{rawnet3_forward.40} parent=19 // pred_check_branch
          %171 = sbr.rel (%p169) target = $region24
        $region23: #{rawnet3_forward.40} parent=19 // pred_region
          %s172 = sand.u32 %s68, 1
          %s173 = sand.u32 %s68, 1
          %s174 = smul.addr %s173, 128
          %s175 = scalar_lea.vmem [#allocation3], %s174
          %s176 = smul.u32 16, %s18
          %s177 = smul.u32 2, %s17
          %s178 = smul.addr %s176, 12
          %s179 = sadd.s32 %s177, %s178
          %s180 = smul.addr %s179, 4
          %s181 = scalar_lea.vmem %s1, %s180
          // Predicated region
          $region25: #{rawnet3_forward.40} parent=23 // pred_check
            _
          $region26: #{rawnet3_forward.40} parent=23 // pred_check_branch
            %183 = sbr.rel (0) target = $region28
          $region27: #{rawnet3_forward.40} parent=23 // pred_region
            // Predicated region
            $region29: #{rawnet3_forward.40} parent=27 // pred_check
              _
            $region30: #{rawnet3_forward.40} parent=27 // pred_check_branch
              %185 = sbr.rel (0) target = $region32
            $region31: #{rawnet3_forward.40} parent=27 // pred_region
              // Predicated region
              $region44: #{rawnet3_forward.40} parent=31 // pred_check
                _
              $region45: #{rawnet3_forward.40} parent=31 // pred_check_branch
                %230 = sbr.rel (0) target = $region47
              $region46: #{rawnet3_forward.40} parent=31 // pred_region
                loop: start=0, step=1, limit=1
                $region48: #{rawnet3_forward.40} parent=46 // loop_pre_header
                  _
                $region49: #{rawnet3_forward.40} parent=46 // loop_header
                  %s232 = sphi 0, %s236
                  %p233 = scmp.ge.s32.totalorder %s232, 1
                  %s237 = sphi %s181, %s181
                  %s238 = sphi %s175, %s175
                $region50: #{rawnet3_forward.40} parent=46 // loop_header_branch
                  %235 = sbr.rel (%p233) target = $region54
                $region51: #{rawnet3_forward.40} parent=46 // loop_body
                  %v239 = vld [vmem:[%s237] sm:$0xff]
                  %240 = vst [vmem:[%s238] sm:$0xff] %v239
                  %v241 = vld [vmem:[%s237 + $0x30] sm:$0xff]
                  %242 = vst [vmem:[%s238 + $0x8] sm:$0xff] %v241
                  %v243 = vld [vmem:[%s237 + $0x60] sm:$0xff]
                  %244 = vst [vmem:[%s238 + $0x10] sm:$0xff] %v243
                  %v245 = vld [vmem:[%s237 + $0x90] sm:$0xff]
                  %246 = vst [vmem:[%s238 + $0x18] sm:$0xff] %v245
                  %v247 = vld [vmem:[%s237 + $0xc0] sm:$0xff]
                  %248 = vst [vmem:[%s238 + $0x20] sm:$0xff] %v247
                  %v249 = vld [vmem:[%s237 + $0xf0] sm:$0xff]
                  %250 = vst [vmem:[%s238 + $0x28] sm:$0xff] %v249
                  %v251 = vld [vmem:[%s237 + $0x120] sm:$0xff]
                  %252 = vst [vmem:[%s238 + $0x30] sm:$0xff] %v251
                  %v253 = vld [vmem:[%s237 + $0x150] sm:$0xff]
                  %254 = vst [vmem:[%s238 + $0x38] sm:$0xff] %v253
                  %v255 = vld [vmem:[%s237 + $0x180] sm:$0xff]
                  %256 = vst [vmem:[%s238 + $0x40] sm:$0xff] %v255
                  %v257 = vld [vmem:[%s237 + $0x1b0] sm:$0xff]
                  %258 = vst [vmem:[%s238 + $0x48] sm:$0xff] %v257
                  %v259 = vld [vmem:[%s237 + $0x1e0] sm:$0xff]
                  %260 = vst [vmem:[%s238 + $0x50] sm:$0xff] %v259
                  %v261 = vld [vmem:[%s237 + $0x210] sm:$0xff]
                  %262 = vst [vmem:[%s238 + $0x58] sm:$0xff] %v261
                  %v263 = vld [vmem:[%s237 + $0x240] sm:$0xff]
                  %264 = vst [vmem:[%s238 + $0x60] sm:$0xff] %v263
                  %v265 = vld [vmem:[%s237 + $0x270] sm:$0xff]
                  %266 = vst [vmem:[%s238 + $0x68] sm:$0xff] %v265
                  %v267 = vld [vmem:[%s237 + $0x2a0] sm:$0xff]
                  %268 = vst [vmem:[%s238 + $0x70] sm:$0xff] %v267
                  %v269 = vld [vmem:[%s237 + $0x2d0] sm:$0xff]
                  %270 = vst [vmem:[%s238 + $0x78] sm:$0xff] %v269
                $region52: #{rawnet3_forward.40} parent=46 // loop_footer
                  %s236 = sadd.s32 1, %s232
                $region53: #{rawnet3_forward.40} parent=46 // loop_footer_branch
                  %231 = sbr.rel target = $region49
                $region54: #{rawnet3_forward.40} parent=46 // loop_exit
                  _
              $region47: #{rawnet3_forward.40} parent=31 // pred_fallthru
                _
              // Predicated region
              $region55: #{rawnet3_forward.40} parent=31 // pred_check
                _
              $region56: #{rawnet3_forward.40} parent=31 // pred_check_branch
                %272 = sbr.rel target = $region58
              $region57: #{rawnet3_forward.40} parent=31 // pred_region
                _
              $region58: #{rawnet3_forward.40} parent=31 // pred_fallthru
                _
            $region32: #{rawnet3_forward.40} parent=27 // pred_fallthru
              _
            // Predicated region
            $region33: #{rawnet3_forward.40} parent=27 // pred_check
              _
            $region34: #{rawnet3_forward.40} parent=27 // pred_check_branch
              %187 = sbr.rel target = $region36
            $region35: #{rawnet3_forward.40} parent=27 // pred_region
              loop: start=0, step=1, limit=1
              $region37: #{rawnet3_forward.40} parent=35 // loop_pre_header
                _
              $region38: #{rawnet3_forward.40} parent=35 // loop_header
                %s190 = sphi 0, %s194
                %p191 = scmp.ge.s32.totalorder %s190, 1
                %s195 = sphi %s181, %s181
                %s196 = sphi %s175, %s175
              $region39: #{rawnet3_forward.40} parent=35 // loop_header_branch
                %193 = sbr.rel (%p191) target = $region43
              $region40: #{rawnet3_forward.40} parent=35 // loop_body
                %v197 = vld [vmem:[%s195] sm:$0xff]
                %198 = vst [vmem:[%s196] sm:$0xff] %v197
                %v199 = vld [vmem:[%s195 + $0x30] sm:$0xff]
                %200 = vst [vmem:[%s196 + $0x8] sm:$0xff] %v199
                %v201 = vld [vmem:[%s195 + $0x60] sm:$0xff]
                %202 = vst [vmem:[%s196 + $0x10] sm:$0xff] %v201
                %v203 = vld [vmem:[%s195 + $0x90] sm:$0xff]
                %204 = vst [vmem:[%s196 + $0x18] sm:$0xff] %v203
                %v205 = vld [vmem:[%s195 + $0xc0] sm:$0xff]
                %206 = vst [vmem:[%s196 + $0x20] sm:$0xff] %v205
                %v207 = vld [vmem:[%s195 + $0xf0] sm:$0xff]
                %208 = vst [vmem:[%s196 + $0x28] sm:$0xff] %v207
                %v209 = vld [vmem:[%s195 + $0x120] sm:$0xff]
                %210 = vst [vmem:[%s196 + $0x30] sm:$0xff] %v209
                %v211 = vld [vmem:[%s195 + $0x150] sm:$0xff]
                %212 = vst [vmem:[%s196 + $0x38] sm:$0xff] %v211
                %v213 = vld [vmem:[%s195 + $0x180] sm:$0xff]
                %214 = vst [vmem:[%s196 + $0x40] sm:$0xff] %v213
                %v215 = vld [vmem:[%s195 + $0x1b0] sm:$0xff]
                %216 = vst [vmem:[%s196 + $0x48] sm:$0xff] %v215
                %v217 = vld [vmem:[%s195 + $0x1e0] sm:$0xff]
                %218 = vst [vmem:[%s196 + $0x50] sm:$0xff] %v217
                %v219 = vld [vmem:[%s195 + $0x210] sm:$0xff]
                %220 = vst [vmem:[%s196 + $0x58] sm:$0xff] %v219
                %v221 = vld [vmem:[%s195 + $0x240] sm:$0xff]
                %222 = vst [vmem:[%s196 + $0x60] sm:$0xff] %v221
                %v223 = vld [vmem:[%s195 + $0x270] sm:$0xff]
                %224 = vst [vmem:[%s196 + $0x68] sm:$0xff] %v223
                %v225 = vld [vmem:[%s195 + $0x2a0] sm:$0xff]
                %226 = vst [vmem:[%s196 + $0x70] sm:$0xff] %v225
                %v227 = vld [vmem:[%s195 + $0x2d0] sm:$0xff]
                %228 = vst [vmem:[%s196 + $0x78] sm:$0xff] %v227
              $region41: #{rawnet3_forward.40} parent=35 // loop_footer
                %s194 = sadd.s32 1, %s190
              $region42: #{rawnet3_forward.40} parent=35 // loop_footer_branch
                %189 = sbr.rel target = $region38
              $region43: #{rawnet3_forward.40} parent=35 // loop_exit
                _
            $region36: #{rawnet3_forward.40} parent=27 // pred_fallthru
              _
          $region28: #{rawnet3_forward.40} parent=23 // pred_fallthru
            _
          %273 = vnop
        $region24: #{rawnet3_forward.40} parent=19 // pred_fallthru
          _
        // Predicated region
        $region59: #{rawnet3_forward.40} parent=19 // pred_check
          %p274 = pneg %p104
        $region60: #{rawnet3_forward.40} parent=19 // pred_check_branch
          %276 = sbr.rel (%p274) target = $region62
        $region61: #{rawnet3_forward.40} parent=19 // pred_region
          %s277 = smul.u32 2, %s17
          %p278 = scmp.lt.s32.totalorder %s277, 11
          %s279 = scalar_select %p278, %s277, 11
          %s280 = scalar_lea.vmem %s2, %s279
          %s281 = smul.u32 2, %s17
        $region62: #{rawnet3_forward.40} parent=19 // pred_fallthru
          _
      $region20: #{rawnet3_forward.40} parent=5 // pred_fallthru
        _
      %p282 = scmp.le.s32.totalorder 1, %s9
      %p283 = scmp.lt.s32.totalorder %s9, 7
      %p284 = pnand %p282, %p283
      %p285 = pneg %p284
      // Predicated region
      $region63: #{rawnet3_forward.40} parent=5 // pred_check
        _
      $region64: #{rawnet3_forward.40} parent=5 // pred_check_branch
        %287 = sbr.rel (%p284) target = $region66
      $region65: #{rawnet3_forward.40} parent=5 // pred_region
        %s288 = ssub.s32 %s9, 1
        %s289 = sand.u32 %s71, 1
        %s290 = sand.u32 %s71, 1
        %s291 = smul.addr %s290, 128
        %s292 = scalar_lea.vmem [#allocation3], %s291
        // Predicated region
        $region67: #{rawnet3_forward.40} parent=65 // pred_check
          %p293 = pneg %p84
        $region68: #{rawnet3_forward.40} parent=65 // pred_check_branch
          %295 = sbr.rel (%p293) target = $region70
        $region69: #{rawnet3_forward.40} parent=65 // pred_region
          _
        $region70: #{rawnet3_forward.40} parent=65 // pred_fallthru
          _
        %s296 = smul.u32 4, %s19
        %p297 = scmp.lt.s32.totalorder %s296, 3
        %s298 = scalar_select %p297, %s296, 3
        %p299 = scmp.lt.s32.totalorder %s21, 0
        %s300 = scalar_select %p299, %s21, 0
        %s301 = sadd.s32 %s300, %s298
        %s302 = smul.addr %s301, 4
        %s303 = scalar_lea.vmem %s0, %s302
        %p304 = pneg %p56
        %p305 = pneg %p53
        %s306 = sand.u32 %s71, 1
        %s307 = sand.u32 %s71, 1
        %s308 = smul.addr %s307, 128
        %s309 = scalar_lea.vmem [#allocation3], %s308
        %p310 = pneg %p84
        %p311 = pneg %p81
        %s312 = smul.u32 2, %s20
        %p313 = scmp.lt.s32.totalorder %s312, 11
        %s314 = scalar_select %p313, %s312, 11
        %s315 = scalar_lea.vmem %s2, %s314
        %p316 = pneg %p110
        %p317 = pneg %p107
        %p318 = pneg %p138
        %p319 = pneg %p135
        %s320 = sand.u32 %s125, 1
        %s321 = sand.u32 %s125, 1
        %s322 = smul.addr %s321, 64
        %s323 = scalar_lea.vmem [#allocation4], %s322
        %s324 = smul.u32 4, %s19
        %p325 = scmp.lt.s32.totalorder %s324, 3
        %s326 = scalar_select %p325, %s324, 3
        %p327 = scmp.lt.s32.totalorder %s21, 0
        %s328 = scalar_select %p327, %s21, 0
        %s329 = sadd.s32 %s328, %s326
        %s330 = smul.addr %s329, 4
        %s331 = scalar_lea.vmem %s0, %s330
        %s332 = smul.u32 4, %s19
        %s333 = smul.u32 16, %s21
        %s334 = smul.u32 2, %s20
        %s335 = smul.u32 2, %s20
        %p336 = scmp.lt.s32.totalorder %s335, 11
        %s337 = scalar_select %p336, %s335, 11
        %s338 = scalar_lea.vmem %s2, %s337
        %s339 = smul.u32 2, %s20
        %s340 = smul.u32 4, %s19
        %s341 = smul.u32 2, %s20
        %p343 = scmp.eq.s32.totalorder %s21, 0
        // Predicated region
        $region71: #{rawnet3_forward.40} parent=65 // pred_check
          %p344 = pneg %p343
        $region72: #{rawnet3_forward.40} parent=65 // pred_check_branch
          %346 = sbr.rel (%p344) target = $region74
        $region73: #{rawnet3_forward.40} parent=65 // pred_region
          %347 = vst [vmem:[#allocation2] sm:$0xff] 0.0
          %348 = vst [vmem:[#allocation2 + $0x8] sm:$0xff] 0.0
          %349 = vst [vmem:[#allocation2 + $0x10] sm:$0xff] 0.0
          %350 = vst [vmem:[#allocation2 + $0x18] sm:$0xff] 0.0
          %351 = vst [vmem:[#allocation2 + $0x20] sm:$0xff] 0.0
          %352 = vst [vmem:[#allocation2 + $0x28] sm:$0xff] 0.0
          %353 = vst [vmem:[#allocation2 + $0x30] sm:$0xff] 0.0
          %354 = vst [vmem:[#allocation2 + $0x38] sm:$0xff] 0.0
        $region74: #{rawnet3_forward.40} parent=65 // pred_fallthru
          _
        %v355 = vld [vmem:[#allocation2] sm:$0xff]
        %v356 = vld [vmem:[#allocation2 + $0x8] sm:$0xff]
        %v357 = vld [vmem:[#allocation2 + $0x10] sm:$0xff]
        %v358 = vld [vmem:[#allocation2 + $0x18] sm:$0xff]
        %v359 = vld [vmem:[#allocation2 + $0x20] sm:$0xff]
        %v360 = vld [vmem:[#allocation2 + $0x28] sm:$0xff]
        %v361 = vld [vmem:[#allocation2 + $0x30] sm:$0xff]
        %v362 = vld [vmem:[#allocation2 + $0x38] sm:$0xff]
        %v363 = vld [vmem:[%s331] sm:$0xf]
        %v364 = vld [vmem:[%s331 + $0x4] sm:$0xf]
        %v365 = vld [vmem:[%s331 + $0x8] sm:$0xf]
        %v366 = vld [vmem:[%s331 + $0xc] sm:$0xf]
        %v367 = vld [vmem:[%s292] sm:$0xff]
        %v368 = vld [vmem:[%s292 + $0x8] sm:$0xff]
        %v369 = vld [vmem:[%s292 + $0x10] sm:$0xff]
        %v370 = vld [vmem:[%s292 + $0x18] sm:$0xff]
        %v371 = vld [vmem:[%s292 + $0x20] sm:$0xff]
        %v372 = vld [vmem:[%s292 + $0x28] sm:$0xff]
        %v373 = vld [vmem:[%s292 + $0x30] sm:$0xff]
        %v374 = vld [vmem:[%s292 + $0x38] sm:$0xff]
        %v375 = vld [vmem:[%s292 + $0x40] sm:$0xff]
        %v376 = vld [vmem:[%s292 + $0x48] sm:$0xff]
        %v377 = vld [vmem:[%s292 + $0x50] sm:$0xff]
        %v378 = vld [vmem:[%s292 + $0x58] sm:$0xff]
        %v379 = vld [vmem:[%s292 + $0x60] sm:$0xff]
        %v380 = vld [vmem:[%s292 + $0x68] sm:$0xff]
        %v381 = vld [vmem:[%s292 + $0x70] sm:$0xff]
        %v382 = vld [vmem:[%s292 + $0x78] sm:$0xff]
        %v387 = vunpack.c.l.b16 %v363
        %v388 = vunpack.c.l.b16 %v364
        %v389 = vunpack.c.l.b16 %v365
        %v390 = vunpack.c.l.b16 %v366
        %v391 = vpack.c.b16 %v388, %v387
        %v392 = vpack.c.b16 %v390, %v389
        %v411 = vunpack.c.l.b16 %v367
        %v412 = vunpack.c.h.b16 %v367
        %v413 = vunpack.c.l.b16 %v368
        %v414 = vunpack.c.h.b16 %v368
        %v415 = vunpack.c.l.b16 %v369
        %v416 = vunpack.c.h.b16 %v369
        %v417 = vunpack.c.l.b16 %v370
        %v418 = vunpack.c.h.b16 %v370
        %v419 = vunpack.c.l.b16 %v371
        %v420 = vunpack.c.h.b16 %v371
        %v421 = vunpack.c.l.b16 %v372
        %v422 = vunpack.c.h.b16 %v372
        %v423 = vunpack.c.l.b16 %v373
        %v424 = vunpack.c.h.b16 %v373
        %v425 = vunpack.c.l.b16 %v374
        %v426 = vunpack.c.h.b16 %v374
        %v427 = vunpack.c.l.b16 %v375
        %v428 = vunpack.c.h.b16 %v375
        %v429 = vunpack.c.l.b16 %v376
        %v430 = vunpack.c.h.b16 %v376
        %v431 = vunpack.c.l.b16 %v377
        %v432 = vunpack.c.h.b16 %v377
        %v433 = vunpack.c.l.b16 %v378
        %v434 = vunpack.c.h.b16 %v378
        %v435 = vunpack.c.l.b16 %v379
        %v436 = vunpack.c.h.b16 %v379
        %v437 = vunpack.c.l.b16 %v380
        %v438 = vunpack.c.h.b16 %v380
        %v439 = vunpack.c.l.b16 %v381
        %v440 = vunpack.c.h.b16 %v381
        %v441 = vunpack.c.l.b16 %v382
        %v442 = vunpack.c.h.b16 %v382
        %v443 = vpack.c.b16 %v413, %v411
        %v444 = vpack.c.b16 %v414, %v412
        %v445 = vpack.c.b16 %v417, %v415
        %v446 = vpack.c.b16 %v418, %v416
        %v447 = vpack.c.b16 %v421, %v419
        %v448 = vpack.c.b16 %v422, %v420
        %v449 = vpack.c.b16 %v425, %v423
        %v450 = vpack.c.b16 %v426, %v424
        %v451 = vpack.c.b16 %v429, %v427
        %v452 = vpack.c.b16 %v430, %v428
        %v453 = vpack.c.b16 %v433, %v431
        %v454 = vpack.c.b16 %v434, %v432
        %v455 = vpack.c.b16 %v437, %v435
        %v456 = vpack.c.b16 %v438, %v436
        %v457 = vpack.c.b16 %v441, %v439
        %v458 = vpack.c.b16 %v442, %v440
        %475 = vmatprep.subr.bf16.mxu0 %v444
        %476 = vmatpush1.bf16.msra.mxu0 %v443
        %477 = vmatprep.subr.bf16.mxu0 %v446
        %478 = vmatpush1.bf16.msra.mxu0 %v445
        %479 = vmatprep.subr.bf16.mxu0 %v448
        %480 = vmatpush1.bf16.msra.mxu0 %v447
        %481 = vmatprep.subr.bf16.mxu0 %v450
        %482 = vmatpush1.bf16.msra.mxu0 %v449
        %483 = vmatprep.subr.bf16.mxu0 %v452
        %484 = vmatpush1.bf16.msra.mxu0 %v451
        %485 = vmatprep.subr.bf16.mxu0 %v454
        %486 = vmatpush1.bf16.msra.mxu0 %v453
        %487 = vmatprep.subr.bf16.mxu0 %v456
        %488 = vmatpush1.bf16.msra.mxu0 %v455
        %489 = vmatprep.subr.bf16.mxu0 %v458
        %490 = vmatpush1.bf16.msra.mxu0 %v457
        %491 = vmatprep.subr.bf16.mxu0 0
        %492 = vmatpush1.bf16.msra.mxu0 0
        %493 = vmatprep.subr.bf16.mxu0 0
        %494 = vmatpush1.bf16.msra.mxu0 0
        %495 = vmatprep.subr.bf16.mxu0 0
        %496 = vmatpush1.bf16.msra.mxu0 0
        %497 = vmatprep.subr.bf16.mxu0 0
        %498 = vmatpush1.bf16.msra.mxu0 0
        %499 = vmatprep.subr.bf16.mxu0 0
        %500 = vmatpush1.bf16.msra.mxu0 0
        %501 = vmatprep.subr.bf16.mxu0 0
        %502 = vmatpush1.bf16.msra.mxu0 0
        %503 = vmatprep.subr.bf16.mxu0 0
        %504 = vmatpush1.bf16.msra.mxu0 0
        %505 = vmatprep.subr.bf16.mxu0 0
        %506 = vmatpush1.bf16.msra.mxu0 0
        %507 = vmatprep.mubr.bf16.mxu0 0
        %508 = vmatmul.mubr.bf16.gmra.mrb[0].mxu0 %v391
        %v509 = vpop.f32.mrb[0].mxu0
        %v510 = vadd.f32 0.0, %v509
        %v511 = vpop.f32.mrb[0].mxu0
        %v512 = vadd.f32 0.0, %v511
        %v513 = vpop.f32.mrb[0].mxu0
        %v514 = vadd.f32 0.0, %v513
        %v515 = vpop.f32.mrb[0].mxu0
        %v516 = vadd.f32 0.0, %v515
        %517 = vmatprep.mubr.bf16.mxu0 0
        %518 = vmatmul.mubr.bf16.gmra.mrb[0].mxu0 %v392
        %v519 = vpop.f32.mrb[0].mxu0
        %v520 = vadd.f32 0.0, %v519
        %v521 = vpop.f32.mrb[0].mxu0
        %v522 = vadd.f32 0.0, %v521
        %v523 = vpop.f32.mrb[0].mxu0
        %v524 = vadd.f32 0.0, %v523
        %v525 = vpop.f32.mrb[0].mxu0
        %v526 = vadd.f32 0.0, %v525
        %527 = vdwg.mxu0
        %v528 = vadd.f32 %v355, %v510
        %v529 = vadd.f32 %v356, %v512
        %v530 = vadd.f32 %v357, %v514
        %v531 = vadd.f32 %v358, %v516
        %v532 = vadd.f32 %v359, %v520
        %v533 = vadd.f32 %v360, %v522
        %v534 = vadd.f32 %v361, %v524
        %v535 = vadd.f32 %v362, %v526
        %536 = vst [vmem:[#allocation2] sm:$0xff] %v528
        %537 = vst [vmem:[#allocation2 + $0x8] sm:$0xff] %v529
        %538 = vst [vmem:[#allocation2 + $0x10] sm:$0xff] %v530
        %539 = vst [vmem:[#allocation2 + $0x18] sm:$0xff] %v531
        %540 = vst [vmem:[#allocation2 + $0x20] sm:$0xff] %v532
        %541 = vst [vmem:[#allocation2 + $0x28] sm:$0xff] %v533
        %542 = vst [vmem:[#allocation2 + $0x30] sm:$0xff] %v534
        %543 = vst [vmem:[#allocation2 + $0x38] sm:$0xff] %v535
        // Predicated region
        $region75: #{rawnet3_forward.40} parent=65 // pred_check
          %p544 = pneg %p343
        $region76: #{rawnet3_forward.40} parent=65 // pred_check_branch
          %546 = sbr.rel (%p544) target = $region78
        $region77: #{rawnet3_forward.40} parent=65 // pred_region
          %v547 = vld [vmem:[#allocation2] sm:$0xff]
          %v548 = vld [vmem:[#allocation2 + $0x8] sm:$0xff]
          %v549 = vld [vmem:[#allocation2 + $0x10] sm:$0xff]
          %v550 = vld [vmem:[#allocation2 + $0x18] sm:$0xff]
          %v551 = vld [vmem:[#allocation2 + $0x20] sm:$0xff]
          %v552 = vld [vmem:[#allocation2 + $0x28] sm:$0xff]
          %v553 = vld [vmem:[#allocation2 + $0x30] sm:$0xff]
          %v554 = vld [vmem:[#allocation2 + $0x38] sm:$0xff]
          %v555 = vld [vmem:[%s338] sm:$0x3]
          %v557 = vlaneseq
          %v558 = vshrl.u32 %v557, 7
          %v559 = vsub.s32 0, %v558
          %v560 = vrot.slane %v555, %v559
          %v561 = vlaneseq
          %v562 = vshrl.u32 %v561, 7
          %v563 = vsub.s32 1, %v562
          %v564 = vrot.slane %v555, %v563
          %v567 = vadd.f32 %v547, %v560
          %v568 = vadd.f32 %v548, %v564
          %v569 = vadd.f32 %v549, %v560
          %v570 = vadd.f32 %v550, %v564
          %v571 = vadd.f32 %v551, %v560
          %v572 = vadd.f32 %v552, %v564
          %v573 = vadd.f32 %v553, %v560
          %v574 = vadd.f32 %v554, %v564
          %575 = vst [vmem:[%s323] sm:$0xff] %v567
          %576 = vst [vmem:[%s323 + $0x8] sm:$0xff] %v568
          %577 = vst [vmem:[%s323 + $0x10] sm:$0xff] %v569
          %578 = vst [vmem:[%s323 + $0x18] sm:$0xff] %v570
          %579 = vst [vmem:[%s323 + $0x20] sm:$0xff] %v571
          %580 = vst [vmem:[%s323 + $0x28] sm:$0xff] %v572
          %581 = vst [vmem:[%s323 + $0x30] sm:$0xff] %v573
          %582 = vst [vmem:[%s323 + $0x38] sm:$0xff] %v574
        $region78: #{rawnet3_forward.40} parent=65 // pred_fallthru
          _
        %s583 = sand.u32 %s125, 1
        %s584 = sand.u32 %s125, 1
        %s585 = smul.addr %s584, 64
        %s586 = scalar_lea.vmem [#allocation4], %s585
        // Predicated region
        $region79: #{rawnet3_forward.40} parent=65 // pred_check
          %p587 = pneg %p135
        $region80: #{rawnet3_forward.40} parent=65 // pred_check_branch
          %589 = sbr.rel (%p587) target = $region82
        $region81: #{rawnet3_forward.40} parent=65 // pred_region
          %s590 = smul.u32 4, %s19
          %s591 = smul.u32 2, %s20
          %s592 = smul.addr %s590, 12
          %s593 = sadd.s32 %s591, %s592
          %s594 = smul.addr %s593, 8
          %s595 = scalar_lea.vmem %s3, %s594
          // Predicated region
          $region83: #{rawnet3_forward.40} parent=81 // pred_check
            _
          $region84: #{rawnet3_forward.40} parent=81 // pred_check_branch
            %597 = sbr.rel (0) target = $region86
          $region85: #{rawnet3_forward.40} parent=81 // pred_region
            // Predicated region
            $region87: #{rawnet3_forward.40} parent=85 // pred_check
              _
            $region88: #{rawnet3_forward.40} parent=85 // pred_check_branch
              %599 = sbr.rel (0) target = $region90
            $region89: #{rawnet3_forward.40} parent=85 // pred_region
              loop: start=0, step=1, limit=1
              $region91: #{rawnet3_forward.40} parent=89 // loop_pre_header
                _
              $region92: #{rawnet3_forward.40} parent=89 // loop_header
                %s601 = sphi 0, %s605
                %p602 = scmp.ge.s32.totalorder %s601, 1
                %s606 = sphi %s586, %s586
                %s607 = sphi %s595, %s595
              $region93: #{rawnet3_forward.40} parent=89 // loop_header_branch
                %604 = sbr.rel (%p602) target = $region97
              $region94: #{rawnet3_forward.40} parent=89 // loop_body
                %v608 = vld [vmem:[%s606] sm:$0xff]
                %609 = vst [vmem:[%s607] sm:$0xff] %v608
                %v610 = vld [vmem:[%s606 + $0x8] sm:$0xff]
                %611 = vst [vmem:[%s607 + $0x8] sm:$0xff] %v610
                %v612 = vld [vmem:[%s606 + $0x10] sm:$0xff]
                %613 = vst [vmem:[%s607 + $0x60] sm:$0xff] %v612
                %v614 = vld [vmem:[%s606 + $0x18] sm:$0xff]
                %615 = vst [vmem:[%s607 + $0x68] sm:$0xff] %v614
                %v616 = vld [vmem:[%s606 + $0x20] sm:$0xff]
                %617 = vst [vmem:[%s607 + $0xc0] sm:$0xff] %v616
                %v618 = vld [vmem:[%s606 + $0x28] sm:$0xff]
                %619 = vst [vmem:[%s607 + $0xc8] sm:$0xff] %v618
                %v620 = vld [vmem:[%s606 + $0x30] sm:$0xff]
                %621 = vst [vmem:[%s607 + $0x120] sm:$0xff] %v620
                %v622 = vld [vmem:[%s606 + $0x38] sm:$0xff]
                %623 = vst [vmem:[%s607 + $0x128] sm:$0xff] %v622
              $region95: #{rawnet3_forward.40} parent=89 // loop_footer
                %s605 = sadd.s32 1, %s601
              $region96: #{rawnet3_forward.40} parent=89 // loop_footer_branch
                %600 = sbr.rel target = $region92
              $region97: #{rawnet3_forward.40} parent=89 // loop_exit
                _
            $region90: #{rawnet3_forward.40} parent=85 // pred_fallthru
              _
            // Predicated region
            $region98: #{rawnet3_forward.40} parent=85 // pred_check
              _
            $region99: #{rawnet3_forward.40} parent=85 // pred_check_branch
              %625 = sbr.rel target = $region101
            $region100: #{rawnet3_forward.40} parent=85 // pred_region
              _
            $region101: #{rawnet3_forward.40} parent=85 // pred_fallthru
              _
          $region86: #{rawnet3_forward.40} parent=81 // pred_fallthru
            _
          %626 = vnop
        $region82: #{rawnet3_forward.40} parent=65 // pred_fallthru
          _
      $region66: #{rawnet3_forward.40} parent=5 // pred_fallthru
        _
      %p627 = scmp.le.s32.totalorder 2, %s9
      // Predicated region
      $region102: #{rawnet3_forward.40} parent=5 // pred_check
        %p628 = pneg %p627
      $region103: #{rawnet3_forward.40} parent=5 // pred_check_branch
        %630 = sbr.rel (%p628) target = $region105
      $region104: #{rawnet3_forward.40} parent=5 // pred_region
        %s631 = ssub.s32 %s9, 2
        // Predicated region
        $region106: #{rawnet3_forward.40} parent=104 // pred_check
          %p632 = pneg %p141
        $region107: #{rawnet3_forward.40} parent=104 // pred_check_branch
          %634 = sbr.rel (%p632) target = $region109
        $region108: #{rawnet3_forward.40} parent=104 // pred_region
          %s635 = sand.u32 %s126, 1
          %s636 = sand.u32 %s126, 1
          %s637 = smul.addr %s636, 64
          %s638 = scalar_lea.vmem [#allocation4], %s637
        $region109: #{rawnet3_forward.40} parent=104 // pred_fallthru
          _
      $region105: #{rawnet3_forward.40} parent=5 // pred_fallthru
        _
    $region6: #{rawnet3_forward.40} parent=1 // loop_footer
      %s13 = sadd.s32 1, %s9
    $region7: #{rawnet3_forward.40} parent=1 // loop_footer_branch
      %8 = sbr.rel target = $region3
    $region8: #{rawnet3_forward.40} parent=1 // loop_exit
      _

// kernel: rawnet3_forward.41
$region0: #{rawnet3_forward.41}
  #allocation0 [shape = 'u32[]', space=smem, size = 0x4, offset = 0x4, fixed_abs, tag = 'smem constant byte address 0x4 - core index']
  #allocation1 [shape = 'u32[144,128]{1,0:T(1,128)}', space=vmem, size = 0x12000, scoped, tag = 'internal scratch']
  #allocation2 [shape = 'f32[1,1536]{1,0:T(1,128)}', space=vmem, size = 0x1800, scoped, tag = 'scratch operand']
  #allocation3 [shape = 'f32[1,1536]{1,0:T(1,128)}', space=vmem, size = 0x1800, scoped, tag = 'scratch operand']
  #allocation4 [shape = 'f32[1,1536]{1,0:T(1,128)}', space=vmem, size = 0x1800, scoped, tag = 'scratch operand']
  #allocation5 [shape = 'f32[1,1536]{1,0:T(1,128)}', space=vmem, size = 0x1800, scoped, tag = 'scratch operand']
  %s0 = inlined_call_operand.vmem [shape: f32[2,16,1536], index: 0, kind: input, shape index: {}]
  %s1 = inlined_call_operand.vmem [shape: f32[2,16,1536], index: 1, kind: input, shape index: {}]
  %s2 = inlined_call_operand.vmem [shape: f32[2,1,3072], index: 2, kind: output, shape index: {}]
  %s3 = sld [smem:[#allocation0]]
  $region49: #{rawnet3_forward.41} parent=0
    _
  %s5 = ssub.s32 1, %s3
  %s6 = scalar_select 0, %s5, %s3
  loop: start=0, step=1, limit=4
  $region2: #{rawnet3_forward.41} parent=0 // loop_pre_header
    _
  $region3: #{rawnet3_forward.41} parent=0 // loop_header
    %s8 = sphi 0, %s12
    %p9 = scmp.ge.s32.totalorder %s8, 4
    %s15 = sphi 0, %s27
    %s16 = sphi 0, %s23
    %s17 = sphi 0, %s15
    %s18 = sphi 0, %s16
    %s19 = sphi 0, %s17
    %s20 = sphi 0, %s18
    %s32 = sphi 0, %s34
    %s35 = sphi 0, %s32
    %s36 = sphi 0, %s35
    %s52 = sphi 0, %s36
    %s60 = sphi 0, %s62
    %s63 = sphi 0, %s60
    %s64 = sphi 0, %s63
    %s80 = sphi 0, %s64
    %s86 = sphi 0, %s88
    %s89 = sphi 0, %s86
    %s90 = sphi 0, %s89
    %s106 = sphi 0, %s90
  $region4: #{rawnet3_forward.41} parent=0 // loop_header_branch
    %11 = sbr.rel (%p9) target = $region8
  $region5: #{rawnet3_forward.41} parent=0 // loop_body
    %s13 = ssub.s32 %s8, 1
    %s14 = ssub.s32 %s8, 2
    %s21 = sadd.s32 1, %s16
    %p22 = scmp.ge.s32.totalorder %s21, 1
    %s23 = scalar_select %p22, 0, %s21
    %s24 = sadd.s32 1, %s15
    %s25 = scalar_select %p22, %s24, %s15
    %p26 = scmp.ge.s32.totalorder %s25, 2
    %s27 = scalar_select %p26, 0, %s25
    %s28 = ssub.s32 %s15, %s27
    %s29 = ssub.s32 %s16, %s23
    %s30 = sor.u32 %s28, %s29
    %p31 = scmp.eq.s32.totalorder %s30, 0
    %s33 = sadd.s32 %s32, 1
    %s34 = scalar_select %p31, %s32, %s33
    %p37 = pneg %p31
    %p38 = scmp.eq.s32.totalorder %s8, 1
    %p39 = por %p37, %p38
    %p40 = scmp.ne.s32.totalorder %s32, %s35
    %p41 = scmp.eq.s32.totalorder %s8, 0
    %p42 = por %p40, %p41
    %p43 = scmp.ne.s32.totalorder %s32, %s35
    %p44 = scmp.eq.s32.totalorder %s13, 1
    %p45 = por %p43, %p44
    %p46 = scmp.ne.s32.totalorder %s35, %s36
    %p47 = scmp.eq.s32.totalorder %s13, 0
    %p48 = por %p46, %p47
    %p49 = scmp.ne.s32.totalorder %s35, %s36
    %p50 = scmp.eq.s32.totalorder %s14, 1
    %p51 = por %p49, %p50
    %p53 = scmp.ne.s32.totalorder %s36, %s52
    %p54 = scmp.eq.s32.totalorder %s14, 0
    %p55 = por %p53, %p54
    %s56 = ssub.s32 %s15, %s27
    %s57 = ssub.s32 %s16, %s23
    %s58 = sor.u32 %s56, %s57
    %p59 = scmp.eq.s32.totalorder %s58, 0
    %s61 = sadd.s32 %s60, 1
    %s62 = scalar_select %p59, %s60, %s61
    %p65 = pneg %p59
    %p66 = scmp.eq.s32.totalorder %s8, 1
    %p67 = por %p65, %p66
    %p68 = scmp.ne.s32.totalorder %s60, %s63
    %p69 = scmp.eq.s32.totalorder %s8, 0
    %p70 = por %p68, %p69
    %p71 = scmp.ne.s32.totalorder %s60, %s63
    %p72 = scmp.eq.s32.totalorder %s13, 1
    %p73 = por %p71, %p72
    %p74 = scmp.ne.s32.totalorder %s63, %s64
    %p75 = scmp.eq.s32.totalorder %s13, 0
    %p76 = por %p74, %p75
    %p77 = scmp.ne.s32.totalorder %s63, %s64
    %p78 = scmp.eq.s32.totalorder %s14, 1
    %p79 = por %p77, %p78
    %p81 = scmp.ne.s32.totalorder %s64, %s80
    %p82 = scmp.eq.s32.totalorder %s14, 0
    %p83 = por %p81, %p82
    %s84 = ssub.s32 %s15, %s27
    %p85 = scmp.eq.s32.totalorder %s84, 0
    %s87 = sadd.s32 %s86, 1
    %s88 = scalar_select %p85, %s86, %s87
    %p91 = pneg %p85
    %p92 = scmp.eq.s32.totalorder %s8, 1
    %p93 = por %p91, %p92
    %p94 = scmp.ne.s32.totalorder %s86, %s89
    %p95 = scmp.eq.s32.totalorder %s8, 0
    %p96 = por %p94, %p95
    %p97 = scmp.ne.s32.totalorder %s86, %s89
    %p98 = scmp.eq.s32.totalorder %s13, 1
    %p99 = por %p97, %p98
    %p100 = scmp.ne.s32.totalorder %s89, %s90
    %p101 = scmp.eq.s32.totalorder %s13, 0
    %p102 = por %p100, %p101
    %p103 = scmp.ne.s32.totalorder %s89, %s90
    %p104 = scmp.eq.s32.totalorder %s14, 1
    %p105 = por %p103, %p104
    %p107 = scmp.ne.s32.totalorder %s90, %s106
    %p108 = scmp.eq.s32.totalorder %s14, 0
    %p109 = por %p107, %p108
    %p110 = scmp.le.s32.totalorder 1, %s8
    %p111 = scmp.lt.s32.totalorder %s8, 3
    %p112 = pnand %p110, %p111
    %p113 = pneg %p112
    // Predicated region
    $region9: #{rawnet3_forward.41} parent=5 // pred_check
      _
    $region10: #{rawnet3_forward.41} parent=5 // pred_check_branch
      %115 = sbr.rel (%p112) target = $region12
    $region11: #{rawnet3_forward.41} parent=5 // pred_region
      %s116 = ssub.s32 %s8, 1
    $region12: #{rawnet3_forward.41} parent=5 // pred_fallthru
      _
    %p117 = scmp.lt.s32.totalorder %s8, 2
    // Predicated region
    $region13: #{rawnet3_forward.41} parent=5 // pred_check
      %p118 = pneg %p117
    $region14: #{rawnet3_forward.41} parent=5 // pred_check_branch
      %120 = sbr.rel (%p118) target = $region16
    $region15: #{rawnet3_forward.41} parent=5 // pred_region
      // Predicated region
      $region17: #{rawnet3_forward.41} parent=15 // pred_check
        %p121 = pneg %p42
      $region18: #{rawnet3_forward.41} parent=15 // pred_check_branch
        %123 = sbr.rel (%p121) target = $region20
      $region19: #{rawnet3_forward.41} parent=15 // pred_region
        %s124 = smul.u32 2, %s16
        %p125 = scmp.lt.s32.totalorder %s15, 1
        %s126 = scalar_select %p125, %s15, 1
        %p127 = scmp.lt.s32.totalorder %s124, 1
        %s128 = scalar_select %p127, %s124, 1
        %s129 = smul.addr %s128, 12
        %s130 = smul.addr %s126, 24
        %s131 = sadd.s32 %s129, %s130
        %s132 = smul.addr %s131, 8
        %s133 = scalar_lea.vmem %s0, %s132
        %s134 = smul.u32 2, %s16
      $region20: #{rawnet3_forward.41} parent=15 // pred_fallthru
        _
      // Predicated region
      $region21: #{rawnet3_forward.41} parent=15 // pred_check
        %p135 = pneg %p70
      $region22: #{rawnet3_forward.41} parent=15 // pred_check_branch
        %137 = sbr.rel (%p135) target = $region24
      $region23: #{rawnet3_forward.41} parent=15 // pred_region
        %s138 = smul.u32 2, %s16
        %p139 = scmp.lt.s32.totalorder %s15, 1
        %s140 = scalar_select %p139, %s15, 1
        %p141 = scmp.lt.s32.totalorder %s138, 1
        %s142 = scalar_select %p141, %s138, 1
        %s143 = smul.addr %s142, 12
        %s144 = smul.addr %s140, 24
        %s145 = sadd.s32 %s143, %s144
        %s146 = smul.addr %s145, 8
        %s147 = scalar_lea.vmem %s1, %s146
        %s148 = smul.u32 2, %s16
      $region24: #{rawnet3_forward.41} parent=15 // pred_fallthru
        _
    $region16: #{rawnet3_forward.41} parent=5 // pred_fallthru
      _
    %p149 = scmp.le.s32.totalorder 1, %s8
    %p150 = scmp.lt.s32.totalorder %s8, 3
    %p151 = pnand %p149, %p150
    %p152 = pneg %p151
    // Predicated region
    $region25: #{rawnet3_forward.41} parent=5 // pred_check
      _
    $region26: #{rawnet3_forward.41} parent=5 // pred_check_branch
      %154 = sbr.rel (%p151) target = $region28
    $region27: #{rawnet3_forward.41} parent=5 // pred_region
      %s155 = ssub.s32 %s8, 1
      %s156 = smul.u32 2, %s18
      %p157 = scmp.lt.s32.totalorder %s17, 1
      %s158 = scalar_select %p157, %s17, 1
      %p159 = scmp.lt.s32.totalorder %s156, 1
      %s160 = scalar_select %p159, %s156, 1
      %s161 = smul.addr %s160, 12
      %s162 = smul.addr %s158, 24
      %s163 = sadd.s32 %s161, %s162
      %s164 = smul.addr %s163, 8
      %s165 = scalar_lea.vmem %s0, %s164
      %p166 = pneg %p48
      %p167 = pneg %p45
      %s168 = smul.u32 2, %s18
      %p169 = scmp.lt.s32.totalorder %s17, 1
      %s170 = scalar_select %p169, %s17, 1
      %p171 = scmp.lt.s32.totalorder %s168, 1
      %s172 = scalar_select %p171, %s168, 1
      %s173 = smul.addr %s172, 12
      %s174 = smul.addr %s170, 24
      %s175 = sadd.s32 %s173, %s174
      %s176 = smul.addr %s175, 8
      %s177 = scalar_lea.vmem %s1, %s176
      %p178 = pneg %p76
      %p179 = pneg %p73
      %p180 = pneg %p102
      %p181 = pneg %p99
      %p182 = scmp.lt.s32.totalorder %s17, 1
      %s183 = scalar_select %p182, %s17, 1
      %s184 = smul.addr %s183, 24
      %s185 = scalar_lea.vmem %s2, %s184
      %s186 = smul.u32 2, %s18
      %p187 = scmp.lt.s32.totalorder %s17, 1
      %s188 = scalar_select %p187, %s17, 1
      %p189 = scmp.lt.s32.totalorder %s186, 1
      %s190 = scalar_select %p189, %s186, 1
      %s191 = smul.addr %s190, 12
      %s192 = smul.addr %s188, 24
      %s193 = sadd.s32 %s191, %s192
      %s194 = smul.addr %s193, 8
      %s195 = scalar_lea.vmem %s0, %s194
      %s196 = smul.u32 2, %s18
      %s197 = smul.u32 2, %s18
      %p198 = scmp.lt.s32.totalorder %s17, 1
      %s199 = scalar_select %p198, %s17, 1
      %p200 = scmp.lt.s32.totalorder %s197, 1
      %s201 = scalar_select %p200, %s197, 1
      %s202 = smul.addr %s201, 12
      %s203 = smul.addr %s199, 24
      %s204 = sadd.s32 %s202, %s203
      %s205 = smul.addr %s204, 8
      %s206 = scalar_lea.vmem %s1, %s205
      %s207 = smul.u32 2, %s18
      %p208 = scmp.lt.s32.totalorder %s17, 1
      %s209 = scalar_select %p208, %s17, 1
      %s210 = smul.addr %s209, 24
      %s211 = scalar_lea.vmem %s2, %s210
      %p212 = scmp.eq.s32.totalorder %s18, 0
      // Predicated region
      $region29: #{rawnet3_forward.41} parent=27 // pred_check
        %p213 = pneg %p212
      $region30: #{rawnet3_forward.41} parent=27 // pred_check_branch
        %215 = sbr.rel (%p213) target = $region32
      $region31: #{rawnet3_forward.41} parent=27 // pred_region
        %216 = vst [vmem:[#allocation2] sm:$0xff] -inf
        %v217 = vlaneseq
        %vm218 = vcmp.ge.s32.totalorder %v217, 0
        %vm219 = vcmp.lt.s32.totalorder %v217, 512
        %vm220 = vmand %vm218, %vm219
        %221 = vst.msk [vmem:[#allocation2 + $0x8] sm:$0xf] %vm220, -inf
        %222 = vst [vmem:[#allocation3] sm:$0xff] 0.0
        %223 = vst.msk [vmem:[#allocation3 + $0x8] sm:$0xf] %vm220, 0.0
        %224 = vst [vmem:[#allocation4] sm:$0xff] 0.0
        %225 = vst.msk [vmem:[#allocation4 + $0x8] sm:$0xf] %vm220, 0.0
        %226 = vst [vmem:[#allocation5] sm:$0xff] 0.0
        %227 = vst.msk [vmem:[#allocation5 + $0x8] sm:$0xf] %vm220, 0.0
      $region32: #{rawnet3_forward.41} parent=27 // pred_fallthru
        _
      %v228 = vld [vmem:[%s195] sm:$0xff]
      %v229 = vld [vmem:[%s195 + $0x8] sm:$0xff]
      %v230 = vld [vmem:[%s195 + $0x10] sm:$0xff]
      %v231 = vld [vmem:[%s195 + $0x18] sm:$0xff]
      %v232 = vld [vmem:[%s195 + $0x20] sm:$0xff]
      %v233 = vld [vmem:[%s195 + $0x28] sm:$0xff]
      %v234 = vld [vmem:[%s195 + $0x30] sm:$0xff]
      %v235 = vld [vmem:[%s195 + $0x38] sm:$0xff]
      %v236 = vld [vmem:[%s195 + $0x40] sm:$0xff]
      %v237 = vld [vmem:[%s195 + $0x48] sm:$0xff]
      %v238 = vld [vmem:[%s195 + $0x50] sm:$0xff]
      %v239 = vld [vmem:[%s195 + $0x58] sm:$0xff]
      %v240 = vld [vmem:[%s195 + $0x60] sm:$0xff]
      %v241 = vld [vmem:[%s195 + $0x68] sm:$0xff]
      %v242 = vld [vmem:[%s195 + $0x70] sm:$0xff]
      %v243 = vld [vmem:[%s195 + $0x78] sm:$0xff]
      %v244 = vld [vmem:[%s195 + $0x80] sm:$0xff]
      %v245 = vld [vmem:[%s195 + $0x88] sm:$0xff]
      %v246 = vld [vmem:[%s195 + $0x90] sm:$0xff]
      %v247 = vld [vmem:[%s195 + $0x98] sm:$0xff]
      %v248 = vld [vmem:[%s195 + $0xa0] sm:$0xff]
      %v249 = vld [vmem:[%s195 + $0xa8] sm:$0xff]
      %v250 = vld [vmem:[%s195 + $0xb0] sm:$0xff]
      %v251 = vld [vmem:[%s195 + $0xb8] sm:$0xff]
      %v252 = vld [vmem:[%s206] sm:$0xff]
      %v253 = vld [vmem:[%s206 + $0x8] sm:$0xff]
      %v254 = vld [vmem:[%s206 + $0x10] sm:$0xff]
      %v255 = vld [vmem:[%s206 + $0x18] sm:$0xff]
      %v256 = vld [vmem:[%s206 + $0x20] sm:$0xff]
      %v257 = vld [vmem:[%s206 + $0x28] sm:$0xff]
      %v258 = vld [vmem:[%s206 + $0x30] sm:$0xff]
      %v259 = vld [vmem:[%s206 + $0x38] sm:$0xff]
      %v260 = vld [vmem:[%s206 + $0x40] sm:$0xff]
      %v261 = vld [vmem:[%s206 + $0x48] sm:$0xff]
      %v262 = vld [vmem:[%s206 + $0x50] sm:$0xff]
      %v263 = vld [vmem:[%s206 + $0x58] sm:$0xff]
      %v264 = vld [vmem:[%s206 + $0x60] sm:$0xff]
      %v265 = vld [vmem:[%s206 + $0x68] sm:$0xff]
      %v266 = vld [vmem:[%s206 + $0x70] sm:$0xff]
      %v267 = vld [vmem:[%s206 + $0x78] sm:$0xff]
      %v268 = vld [vmem:[%s206 + $0x80] sm:$0xff]
      %v269 = vld [vmem:[%s206 + $0x88] sm:$0xff]
      %v270 = vld [vmem:[%s206 + $0x90] sm:$0xff]
      %v271 = vld [vmem:[%s206 + $0x98] sm:$0xff]
      %v272 = vld [vmem:[%s206 + $0xa0] sm:$0xff]
      %v273 = vld [vmem:[%s206 + $0xa8] sm:$0xff]
      %v274 = vld [vmem:[%s206 + $0xb0] sm:$0xff]
      %v275 = vld [vmem:[%s206 + $0xb8] sm:$0xff]
      %v276 = vld [vmem:[#allocation2] sm:$0xff]
      %v277 = vld [vmem:[#allocation2 + $0x8] sm:$0xf]
      %v278 = vmax.f32 %v252, %v264
      %v279 = vrot.slane %v278, 4
      %v280 = vmax.f32 %v278, %v279
      %v281 = vrot.slane %v280, 2
      %v282 = vmax.f32 %v280, %v281
      %v283 = vrot.slane %v282, 1
      %v284 = vmax.f32 %v282, %v283
      %v285 = vmax.f32 %v253, %v265
      %v286 = vrot.slane %v285, 4
      %v287 = vmax.f32 %v285, %v286
      %v288 = vrot.slane %v287, 2
      %v289 = vmax.f32 %v287, %v288
      %v290 = vrot.slane %v289, 1
      %v291 = vmax.f32 %v289, %v290
      %v292 = vmax.f32 %v254, %v266
      %v293 = vrot.slane %v292, 4
      %v294 = vmax.f32 %v292, %v293
      %v295 = vrot.slane %v294, 2
      %v296 = vmax.f32 %v294, %v295
      %v297 = vrot.slane %v296, 1
      %v298 = vmax.f32 %v296, %v297
      %v299 = vmax.f32 %v255, %v267
      %v300 = vrot.slane %v299, 4
      %v301 = vmax.f32 %v299, %v300
      %v302 = vrot.slane %v301, 2
      %v303 = vmax.f32 %v301, %v302
      %v304 = vrot.slane %v303, 1
      %v305 = vmax.f32 %v303, %v304
      %v306 = vmax.f32 %v256, %v268
      %v307 = vrot.slane %v306, 4
      %v308 = vmax.f32 %v306, %v307
      %v309 = vrot.slane %v308, 2
      %v310 = vmax.f32 %v308, %v309
      %v311 = vrot.slane %v310, 1
      %v312 = vmax.f32 %v310, %v311
      %v313 = vmax.f32 %v257, %v269
      %v314 = vrot.slane %v313, 4
      %v315 = vmax.f32 %v313, %v314
      %v316 = vrot.slane %v315, 2
      %v317 = vmax.f32 %v315, %v316
      %v318 = vrot.slane %v317, 1
      %v319 = vmax.f32 %v317, %v318
      %v320 = vmax.f32 %v258, %v270
      %v321 = vrot.slane %v320, 4
      %v322 = vmax.f32 %v320, %v321
      %v323 = vrot.slane %v322, 2
      %v324 = vmax.f32 %v322, %v323
      %v325 = vrot.slane %v324, 1
      %v326 = vmax.f32 %v324, %v325
      %v327 = vmax.f32 %v259, %v271
      %v328 = vrot.slane %v327, 4
      %v329 = vmax.f32 %v327, %v328
      %v330 = vrot.slane %v329, 2
      %v331 = vmax.f32 %v329, %v330
      %v332 = vrot.slane %v331, 1
      %v333 = vmax.f32 %v331, %v332
      %v334 = vmax.f32 %v260, %v272
      %v335 = vrot.slane %v334, 4
      %v336 = vmax.f32 %v334, %v335
      %v337 = vrot.slane %v336, 2
      %v338 = vmax.f32 %v336, %v337
      %v339 = vrot.slane %v338, 1
      %v340 = vmax.f32 %v338, %v339
      %v341 = vmax.f32 %v261, %v273
      %v342 = vrot.slane %v341, 4
      %v343 = vmax.f32 %v341, %v342
      %v344 = vrot.slane %v343, 2
      %v345 = vmax.f32 %v343, %v344
      %v346 = vrot.slane %v345, 1
      %v347 = vmax.f32 %v345, %v346
      %v348 = vmax.f32 %v262, %v274
      %v349 = vrot.slane %v348, 4
      %v350 = vmax.f32 %v348, %v349
      %v351 = vrot.slane %v350, 2
      %v352 = vmax.f32 %v350, %v351
      %v353 = vrot.slane %v352, 1
      %v354 = vmax.f32 %v352, %v353
      %v355 = vmax.f32 %v263, %v275
      %v356 = vrot.slane %v355, 4
      %v357 = vmax.f32 %v355, %v356
      %v358 = vrot.slane %v357, 2
      %v359 = vmax.f32 %v357, %v358
      %v360 = vrot.slane %v359, 1
      %v361 = vmax.f32 %v359, %v360
      %v374 = vcombine.low %v284, %v291
      %v375 = vcombine.low %v298, %v305
      %v376 = vcombine.low %v312, %v319
      %v377 = vcombine.low %v326, %v333
      %v379 = vunpack.c.l.s4 1966171168
      %v380 = vunpack.c.0.s8 %v379
      %v381 = vlaneseq
      %v382 = vshrl.u32 %v381, 7
      %v383 = vsub.s32 %v380, %v382
      %v384 = vrot.slane %v374, %v383
      %v386 = vunpack.c.l.s4 1966171168
      %v387 = vunpack.c.0.s8 %v386
      %v388 = vlaneseq
      %v389 = vshrl.u32 %v388, 7
      %v390 = vsub.s32 %v387, %v389
      %v391 = vrot.slane %v375, %v390
      %v393 = vunpack.c.l.s4 1966171168
      %v394 = vunpack.c.0.s8 %v393
      %v395 = vlaneseq
      %v396 = vshrl.u32 %v395, 7
      %v397 = vsub.s32 %v394, %v396
      %v398 = vrot.slane %v376, %v397
      %v400 = vunpack.c.l.s4 1966171168
      %v401 = vunpack.c.0.s8 %v400
      %v402 = vlaneseq
      %v403 = vshrl.u32 %v402, 7
      %v404 = vsub.s32 %v401, %v403
      %v405 = vrot.slane %v377, %v404
      %v406 = vcombine.low %v384, %v391
      %v407 = vcombine.low %v398, %v405
      %v409 = vunpack.c.l.s4 1966171168
      %v410 = vunpack.c.0.s8 %v409
      %v411 = vlaneseq
      %v412 = vshrl.u32 %v411, 7
      %v413 = vsub.s32 %v410, %v412
      %v414 = vrot.slane %v406, %v413
      %v416 = vunpack.c.l.s4 1966171168
      %v417 = vunpack.c.0.s8 %v416
      %v418 = vlaneseq
      %v419 = vshrl.u32 %v418, 7
      %v420 = vsub.s32 %v417, %v419
      %v421 = vrot.slane %v407, %v420
      %v422 = vcombine.low %v414, %v421
      %v423 = vcombine.low %v340, %v347
      %v424 = vcombine.low %v354, %v361
      %v426 = vunpack.c.l.s4 1966171168
      %v427 = vunpack.c.0.s8 %v426
      %v428 = vlaneseq
      %v429 = vshrl.u32 %v428, 7
      %v430 = vsub.s32 %v427, %v429
      %v431 = vrot.slane %v423, %v430
      %v433 = vunpack.c.l.s4 1966171168
      %v434 = vunpack.c.0.s8 %v433
      %v435 = vlaneseq
      %v436 = vshrl.u32 %v435, 7
      %v437 = vsub.s32 %v434, %v436
      %v438 = vrot.slane %v424, %v437
      %v439 = vcombine.low %v431, %v438
      %v441 = vunpack.c.l.s4 1966171168
      %v442 = vunpack.c.0.s8 %v441
      %v443 = vlaneseq
      %v444 = vshrl.u32 %v443, 7
      %v445 = vsub.s32 %v442, %v444
      %v446 = vrot.slane %v439, %v445
      %v449 = vmax.f32 %v276, %v422
      %v450 = vmax.f32 %v277, %v446
      %v451 = vsub.f32 %v276, %v449
      %v452 = vsub.f32 %v277, %v450
      %v453 = vmul.f32 %v451, 1.442695
      %v454 = vpow.pop %v453
      %v455 = vmul.f32 %v452, 1.442695
      %v456 = vpow.pop %v455
      %v459 = vlaneseq
      %v460 = vshrl.u32 %v459, 7
      %v461 = vsub.s32 0, %v460
      %v462 = vrot.slane %v449, %v461
      %v463 = vlaneseq
      %v464 = vshrl.u32 %v463, 7
      %v465 = vsub.s32 1, %v464
      %v466 = vrot.slane %v449, %v465
      %v467 = vlaneseq
      %v468 = vshrl.u32 %v467, 7
      %v469 = vsub.s32 2, %v468
      %v470 = vrot.slane %v449, %v469
      %v471 = vlaneseq
      %v472 = vshrl.u32 %v471, 7
      %v473 = vsub.s32 3, %v472
      %v474 = vrot.slane %v449, %v473
      %v475 = vlaneseq
      %v476 = vshrl.u32 %v475, 7
      %v477 = vsub.s32 4, %v476
      %v478 = vrot.slane %v449, %v477
      %v479 = vlaneseq
      %v480 = vshrl.u32 %v479, 7
      %v481 = vsub.s32 5, %v480
      %v482 = vrot.slane %v449, %v481
      %v483 = vlaneseq
      %v484 = vshrl.u32 %v483, 7
      %v485 = vsub.s32 6, %v484
      %v486 = vrot.slane %v449, %v485
      %v487 = vlaneseq
      %v488 = vshrl.u32 %v487, 7
      %v489 = vsub.s32 7, %v488
      %v490 = vrot.slane %v449, %v489
      %v491 = vlaneseq
      %v492 = vshrl.u32 %v491, 7
      %v493 = vsub.s32 0, %v492
      %v494 = vrot.slane %v450, %v493
      %v495 = vlaneseq
      %v496 = vshrl.u32 %v495, 7
      %v497 = vsub.s32 1, %v496
      %v498 = vrot.slane %v450, %v497
      %v499 = vlaneseq
      %v500 = vshrl.u32 %v499, 7
      %v501 = vsub.s32 2, %v500
      %v502 = vrot.slane %v450, %v501
      %v503 = vlaneseq
      %v504 = vshrl.u32 %v503, 7
      %v505 = vsub.s32 3, %v504
      %v506 = vrot.slane %v450, %v505
      %v519 = vsub.f32 %v252, %v462
      %v520 = vsub.f32 %v253, %v466
      %v521 = vsub.f32 %v254, %v470
      %v522 = vsub.f32 %v255, %v474
      %v523 = vsub.f32 %v256, %v478
      %v524 = vsub.f32 %v257, %v482
      %v525 = vsub.f32 %v258, %v486
      %v526 = vsub.f32 %v259, %v490
      %v527 = vsub.f32 %v260, %v494
      %v528 = vsub.f32 %v261, %v498
      %v529 = vsub.f32 %v262, %v502
      %v530 = vsub.f32 %v263, %v506
      %v531 = vsub.f32 %v264, %v462
      %v532 = vsub.f32 %v265, %v466
      %v533 = vsub.f32 %v266, %v470
      %v534 = vsub.f32 %v267, %v474
      %v535 = vsub.f32 %v268, %v478
      %v536 = vsub.f32 %v269, %v482
      %v537 = vsub.f32 %v270, %v486
      %v538 = vsub.f32 %v271, %v490
      %v539 = vsub.f32 %v272, %v494
      %v540 = vsub.f32 %v273, %v498
      %v541 = vsub.f32 %v274, %v502
      %v542 = vsub.f32 %v275, %v506
      %v543 = vmul.f32 %v519, 1.442695
      %v544 = vpow.pop %v543
      %v545 = vmul.f32 %v520, 1.442695
      %v546 = vpow.pop %v545
      %v547 = vmul.f32 %v521, 1.442695
      %v548 = vpow.pop %v547
      %v549 = vmul.f32 %v522, 1.442695
      %v550 = vpow.pop %v549
      %v551 = vmul.f32 %v523, 1.442695
      %v552 = vpow.pop %v551
      %v553 = vmul.f32 %v524, 1.442695
      %v554 = vpow.pop %v553
      %v555 = vmul.f32 %v525, 1.442695
      %v556 = vpow.pop %v555
      %v557 = vmul.f32 %v526, 1.442695
      %v558 = vpow.pop %v557
      %v559 = vmul.f32 %v527, 1.442695
      %v560 = vpow.pop %v559
      %v561 = vmul.f32 %v528, 1.442695
      %v562 = vpow.pop %v561
      %v563 = vmul.f32 %v529, 1.442695
      %v564 = vpow.pop %v563
      %v565 = vmul.f32 %v530, 1.442695
      %v566 = vpow.pop %v565
      %v567 = vmul.f32 %v531, 1.442695
      %v568 = vpow.pop %v567
      %v569 = vmul.f32 %v532, 1.442695
      %v570 = vpow.pop %v569
      %v571 = vmul.f32 %v533, 1.442695
      %v572 = vpow.pop %v571
      %v573 = vmul.f32 %v534, 1.442695
      %v574 = vpow.pop %v573
      %v575 = vmul.f32 %v535, 1.442695
      %v576 = vpow.pop %v575
      %v577 = vmul.f32 %v536, 1.442695
      %v578 = vpow.pop %v577
      %v579 = vmul.f32 %v537, 1.442695
      %v580 = vpow.pop %v579
      %v581 = vmul.f32 %v538, 1.442695
      %v582 = vpow.pop %v581
      %v583 = vmul.f32 %v539, 1.442695
      %v584 = vpow.pop %v583
      %v585 = vmul.f32 %v540, 1.442695
      %v586 = vpow.pop %v585
      %v587 = vmul.f32 %v541, 1.442695
      %v588 = vpow.pop %v587
      %v589 = vmul.f32 %v542, 1.442695
      %v590 = vpow.pop %v589
      %v591 = vld [vmem:[#allocation3] sm:$0xff]
      %v592 = vld [vmem:[#allocation3 + $0x8] sm:$0xf]
      %v593 = vmul.f32 %v454, %v591
      %v594 = vmul.f32 %v456, %v592
      %v595 = vadd.f32 %v544, %v568
      %v596 = vrot.slane %v595, 4
      %v597 = vadd.f32 %v595, %v596
      %v598 = vrot.slane %v597, 2
      %v599 = vadd.f32 %v597, %v598
      %v600 = vrot.slane %v599, 1
      %v601 = vadd.f32 %v599, %v600
      %v602 = vadd.f32 %v546, %v570
      %v603 = vrot.slane %v602, 4
      %v604 = vadd.f32 %v602, %v603
      %v605 = vrot.slane %v604, 2
      %v606 = vadd.f32 %v604, %v605
      %v607 = vrot.slane %v606, 1
      %v608 = vadd.f32 %v606, %v607
      %v609 = vadd.f32 %v548, %v572
      %v610 = vrot.slane %v609, 4
      %v611 = vadd.f32 %v609, %v610
      %v612 = vrot.slane %v611, 2
      %v613 = vadd.f32 %v611, %v612
      %v614 = vrot.slane %v613, 1
      %v615 = vadd.f32 %v613, %v614
      %v616 = vadd.f32 %v550, %v574
      %v617 = vrot.slane %v616, 4
      %v618 = vadd.f32 %v616, %v617
      %v619 = vrot.slane %v618, 2
      %v620 = vadd.f32 %v618, %v619
      %v621 = vrot.slane %v620, 1
      %v622 = vadd.f32 %v620, %v621
      %v623 = vadd.f32 %v552, %v576
      %v624 = vrot.slane %v623, 4
      %v625 = vadd.f32 %v623, %v624
      %v626 = vrot.slane %v625, 2
      %v627 = vadd.f32 %v625, %v626
      %v628 = vrot.slane %v627, 1
      %v629 = vadd.f32 %v627, %v628
      %v630 = vadd.f32 %v554, %v578
      %v631 = vrot.slane %v630, 4
      %v632 = vadd.f32 %v630, %v631
      %v633 = vrot.slane %v632, 2
      %v634 = vadd.f32 %v632, %v633
      %v635 = vrot.slane %v634, 1
      %v636 = vadd.f32 %v634, %v635
      %v637 = vadd.f32 %v556, %v580
      %v638 = vrot.slane %v637, 4
      %v639 = vadd.f32 %v637, %v638
      %v640 = vrot.slane %v639, 2
      %v641 = vadd.f32 %v639, %v640
      %v642 = vrot.slane %v641, 1
      %v643 = vadd.f32 %v641, %v642
      %v644 = vadd.f32 %v558, %v582
      %v645 = vrot.slane %v644, 4
      %v646 = vadd.f32 %v644, %v645
      %v647 = vrot.slane %v646, 2
      %v648 = vadd.f32 %v646, %v647
      %v649 = vrot.slane %v648, 1
      %v650 = vadd.f32 %v648, %v649
      %v651 = vadd.f32 %v560, %v584
      %v652 = vrot.slane %v651, 4
      %v653 = vadd.f32 %v651, %v652
      %v654 = vrot.slane %v653, 2
      %v655 = vadd.f32 %v653, %v654
      %v656 = vrot.slane %v655, 1
      %v657 = vadd.f32 %v655, %v656
      %v658 = vadd.f32 %v562, %v586
      %v659 = vrot.slane %v658, 4
      %v660 = vadd.f32 %v658, %v659
      %v661 = vrot.slane %v660, 2
      %v662 = vadd.f32 %v660, %v661
      %v663 = vrot.slane %v662, 1
      %v664 = vadd.f32 %v662, %v663
      %v665 = vadd.f32 %v564, %v588
      %v666 = vrot.slane %v665, 4
      %v667 = vadd.f32 %v665, %v666
      %v668 = vrot.slane %v667, 2
      %v669 = vadd.f32 %v667, %v668
      %v670 = vrot.slane %v669, 1
      %v671 = vadd.f32 %v669, %v670
      %v672 = vadd.f32 %v566, %v590
      %v673 = vrot.slane %v672, 4
      %v674 = vadd.f32 %v672, %v673
      %v675 = vrot.slane %v674, 2
      %v676 = vadd.f32 %v674, %v675
      %v677 = vrot.slane %v676, 1
      %v678 = vadd.f32 %v676, %v677
      %v691 = vcombine.low %v601, %v608
      %v692 = vcombine.low %v615, %v622
      %v693 = vcombine.low %v629, %v636
      %v694 = vcombine.low %v643, %v650
      %v696 = vunpack.c.l.s4 1966171168
      %v697 = vunpack.c.0.s8 %v696
      %v698 = vlaneseq
      %v699 = vshrl.u32 %v698, 7
      %v700 = vsub.s32 %v697, %v699
      %v701 = vrot.slane %v691, %v700
      %v703 = vunpack.c.l.s4 1966171168
      %v704 = vunpack.c.0.s8 %v703
      %v705 = vlaneseq
      %v706 = vshrl.u32 %v705, 7
      %v707 = vsub.s32 %v704, %v706
      %v708 = vrot.slane %v692, %v707
      %v710 = vunpack.c.l.s4 1966171168
      %v711 = vunpack.c.0.s8 %v710
      %v712 = vlaneseq
      %v713 = vshrl.u32 %v712, 7
      %v714 = vsub.s32 %v711, %v713
      %v715 = vrot.slane %v693, %v714
      %v717 = vunpack.c.l.s4 1966171168
      %v718 = vunpack.c.0.s8 %v717
      %v719 = vlaneseq
      %v720 = vshrl.u32 %v719, 7
      %v721 = vsub.s32 %v718, %v720
      %v722 = vrot.slane %v694, %v721
      %v723 = vcombine.low %v701, %v708
      %v724 = vcombine.low %v715, %v722
      %v726 = vunpack.c.l.s4 1966171168
      %v727 = vunpack.c.0.s8 %v726
      %v728 = vlaneseq
      %v729 = vshrl.u32 %v728, 7
      %v730 = vsub.s32 %v727, %v729
      %v731 = vrot.slane %v723, %v730
      %v733 = vunpack.c.l.s4 1966171168
      %v734 = vunpack.c.0.s8 %v733
      %v735 = vlaneseq
      %v736 = vshrl.u32 %v735, 7
      %v737 = vsub.s32 %v734, %v736
      %v738 = vrot.slane %v724, %v737
      %v739 = vcombine.low %v731, %v738
      %v740 = vcombine.low %v657, %v664
      %v741 = vcombine.low %v671, %v678
      %v743 = vunpack.c.l.s4 1966171168
      %v744 = vunpack.c.0.s8 %v743
      %v745 = vlaneseq
      %v746 = vshrl.u32 %v745, 7
      %v747 = vsub.s32 %v744, %v746
      %v748 = vrot.slane %v740, %v747
      %v750 = vunpack.c.l.s4 1966171168
      %v751 = vunpack.c.0.s8 %v750
      %v752 = vlaneseq
      %v753 = vshrl.u32 %v752, 7
      %v754 = vsub.s32 %v751, %v753
      %v755 = vrot.slane %v741, %v754
      %v756 = vcombine.low %v748, %v755
      %v758 = vunpack.c.l.s4 1966171168
      %v759 = vunpack.c.0.s8 %v758
      %v760 = vlaneseq
      %v761 = vshrl.u32 %v760, 7
      %v762 = vsub.s32 %v759, %v761
      %v763 = vrot.slane %v756, %v762
      %v766 = vadd.f32 %v593, %v739
      %v767 = vadd.f32 %v594, %v763
      %768 = vst [vmem:[#allocation3] sm:$0xff] %v766
      %v769 = vlaneseq
      %vm770 = vcmp.ge.s32.totalorder %v769, 0
      %vm771 = vcmp.lt.s32.totalorder %v769, 512
      %vm772 = vmand %vm770, %vm771
      %773 = vst.msk [vmem:[#allocation3 + $0x8] sm:$0xf] %vm772, %v767
      %v774 = vld [vmem:[#allocation4] sm:$0xff]
      %v775 = vld [vmem:[#allocation4 + $0x8] sm:$0xf]
      %v776 = vmul.f32 %v454, %v774
      %v777 = vmul.f32 %v456, %v775
      %v778 = vmul.f32 %v544, %v228
      %v779 = vmul.f32 %v546, %v229
      %v780 = vmul.f32 %v548, %v230
      %v781 = vmul.f32 %v550, %v231
      %v782 = vmul.f32 %v552, %v232
      %v783 = vmul.f32 %v554, %v233
      %v784 = vmul.f32 %v556, %v234
      %v785 = vmul.f32 %v558, %v235
      %v786 = vmul.f32 %v560, %v236
      %v787 = vmul.f32 %v562, %v237
      %v788 = vmul.f32 %v564, %v238
      %v789 = vmul.f32 %v566, %v239
      %v790 = vmul.f32 %v568, %v240
      %v791 = vmul.f32 %v570, %v241
      %v792 = vmul.f32 %v572, %v242
      %v793 = vmul.f32 %v574, %v243
      %v794 = vmul.f32 %v576, %v244
      %v795 = vmul.f32 %v578, %v245
      %v796 = vmul.f32 %v580, %v246
      %v797 = vmul.f32 %v582, %v247
      %v798 = vmul.f32 %v584, %v248
      %v799 = vmul.f32 %v586, %v249
      %v800 = vmul.f32 %v588, %v250
      %v801 = vmul.f32 %v590, %v251
      %v802 = vadd.f32 %v778, %v790
      %v803 = vrot.slane %v802, 4
      %v804 = vadd.f32 %v802, %v803
      %v805 = vrot.slane %v804, 2
      %v806 = vadd.f32 %v804, %v805
      %v807 = vrot.slane %v806, 1
      %v808 = vadd.f32 %v806, %v807
      %v809 = vadd.f32 %v779, %v791
      %v810 = vrot.slane %v809, 4
      %v811 = vadd.f32 %v809, %v810
      %v812 = vrot.slane %v811, 2
      %v813 = vadd.f32 %v811, %v812
      %v814 = vrot.slane %v813, 1
      %v815 = vadd.f32 %v813, %v814
      %v816 = vadd.f32 %v780, %v792
      %v817 = vrot.slane %v816, 4
      %v818 = vadd.f32 %v816, %v817
      %v819 = vrot.slane %v818, 2
      %v820 = vadd.f32 %v818, %v819
      %v821 = vrot.slane %v820, 1
      %v822 = vadd.f32 %v820, %v821
      %v823 = vadd.f32 %v781, %v793
      %v824 = vrot.slane %v823, 4
      %v825 = vadd.f32 %v823, %v824
      %v826 = vrot.slane %v825, 2
      %v827 = vadd.f32 %v825, %v826
      %v828 = vrot.slane %v827, 1
      %v829 = vadd.f32 %v827, %v828
      %v830 = vadd.f32 %v782, %v794
      %v831 = vrot.slane %v830, 4
      %v832 = vadd.f32 %v830, %v831
      %v833 = vrot.slane %v832, 2
      %v834 = vadd.f32 %v832, %v833
      %v835 = vrot.slane %v834, 1
      %v836 = vadd.f32 %v834, %v835
      %v837 = vadd.f32 %v783, %v795
      %v838 = vrot.slane %v837, 4
      %v839 = vadd.f32 %v837, %v838
      %v840 = vrot.slane %v839, 2
      %v841 = vadd.f32 %v839, %v840
      %v842 = vrot.slane %v841, 1
      %v843 = vadd.f32 %v841, %v842
      %v844 = vadd.f32 %v784, %v796
      %v845 = vrot.slane %v844, 4
      %v846 = vadd.f32 %v844, %v845
      %v847 = vrot.slane %v846, 2
      %v848 = vadd.f32 %v846, %v847
      %v849 = vrot.slane %v848, 1
      %v850 = vadd.f32 %v848, %v849
      %v851 = vadd.f32 %v785, %v797
      %v852 = vrot.slane %v851, 4
      %v853 = vadd.f32 %v851, %v852
      %v854 = vrot.slane %v853, 2
      %v855 = vadd.f32 %v853, %v854
      %v856 = vrot.slane %v855, 1
      %v857 = vadd.f32 %v855, %v856
      %v858 = vadd.f32 %v786, %v798
      %v859 = vrot.slane %v858, 4
      %v860 = vadd.f32 %v858, %v859
      %v861 = vrot.slane %v860, 2
      %v862 = vadd.f32 %v860, %v861
      %v863 = vrot.slane %v862, 1
      %v864 = vadd.f32 %v862, %v863
      %v865 = vadd.f32 %v787, %v799
      %v866 = vrot.slane %v865, 4
      %v867 = vadd.f32 %v865, %v866
      %v868 = vrot.slane %v867, 2
      %v869 = vadd.f32 %v867, %v868
      %v870 = vrot.slane %v869, 1
      %v871 = vadd.f32 %v869, %v870
      %v872 = vadd.f32 %v788, %v800
      %v873 = vrot.slane %v872, 4
      %v874 = vadd.f32 %v872, %v873
      %v875 = vrot.slane %v874, 2
      %v876 = vadd.f32 %v874, %v875
      %v877 = vrot.slane %v876, 1
      %v878 = vadd.f32 %v876, %v877
      %v879 = vadd.f32 %v789, %v801
      %v880 = vrot.slane %v879, 4
      %v881 = vadd.f32 %v879, %v880
      %v882 = vrot.slane %v881, 2
      %v883 = vadd.f32 %v881, %v882
      %v884 = vrot.slane %v883, 1
      %v885 = vadd.f32 %v883, %v884
      %v898 = vcombine.low %v808, %v815
      %v899 = vcombine.low %v822, %v829
      %v900 = vcombine.low %v836, %v843
      %v901 = vcombine.low %v850, %v857
      %v903 = vunpack.c.l.s4 1966171168
      %v904 = vunpack.c.0.s8 %v903
      %v905 = vlaneseq
      %v906 = vshrl.u32 %v905, 7
      %v907 = vsub.s32 %v904, %v906
      %v908 = vrot.slane %v898, %v907
      %v910 = vunpack.c.l.s4 1966171168
      %v911 = vunpack.c.0.s8 %v910
      %v912 = vlaneseq
      %v913 = vshrl.u32 %v912, 7
      %v914 = vsub.s32 %v911, %v913
      %v915 = vrot.slane %v899, %v914
      %v917 = vunpack.c.l.s4 1966171168
      %v918 = vunpack.c.0.s8 %v917
      %v919 = vlaneseq
      %v920 = vshrl.u32 %v919, 7
      %v921 = vsub.s32 %v918, %v920
      %v922 = vrot.slane %v900, %v921
      %v924 = vunpack.c.l.s4 1966171168
      %v925 = vunpack.c.0.s8 %v924
      %v926 = vlaneseq
      %v927 = vshrl.u32 %v926, 7
      %v928 = vsub.s32 %v925, %v927
      %v929 = vrot.slane %v901, %v928
      %v930 = vcombine.low %v908, %v915
      %v931 = vcombine.low %v922, %v929
      %v933 = vunpack.c.l.s4 1966171168
      %v934 = vunpack.c.0.s8 %v933
      %v935 = vlaneseq
      %v936 = vshrl.u32 %v935, 7
      %v937 = vsub.s32 %v934, %v936
      %v938 = vrot.slane %v930, %v937
      %v940 = vunpack.c.l.s4 1966171168
      %v941 = vunpack.c.0.s8 %v940
      %v942 = vlaneseq
      %v943 = vshrl.u32 %v942, 7
      %v944 = vsub.s32 %v941, %v943
      %v945 = vrot.slane %v931, %v944
      %v946 = vcombine.low %v938, %v945
      %v947 = vcombine.low %v864, %v871
      %v948 = vcombine.low %v878, %v885
      %v950 = vunpack.c.l.s4 1966171168
      %v951 = vunpack.c.0.s8 %v950
      %v952 = vlaneseq
      %v953 = vshrl.u32 %v952, 7
      %v954 = vsub.s32 %v951, %v953
      %v955 = vrot.slane %v947, %v954
      %v957 = vunpack.c.l.s4 1966171168
      %v958 = vunpack.c.0.s8 %v957
      %v959 = vlaneseq
      %v960 = vshrl.u32 %v959, 7
      %v961 = vsub.s32 %v958, %v960
      %v962 = vrot.slane %v948, %v961
      %v963 = vcombine.low %v955, %v962
      %v965 = vunpack.c.l.s4 1966171168
      %v966 = vunpack.c.0.s8 %v965
      %v967 = vlaneseq
      %v968 = vshrl.u32 %v967, 7
      %v969 = vsub.s32 %v966, %v968
      %v970 = vrot.slane %v963, %v969
      %v973 = vadd.f32 %v776, %v946
      %v974 = vadd.f32 %v777, %v970
      %975 = vst [vmem:[#allocation4] sm:$0xff] %v973
      %976 = vst.msk [vmem:[#allocation4 + $0x8] sm:$0xf] %vm772, %v974
      %v977 = vld [vmem:[#allocation5] sm:$0xff]
      %v978 = vld [vmem:[#allocation5 + $0x8] sm:$0xf]
      %v979 = vmul.f32 %v454, %v977
      %v980 = vmul.f32 %v456, %v978
      %v981 = vmul.f32 %v778, %v228
      %v982 = vmul.f32 %v779, %v229
      %v983 = vmul.f32 %v780, %v230
      %v984 = vmul.f32 %v781, %v231
      %v985 = vmul.f32 %v782, %v232
      %v986 = vmul.f32 %v783, %v233
      %v987 = vmul.f32 %v784, %v234
      %v988 = vmul.f32 %v785, %v235
      %v989 = vmul.f32 %v786, %v236
      %v990 = vmul.f32 %v787, %v237
      %v991 = vmul.f32 %v788, %v238
      %v992 = vmul.f32 %v789, %v239
      %v993 = vmul.f32 %v790, %v240
      %v994 = vmul.f32 %v791, %v241
      %v995 = vmul.f32 %v792, %v242
      %v996 = vmul.f32 %v793, %v243
      %v997 = vmul.f32 %v794, %v244
      %v998 = vmul.f32 %v795, %v245
      %v999 = vmul.f32 %v796, %v246
      %v1000 = vmul.f32 %v797, %v247
      %v1001 = vmul.f32 %v798, %v248
      %v1002 = vmul.f32 %v799, %v249
      %v1003 = vmul.f32 %v800, %v250
      %v1004 = vmul.f32 %v801, %v251
      %v1005 = vadd.f32 %v981, %v993
      %v1006 = vrot.slane %v1005, 4
      %v1007 = vadd.f32 %v1005, %v1006
      %v1008 = vrot.slane %v1007, 2
      %v1009 = vadd.f32 %v1007, %v1008
      %v1010 = vrot.slane %v1009, 1
      %v1011 = vadd.f32 %v1009, %v1010
      %v1012 = vadd.f32 %v982, %v994
      %v1013 = vrot.slane %v1012, 4
      %v1014 = vadd.f32 %v1012, %v1013
      %v1015 = vrot.slane %v1014, 2
      %v1016 = vadd.f32 %v1014, %v1015
      %v1017 = vrot.slane %v1016, 1
      %v1018 = vadd.f32 %v1016, %v1017
      %v1019 = vadd.f32 %v983, %v995
      %v1020 = vrot.slane %v1019, 4
      %v1021 = vadd.f32 %v1019, %v1020
      %v1022 = vrot.slane %v1021, 2
      %v1023 = vadd.f32 %v1021, %v1022
      %v1024 = vrot.slane %v1023, 1
      %v1025 = vadd.f32 %v1023, %v1024
      %v1026 = vadd.f32 %v984, %v996
      %v1027 = vrot.slane %v1026, 4
      %v1028 = vadd.f32 %v1026, %v1027
      %v1029 = vrot.slane %v1028, 2
      %v1030 = vadd.f32 %v1028, %v1029
      %v1031 = vrot.slane %v1030, 1
      %v1032 = vadd.f32 %v1030, %v1031
      %v1033 = vadd.f32 %v985, %v997
      %v1034 = vrot.slane %v1033, 4
      %v1035 = vadd.f32 %v1033, %v1034
      %v1036 = vrot.slane %v1035, 2
      %v1037 = vadd.f32 %v1035, %v1036
      %v1038 = vrot.slane %v1037, 1
      %v1039 = vadd.f32 %v1037, %v1038
      %v1040 = vadd.f32 %v986, %v998
      %v1041 = vrot.slane %v1040, 4
      %v1042 = vadd.f32 %v1040, %v1041
      %v1043 = vrot.slane %v1042, 2
      %v1044 = vadd.f32 %v1042, %v1043
      %v1045 = vrot.slane %v1044, 1
      %v1046 = vadd.f32 %v1044, %v1045
      %v1047 = vadd.f32 %v987, %v999
      %v1048 = vrot.slane %v1047, 4
      %v1049 = vadd.f32 %v1047, %v1048
      %v1050 = vrot.slane %v1049, 2
      %v1051 = vadd.f32 %v1049, %v1050
      %v1052 = vrot.slane %v1051, 1
      %v1053 = vadd.f32 %v1051, %v1052
      %v1054 = vadd.f32 %v988, %v1000
      %v1055 = vrot.slane %v1054, 4
      %v1056 = vadd.f32 %v1054, %v1055
      %v1057 = vrot.slane %v1056, 2
      %v1058 = vadd.f32 %v1056, %v1057
      %v1059 = vrot.slane %v1058, 1
      %v1060 = vadd.f32 %v1058, %v1059
      %v1061 = vadd.f32 %v989, %v1001
      %v1062 = vrot.slane %v1061, 4
      %v1063 = vadd.f32 %v1061, %v1062
      %v1064 = vrot.slane %v1063, 2
      %v1065 = vadd.f32 %v1063, %v1064
      %v1066 = vrot.slane %v1065, 1
      %v1067 = vadd.f32 %v1065, %v1066
      %v1068 = vadd.f32 %v990, %v1002
      %v1069 = vrot.slane %v1068, 4
      %v1070 = vadd.f32 %v1068, %v1069
      %v1071 = vrot.slane %v1070, 2
      %v1072 = vadd.f32 %v1070, %v1071
      %v1073 = vrot.slane %v1072, 1
      %v1074 = vadd.f32 %v1072, %v1073
      %v1075 = vadd.f32 %v991, %v1003
      %v1076 = vrot.slane %v1075, 4
      %v1077 = vadd.f32 %v1075, %v1076
      %v1078 = vrot.slane %v1077, 2
      %v1079 = vadd.f32 %v1077, %v1078
      %v1080 = vrot.slane %v1079, 1
      %v1081 = vadd.f32 %v1079, %v1080
      %v1082 = vadd.f32 %v992, %v1004
      %v1083 = vrot.slane %v1082, 4
      %v1084 = vadd.f32 %v1082, %v1083
      %v1085 = vrot.slane %v1084, 2
      %v1086 = vadd.f32 %v1084, %v1085
      %v1087 = vrot.slane %v1086, 1
      %v1088 = vadd.f32 %v1086, %v1087
      %v1101 = vcombine.low %v1011, %v1018
      %v1102 = vcombine.low %v1025, %v1032
      %v1103 = vcombine.low %v1039, %v1046
      %v1104 = vcombine.low %v1053, %v1060
      %v1106 = vunpack.c.l.s4 1966171168
      %v1107 = vunpack.c.0.s8 %v1106
      %v1108 = vlaneseq
      %v1109 = vshrl.u32 %v1108, 7
      %v1110 = vsub.s32 %v1107, %v1109
      %v1111 = vrot.slane %v1101, %v1110
      %v1113 = vunpack.c.l.s4 1966171168
      %v1114 = vunpack.c.0.s8 %v1113
      %v1115 = vlaneseq
      %v1116 = vshrl.u32 %v1115, 7
      %v1117 = vsub.s32 %v1114, %v1116
      %v1118 = vrot.slane %v1102, %v1117
      %v1120 = vunpack.c.l.s4 1966171168
      %v1121 = vunpack.c.0.s8 %v1120
      %v1122 = vlaneseq
      %v1123 = vshrl.u32 %v1122, 7
      %v1124 = vsub.s32 %v1121, %v1123
      %v1125 = vrot.slane %v1103, %v1124
      %v1127 = vunpack.c.l.s4 1966171168
      %v1128 = vunpack.c.0.s8 %v1127
      %v1129 = vlaneseq
      %v1130 = vshrl.u32 %v1129, 7
      %v1131 = vsub.s32 %v1128, %v1130
      %v1132 = vrot.slane %v1104, %v1131
      %v1133 = vcombine.low %v1111, %v1118
      %v1134 = vcombine.low %v1125, %v1132
      %v1136 = vunpack.c.l.s4 1966171168
      %v1137 = vunpack.c.0.s8 %v1136
      %v1138 = vlaneseq
      %v1139 = vshrl.u32 %v1138, 7
      %v1140 = vsub.s32 %v1137, %v1139
      %v1141 = vrot.slane %v1133, %v1140
      %v1143 = vunpack.c.l.s4 1966171168
      %v1144 = vunpack.c.0.s8 %v1143
      %v1145 = vlaneseq
      %v1146 = vshrl.u32 %v1145, 7
      %v1147 = vsub.s32 %v1144, %v1146
      %v1148 = vrot.slane %v1134, %v1147
      %v1149 = vcombine.low %v1141, %v1148
      %v1150 = vcombine.low %v1067, %v1074
      %v1151 = vcombine.low %v1081, %v1088
      %v1153 = vunpack.c.l.s4 1966171168
      %v1154 = vunpack.c.0.s8 %v1153
      %v1155 = vlaneseq
      %v1156 = vshrl.u32 %v1155, 7
      %v1157 = vsub.s32 %v1154, %v1156
      %v1158 = vrot.slane %v1150, %v1157
      %v1160 = vunpack.c.l.s4 1966171168
      %v1161 = vunpack.c.0.s8 %v1160
      %v1162 = vlaneseq
      %v1163 = vshrl.u32 %v1162, 7
      %v1164 = vsub.s32 %v1161, %v1163
      %v1165 = vrot.slane %v1151, %v1164
      %v1166 = vcombine.low %v1158, %v1165
      %v1168 = vunpack.c.l.s4 1966171168
      %v1169 = vunpack.c.0.s8 %v1168
      %v1170 = vlaneseq
      %v1171 = vshrl.u32 %v1170, 7
      %v1172 = vsub.s32 %v1169, %v1171
      %v1173 = vrot.slane %v1166, %v1172
      %v1176 = vadd.f32 %v979, %v1149
      %v1177 = vadd.f32 %v980, %v1173
      %1178 = vst [vmem:[#allocation5] sm:$0xff] %v1176
      %1179 = vst.msk [vmem:[#allocation5 + $0x8] sm:$0xf] %vm772, %v1177
      %1180 = vst [vmem:[#allocation2] sm:$0xff] %v449
      %1181 = vst.msk [vmem:[#allocation2 + $0x8] sm:$0xf] %vm772, %v450
      // Predicated region
      $region33: #{rawnet3_forward.41} parent=27 // pred_check
        %p1182 = pneg %p212
      $region34: #{rawnet3_forward.41} parent=27 // pred_check_branch
        %1184 = sbr.rel (%p1182) target = $region36
      $region35: #{rawnet3_forward.41} parent=27 // pred_region
        %v1185 = vld [vmem:[#allocation3] sm:$0xff]
        %v1186 = vld [vmem:[#allocation3 + $0x8] sm:$0xf]
        %v1187 = vrcp.pop %v1185
        %v1188 = vmul.f32 1.0, %v1187
        %v1189 = vrcp.pop %v1186
        %v1190 = vmul.f32 1.0, %v1189
        %v1191 = vld [vmem:[#allocation4] sm:$0xff]
        %v1192 = vld [vmem:[#allocation4 + $0x8] sm:$0xf]
        %v1193 = vmul.f32 %v1191, %v1188
        %v1194 = vmul.f32 %v1192, %v1190
        %v1195 = vld [vmem:[#allocation5] sm:$0xff]
        %v1196 = vld [vmem:[#allocation5 + $0x8] sm:$0xf]
        %v1197 = vmul.f32 %v1195, %v1188
        %v1198 = vmul.f32 %v1196, %v1190
        %v1199 = vmul.f32 %v1193, %v1193
        %v1200 = vmul.f32 %v1194, %v1194
        %v1201 = vsub.f32 %v1197, %v1199
        %v1202 = vsub.f32 %v1198, %v1200
        %v1203 = vmax.f32 %v1201, 0.0001
        %v1204 = vmax.f32 %v1202, 0.0001
        %v1205 = vmin.f32 %v1203, 10000.0
        %v1206 = vmin.f32 %v1204, 10000.0
        %v1207 = vrsqrt.pop %v1205
        %v1208 = vmul.f32 %v1205, %v1207
        %vm1209 = vcmp.eq.f32.partialorder %v1205, inf
        %v1210 = vsel %vm1209, %v1205, %v1208
        %vm1211 = vcmp.eq.f32.partialorder %v1205, 0.0
        %v1212 = vand.u32 %v1205, 2147483648
        %v1213 = vsel %vm1211, %v1212, %v1210
        %v1214 = vrsqrt.pop %v1206
        %v1215 = vmul.f32 %v1206, %v1214
        %vm1216 = vcmp.eq.f32.partialorder %v1206, inf
        %v1217 = vsel %vm1216, %v1206, %v1215
        %vm1218 = vcmp.eq.f32.partialorder %v1206, 0.0
        %v1219 = vand.u32 %v1206, 2147483648
        %v1220 = vsel %vm1218, %v1219, %v1217
        %1221 = vst [vmem:[%s211] sm:$0xff] %v1193
        %1222 = vst.msk [vmem:[%s211 + $0x8] sm:$0xf] %vm772, %v1194
        %1223 = vst [vmem:[%s211 + $0xc] sm:$0xff] %v1213
        %1224 = vst.msk [vmem:[%s211 + $0x14] sm:$0xf] %vm772, %v1220
      $region36: #{rawnet3_forward.41} parent=27 // pred_fallthru
        _
      %p1225 = scmp.lt.s32.totalorder %s17, 1
      %s1226 = scalar_select %p1225, %s17, 1
      %s1227 = smul.addr %s1226, 24
      %s1228 = scalar_lea.vmem %s2, %s1227
      // Predicated region
      $region37: #{rawnet3_forward.41} parent=27 // pred_check
        %p1229 = pneg %p99
      $region38: #{rawnet3_forward.41} parent=27 // pred_check_branch
        %1231 = sbr.rel (%p1229) target = $region40
      $region39: #{rawnet3_forward.41} parent=27 // pred_region
        _
      $region40: #{rawnet3_forward.41} parent=27 // pred_fallthru
        _
    $region28: #{rawnet3_forward.41} parent=5 // pred_fallthru
      _
    %p1232 = scmp.le.s32.totalorder 2, %s8
    // Predicated region
    $region41: #{rawnet3_forward.41} parent=5 // pred_check
      %p1233 = pneg %p1232
    $region42: #{rawnet3_forward.41} parent=5 // pred_check_branch
      %1235 = sbr.rel (%p1233) target = $region44
    $region43: #{rawnet3_forward.41} parent=5 // pred_region
      %s1236 = ssub.s32 %s8, 2
      // Predicated region
      $region45: #{rawnet3_forward.41} parent=43 // pred_check
        %p1237 = pneg %p105
      $region46: #{rawnet3_forward.41} parent=43 // pred_check_branch
        %1239 = sbr.rel (%p1237) target = $region48
      $region47: #{rawnet3_forward.41} parent=43 // pred_region
        %p1240 = scmp.lt.s32.totalorder %s19, 1
        %s1241 = scalar_select %p1240, %s19, 1
        %s1242 = smul.addr %s1241, 24
        %s1243 = scalar_lea.vmem %s2, %s1242
      $region48: #{rawnet3_forward.41} parent=43 // pred_fallthru
        _
    $region44: #{rawnet3_forward.41} parent=5 // pred_fallthru
      _
  $region6: #{rawnet3_forward.41} parent=0 // loop_footer
    %s12 = sadd.s32 1, %s8
  $region7: #{rawnet3_forward.41} parent=0 // loop_footer_branch
    %7 = sbr.rel target = $region3
  $region8: #{rawnet3_forward.41} parent=0 // loop_exit
    _

</llo_original>
